<compile_context>
chip_gen: v7x
topology: tpu7x:2x2x1
jax: 0.10.0
libtpu: 0.0.40
codegen_flags: <defaults>
</compile_context>

<pallas_src>
import jax
import jax.numpy as jnp
from jax.experimental import pallas as pl
from jax.experimental.pallas import tpu as pltpu

# ----------------------------- config ---------------------------------------
B, S, H = 2, 8, 32          # batch, seq, hidden
NUM_HEADS = 4
HEAD_DIM = H // NUM_HEADS
INTERMEDIATE = 64
NUM_LAYERS = 2
VOCAB = 64
MAX_POS = 16
TYPE_VOCAB = 2
NUM_CLASSES = 2             # start / end logits
LN_EPS = 1e-12
BS = B * S
G = NUM_HEADS * B           # folded (head, batch) leading dim, head-major

# embedding-table row layout (packed at init)
POS_ROW = VOCAB             # rows [VOCAB, VOCAB+S)  : positional embeddings
LNG_ROW = VOCAB + S         # embedding LayerNorm gamma
LNB_ROW = VOCAB + S + 1     # embedding LayerNorm beta
TYPE0_ROW = VOCAB + S + 2
TYPE1_ROW = VOCAB + S + 3
EMB_ROWS = VOCAB + S + 4

# per-layer vector slab row layout ([L, 8, 128])
BO_ROW, LN1G_ROW, LN1B_ROW, B1_ROW, B2_ROW, LN2G_ROW, LN2B_ROW = range(7)

VMEM = pl.BlockSpec(memory_space=pltpu.MemorySpace.VMEM)


# ----------------------------- kernel ----------------------------------------
def _layernorm(x, g, b):
    mu = jnp.mean(x, axis=-1, keepdims=True)
    var = jnp.mean((x - mu) ** 2, axis=-1, keepdims=True)
    return (x - mu) * jax.lax.rsqrt(var + LN_EPS) * g + b


def bert_qa_kernel(int_ref, tgt_ref, bias_ref, emb_ref,
                   wqkv_ref, bqkv_ref, wo_ref, lvecs_ref,
                   w1_ref, w2_ref, qaw_ref, qab_ref, out_ref):
    f32 = jnp.float32

    # ---------------- embeddings (gather via one-hot matmul) -----------------
    ids = int_ref[:, 0:1]                                        # [BS, 1] int32
    seg = int_ref[:, 1:2]                                        # [BS, 1] int32
    vocab_iota = jax.lax.broadcasted_iota(jnp.int32, (BS, VOCAB), 1)
    onehot_w = (vocab_iota == ids).astype(f32)                   # [BS, VOCAB]
    word_e = jnp.dot(onehot_w, emb_ref[0:VOCAB, :],
                     preferred_element_type=f32)                 # [BS, H]
    type_e = jnp.where(seg == 0,
                       emb_ref[TYPE0_ROW:TYPE0_ROW + 1, :],
                       emb_ref[TYPE1_ROW:TYPE1_ROW + 1, :])      # [BS, H]
    pos_e = emb_ref[POS_ROW:POS_ROW + S, :]                      # [S, H]
    emb3 = (word_e + type_e).reshape(B, S, H) + pos_e            # broadcast over B
    x = _layernorm(emb3.reshape(BS, H),
                   emb_ref[LNG_ROW:LNG_ROW + 1, :],
                   emb_ref[LNB_ROW:LNB_ROW + 1, :])              # [BS, H]

    # attention-mask bias, tiled head-major once (constant across layers)
    bias_g = jnp.concatenate([bias_ref[...]] * NUM_HEADS, axis=0)  # [G, 1, S]

    # ---------------- encoder layers (statically unrolled) -------------------
    for l in range(NUM_LAYERS):
        lv = lvecs_ref[l]                    # [8, 128] per-layer vectors
        wqkv_l = wqkv_ref[l]                 # [G, H, 3*HD]  (Q prescaled)
        bqkv_l = bqkv_ref[l]                 # [G, 1, 3*HD]
        wo_l = wo_ref[l]                     # [G, HD, H]

        x3 = x.reshape(B, S, H)
        x_rep = jnp.concatenate([x3] * NUM_HEADS, axis=0)        # [G, S, H]

        # per-head fused QKV as one batched einsum (heads pre-split at pack time)
        qkv = jnp.einsum('gsh,ghe->gse', x_rep, wqkv_l,
                         preferred_element_type=f32) + bqkv_l    # [G, S, 3*HD]
        q = qkv[:, :, 0:HEAD_DIM]
        k = qkv[:, :, HEAD_DIM:2 * HEAD_DIM]
        v = qkv[:, :, 2 * HEAD_DIM:3 * HEAD_DIM]

        scores = jnp.einsum('gqd,gkd->gqk', q, k,
                            preferred_element_type=f32) + bias_g  # [G, S, S]
        m = jnp.max(scores, axis=-1, keepdims=True)
        p = jnp.exp(scores - m)
        p = p * pl.reciprocal(jnp.sum(p, axis=-1, keepdims=True), approx=True)
        ctx = jnp.einsum('gqk,gkd->gqd', p, v,
                         preferred_element_type=f32)              # [G, S, HD]

        # per-head output projection; sum heads (leading-dim slices only)
        og = jnp.einsum('gsd,gdh->gsh', ctx, wo_l,
                        preferred_element_type=f32)               # [G, S, H]
        attn3 = og[0:B]
        for n in range(1, NUM_HEADS):
            attn3 = attn3 + og[n * B:(n + 1) * B]
        attn = attn3.reshape(BS, H) + lv[BO_ROW:BO_ROW + 1, 0:H]

        x1 = _layernorm(x + attn,
                        lv[LN1G_ROW:LN1G_ROW + 1, 0:H],
                        lv[LN1B_ROW:LN1B_ROW + 1, 0:H])
        h1 = jax.nn.gelu(
            jnp.dot(x1, w1_ref[l], preferred_element_type=f32)
            + lv[B1_ROW:B1_ROW + 1, 0:INTERMEDIATE],
            approximate=True)
        h2 = jnp.dot(h1, w2_ref[l], preferred_element_type=f32) \
            + lv[B2_ROW:B2_ROW + 1, 0:H]
        x = _layernorm(x1 + h2,
                       lv[LN2G_ROW:LN2G_ROW + 1, 0:H],
                       lv[LN2B_ROW:LN2B_ROW + 1, 0:H])

    # ---------------- QA head (MXU) + cross-entropy loss ----------------------
    # TODO(synk): nn.Dropout(0.5) is identity in eval mode; training-mode
    # dropout (stateful PRNG masking) is not implemented here.
    x3f = x.reshape(B, S, H)
    logits = jnp.einsum('bch,bsh->bcs', qaw_ref[...], x3f,
                        preferred_element_type=f32) + qab_ref[...]   # [B, 2, S]

    mx = jnp.max(logits, axis=-1, keepdims=True)
    lse = jnp.log(jnp.sum(jnp.exp(logits - mx), axis=-1, keepdims=True)) + mx
    pos_iota = jax.lax.broadcasted_iota(jnp.int32, (B, NUM_CLASSES, S), 2)
    onehot_t = (pos_iota == tgt_ref[...]).astype(f32)                 # [B, 2, S]
    per = -jnp.sum(onehot_t * (logits - lse), axis=-1, keepdims=True)  # [B, 2, 1]
    loss = jnp.sum(jnp.sum(per, axis=1, keepdims=True), axis=0, keepdims=True)
    loss = loss * (1.0 / (2.0 * B))                                    # [1, 1, 1]

    # ---- single lane-dense output slab: rows 0/1 logits, row 2 loss ----------
    pad = jnp.zeros((B, NUM_CLASSES, 128 - S), f32)
    logits_pad = jnp.concatenate([logits, pad], axis=-1)               # [B, 2, 128]
    loss_row = loss + jnp.zeros((B, 1, 128), f32)                      # [B, 1, 128]
    filler = jnp.zeros((B, 8 - NUM_CLASSES - 1, 128), f32)             # [B, 5, 128]
    out_ref[...] = jnp.concatenate([logits_pad, loss_row, filler], axis=1)


# ----------------------------- parameters -------------------------------------
def init_params(key):
    keys = iter(jax.random.split(key, 64))
    nrm = lambda shape: (jax.random.normal(next(keys), shape, jnp.float32) * 0.02)
    params = {
        'word_emb': nrm((VOCAB, H)),
        'pos_emb': nrm((MAX_POS, H)),
        'type_emb': nrm((TYPE_VOCAB, H)),
        'emb_ln_g': jnp.ones((1, H), jnp.float32),
        'emb_ln_b': jnp.zeros((1, H), jnp.float32),
        'layers': [],
        'qa_w': nrm((NUM_CLASSES, H)),        # PyTorch nn.Linear layout
        'qa_b': jnp.zeros((1, NUM_CLASSES), jnp.float32),
    }
    for _ in range(NUM_LAYERS):
        params['layers'].append({
            'wq': nrm((H, H)), 'bq': jnp.zeros((1, H), jnp.float32),
            'wk': nrm((H, H)), 'bk': jnp.zeros((1, H), jnp.float32),
            'wv': nrm((H, H)), 'bv': jnp.zeros((1, H), jnp.float32),
            'wo': nrm((H, H)), 'bo': jnp.zeros((1, H), jnp.float32),
            'ln1_g': jnp.ones((1, H), jnp.float32),
            'ln1_b': jnp.zeros((1, H), jnp.float32),
            'w1': nrm((H, INTERMEDIATE)),
            'b1': jnp.zeros((1, INTERMEDIATE), jnp.float32),
            'w2': nrm((INTERMEDIATE, H)),
            'b2': jnp.zeros((1, H), jnp.float32),
            'ln2_g': jnp.ones((1, H), jnp.float32),
            'ln2_b': jnp.zeros((1, H), jnp.float32),
        })
    return params


def pack_params(params):
    """Pack weights ONCE at init (hoisted out of the per-call path).

    Heads are pre-split and replicated over batch (leading dim G = NH*B,
    head-major), the 1/sqrt(HEAD_DIM) scale is folded into the Q weights/bias,
    and all per-layer bias/LN vectors go into one [L, 8, 128] slab.
    """
    Ls = params['layers']
    scale = 1.0 / float(HEAD_DIM) ** 0.5
    wqkv_rep, bqkv_rep, wo_rep, lvecs = [], [], [], []
    for lp in Ls:
        per_w, per_b, per_wo = [], [], []
        for n in range(NUM_HEADS):
            sl = slice(n * HEAD_DIM, (n + 1) * HEAD_DIM)
            per_w.append(jnp.concatenate(
                [lp['wq'][:, sl] * scale, lp['wk'][:, sl], lp['wv'][:, sl]],
                axis=1))                                       # [H, 3*HD]
            per_b.append(jnp.concatenate(
                [lp['bq'][:, sl] * scale, lp['bk'][:, sl], lp['bv'][:, sl]],
                axis=1))                                       # [1, 3*HD]
            per_wo.append(lp['wo'][sl, :])                     # [HD, H]
        wqkv_rep.append(jnp.stack([per_w[g // B] for g in range(G)], axis=0))
        bqkv_rep.append(jnp.stack([per_b[g // B] for g in range(G)], axis=0))
        wo_rep.append(jnp.stack([per_wo[g // B] for g in range(G)], axis=0))

        rows = jnp.zeros((8, 128), jnp.float32)
        rows = rows.at[BO_ROW, :H].set(lp['bo'][0])
        rows = rows.at[LN1G_ROW, :H].set(lp['ln1_g'][0])
        rows = rows.at[LN1B_ROW, :H].set(lp['ln1_b'][0])
        rows = rows.at[B1_ROW, :INTERMEDIATE].set(lp['b1'][0])
        rows = rows.at[B2_ROW, :H].set(lp['b2'][0])
        rows = rows.at[LN2G_ROW, :H].set(lp['ln2_g'][0])
        rows = rows.at[LN2B_ROW, :H].set(lp['ln2_b'][0])
        lvecs.append(rows)

    emb_tab = jnp.concatenate(
        [params['word_emb'], params['pos_emb'][:S],
         params['emb_ln_g'], params['emb_ln_b'], params['type_emb']], axis=0)

    return {
        'wqkv': jnp.stack(wqkv_rep, axis=0),     # [L, G, H, 3*HD]
        'bqkv': jnp.stack(bqkv_rep, axis=0),     # [L, G, 1, 3*HD]
        'wo': jnp.stack(wo_rep, axis=0),         # [L, G, HD, H]
        'lvecs': jnp.stack(lvecs, axis=0),       # [L, 8, 128]
        'w1': jnp.stack([lp['w1'] for lp in Ls], axis=0),
        'w2': jnp.stack([lp['w2'] for lp in Ls], axis=0),
        'emb_tab': emb_tab,                      # [EMB_ROWS, H]
        'qaw': jnp.broadcast_to(params['qa_w'][None], (B, NUM_CLASSES, H)),
        'qab': params['qa_b'].reshape(1, NUM_CLASSES, 1),
    }


# ----------------------------- forward (single fused call) --------------------
@jax.jit
def bert_qa_forward(packed, input_ids, input_mask, segment_ids,
                    start_positions, end_positions):
    int_in = jnp.stack([input_ids.reshape(BS), segment_ids.reshape(BS)],
                       axis=1).astype(jnp.int32)                     # [BS, 2]
    targets = jnp.stack([start_positions, end_positions],
                        axis=1).astype(jnp.int32).reshape(B, NUM_CLASSES, 1)
    bias = (1.0 - input_mask.astype(jnp.float32))[:, None, :] * -1e9  # [B, 1, S]

    out = pl.pallas_call(
        bert_qa_kernel,
        out_shape=jax.ShapeDtypeStruct((B, 8, 128), jnp.float32),
        in_specs=[VMEM] * 12,
        out_specs=VMEM,
    )(int_in, targets, bias, packed['emb_tab'],
      packed['wqkv'], packed['bqkv'], packed['wo'], packed['lvecs'],
      packed['w1'], packed['w2'], packed['qaw'], packed['qab'])

    start_logits = out[:, 0, :S]
    end_logits = out[:, 1, :S]
    loss = out[0, NUM_CLASSES, 0]
    return loss, start_logits, end_logits


# --------------------- pure-JAX reference (sanity check) ----------------------
def _ref_forward(params, input_ids, input_mask, segment_ids, start_pos, end_pos):
    def ln(x, g, b):
        mu = jnp.mean(x, -1, keepdims=True)
        var = jnp.mean((x - mu) ** 2, -1, keepdims=True)
        return (x - mu) * jax.lax.rsqrt(var + LN_EPS) * g + b

    pos_ids = jnp.arange(S, dtype=jnp.int32)
    x = (params['word_emb'][input_ids] + params['pos_emb'][pos_ids][None]
         + params['type_emb'][segment_ids])
    x = ln(x, params['emb_ln_g'], params['emb_ln_b'])
    mask = input_mask.astype(jnp.float32)
    bias = (1.0 - mask)[:, None, :] * -1e9
    for lp in params['layers']:
        q = x @ lp['wq'] + lp['bq']
        k = x @ lp['wk'] + lp['bk']
        v = x @ lp['wv'] + lp['bv']
        attn = jnp.zeros_like(x)
        for h in range(NUM_HEADS):
            sl = slice(h * HEAD_DIM, (h + 1) * HEAD_DIM)
            sc = jnp.einsum('bqd,bkd->bqk', q[..., sl], k[..., sl])
            sc = sc / float(HEAD_DIM) ** 0.5 + bias
            p = jax.nn.softmax(sc, axis=-1)
            ctx = jnp.einsum('bqk,bkd->bqd', p, v[..., sl])
            attn = attn + ctx @ lp['wo'][sl, :]
        x1 = ln(x + attn + lp['bo'], lp['ln1_g'], lp['ln1_b'])
        h1 = jax.nn.gelu(x1 @ lp['w1'] + lp['b1'], approximate=True)
        x = ln(x1 + h1 @ lp['w2'] + lp['b2'], lp['ln2_g'], lp['ln2_b'])
    logits = jnp.einsum('bsh,ch->bsc', x, params['qa_w']) + params['qa_b'][0]
    start_l, end_l = logits[..., 0], logits[..., 1]

    def ce(lg, tgt):
        lp_ = jax.nn.log_softmax(lg, axis=-1)
        return -jnp.mean(jnp.take_along_axis(lp_, tgt[:, None], axis=-1))

    loss = 0.5 * (ce(start_l, start_pos) + ce(end_l, end_pos))
    return loss, start_l, end_l


# ----------------------------- main --------------------------------------------
if __name__ == "__main__":
    key = jax.random.PRNGKey(0)
    kp, k1, k2, k3, k4 = jax.random.split(key, 5)
    params = init_params(kp)
    packed = pack_params(params)        # packed ONCE, outside the per-call path

    input_ids = jax.random.randint(k1, (B, S), 0, VOCAB, dtype=jnp.int32)
    segment_ids = jnp.concatenate(
        [jnp.zeros((B, S // 2), jnp.int32), jnp.ones((B, S // 2), jnp.int32)],
        axis=1)
    input_mask = jnp.ones((B, S), jnp.int32).at[1, S - 2:].set(0)
    start_positions = jax.random.randint(k3, (B,), 0, S, dtype=jnp.int32)
    end_positions = jax.random.randint(k4, (B,), 0, S, dtype=jnp.int32)

    loss, start_logits, end_logits = bert_qa_forward(
        packed, input_ids, input_mask, segment_ids,
        start_positions, end_positions)
    jax.block_until_ready((loss, start_logits, end_logits))

    rl, rs, re = _ref_forward(params, input_ids, input_mask, segment_ids,
                              start_positions, end_positions)
    assert jnp.allclose(start_logits, rs, atol=1e-3, rtol=1e-3)
    assert jnp.allclose(end_logits, re, atol=1e-3, rtol=1e-3)
    assert jnp.allclose(loss, rl, atol=1e-3, rtol=1e-3)

    print("KERNEL_OK")
</pallas_src>

<mosaic_0001>
module attributes {stable_mosaic.version = 11 : i64} {
  func.func @bert_qa_kernel(%arg0: memref<16x2xi32, #tpu.memory_space<vmem>>, %arg1: memref<2x2x1xi32, #tpu.memory_space<vmem>>, %arg2: memref<2x1x8xf32, #tpu.memory_space<vmem>>, %arg3: memref<76x32xf32, #tpu.memory_space<vmem>>, %arg4: memref<2x8x32x24xf32, #tpu.memory_space<vmem>>, %arg5: memref<2x8x1x24xf32, #tpu.memory_space<vmem>>, %arg6: memref<2x8x8x32xf32, #tpu.memory_space<vmem>>, %arg7: memref<2x8x128xf32, #tpu.memory_space<vmem>>, %arg8: memref<2x32x64xf32, #tpu.memory_space<vmem>>, %arg9: memref<2x64x32xf32, #tpu.memory_space<vmem>>, %arg10: memref<2x2x32xf32, #tpu.memory_space<vmem>>, %arg11: memref<1x2x1xf32, #tpu.memory_space<vmem>>, %arg12: memref<2x8x128xf32, #tpu.memory_space<vmem>>) attributes {dimension_semantics = [], scalar_prefetch = 0 : i64, scratch_operands = 0 : i64, tpu.core_type = #tpu.core_type<tc>} {
    %c0 = arith.constant 0 : index
    %c0_0 = arith.constant 0 : index
    %0 = vector.load %arg0[%c0, %c0_0] : memref<16x2xi32, #tpu.memory_space<vmem>>, vector<16x1xi32>
    %c0_1 = arith.constant 0 : index
    %c1 = arith.constant 1 : index
    %1 = vector.load %arg0[%c0_1, %c1] : memref<16x2xi32, #tpu.memory_space<vmem>>, vector<16x1xi32>
    %2 = tpu.iota {dimensions = array<i32: 1>} : vector<16x64xi32>
    %3 = vector.broadcast %0 : vector<16x1xi32> to vector<16x64xi32>
    %4 = arith.cmpi eq, %2, %3 : vector<16x64xi32>
    %5 = arith.extui %4 : vector<16x64xi1> to vector<16x64xi32>
    %6 = arith.sitofp %5 : vector<16x64xi32> to vector<16x64xf32>
    %c0_2 = arith.constant 0 : index
    %c0_3 = arith.constant 0 : index
    %7 = vector.load %arg3[%c0_2, %c0_3] : memref<76x32xf32, #tpu.memory_space<vmem>>, vector<64x32xf32>
    %cst = arith.constant dense<0.000000e+00> : vector<16x32xf32>
    %8 = tpu.matmul %6, %7, %cst {dimension_numbers = #tpu.dot_dimension_numbers<[1], [0], [0], [1], [0, 0, 1, 1], [], []>} : vector<16x64xf32>, vector<64x32xf32>, vector<16x32xf32> -> vector<16x32xf32>
    %c0_i32 = arith.constant 0 : i32
    %9 = vector.broadcast %c0_i32 : i32 to vector<16x1xi32>
    %10 = arith.cmpi eq, %1, %9 : vector<16x1xi32>
    %c74 = arith.constant 74 : index
    %c0_4 = arith.constant 0 : index
    %11 = vector.load %arg3[%c74, %c0_4] : memref<76x32xf32, #tpu.memory_space<vmem>>, vector<1x32xf32>
    %c75 = arith.constant 75 : index
    %c0_5 = arith.constant 0 : index
    %12 = vector.load %arg3[%c75, %c0_5] : memref<76x32xf32, #tpu.memory_space<vmem>>, vector<1x32xf32>
    %13 = vector.shape_cast %10 : vector<16x1xi1> to vector<16x1xi1>
    %14 = vector.broadcast %13 : vector<16x1xi1> to vector<16x32xi1>
    %15 = vector.shape_cast %11 : vector<1x32xf32> to vector<1x32xf32>
    %16 = vector.broadcast %15 : vector<1x32xf32> to vector<16x32xf32>
    %17 = vector.shape_cast %12 : vector<1x32xf32> to vector<1x32xf32>
    %18 = vector.broadcast %17 : vector<1x32xf32> to vector<16x32xf32>
    %19 = arith.select %14, %16, %18 : vector<16x32xi1>, vector<16x32xf32>
    %c64 = arith.constant 64 : index
    %c0_6 = arith.constant 0 : index
    %20 = vector.load %arg3[%c64, %c0_6] : memref<76x32xf32, #tpu.memory_space<vmem>>, vector<8x32xf32>
    %21 = arith.addf %8, %19 : vector<16x32xf32>
    %22 = vector.shape_cast %21 : vector<16x32xf32> to vector<2x8x32xf32>
    %23 = vector.shape_cast %20 : vector<8x32xf32> to vector<1x8x32xf32>
    %24 = vector.broadcast %23 : vector<1x8x32xf32> to vector<2x8x32xf32>
    %25 = arith.addf %22, %24 : vector<2x8x32xf32>
    %26 = vector.shape_cast %25 : vector<2x8x32xf32> to vector<16x32xf32>
    %c72 = arith.constant 72 : index
    %c0_7 = arith.constant 0 : index
    %27 = vector.load %arg3[%c72, %c0_7] : memref<76x32xf32, #tpu.memory_space<vmem>>, vector<1x32xf32>
    %c73 = arith.constant 73 : index
    %c0_8 = arith.constant 0 : index
    %28 = vector.load %arg3[%c73, %c0_8] : memref<76x32xf32, #tpu.memory_space<vmem>>, vector<1x32xf32>
    %cst_9 = arith.constant dense<0.000000e+00> : vector<16xf32>
    %29 = vector.multi_reduction <add>, %26, %cst_9 [1] : vector<16x32xf32> to vector<16xf32>
    %30 = vector.shape_cast %29 : vector<16xf32> to vector<16x1xf32>
    %cst_10 = arith.constant 3.200000e+01 : f32
    %31 = vector.broadcast %cst_10 : f32 to vector<16x1xf32>
    %32 = arith.divf %30, %31 : vector<16x1xf32>
    %33 = vector.broadcast %32 : vector<16x1xf32> to vector<16x32xf32>
    %34 = arith.subf %26, %33 : vector<16x32xf32>
    %35 = arith.mulf %34, %34 : vector<16x32xf32>
    %cst_11 = arith.constant dense<0.000000e+00> : vector<16xf32>
    %36 = vector.multi_reduction <add>, %35, %cst_11 [1] : vector<16x32xf32> to vector<16xf32>
    %37 = vector.shape_cast %36 : vector<16xf32> to vector<16x1xf32>
    %cst_12 = arith.constant 3.200000e+01 : f32
    %38 = vector.broadcast %cst_12 : f32 to vector<16x1xf32>
    %39 = arith.divf %37, %38 : vector<16x1xf32>
    %40 = vector.broadcast %32 : vector<16x1xf32> to vector<16x32xf32>
    %41 = arith.subf %26, %40 : vector<16x32xf32>
    %cst_13 = arith.constant 9.99999996E-13 : f32
    %42 = vector.broadcast %cst_13 : f32 to vector<16x1xf32>
    %43 = arith.addf %39, %42 : vector<16x1xf32>
    %44 = math.rsqrt %43 : vector<16x1xf32>
    %45 = vector.broadcast %44 : vector<16x1xf32> to vector<16x32xf32>
    %46 = arith.mulf %41, %45 : vector<16x32xf32>
    %47 = vector.broadcast %27 : vector<1x32xf32> to vector<16x32xf32>
    %48 = arith.mulf %46, %47 : vector<16x32xf32>
    %49 = vector.broadcast %28 : vector<1x32xf32> to vector<16x32xf32>
    %50 = arith.addf %48, %49 : vector<16x32xf32>
    %c0_14 = arith.constant 0 : index
    %c0_15 = arith.constant 0 : index
    %c0_16 = arith.constant 0 : index
    %51 = vector.load %arg2[%c0_14, %c0_15, %c0_16] : memref<2x1x8xf32, #tpu.memory_space<vmem>>, vector<2x1x8xf32>
    %52 = tpu.concatenate %51, %51, %51, %51 in 0 : vector<2x1x8xf32>, vector<2x1x8xf32>, vector<2x1x8xf32>, vector<2x1x8xf32> -> vector<8x1x8xf32>
    %c0_17 = arith.constant 0 : index
    %c0_18 = arith.constant 0 : index
    %c0_19 = arith.constant 0 : index
    %53 = vector.load %arg7[%c0_17, %c0_18, %c0_19] : memref<2x8x128xf32, #tpu.memory_space<vmem>>, vector<1x8x128xf32>
    %54 = vector.shape_cast %53 : vector<1x8x128xf32> to vector<8x128xf32>
    %c0_20 = arith.constant 0 : index
    %c0_21 = arith.constant 0 : index
    %c0_22 = arith.constant 0 : index
    %c0_23 = arith.constant 0 : index
    %55 = vector.load %arg4[%c0_20, %c0_21, %c0_22, %c0_23] : memref<2x8x32x24xf32, #tpu.memory_space<vmem>>, vector<1x8x32x24xf32>
    %56 = vector.shape_cast %55 : vector<1x8x32x24xf32> to vector<8x32x24xf32>
    %c0_24 = arith.constant 0 : index
    %c0_25 = arith.constant 0 : index
    %c0_26 = arith.constant 0 : index
    %c0_27 = arith.constant 0 : index
    %57 = vector.load %arg5[%c0_24, %c0_25, %c0_26, %c0_27] : memref<2x8x1x24xf32, #tpu.memory_space<vmem>>, vector<1x8x1x24xf32>
    %58 = vector.shape_cast %57 : vector<1x8x1x24xf32> to vector<8x1x24xf32>
    %c0_28 = arith.constant 0 : index
    %c0_29 = arith.constant 0 : index
    %c0_30 = arith.constant 0 : index
    %c0_31 = arith.constant 0 : index
    %59 = vector.load %arg6[%c0_28, %c0_29, %c0_30, %c0_31] : memref<2x8x8x32xf32, #tpu.memory_space<vmem>>, vector<1x8x8x32xf32>
    %60 = vector.shape_cast %59 : vector<1x8x8x32xf32> to vector<8x8x32xf32>
    %61 = vector.shape_cast %50 : vector<16x32xf32> to vector<2x8x32xf32>
    %62 = tpu.concatenate %61, %61, %61, %61 in 0 : vector<2x8x32xf32>, vector<2x8x32xf32>, vector<2x8x32xf32>, vector<2x8x32xf32> -> vector<8x8x32xf32>
    "tpu.trace_start"() <{level = 10 : i32, message = "gsh,ghe->gse"}> : () -> ()
    %cst_32 = arith.constant dense<0.000000e+00> : vector<8x8x24xf32>
    %63 = tpu.matmul %62, %56, %cst_32 {dimension_numbers = #tpu.dot_dimension_numbers<[2], [1], [1], [2], [0, 0, 0, 1, 1, 2], [0], [0]>} : vector<8x8x32xf32>, vector<8x32x24xf32>, vector<8x8x24xf32> -> vector<8x8x24xf32>
    "tpu.trace_stop"() : () -> ()
    %64 = vector.broadcast %58 : vector<8x1x24xf32> to vector<8x8x24xf32>
    %65 = arith.addf %63, %64 : vector<8x8x24xf32>
    %66 = vector.extract_strided_slice %65 {offsets = [0, 0, 0], sizes = [8, 8, 8], strides = [1, 1, 1]} : vector<8x8x24xf32> to vector<8x8x8xf32>
    %67 = vector.extract_strided_slice %65 {offsets = [0, 0, 8], sizes = [8, 8, 8], strides = [1, 1, 1]} : vector<8x8x24xf32> to vector<8x8x8xf32>
    %68 = vector.extract_strided_slice %65 {offsets = [0, 0, 16], sizes = [8, 8, 8], strides = [1, 1, 1]} : vector<8x8x24xf32> to vector<8x8x8xf32>
    "tpu.trace_start"() <{level = 10 : i32, message = "gqd,gkd->gqk"}> : () -> ()
    %cst_33 = arith.constant dense<0.000000e+00> : vector<8x8x8xf32>
    %69 = tpu.matmul %66, %67, %cst_33 {dimension_numbers = #tpu.dot_dimension_numbers<[2], [2], [1], [1], [0, 0, 0, 1, 1, 1], [0], [0]>} : vector<8x8x8xf32>, vector<8x8x8xf32>, vector<8x8x8xf32> -> vector<8x8x8xf32>
    "tpu.trace_stop"() : () -> ()
    %70 = vector.broadcast %52 : vector<8x1x8xf32> to vector<8x8x8xf32>
    %71 = arith.addf %69, %70 : vector<8x8x8xf32>
    %cst_34 = arith.constant dense<0xFF800000> : vector<8x8xf32>
    %72 = vector.multi_reduction <maximumf>, %71, %cst_34 [2] : vector<8x8x8xf32> to vector<8x8xf32>
    %73 = vector.shape_cast %72 : vector<8x8xf32> to vector<8x8x1xf32>
    %74 = vector.broadcast %73 : vector<8x8x1xf32> to vector<8x8x8xf32>
    %75 = arith.subf %71, %74 : vector<8x8x8xf32>
    %76 = math.exp %75 : vector<8x8x8xf32>
    %cst_35 = arith.constant dense<0.000000e+00> : vector<8x8xf32>
    %77 = vector.multi_reduction <add>, %76, %cst_35 [2] : vector<8x8x8xf32> to vector<8x8xf32>
    %78 = vector.shape_cast %77 : vector<8x8xf32> to vector<8x8x1xf32>
    %79 = tpu.reciprocal %78 {approx = true} : vector<8x8x1xf32> -> vector<8x8x1xf32>
    %80 = vector.broadcast %79 : vector<8x8x1xf32> to vector<8x8x8xf32>
    %81 = arith.mulf %76, %80 : vector<8x8x8xf32>
    "tpu.trace_start"() <{level = 10 : i32, message = "gqk,gkd->gqd"}> : () -> ()
    %cst_36 = arith.constant dense<0.000000e+00> : vector<8x8x8xf32>
    %82 = tpu.matmul %81, %68, %cst_36 {dimension_numbers = #tpu.dot_dimension_numbers<[2], [1], [1], [2], [0, 0, 0, 1, 1, 2], [0], [0]>} : vector<8x8x8xf32>, vector<8x8x8xf32>, vector<8x8x8xf32> -> vector<8x8x8xf32>
    "tpu.trace_stop"() : () -> ()
    "tpu.trace_start"() <{level = 10 : i32, message = "gsd,gdh->gsh"}> : () -> ()
    %cst_37 = arith.constant dense<0.000000e+00> : vector<8x8x32xf32>
    %83 = tpu.matmul %82, %60, %cst_37 {dimension_numbers = #tpu.dot_dimension_numbers<[2], [1], [1], [2], [0, 0, 0, 1, 1, 2], [0], [0]>} : vector<8x8x8xf32>, vector<8x8x32xf32>, vector<8x8x32xf32> -> vector<8x8x32xf32>
    "tpu.trace_stop"() : () -> ()
    %84 = vector.extract_strided_slice %83 {offsets = [0, 0, 0], sizes = [2, 8, 32], strides = [1, 1, 1]} : vector<8x8x32xf32> to vector<2x8x32xf32>
    %85 = vector.extract_strided_slice %83 {offsets = [2, 0, 0], sizes = [2, 8, 32], strides = [1, 1, 1]} : vector<8x8x32xf32> to vector<2x8x32xf32>
    %86 = arith.addf %84, %85 : vector<2x8x32xf32>
    %87 = vector.extract_strided_slice %83 {offsets = [4, 0, 0], sizes = [2, 8, 32], strides = [1, 1, 1]} : vector<8x8x32xf32> to vector<2x8x32xf32>
    %88 = arith.addf %86, %87 : vector<2x8x32xf32>
    %89 = vector.extract_strided_slice %83 {offsets = [6, 0, 0], sizes = [2, 8, 32], strides = [1, 1, 1]} : vector<8x8x32xf32> to vector<2x8x32xf32>
    %90 = arith.addf %88, %89 : vector<2x8x32xf32>
    %91 = vector.shape_cast %90 : vector<2x8x32xf32> to vector<16x32xf32>
    %92 = vector.extract_strided_slice %54 {offsets = [0, 0], sizes = [1, 32], strides = [1, 1]} : vector<8x128xf32> to vector<1x32xf32>
    %93 = vector.broadcast %92 : vector<1x32xf32> to vector<16x32xf32>
    %94 = arith.addf %91, %93 : vector<16x32xf32>
    %95 = arith.addf %50, %94 : vector<16x32xf32>
    %96 = vector.extract_strided_slice %54 {offsets = [1, 0], sizes = [1, 32], strides = [1, 1]} : vector<8x128xf32> to vector<1x32xf32>
    %97 = vector.extract_strided_slice %54 {offsets = [2, 0], sizes = [1, 32], strides = [1, 1]} : vector<8x128xf32> to vector<1x32xf32>
    %cst_38 = arith.constant dense<0.000000e+00> : vector<16xf32>
    %98 = vector.multi_reduction <add>, %95, %cst_38 [1] : vector<16x32xf32> to vector<16xf32>
    %99 = vector.shape_cast %98 : vector<16xf32> to vector<16x1xf32>
    %cst_39 = arith.constant 3.200000e+01 : f32
    %100 = vector.broadcast %cst_39 : f32 to vector<16x1xf32>
    %101 = arith.divf %99, %100 : vector<16x1xf32>
    %102 = vector.broadcast %101 : vector<16x1xf32> to vector<16x32xf32>
    %103 = arith.subf %95, %102 : vector<16x32xf32>
    %104 = arith.mulf %103, %103 : vector<16x32xf32>
    %cst_40 = arith.constant dense<0.000000e+00> : vector<16xf32>
    %105 = vector.multi_reduction <add>, %104, %cst_40 [1] : vector<16x32xf32> to vector<16xf32>
    %106 = vector.shape_cast %105 : vector<16xf32> to vector<16x1xf32>
    %cst_41 = arith.constant 3.200000e+01 : f32
    %107 = vector.broadcast %cst_41 : f32 to vector<16x1xf32>
    %108 = arith.divf %106, %107 : vector<16x1xf32>
    %109 = vector.broadcast %101 : vector<16x1xf32> to vector<16x32xf32>
    %110 = arith.subf %95, %109 : vector<16x32xf32>
    %cst_42 = arith.constant 9.99999996E-13 : f32
    %111 = vector.broadcast %cst_42 : f32 to vector<16x1xf32>
    %112 = arith.addf %108, %111 : vector<16x1xf32>
    %113 = math.rsqrt %112 : vector<16x1xf32>
    %114 = vector.broadcast %113 : vector<16x1xf32> to vector<16x32xf32>
    %115 = arith.mulf %110, %114 : vector<16x32xf32>
    %116 = vector.broadcast %96 : vector<1x32xf32> to vector<16x32xf32>
    %117 = arith.mulf %115, %116 : vector<16x32xf32>
    %118 = vector.broadcast %97 : vector<1x32xf32> to vector<16x32xf32>
    %119 = arith.addf %117, %118 : vector<16x32xf32>
    %c0_43 = arith.constant 0 : index
    %c0_44 = arith.constant 0 : index
    %c0_45 = arith.constant 0 : index
    %120 = vector.load %arg8[%c0_43, %c0_44, %c0_45] : memref<2x32x64xf32, #tpu.memory_space<vmem>>, vector<1x32x64xf32>
    %121 = vector.shape_cast %120 : vector<1x32x64xf32> to vector<32x64xf32>
    %cst_46 = arith.constant dense<0.000000e+00> : vector<16x64xf32>
    %122 = tpu.matmul %119, %121, %cst_46 {dimension_numbers = #tpu.dot_dimension_numbers<[1], [0], [0], [1], [0, 0, 1, 1], [], []>} : vector<16x32xf32>, vector<32x64xf32>, vector<16x64xf32> -> vector<16x64xf32>
    %123 = vector.extract_strided_slice %54 {offsets = [3, 0], sizes = [1, 64], strides = [1, 1]} : vector<8x128xf32> to vector<1x64xf32>
    %124 = vector.broadcast %123 : vector<1x64xf32> to vector<16x64xf32>
    %125 = arith.addf %122, %124 : vector<16x64xf32>
    %126 = arith.mulf %125, %125 : vector<16x64xf32>
    %127 = arith.mulf %125, %126 : vector<16x64xf32>
    %cst_47 = arith.constant 4.471500e-02 : f32
    %128 = vector.broadcast %cst_47 : f32 to vector<16x64xf32>
    %129 = arith.mulf %128, %127 : vector<16x64xf32>
    %130 = arith.addf %125, %129 : vector<16x64xf32>
    %cst_48 = arith.constant 0.797884583 : f32
    %131 = vector.broadcast %cst_48 : f32 to vector<16x64xf32>
    %132 = arith.mulf %131, %130 : vector<16x64xf32>
    %133 = math.tanh %132 : vector<16x64xf32>
    %cst_49 = arith.constant 1.000000e+00 : f32
    %134 = vector.broadcast %cst_49 : f32 to vector<16x64xf32>
    %135 = arith.addf %134, %133 : vector<16x64xf32>
    %cst_50 = arith.constant 5.000000e-01 : f32
    %136 = vector.broadcast %cst_50 : f32 to vector<16x64xf32>
    %137 = arith.mulf %136, %135 : vector<16x64xf32>
    %138 = arith.mulf %125, %137 : vector<16x64xf32>
    %c0_51 = arith.constant 0 : index
    %c0_52 = arith.constant 0 : index
    %c0_53 = arith.constant 0 : index
    %139 = vector.load %arg9[%c0_51, %c0_52, %c0_53] : memref<2x64x32xf32, #tpu.memory_space<vmem>>, vector<1x64x32xf32>
    %140 = vector.shape_cast %139 : vector<1x64x32xf32> to vector<64x32xf32>
    %cst_54 = arith.constant dense<0.000000e+00> : vector<16x32xf32>
    %141 = tpu.matmul %138, %140, %cst_54 {dimension_numbers = #tpu.dot_dimension_numbers<[1], [0], [0], [1], [0, 0, 1, 1], [], []>} : vector<16x64xf32>, vector<64x32xf32>, vector<16x32xf32> -> vector<16x32xf32>
    %142 = vector.extract_strided_slice %54 {offsets = [4, 0], sizes = [1, 32], strides = [1, 1]} : vector<8x128xf32> to vector<1x32xf32>
    %143 = vector.broadcast %142 : vector<1x32xf32> to vector<16x32xf32>
    %144 = arith.addf %141, %143 : vector<16x32xf32>
    %145 = arith.addf %119, %144 : vector<16x32xf32>
    %146 = vector.extract_strided_slice %54 {offsets = [5, 0], sizes = [1, 32], strides = [1, 1]} : vector<8x128xf32> to vector<1x32xf32>
    %147 = vector.extract_strided_slice %54 {offsets = [6, 0], sizes = [1, 32], strides = [1, 1]} : vector<8x128xf32> to vector<1x32xf32>
    %cst_55 = arith.constant dense<0.000000e+00> : vector<16xf32>
    %148 = vector.multi_reduction <add>, %145, %cst_55 [1] : vector<16x32xf32> to vector<16xf32>
    %149 = vector.shape_cast %148 : vector<16xf32> to vector<16x1xf32>
    %cst_56 = arith.constant 3.200000e+01 : f32
    %150 = vector.broadcast %cst_56 : f32 to vector<16x1xf32>
    %151 = arith.divf %149, %150 : vector<16x1xf32>
    %152 = vector.broadcast %151 : vector<16x1xf32> to vector<16x32xf32>
    %153 = arith.subf %145, %152 : vector<16x32xf32>
    %154 = arith.mulf %153, %153 : vector<16x32xf32>
    %cst_57 = arith.constant dense<0.000000e+00> : vector<16xf32>
    %155 = vector.multi_reduction <add>, %154, %cst_57 [1] : vector<16x32xf32> to vector<16xf32>
    %156 = vector.shape_cast %155 : vector<16xf32> to vector<16x1xf32>
    %cst_58 = arith.constant 3.200000e+01 : f32
    %157 = vector.broadcast %cst_58 : f32 to vector<16x1xf32>
    %158 = arith.divf %156, %157 : vector<16x1xf32>
    %159 = vector.broadcast %151 : vector<16x1xf32> to vector<16x32xf32>
    %160 = arith.subf %145, %159 : vector<16x32xf32>
    %cst_59 = arith.constant 9.99999996E-13 : f32
    %161 = vector.broadcast %cst_59 : f32 to vector<16x1xf32>
    %162 = arith.addf %158, %161 : vector<16x1xf32>
    %163 = math.rsqrt %162 : vector<16x1xf32>
    %164 = vector.broadcast %163 : vector<16x1xf32> to vector<16x32xf32>
    %165 = arith.mulf %160, %164 : vector<16x32xf32>
    %166 = vector.broadcast %146 : vector<1x32xf32> to vector<16x32xf32>
    %167 = arith.mulf %165, %166 : vector<16x32xf32>
    %168 = vector.broadcast %147 : vector<1x32xf32> to vector<16x32xf32>
    %169 = arith.addf %167, %168 : vector<16x32xf32>
    %c1_60 = arith.constant 1 : index
    %c0_61 = arith.constant 0 : index
    %c0_62 = arith.constant 0 : index
    %170 = vector.load %arg7[%c1_60, %c0_61, %c0_62] : memref<2x8x128xf32, #tpu.memory_space<vmem>>, vector<1x8x128xf32>
    %171 = vector.shape_cast %170 : vector<1x8x128xf32> to vector<8x128xf32>
    %c1_63 = arith.constant 1 : index
    %c0_64 = arith.constant 0 : index
    %c0_65 = arith.constant 0 : index
    %c0_66 = arith.constant 0 : index
    %172 = vector.load %arg4[%c1_63, %c0_64, %c0_65, %c0_66] : memref<2x8x32x24xf32, #tpu.memory_space<vmem>>, vector<1x8x32x24xf32>
    %173 = vector.shape_cast %172 : vector<1x8x32x24xf32> to vector<8x32x24xf32>
    %c1_67 = arith.constant 1 : index
    %c0_68 = arith.constant 0 : index
    %c0_69 = arith.constant 0 : index
    %c0_70 = arith.constant 0 : index
    %174 = vector.load %arg5[%c1_67, %c0_68, %c0_69, %c0_70] : memref<2x8x1x24xf32, #tpu.memory_space<vmem>>, vector<1x8x1x24xf32>
    %175 = vector.shape_cast %174 : vector<1x8x1x24xf32> to vector<8x1x24xf32>
    %c1_71 = arith.constant 1 : index
    %c0_72 = arith.constant 0 : index
    %c0_73 = arith.constant 0 : index
    %c0_74 = arith.constant 0 : index
    %176 = vector.load %arg6[%c1_71, %c0_72, %c0_73, %c0_74] : memref<2x8x8x32xf32, #tpu.memory_space<vmem>>, vector<1x8x8x32xf32>
    %177 = vector.shape_cast %176 : vector<1x8x8x32xf32> to vector<8x8x32xf32>
    %178 = vector.shape_cast %169 : vector<16x32xf32> to vector<2x8x32xf32>
    %179 = tpu.concatenate %178, %178, %178, %178 in 0 : vector<2x8x32xf32>, vector<2x8x32xf32>, vector<2x8x32xf32>, vector<2x8x32xf32> -> vector<8x8x32xf32>
    "tpu.trace_start"() <{level = 10 : i32, message = "gsh,ghe->gse"}> : () -> ()
    %cst_75 = arith.constant dense<0.000000e+00> : vector<8x8x24xf32>
    %180 = tpu.matmul %179, %173, %cst_75 {dimension_numbers = #tpu.dot_dimension_numbers<[2], [1], [1], [2], [0, 0, 0, 1, 1, 2], [0], [0]>} : vector<8x8x32xf32>, vector<8x32x24xf32>, vector<8x8x24xf32> -> vector<8x8x24xf32>
    "tpu.trace_stop"() : () -> ()
    %181 = vector.broadcast %175 : vector<8x1x24xf32> to vector<8x8x24xf32>
    %182 = arith.addf %180, %181 : vector<8x8x24xf32>
    %183 = vector.extract_strided_slice %182 {offsets = [0, 0, 0], sizes = [8, 8, 8], strides = [1, 1, 1]} : vector<8x8x24xf32> to vector<8x8x8xf32>
    %184 = vector.extract_strided_slice %182 {offsets = [0, 0, 8], sizes = [8, 8, 8], strides = [1, 1, 1]} : vector<8x8x24xf32> to vector<8x8x8xf32>
    %185 = vector.extract_strided_slice %182 {offsets = [0, 0, 16], sizes = [8, 8, 8], strides = [1, 1, 1]} : vector<8x8x24xf32> to vector<8x8x8xf32>
    "tpu.trace_start"() <{level = 10 : i32, message = "gqd,gkd->gqk"}> : () -> ()
    %cst_76 = arith.constant dense<0.000000e+00> : vector<8x8x8xf32>
    %186 = tpu.matmul %183, %184, %cst_76 {dimension_numbers = #tpu.dot_dimension_numbers<[2], [2], [1], [1], [0, 0, 0, 1, 1, 1], [0], [0]>} : vector<8x8x8xf32>, vector<8x8x8xf32>, vector<8x8x8xf32> -> vector<8x8x8xf32>
    "tpu.trace_stop"() : () -> ()
    %187 = vector.broadcast %52 : vector<8x1x8xf32> to vector<8x8x8xf32>
    %188 = arith.addf %186, %187 : vector<8x8x8xf32>
    %cst_77 = arith.constant dense<0xFF800000> : vector<8x8xf32>
    %189 = vector.multi_reduction <maximumf>, %188, %cst_77 [2] : vector<8x8x8xf32> to vector<8x8xf32>
    %190 = vector.shape_cast %189 : vector<8x8xf32> to vector<8x8x1xf32>
    %191 = vector.broadcast %190 : vector<8x8x1xf32> to vector<8x8x8xf32>
    %192 = arith.subf %188, %191 : vector<8x8x8xf32>
    %193 = math.exp %192 : vector<8x8x8xf32>
    %cst_78 = arith.constant dense<0.000000e+00> : vector<8x8xf32>
    %194 = vector.multi_reduction <add>, %193, %cst_78 [2] : vector<8x8x8xf32> to vector<8x8xf32>
    %195 = vector.shape_cast %194 : vector<8x8xf32> to vector<8x8x1xf32>
    %196 = tpu.reciprocal %195 {approx = true} : vector<8x8x1xf32> -> vector<8x8x1xf32>
    %197 = vector.broadcast %196 : vector<8x8x1xf32> to vector<8x8x8xf32>
    %198 = arith.mulf %193, %197 : vector<8x8x8xf32>
    "tpu.trace_start"() <{level = 10 : i32, message = "gqk,gkd->gqd"}> : () -> ()
    %cst_79 = arith.constant dense<0.000000e+00> : vector<8x8x8xf32>
    %199 = tpu.matmul %198, %185, %cst_79 {dimension_numbers = #tpu.dot_dimension_numbers<[2], [1], [1], [2], [0, 0, 0, 1, 1, 2], [0], [0]>} : vector<8x8x8xf32>, vector<8x8x8xf32>, vector<8x8x8xf32> -> vector<8x8x8xf32>
    "tpu.trace_stop"() : () -> ()
    "tpu.trace_start"() <{level = 10 : i32, message = "gsd,gdh->gsh"}> : () -> ()
    %cst_80 = arith.constant dense<0.000000e+00> : vector<8x8x32xf32>
    %200 = tpu.matmul %199, %177, %cst_80 {dimension_numbers = #tpu.dot_dimension_numbers<[2], [1], [1], [2], [0, 0, 0, 1, 1, 2], [0], [0]>} : vector<8x8x8xf32>, vector<8x8x32xf32>, vector<8x8x32xf32> -> vector<8x8x32xf32>
    "tpu.trace_stop"() : () -> ()
    %201 = vector.extract_strided_slice %200 {offsets = [0, 0, 0], sizes = [2, 8, 32], strides = [1, 1, 1]} : vector<8x8x32xf32> to vector<2x8x32xf32>
    %202 = vector.extract_strided_slice %200 {offsets = [2, 0, 0], sizes = [2, 8, 32], strides = [1, 1, 1]} : vector<8x8x32xf32> to vector<2x8x32xf32>
    %203 = arith.addf %201, %202 : vector<2x8x32xf32>
    %204 = vector.extract_strided_slice %200 {offsets = [4, 0, 0], sizes = [2, 8, 32], strides = [1, 1, 1]} : vector<8x8x32xf32> to vector<2x8x32xf32>
    %205 = arith.addf %203, %204 : vector<2x8x32xf32>
    %206 = vector.extract_strided_slice %200 {offsets = [6, 0, 0], sizes = [2, 8, 32], strides = [1, 1, 1]} : vector<8x8x32xf32> to vector<2x8x32xf32>
    %207 = arith.addf %205, %206 : vector<2x8x32xf32>
    %208 = vector.shape_cast %207 : vector<2x8x32xf32> to vector<16x32xf32>
    %209 = vector.extract_strided_slice %171 {offsets = [0, 0], sizes = [1, 32], strides = [1, 1]} : vector<8x128xf32> to vector<1x32xf32>
    %210 = vector.broadcast %209 : vector<1x32xf32> to vector<16x32xf32>
    %211 = arith.addf %208, %210 : vector<16x32xf32>
    %212 = arith.addf %169, %211 : vector<16x32xf32>
    %213 = vector.extract_strided_slice %171 {offsets = [1, 0], sizes = [1, 32], strides = [1, 1]} : vector<8x128xf32> to vector<1x32xf32>
    %214 = vector.extract_strided_slice %171 {offsets = [2, 0], sizes = [1, 32], strides = [1, 1]} : vector<8x128xf32> to vector<1x32xf32>
    %cst_81 = arith.constant dense<0.000000e+00> : vector<16xf32>
    %215 = vector.multi_reduction <add>, %212, %cst_81 [1] : vector<16x32xf32> to vector<16xf32>
    %216 = vector.shape_cast %215 : vector<16xf32> to vector<16x1xf32>
    %cst_82 = arith.constant 3.200000e+01 : f32
    %217 = vector.broadcast %cst_82 : f32 to vector<16x1xf32>
    %218 = arith.divf %216, %217 : vector<16x1xf32>
    %219 = vector.broadcast %218 : vector<16x1xf32> to vector<16x32xf32>
    %220 = arith.subf %212, %219 : vector<16x32xf32>
    %221 = arith.mulf %220, %220 : vector<16x32xf32>
    %cst_83 = arith.constant dense<0.000000e+00> : vector<16xf32>
    %222 = vector.multi_reduction <add>, %221, %cst_83 [1] : vector<16x32xf32> to vector<16xf32>
    %223 = vector.shape_cast %222 : vector<16xf32> to vector<16x1xf32>
    %cst_84 = arith.constant 3.200000e+01 : f32
    %224 = vector.broadcast %cst_84 : f32 to vector<16x1xf32>
    %225 = arith.divf %223, %224 : vector<16x1xf32>
    %226 = vector.broadcast %218 : vector<16x1xf32> to vector<16x32xf32>
    %227 = arith.subf %212, %226 : vector<16x32xf32>
    %cst_85 = arith.constant 9.99999996E-13 : f32
    %228 = vector.broadcast %cst_85 : f32 to vector<16x1xf32>
    %229 = arith.addf %225, %228 : vector<16x1xf32>
    %230 = math.rsqrt %229 : vector<16x1xf32>
    %231 = vector.broadcast %230 : vector<16x1xf32> to vector<16x32xf32>
    %232 = arith.mulf %227, %231 : vector<16x32xf32>
    %233 = vector.broadcast %213 : vector<1x32xf32> to vector<16x32xf32>
    %234 = arith.mulf %232, %233 : vector<16x32xf32>
    %235 = vector.broadcast %214 : vector<1x32xf32> to vector<16x32xf32>
    %236 = arith.addf %234, %235 : vector<16x32xf32>
    %c1_86 = arith.constant 1 : index
    %c0_87 = arith.constant 0 : index
    %c0_88 = arith.constant 0 : index
    %237 = vector.load %arg8[%c1_86, %c0_87, %c0_88] : memref<2x32x64xf32, #tpu.memory_space<vmem>>, vector<1x32x64xf32>
    %238 = vector.shape_cast %237 : vector<1x32x64xf32> to vector<32x64xf32>
    %cst_89 = arith.constant dense<0.000000e+00> : vector<16x64xf32>
    %239 = tpu.matmul %236, %238, %cst_89 {dimension_numbers = #tpu.dot_dimension_numbers<[1], [0], [0], [1], [0, 0, 1, 1], [], []>} : vector<16x32xf32>, vector<32x64xf32>, vector<16x64xf32> -> vector<16x64xf32>
    %240 = vector.extract_strided_slice %171 {offsets = [3, 0], sizes = [1, 64], strides = [1, 1]} : vector<8x128xf32> to vector<1x64xf32>
    %241 = vector.broadcast %240 : vector<1x64xf32> to vector<16x64xf32>
    %242 = arith.addf %239, %241 : vector<16x64xf32>
    %243 = arith.mulf %242, %242 : vector<16x64xf32>
    %244 = arith.mulf %242, %243 : vector<16x64xf32>
    %cst_90 = arith.constant 4.471500e-02 : f32
    %245 = vector.broadcast %cst_90 : f32 to vector<16x64xf32>
    %246 = arith.mulf %245, %244 : vector<16x64xf32>
    %247 = arith.addf %242, %246 : vector<16x64xf32>
    %cst_91 = arith.constant 0.797884583 : f32
    %248 = vector.broadcast %cst_91 : f32 to vector<16x64xf32>
    %249 = arith.mulf %248, %247 : vector<16x64xf32>
    %250 = math.tanh %249 : vector<16x64xf32>
    %cst_92 = arith.constant 1.000000e+00 : f32
    %251 = vector.broadcast %cst_92 : f32 to vector<16x64xf32>
    %252 = arith.addf %251, %250 : vector<16x64xf32>
    %cst_93 = arith.constant 5.000000e-01 : f32
    %253 = vector.broadcast %cst_93 : f32 to vector<16x64xf32>
    %254 = arith.mulf %253, %252 : vector<16x64xf32>
    %255 = arith.mulf %242, %254 : vector<16x64xf32>
    %c1_94 = arith.constant 1 : index
    %c0_95 = arith.constant 0 : index
    %c0_96 = arith.constant 0 : index
    %256 = vector.load %arg9[%c1_94, %c0_95, %c0_96] : memref<2x64x32xf32, #tpu.memory_space<vmem>>, vector<1x64x32xf32>
    %257 = vector.shape_cast %256 : vector<1x64x32xf32> to vector<64x32xf32>
    %cst_97 = arith.constant dense<0.000000e+00> : vector<16x32xf32>
    %258 = tpu.matmul %255, %257, %cst_97 {dimension_numbers = #tpu.dot_dimension_numbers<[1], [0], [0], [1], [0, 0, 1, 1], [], []>} : vector<16x64xf32>, vector<64x32xf32>, vector<16x32xf32> -> vector<16x32xf32>
    %259 = vector.extract_strided_slice %171 {offsets = [4, 0], sizes = [1, 32], strides = [1, 1]} : vector<8x128xf32> to vector<1x32xf32>
    %260 = vector.broadcast %259 : vector<1x32xf32> to vector<16x32xf32>
    %261 = arith.addf %258, %260 : vector<16x32xf32>
    %262 = arith.addf %236, %261 : vector<16x32xf32>
    %263 = vector.extract_strided_slice %171 {offsets = [5, 0], sizes = [1, 32], strides = [1, 1]} : vector<8x128xf32> to vector<1x32xf32>
    %264 = vector.extract_strided_slice %171 {offsets = [6, 0], sizes = [1, 32], strides = [1, 1]} : vector<8x128xf32> to vector<1x32xf32>
    %cst_98 = arith.constant dense<0.000000e+00> : vector<16xf32>
    %265 = vector.multi_reduction <add>, %262, %cst_98 [1] : vector<16x32xf32> to vector<16xf32>
    %266 = vector.shape_cast %265 : vector<16xf32> to vector<16x1xf32>
    %cst_99 = arith.constant 3.200000e+01 : f32
    %267 = vector.broadcast %cst_99 : f32 to vector<16x1xf32>
    %268 = arith.divf %266, %267 : vector<16x1xf32>
    %269 = vector.broadcast %268 : vector<16x1xf32> to vector<16x32xf32>
    %270 = arith.subf %262, %269 : vector<16x32xf32>
    %271 = arith.mulf %270, %270 : vector<16x32xf32>
    %cst_100 = arith.constant dense<0.000000e+00> : vector<16xf32>
    %272 = vector.multi_reduction <add>, %271, %cst_100 [1] : vector<16x32xf32> to vector<16xf32>
    %273 = vector.shape_cast %272 : vector<16xf32> to vector<16x1xf32>
    %cst_101 = arith.constant 3.200000e+01 : f32
    %274 = vector.broadcast %cst_101 : f32 to vector<16x1xf32>
    %275 = arith.divf %273, %274 : vector<16x1xf32>
    %276 = vector.broadcast %268 : vector<16x1xf32> to vector<16x32xf32>
    %277 = arith.subf %262, %276 : vector<16x32xf32>
    %cst_102 = arith.constant 9.99999996E-13 : f32
    %278 = vector.broadcast %cst_102 : f32 to vector<16x1xf32>
    %279 = arith.addf %275, %278 : vector<16x1xf32>
    %280 = math.rsqrt %279 : vector<16x1xf32>
    %281 = vector.broadcast %280 : vector<16x1xf32> to vector<16x32xf32>
    %282 = arith.mulf %277, %281 : vector<16x32xf32>
    %283 = vector.broadcast %263 : vector<1x32xf32> to vector<16x32xf32>
    %284 = arith.mulf %282, %283 : vector<16x32xf32>
    %285 = vector.broadcast %264 : vector<1x32xf32> to vector<16x32xf32>
    %286 = arith.addf %284, %285 : vector<16x32xf32>
    %287 = vector.shape_cast %286 : vector<16x32xf32> to vector<2x8x32xf32>
    %c0_103 = arith.constant 0 : index
    %c0_104 = arith.constant 0 : index
    %c0_105 = arith.constant 0 : index
    %288 = vector.load %arg10[%c0_103, %c0_104, %c0_105] : memref<2x2x32xf32, #tpu.memory_space<vmem>>, vector<2x2x32xf32>
    "tpu.trace_start"() <{level = 10 : i32, message = "bch,bsh->bcs"}> : () -> ()
    %cst_106 = arith.constant dense<0.000000e+00> : vector<2x2x8xf32>
    %289 = tpu.matmul %288, %287, %cst_106 {dimension_numbers = #tpu.dot_dimension_numbers<[2], [2], [1], [1], [0, 0, 0, 1, 1, 1], [0], [0]>} : vector<2x2x32xf32>, vector<2x8x32xf32>, vector<2x2x8xf32> -> vector<2x2x8xf32>
    "tpu.trace_stop"() : () -> ()
    %c0_107 = arith.constant 0 : index
    %c0_108 = arith.constant 0 : index
    %c0_109 = arith.constant 0 : index
    %290 = vector.load %arg11[%c0_107, %c0_108, %c0_109] : memref<1x2x1xf32, #tpu.memory_space<vmem>>, vector<1x2x1xf32>
    %291 = vector.broadcast %290 : vector<1x2x1xf32> to vector<2x2x8xf32>
    %292 = arith.addf %289, %291 : vector<2x2x8xf32>
    %cst_110 = arith.constant dense<0xFF800000> : vector<2x2xf32>
    %293 = vector.multi_reduction <maximumf>, %292, %cst_110 [2] : vector<2x2x8xf32> to vector<2x2xf32>
    %294 = vector.shape_cast %293 : vector<2x2xf32> to vector<2x2x1xf32>
    %295 = vector.broadcast %294 : vector<2x2x1xf32> to vector<2x2x8xf32>
    %296 = arith.subf %292, %295 : vector<2x2x8xf32>
    %297 = math.exp %296 : vector<2x2x8xf32>
    %cst_111 = arith.constant dense<0.000000e+00> : vector<2x2xf32>
    %298 = vector.multi_reduction <add>, %297, %cst_111 [2] : vector<2x2x8xf32> to vector<2x2xf32>
    %299 = vector.shape_cast %298 : vector<2x2xf32> to vector<2x2x1xf32>
    %300 = math.log %299 : vector<2x2x1xf32>
    %301 = arith.addf %300, %294 : vector<2x2x1xf32>
    %302 = tpu.iota {dimensions = array<i32: 2>} : vector<2x2x8xi32>
    %c0_112 = arith.constant 0 : index
    %c0_113 = arith.constant 0 : index
    %c0_114 = arith.constant 0 : index
    %303 = vector.load %arg1[%c0_112, %c0_113, %c0_114] : memref<2x2x1xi32, #tpu.memory_space<vmem>>, vector<2x2x1xi32>
    %304 = vector.broadcast %303 : vector<2x2x1xi32> to vector<2x2x8xi32>
    %305 = arith.cmpi eq, %302, %304 : vector<2x2x8xi32>
    %306 = arith.extui %305 : vector<2x2x8xi1> to vector<2x2x8xi32>
    %307 = arith.sitofp %306 : vector<2x2x8xi32> to vector<2x2x8xf32>
    %308 = vector.broadcast %301 : vector<2x2x1xf32> to vector<2x2x8xf32>
    %309 = arith.subf %292, %308 : vector<2x2x8xf32>
    %310 = arith.mulf %307, %309 : vector<2x2x8xf32>
    %cst_115 = arith.constant dense<0.000000e+00> : vector<2x2xf32>
    %311 = vector.multi_reduction <add>, %310, %cst_115 [2] : vector<2x2x8xf32> to vector<2x2xf32>
    %312 = vector.shape_cast %311 : vector<2x2xf32> to vector<2x2x1xf32>
    %cst_116 = arith.constant 0.000000e+00 : f32
    %313 = vector.broadcast %cst_116 : f32 to vector<2x2x1xf32>
    %314 = arith.subf %313, %312 : vector<2x2x1xf32>
    %cst_117 = arith.constant dense<0.000000e+00> : vector<2x1xf32>
    %315 = vector.multi_reduction <add>, %314, %cst_117 [1] : vector<2x2x1xf32> to vector<2x1xf32>
    %316 = vector.shape_cast %315 : vector<2x1xf32> to vector<2x1x1xf32>
    %cst_118 = arith.constant dense<0.000000e+00> : vector<1x1xf32>
    %317 = vector.multi_reduction <add>, %316, %cst_118 [0] : vector<2x1x1xf32> to vector<1x1xf32>
    %318 = vector.shape_cast %317 : vector<1x1xf32> to vector<1x1x1xf32>
    %cst_119 = arith.constant 2.500000e-01 : f32
    %319 = vector.broadcast %cst_119 : f32 to vector<1x1x1xf32>
    %320 = arith.mulf %318, %319 : vector<1x1x1xf32>
    %cst_120 = arith.constant 0.000000e+00 : f32
    %321 = vector.broadcast %cst_120 : f32 to vector<2x2x120xf32>
    %322 = tpu.concatenate %292, %321 in 2 : vector<2x2x8xf32>, vector<2x2x120xf32> -> vector<2x2x128xf32>
    %cst_121 = arith.constant 0.000000e+00 : f32
    %323 = vector.broadcast %cst_121 : f32 to vector<2x1x128xf32>
    %324 = vector.broadcast %320 : vector<1x1x1xf32> to vector<2x1x128xf32>
    %325 = arith.addf %324, %323 : vector<2x1x128xf32>
    %cst_122 = arith.constant 0.000000e+00 : f32
    %326 = vector.broadcast %cst_122 : f32 to vector<2x5x128xf32>
    %327 = tpu.concatenate %322, %325, %326 in 1 : vector<2x2x128xf32>, vector<2x1x128xf32>, vector<2x5x128xf32> -> vector<2x8x128xf32>
    %c0_123 = arith.constant 0 : index
    %c0_124 = arith.constant 0 : index
    %c0_125 = arith.constant 0 : index
    %328 = vector.load %arg12[%c0_123, %c0_124, %c0_125] : memref<2x8x128xf32, #tpu.memory_space<vmem>>, vector<2x8x128xf32>
    tpu.vector_store %arg12[%c0_123, %c0_124, %c0_125], %327 {strides = array<i32>} : memref<2x8x128xf32, #tpu.memory_space<vmem>>, vector<2x8x128xf32>,
    return
  }
}

</mosaic_0001>

<llo_original>
// kernel: bert_qa_forward.1
$region0: #{bert_qa_forward.1}
  #allocation0 [shape = 'u32[]', space=smem, size = 0x4, offset = 0x4, fixed_abs, tag = 'smem constant byte address 0x4 - core index']
  #allocation1 [shape = 'u32[144,128]{1,0:T(1,128)}', space=vmem, size = 0x12000, scoped, tag = 'internal scratch']
  %s0 = inlined_call_operand.vmem [shape: s32[16,2], index: 0, kind: input, shape index: {}]
  %s1 = inlined_call_operand.vmem [shape: s32[2,2,1], index: 1, kind: input, shape index: {}]
  %s2 = inlined_call_operand.vmem [shape: f32[2,1,8], index: 2, kind: input, shape index: {}]
  %s3 = inlined_call_operand.vmem [shape: f32[76,32], index: 3, kind: input, shape index: {}]
  %s4 = inlined_call_operand.vmem [shape: f32[2,8,32,24], index: 4, kind: input, shape index: {}]
  %s5 = inlined_call_operand.vmem [shape: f32[2,8,1,24], index: 5, kind: input, shape index: {}]
  %s6 = inlined_call_operand.vmem [shape: f32[2,8,8,32], index: 6, kind: input, shape index: {}]
  %s7 = inlined_call_operand.vmem [shape: f32[2,8,128], index: 7, kind: input, shape index: {}]
  %s8 = inlined_call_operand.vmem [shape: f32[2,32,64], index: 8, kind: input, shape index: {}]
  %s9 = inlined_call_operand.vmem [shape: f32[2,64,32], index: 9, kind: input, shape index: {}]
  %s10 = inlined_call_operand.vmem [shape: f32[2,2,32], index: 10, kind: input, shape index: {}]
  %s11 = inlined_call_operand.vmem [shape: f32[1,2,1], index: 11, kind: input, shape index: {}]
  %s12 = inlined_call_operand.vmem [shape: f32[2,8,128], index: 12, kind: output, shape index: {}]
  %s13 = sld [smem:[#allocation0]]
  $region58: #{bert_qa_forward.1} parent=0
    _
  %s15 = ssub.s32 1, %s13
  %s16 = scalar_select 0, %s15, %s13
  // Predicated region
  $region2: #{bert_qa_forward.1} parent=0 // pred_check
    _
  $region3: #{bert_qa_forward.1} parent=0 // pred_check_branch
    %18 = sbr.rel (0) target = $region5
  $region4: #{bert_qa_forward.1} parent=0 // pred_region
    _
  $region5: #{bert_qa_forward.1} parent=0 // pred_fallthru
    _
  // Predicated region
  $region6: #{bert_qa_forward.1} parent=0 // pred_check
    _
  $region7: #{bert_qa_forward.1} parent=0 // pred_check_branch
    %20 = sbr.rel (0) target = $region9
  $region8: #{bert_qa_forward.1} parent=0 // pred_region
    _
  $region9: #{bert_qa_forward.1} parent=0 // pred_fallthru
    _
  // Predicated region
  $region10: #{bert_qa_forward.1} parent=0 // pred_check
    _
  $region11: #{bert_qa_forward.1} parent=0 // pred_check_branch
    %22 = sbr.rel (0) target = $region13
  $region12: #{bert_qa_forward.1} parent=0 // pred_region
    _
  $region13: #{bert_qa_forward.1} parent=0 // pred_fallthru
    _
  // Predicated region
  $region14: #{bert_qa_forward.1} parent=0 // pred_check
    _
  $region15: #{bert_qa_forward.1} parent=0 // pred_check_branch
    %24 = sbr.rel (0) target = $region17
  $region16: #{bert_qa_forward.1} parent=0 // pred_region
    _
  $region17: #{bert_qa_forward.1} parent=0 // pred_fallthru
    _
  // Predicated region
  $region18: #{bert_qa_forward.1} parent=0 // pred_check
    _
  $region19: #{bert_qa_forward.1} parent=0 // pred_check_branch
    %26 = sbr.rel (0) target = $region21
  $region20: #{bert_qa_forward.1} parent=0 // pred_region
    _
  $region21: #{bert_qa_forward.1} parent=0 // pred_fallthru
    _
  // Predicated region
  $region22: #{bert_qa_forward.1} parent=0 // pred_check
    _
  $region23: #{bert_qa_forward.1} parent=0 // pred_check_branch
    %28 = sbr.rel (0) target = $region25
  $region24: #{bert_qa_forward.1} parent=0 // pred_region
    _
  $region25: #{bert_qa_forward.1} parent=0 // pred_fallthru
    _
  // Predicated region
  $region26: #{bert_qa_forward.1} parent=0 // pred_check
    _
  $region27: #{bert_qa_forward.1} parent=0 // pred_check_branch
    %30 = sbr.rel (0) target = $region29
  $region28: #{bert_qa_forward.1} parent=0 // pred_region
    _
  $region29: #{bert_qa_forward.1} parent=0 // pred_fallthru
    _
  // Predicated region
  $region30: #{bert_qa_forward.1} parent=0 // pred_check
    _
  $region31: #{bert_qa_forward.1} parent=0 // pred_check_branch
    %32 = sbr.rel (0) target = $region33
  $region32: #{bert_qa_forward.1} parent=0 // pred_region
    _
  $region33: #{bert_qa_forward.1} parent=0 // pred_fallthru
    _
  // Predicated region
  $region34: #{bert_qa_forward.1} parent=0 // pred_check
    _
  $region35: #{bert_qa_forward.1} parent=0 // pred_check_branch
    %34 = sbr.rel (0) target = $region37
  $region36: #{bert_qa_forward.1} parent=0 // pred_region
    _
  $region37: #{bert_qa_forward.1} parent=0 // pred_fallthru
    _
  // Predicated region
  $region38: #{bert_qa_forward.1} parent=0 // pred_check
    _
  $region39: #{bert_qa_forward.1} parent=0 // pred_check_branch
    %36 = sbr.rel (0) target = $region41
  $region40: #{bert_qa_forward.1} parent=0 // pred_region
    _
  $region41: #{bert_qa_forward.1} parent=0 // pred_fallthru
    _
  // Predicated region
  $region42: #{bert_qa_forward.1} parent=0 // pred_check
    _
  $region43: #{bert_qa_forward.1} parent=0 // pred_check_branch
    %38 = sbr.rel (0) target = $region45
  $region44: #{bert_qa_forward.1} parent=0 // pred_region
    _
  $region45: #{bert_qa_forward.1} parent=0 // pred_fallthru
    _
  // Predicated region
  $region46: #{bert_qa_forward.1} parent=0 // pred_check
    _
  $region47: #{bert_qa_forward.1} parent=0 // pred_check_branch
    %40 = sbr.rel (0) target = $region49
  $region48: #{bert_qa_forward.1} parent=0 // pred_region
    _
  $region49: #{bert_qa_forward.1} parent=0 // pred_fallthru
    _
  %v41 = vld [vmem:[%s0] sm:$0xff]
  %v42 = vld [vmem:[%s0 + $0x8] sm:$0xff]
  %v43 = vlaneseq
  %v44 = vand.u32 %v43, 127
  %45 = vset.pattern.permute.xlu0 0
  %46 = vperm.xlu0 %45, %v41
  %v47 = vpop.permute.xlu0 %46
  %48 = vset.pattern.permute.xlu0 0
  %49 = vperm.xlu0 %48, %v42
  %v50 = vpop.permute.xlu0 %49
  %vm51 = vcmp.eq.s32.totalorder %v44, %v47
  %vm52 = vcmp.eq.s32.totalorder %v44, %v50
  %v53 = vsel %vm51, 1, 0
  %v54 = vsel %vm52, 1, 0
  %v55 = vcvt.s32.f32 %v53
  %v56 = vcvt.s32.f32 %v54
  %v57 = vld [vmem:[%s3] sm:$0xff]
  %v58 = vld [vmem:[%s3 + $0x8] sm:$0xff]
  %v59 = vld [vmem:[%s3 + $0x10] sm:$0xff]
  %v60 = vld [vmem:[%s3 + $0x18] sm:$0xff]
  %v61 = vld [vmem:[%s3 + $0x20] sm:$0xff]
  %v62 = vld [vmem:[%s3 + $0x28] sm:$0xff]
  %v63 = vld [vmem:[%s3 + $0x30] sm:$0xff]
  %v64 = vld [vmem:[%s3 + $0x38] sm:$0xff]
  %vm65 = vcmp.eq.s32.totalorder %v41, 0
  %vm66 = vcmp.eq.s32.totalorder %v42, 0
  %v67 = vld [vmem:[%s3 + $0x4a] sm:$0x1]
  %v68 = vld [vmem:[%s3 + $0x4b] sm:$0x1]
  %v69 = vsel %vm65, 1, 0
  %v70 = vsel %vm66, 1, 0
  %71 = vset.pattern.permute.xlu0 1
  %72 = vperm.xlu0 %71, %v69
  %v73 = vpop.permute.xlu0 %72
  %74 = vset.pattern.permute.xlu0 1
  %75 = vperm.xlu0 %74, %v70
  %v76 = vpop.permute.xlu0 %75
  %vm77 = vcmp.eq.s32.totalorder %v73, 1
  %vm78 = vcmp.eq.s32.totalorder %v76, 1
  %v79 = vlaneseq
  %v80 = vshrl.u32 %v79, 7
  %v81 = vsub.s32 0, %v80
  %v82 = vrot.slane %v67, %v81
  %v83 = vlaneseq
  %v84 = vshrl.u32 %v83, 7
  %v85 = vsub.s32 0, %v84
  %v86 = vrot.slane %v68, %v85
  %v87 = vsel %vm77, %v82, %v86
  %v88 = vsel %vm78, %v82, %v86
  %v89 = vld [vmem:[%s3 + $0x40] sm:$0xff]
  %vm90 = vcmask 523264
  %v92 = vsel %vm90, %v55, 0
  %v95 = vsel %vm90, %v56, 0
  %97 = vmatprep.subr.mxu0 0.0
  %98 = vmatpush1.msra.mxu0 %v57
  %99 = vmatprep.subr.mxu0 0.0
  %100 = vmatpush1.msra.mxu0 %v58
  %101 = vmatprep.subr.mxu0 0.0
  %102 = vmatpush1.msra.mxu0 %v59
  %103 = vmatprep.subr.mxu0 0.0
  %104 = vmatpush1.msra.mxu0 %v60
  %105 = vmatprep.subr.mxu0 0.0
  %106 = vmatpush1.msra.mxu0 %v61
  %107 = vmatprep.subr.mxu0 0.0
  %108 = vmatpush1.msra.mxu0 %v62
  %109 = vmatprep.subr.mxu0 0.0
  %110 = vmatpush1.msra.mxu0 %v63
  %111 = vmatprep.subr.mxu0 0.0
  %112 = vmatpush1.msra.mxu0 %v64
  %113 = vmatprep.subr.mxu0 0.0
  %114 = vmatpush1.msra.mxu0 0.0
  %115 = vmatprep.subr.mxu0 0.0
  %116 = vmatpush1.msra.mxu0 0.0
  %117 = vmatprep.subr.mxu0 0.0
  %118 = vmatpush1.msra.mxu0 0.0
  %119 = vmatprep.subr.mxu0 0.0
  %120 = vmatpush1.msra.mxu0 0.0
  %121 = vmatprep.subr.mxu0 0.0
  %122 = vmatpush1.msra.mxu0 0.0
  %123 = vmatprep.subr.mxu0 0.0
  %124 = vmatpush1.msra.mxu0 0.0
  %125 = vmatprep.subr.mxu0 0.0
  %126 = vmatpush1.msra.mxu0 0.0
  %127 = vmatprep.subr.mxu0 0.0
  %128 = vmatpush1.msra.mxu0 0.0
  %129 = vmatprep.subr.mxu0 0.0
  %130 = vmatpush1.msra.mxu0 0.0
  %131 = vmatprep.subr.mxu0 0.0
  %132 = vmatpush1.msra.mxu0 0.0
  %133 = vmatprep.subr.mxu0 0.0
  %134 = vmatpush1.msra.mxu0 0.0
  %135 = vmatprep.subr.mxu0 0.0
  %136 = vmatpush1.msra.mxu0 0.0
  %137 = vmatprep.subr.mxu0 0.0
  %138 = vmatpush1.msra.mxu0 0.0
  %139 = vmatprep.subr.mxu0 0.0
  %140 = vmatpush1.msra.mxu0 0.0
  %141 = vmatprep.subr.mxu0 0.0
  %142 = vmatpush1.msra.mxu0 0.0
  %143 = vmatprep.subr.mxu0 0.0
  %144 = vmatpush1.msra.mxu0 0.0
  %145 = vmatprep.subr.mxu0 0.0
  %146 = vmatpush1.msra.mxu0 0.0
  %147 = vmatprep.subr.mxu0 0.0
  %148 = vmatpush1.msra.mxu0 0.0
  %149 = vmatprep.subr.mxu0 0.0
  %150 = vmatpush1.msra.mxu0 0.0
  %151 = vmatprep.subr.mxu0 0.0
  %152 = vmatpush1.msra.mxu0 0.0
  %153 = vmatprep.subr.mxu0 0.0
  %154 = vmatpush1.msra.mxu0 0.0
  %155 = vmatprep.subr.mxu0 0.0
  %156 = vmatpush1.msra.mxu0 0.0
  %157 = vmatprep.subr.mxu0 0.0
  %158 = vmatpush1.msra.mxu0 0.0
  %159 = vmatprep.subr.mxu0 0.0
  %160 = vmatpush1.msra.mxu0 0.0
  %161 = vmatprep.mubr.f32.mxu0 0.0
  %162 = vmatmul.mubr.f32.gmra.mrb[0].mxu0 %v92
  %v163 = vpop.f32.mrb[0].mxu0
  %v164 = vadd.f32 %v87, %v163
  %v165 = vpop.f32.mrb[0].mxu0
  %166 = vmatprep.mubr.f32.mxu0 0.0
  %167 = vmatmul.mubr.f32.gmra.mrb[0].mxu0 %v95
  %v168 = vpop.f32.mrb[0].mxu0
  %v169 = vadd.f32 %v88, %v168
  %v170 = vpop.f32.mrb[0].mxu0
  %171 = vdwg.mxu0
  %v172 = vadd.f32 %v164, %v89
  %v173 = vadd.f32 %v169, %v89
  %v174 = vld [vmem:[%s3 + $0x48] sm:$0x1]
  %v175 = vld [vmem:[%s3 + $0x49] sm:$0x1]
  %vm176 = vcmask 261120
  %v177 = vsel %vm176, %v172, 0.0
  %178 = vadd.xlane.f32.xlu0 %v177
  %v179 = vpop.xlane.xlu0 %178
  %v180 = vsel %vm176, %v173, 0.0
  %181 = vadd.xlane.f32.xlu0 %v180
  %v182 = vpop.xlane.xlu0 %181
  %v183 = vrcp.pop 32.0
  %v184 = vmul.f32 %v179, %v183
  %v185 = vmul.f32 %v182, %v183
  %v186 = vsub.f32 %v172, %v184
  %v187 = vsub.f32 %v173, %v185
  %v188 = vmul.f32 %v186, %v186
  %v189 = vmul.f32 %v187, %v187
  %v190 = vsel %vm176, %v188, 0.0
  %191 = vadd.xlane.f32.xlu0 %v190
  %v192 = vpop.xlane.xlu0 %191
  %v193 = vsel %vm176, %v189, 0.0
  %194 = vadd.xlane.f32.xlu0 %v193
  %v195 = vpop.xlane.xlu0 %194
  %v196 = vmul.f32 %v192, %v183
  %v197 = vmul.f32 %v195, %v183
  %v198 = vadd.f32 %v196, 1e-12
  %v199 = vadd.f32 %v197, 1e-12
  %v200 = vrsqrt.pop %v198
  %v201 = vrsqrt.pop %v199
  %v202 = vmul.f32 %v186, %v200
  %v203 = vmul.f32 %v187, %v201
  %v204 = vlaneseq
  %v205 = vshrl.u32 %v204, 7
  %v206 = vsub.s32 0, %v205
  %v207 = vrot.slane %v174, %v206
  %v208 = vmul.f32 %v202, %v207
  %v209 = vmul.f32 %v203, %v207
  %v210 = vlaneseq
  %v211 = vshrl.u32 %v210, 7
  %v212 = vsub.s32 0, %v211
  %v213 = vrot.slane %v175, %v212
  %v214 = vadd.f32 %v208, %v213
  %v215 = vadd.f32 %v209, %v213
  %v216 = vld [vmem:[%s2] sm:$0x1]
  %v217 = vld [vmem:[%s2 + $0x1] sm:$0x1]
  %v218 = vld [vmem:[%s7] sm:$0xff]
  %v219 = vld [vmem:[%s4] sm:$0xff]
  %v220 = vld [vmem:[%s4 + $0x8] sm:$0xff]
  %v221 = vld [vmem:[%s4 + $0x10] sm:$0xff]
  %v222 = vld [vmem:[%s4 + $0x18] sm:$0xff]
  %v223 = vld [vmem:[%s4 + $0x20] sm:$0xff]
  %v224 = vld [vmem:[%s4 + $0x28] sm:$0xff]
  %v225 = vld [vmem:[%s4 + $0x30] sm:$0xff]
  %v226 = vld [vmem:[%s4 + $0x38] sm:$0xff]
  %v227 = vld [vmem:[%s4 + $0x40] sm:$0xff]
  %v228 = vld [vmem:[%s4 + $0x48] sm:$0xff]
  %v229 = vld [vmem:[%s4 + $0x50] sm:$0xff]
  %v230 = vld [vmem:[%s4 + $0x58] sm:$0xff]
  %v231 = vld [vmem:[%s4 + $0x60] sm:$0xff]
  %v232 = vld [vmem:[%s4 + $0x68] sm:$0xff]
  %v233 = vld [vmem:[%s4 + $0x70] sm:$0xff]
  %v234 = vld [vmem:[%s4 + $0x78] sm:$0xff]
  %v235 = vld [vmem:[%s4 + $0x80] sm:$0xff]
  %v236 = vld [vmem:[%s4 + $0x88] sm:$0xff]
  %v237 = vld [vmem:[%s4 + $0x90] sm:$0xff]
  %v238 = vld [vmem:[%s4 + $0x98] sm:$0xff]
  %v239 = vld [vmem:[%s4 + $0xa0] sm:$0xff]
  %v240 = vld [vmem:[%s4 + $0xa8] sm:$0xff]
  %v241 = vld [vmem:[%s4 + $0xb0] sm:$0xff]
  %v242 = vld [vmem:[%s4 + $0xb8] sm:$0xff]
  %v243 = vld [vmem:[%s4 + $0xc0] sm:$0xff]
  %v244 = vld [vmem:[%s4 + $0xc8] sm:$0xff]
  %v245 = vld [vmem:[%s4 + $0xd0] sm:$0xff]
  %v246 = vld [vmem:[%s4 + $0xd8] sm:$0xff]
  %v247 = vld [vmem:[%s4 + $0xe0] sm:$0xff]
  %v248 = vld [vmem:[%s4 + $0xe8] sm:$0xff]
  %v249 = vld [vmem:[%s4 + $0xf0] sm:$0xff]
  %v250 = vld [vmem:[%s4 + $0xf8] sm:$0xff]
  %v251 = vld [vmem:[%s5] sm:$0x1]
  %v252 = vld [vmem:[%s5 + $0x1] sm:$0x1]
  %v253 = vld [vmem:[%s5 + $0x2] sm:$0x1]
  %v254 = vld [vmem:[%s5 + $0x3] sm:$0x1]
  %v255 = vld [vmem:[%s5 + $0x4] sm:$0x1]
  %v256 = vld [vmem:[%s5 + $0x5] sm:$0x1]
  %v257 = vld [vmem:[%s5 + $0x6] sm:$0x1]
  %v258 = vld [vmem:[%s5 + $0x7] sm:$0x1]
  %v259 = vld [vmem:[%s6] sm:$0xff]
  %v260 = vld [vmem:[%s6 + $0x8] sm:$0xff]
  %v261 = vld [vmem:[%s6 + $0x10] sm:$0xff]
  %v262 = vld [vmem:[%s6 + $0x18] sm:$0xff]
  %v263 = vld [vmem:[%s6 + $0x20] sm:$0xff]
  %v264 = vld [vmem:[%s6 + $0x28] sm:$0xff]
  %v265 = vld [vmem:[%s6 + $0x30] sm:$0xff]
  %v266 = vld [vmem:[%s6 + $0x38] sm:$0xff]
  %v275 = vlaneseq
  %v276 = vshrl.u32 %v275, 7
  %v277 = vsub.s32 0, %v276
  %v278 = vrot.slane %v251, %v277
  %v279 = vlaneseq
  %v280 = vshrl.u32 %v279, 7
  %v281 = vsub.s32 0, %v280
  %v282 = vrot.slane %v252, %v281
  %v283 = vlaneseq
  %v284 = vshrl.u32 %v283, 7
  %v285 = vsub.s32 0, %v284
  %v286 = vrot.slane %v253, %v285
  %v287 = vlaneseq
  %v288 = vshrl.u32 %v287, 7
  %v289 = vsub.s32 0, %v288
  %v290 = vrot.slane %v254, %v289
  %v291 = vlaneseq
  %v292 = vshrl.u32 %v291, 7
  %v293 = vsub.s32 0, %v292
  %v294 = vrot.slane %v255, %v293
  %v295 = vlaneseq
  %v296 = vshrl.u32 %v295, 7
  %v297 = vsub.s32 0, %v296
  %v298 = vrot.slane %v256, %v297
  %v299 = vlaneseq
  %v300 = vshrl.u32 %v299, 7
  %v301 = vsub.s32 0, %v300
  %v302 = vrot.slane %v257, %v301
  %v303 = vlaneseq
  %v304 = vshrl.u32 %v303, 7
  %v305 = vsub.s32 0, %v304
  %v306 = vrot.slane %v258, %v305
  %v316 = vsel %vm176, %v214, 0
  %318 = vmatprep.subr.mxu0 0.0
  %319 = vmatpush1.msra.mxu0 %v219
  %320 = vmatprep.subr.mxu0 0.0
  %321 = vmatpush1.msra.mxu0 %v220
  %322 = vmatprep.subr.mxu0 0.0
  %323 = vmatpush1.msra.mxu0 %v221
  %324 = vmatprep.subr.mxu0 0.0
  %325 = vmatpush1.msra.mxu0 %v222
  %326 = vmatprep.subr.mxu0 0.0
  %327 = vmatpush1.msra.mxu0 0.0
  %328 = vmatprep.subr.mxu0 0.0
  %329 = vmatpush1.msra.mxu0 0.0
  %330 = vmatprep.subr.mxu0 0.0
  %331 = vmatpush1.msra.mxu0 0.0
  %332 = vmatprep.subr.mxu0 0.0
  %333 = vmatpush1.msra.mxu0 0.0
  %334 = vmatprep.subr.mxu0 0.0
  %335 = vmatpush1.msra.mxu0 0.0
  %336 = vmatprep.subr.mxu0 0.0
  %337 = vmatpush1.msra.mxu0 0.0
  %338 = vmatprep.subr.mxu0 0.0
  %339 = vmatpush1.msra.mxu0 0.0
  %340 = vmatprep.subr.mxu0 0.0
  %341 = vmatpush1.msra.mxu0 0.0
  %342 = vmatprep.subr.mxu0 0.0
  %343 = vmatpush1.msra.mxu0 0.0
  %344 = vmatprep.subr.mxu0 0.0
  %345 = vmatpush1.msra.mxu0 0.0
  %346 = vmatprep.subr.mxu0 0.0
  %347 = vmatpush1.msra.mxu0 0.0
  %348 = vmatprep.subr.mxu0 0.0
  %349 = vmatpush1.msra.mxu0 0.0
  %350 = vmatprep.subr.mxu0 0.0
  %351 = vmatpush1.msra.mxu0 0.0
  %352 = vmatprep.subr.mxu0 0.0
  %353 = vmatpush1.msra.mxu0 0.0
  %354 = vmatprep.subr.mxu0 0.0
  %355 = vmatpush1.msra.mxu0 0.0
  %356 = vmatprep.subr.mxu0 0.0
  %357 = vmatpush1.msra.mxu0 0.0
  %358 = vmatprep.subr.mxu0 0.0
  %359 = vmatpush1.msra.mxu0 0.0
  %360 = vmatprep.subr.mxu0 0.0
  %361 = vmatpush1.msra.mxu0 0.0
  %362 = vmatprep.subr.mxu0 0.0
  %363 = vmatpush1.msra.mxu0 0.0
  %364 = vmatprep.subr.mxu0 0.0
  %365 = vmatpush1.msra.mxu0 0.0
  %366 = vmatprep.subr.mxu0 0.0
  %367 = vmatpush1.msra.mxu0 0.0
  %368 = vmatprep.subr.mxu0 0.0
  %369 = vmatpush1.msra.mxu0 0.0
  %370 = vmatprep.subr.mxu0 0.0
  %371 = vmatpush1.msra.mxu0 0.0
  %372 = vmatprep.subr.mxu0 0.0
  %373 = vmatpush1.msra.mxu0 0.0
  %374 = vmatprep.subr.mxu0 0.0
  %375 = vmatpush1.msra.mxu0 0.0
  %376 = vmatprep.subr.mxu0 0.0
  %377 = vmatpush1.msra.mxu0 0.0
  %378 = vmatprep.subr.mxu0 0.0
  %379 = vmatpush1.msra.mxu0 0.0
  %380 = vmatprep.subr.mxu0 0.0
  %381 = vmatpush1.msra.mxu0 0.0
  %382 = vmatprep.mubr.f32.mxu0 0.0
  %383 = vmatmul.mubr.f32.gmra.mrb[0].mxu0 %v316
  %v384 = vpop.f32.mrb[0].mxu0
  %v385 = vadd.f32 %v278, %v384
  %v386 = vpop.f32.mrb[0].mxu0
  %387 = vdwg.mxu0
  %v389 = vsel %vm176, %v215, 0
  %391 = vmatprep.subr.mxu0 0.0
  %392 = vmatpush1.msra.mxu0 %v223
  %393 = vmatprep.subr.mxu0 0.0
  %394 = vmatpush1.msra.mxu0 %v224
  %395 = vmatprep.subr.mxu0 0.0
  %396 = vmatpush1.msra.mxu0 %v225
  %397 = vmatprep.subr.mxu0 0.0
  %398 = vmatpush1.msra.mxu0 %v226
  %399 = vmatprep.subr.mxu0 0.0
  %400 = vmatpush1.msra.mxu0 0.0
  %401 = vmatprep.subr.mxu0 0.0
  %402 = vmatpush1.msra.mxu0 0.0
  %403 = vmatprep.subr.mxu0 0.0
  %404 = vmatpush1.msra.mxu0 0.0
  %405 = vmatprep.subr.mxu0 0.0
  %406 = vmatpush1.msra.mxu0 0.0
  %407 = vmatprep.subr.mxu0 0.0
  %408 = vmatpush1.msra.mxu0 0.0
  %409 = vmatprep.subr.mxu0 0.0
  %410 = vmatpush1.msra.mxu0 0.0
  %411 = vmatprep.subr.mxu0 0.0
  %412 = vmatpush1.msra.mxu0 0.0
  %413 = vmatprep.subr.mxu0 0.0
  %414 = vmatpush1.msra.mxu0 0.0
  %415 = vmatprep.subr.mxu0 0.0
  %416 = vmatpush1.msra.mxu0 0.0
  %417 = vmatprep.subr.mxu0 0.0
  %418 = vmatpush1.msra.mxu0 0.0
  %419 = vmatprep.subr.mxu0 0.0
  %420 = vmatpush1.msra.mxu0 0.0
  %421 = vmatprep.subr.mxu0 0.0
  %422 = vmatpush1.msra.mxu0 0.0
  %423 = vmatprep.subr.mxu0 0.0
  %424 = vmatpush1.msra.mxu0 0.0
  %425 = vmatprep.subr.mxu0 0.0
  %426 = vmatpush1.msra.mxu0 0.0
  %427 = vmatprep.subr.mxu0 0.0
  %428 = vmatpush1.msra.mxu0 0.0
  %429 = vmatprep.subr.mxu0 0.0
  %430 = vmatpush1.msra.mxu0 0.0
  %431 = vmatprep.subr.mxu0 0.0
  %432 = vmatpush1.msra.mxu0 0.0
  %433 = vmatprep.subr.mxu0 0.0
  %434 = vmatpush1.msra.mxu0 0.0
  %435 = vmatprep.subr.mxu0 0.0
  %436 = vmatpush1.msra.mxu0 0.0
  %437 = vmatprep.subr.mxu0 0.0
  %438 = vmatpush1.msra.mxu0 0.0
  %439 = vmatprep.subr.mxu0 0.0
  %440 = vmatpush1.msra.mxu0 0.0
  %441 = vmatprep.subr.mxu0 0.0
  %442 = vmatpush1.msra.mxu0 0.0
  %443 = vmatprep.subr.mxu0 0.0
  %444 = vmatpush1.msra.mxu0 0.0
  %445 = vmatprep.subr.mxu0 0.0
  %446 = vmatpush1.msra.mxu0 0.0
  %447 = vmatprep.subr.mxu0 0.0
  %448 = vmatpush1.msra.mxu0 0.0
  %449 = vmatprep.subr.mxu0 0.0
  %450 = vmatpush1.msra.mxu0 0.0
  %451 = vmatprep.subr.mxu0 0.0
  %452 = vmatpush1.msra.mxu0 0.0
  %453 = vmatprep.subr.mxu0 0.0
  %454 = vmatpush1.msra.mxu0 0.0
  %455 = vmatprep.mubr.f32.mxu0 0.0
  %456 = vmatmul.mubr.f32.gmra.mrb[0].mxu0 %v389
  %v457 = vpop.f32.mrb[0].mxu0
  %v458 = vadd.f32 %v282, %v457
  %v459 = vpop.f32.mrb[0].mxu0
  %460 = vdwg.mxu0
  %461 = vmatprep.subr.mxu0 0.0
  %462 = vmatpush1.msra.mxu0 %v227
  %463 = vmatprep.subr.mxu0 0.0
  %464 = vmatpush1.msra.mxu0 %v228
  %465 = vmatprep.subr.mxu0 0.0
  %466 = vmatpush1.msra.mxu0 %v229
  %467 = vmatprep.subr.mxu0 0.0
  %468 = vmatpush1.msra.mxu0 %v230
  %469 = vmatprep.subr.mxu0 0.0
  %470 = vmatpush1.msra.mxu0 0.0
  %471 = vmatprep.subr.mxu0 0.0
  %472 = vmatpush1.msra.mxu0 0.0
  %473 = vmatprep.subr.mxu0 0.0
  %474 = vmatpush1.msra.mxu0 0.0
  %475 = vmatprep.subr.mxu0 0.0
  %476 = vmatpush1.msra.mxu0 0.0
  %477 = vmatprep.subr.mxu0 0.0
  %478 = vmatpush1.msra.mxu0 0.0
  %479 = vmatprep.subr.mxu0 0.0
  %480 = vmatpush1.msra.mxu0 0.0
  %481 = vmatprep.subr.mxu0 0.0
  %482 = vmatpush1.msra.mxu0 0.0
  %483 = vmatprep.subr.mxu0 0.0
  %484 = vmatpush1.msra.mxu0 0.0
  %485 = vmatprep.subr.mxu0 0.0
  %486 = vmatpush1.msra.mxu0 0.0
  %487 = vmatprep.subr.mxu0 0.0
  %488 = vmatpush1.msra.mxu0 0.0
  %489 = vmatprep.subr.mxu0 0.0
  %490 = vmatpush1.msra.mxu0 0.0
  %491 = vmatprep.subr.mxu0 0.0
  %492 = vmatpush1.msra.mxu0 0.0
  %493 = vmatprep.subr.mxu0 0.0
  %494 = vmatpush1.msra.mxu0 0.0
  %495 = vmatprep.subr.mxu0 0.0
  %496 = vmatpush1.msra.mxu0 0.0
  %497 = vmatprep.subr.mxu0 0.0
  %498 = vmatpush1.msra.mxu0 0.0
  %499 = vmatprep.subr.mxu0 0.0
  %500 = vmatpush1.msra.mxu0 0.0
  %501 = vmatprep.subr.mxu0 0.0
  %502 = vmatpush1.msra.mxu0 0.0
  %503 = vmatprep.subr.mxu0 0.0
  %504 = vmatpush1.msra.mxu0 0.0
  %505 = vmatprep.subr.mxu0 0.0
  %506 = vmatpush1.msra.mxu0 0.0
  %507 = vmatprep.subr.mxu0 0.0
  %508 = vmatpush1.msra.mxu0 0.0
  %509 = vmatprep.subr.mxu0 0.0
  %510 = vmatpush1.msra.mxu0 0.0
  %511 = vmatprep.subr.mxu0 0.0
  %512 = vmatpush1.msra.mxu0 0.0
  %513 = vmatprep.subr.mxu0 0.0
  %514 = vmatpush1.msra.mxu0 0.0
  %515 = vmatprep.subr.mxu0 0.0
  %516 = vmatpush1.msra.mxu0 0.0
  %517 = vmatprep.subr.mxu0 0.0
  %518 = vmatpush1.msra.mxu0 0.0
  %519 = vmatprep.subr.mxu0 0.0
  %520 = vmatpush1.msra.mxu0 0.0
  %521 = vmatprep.subr.mxu0 0.0
  %522 = vmatpush1.msra.mxu0 0.0
  %523 = vmatprep.subr.mxu0 0.0
  %524 = vmatpush1.msra.mxu0 0.0
  %525 = vmatprep.mubr.f32.mxu0 0.0
  %526 = vmatmul.mubr.f32.gmra.mrb[0].mxu0 %v316
  %v527 = vpop.f32.mrb[0].mxu0
  %v528 = vadd.f32 %v286, %v527
  %v529 = vpop.f32.mrb[0].mxu0
  %530 = vdwg.mxu0
  %531 = vmatprep.subr.mxu0 0.0
  %532 = vmatpush1.msra.mxu0 %v231
  %533 = vmatprep.subr.mxu0 0.0
  %534 = vmatpush1.msra.mxu0 %v232
  %535 = vmatprep.subr.mxu0 0.0
  %536 = vmatpush1.msra.mxu0 %v233
  %537 = vmatprep.subr.mxu0 0.0
  %538 = vmatpush1.msra.mxu0 %v234
  %539 = vmatprep.subr.mxu0 0.0
  %540 = vmatpush1.msra.mxu0 0.0
  %541 = vmatprep.subr.mxu0 0.0
  %542 = vmatpush1.msra.mxu0 0.0
  %543 = vmatprep.subr.mxu0 0.0
  %544 = vmatpush1.msra.mxu0 0.0
  %545 = vmatprep.subr.mxu0 0.0
  %546 = vmatpush1.msra.mxu0 0.0
  %547 = vmatprep.subr.mxu0 0.0
  %548 = vmatpush1.msra.mxu0 0.0
  %549 = vmatprep.subr.mxu0 0.0
  %550 = vmatpush1.msra.mxu0 0.0
  %551 = vmatprep.subr.mxu0 0.0
  %552 = vmatpush1.msra.mxu0 0.0
  %553 = vmatprep.subr.mxu0 0.0
  %554 = vmatpush1.msra.mxu0 0.0
  %555 = vmatprep.subr.mxu0 0.0
  %556 = vmatpush1.msra.mxu0 0.0
  %557 = vmatprep.subr.mxu0 0.0
  %558 = vmatpush1.msra.mxu0 0.0
  %559 = vmatprep.subr.mxu0 0.0
  %560 = vmatpush1.msra.mxu0 0.0
  %561 = vmatprep.subr.mxu0 0.0
  %562 = vmatpush1.msra.mxu0 0.0
  %563 = vmatprep.subr.mxu0 0.0
  %564 = vmatpush1.msra.mxu0 0.0
  %565 = vmatprep.subr.mxu0 0.0
  %566 = vmatpush1.msra.mxu0 0.0
  %567 = vmatprep.subr.mxu0 0.0
  %568 = vmatpush1.msra.mxu0 0.0
  %569 = vmatprep.subr.mxu0 0.0
  %570 = vmatpush1.msra.mxu0 0.0
  %571 = vmatprep.subr.mxu0 0.0
  %572 = vmatpush1.msra.mxu0 0.0
  %573 = vmatprep.subr.mxu0 0.0
  %574 = vmatpush1.msra.mxu0 0.0
  %575 = vmatprep.subr.mxu0 0.0
  %576 = vmatpush1.msra.mxu0 0.0
  %577 = vmatprep.subr.mxu0 0.0
  %578 = vmatpush1.msra.mxu0 0.0
  %579 = vmatprep.subr.mxu0 0.0
  %580 = vmatpush1.msra.mxu0 0.0
  %581 = vmatprep.subr.mxu0 0.0
  %582 = vmatpush1.msra.mxu0 0.0
  %583 = vmatprep.subr.mxu0 0.0
  %584 = vmatpush1.msra.mxu0 0.0
  %585 = vmatprep.subr.mxu0 0.0
  %586 = vmatpush1.msra.mxu0 0.0
  %587 = vmatprep.subr.mxu0 0.0
  %588 = vmatpush1.msra.mxu0 0.0
  %589 = vmatprep.subr.mxu0 0.0
  %590 = vmatpush1.msra.mxu0 0.0
  %591 = vmatprep.subr.mxu0 0.0
  %592 = vmatpush1.msra.mxu0 0.0
  %593 = vmatprep.subr.mxu0 0.0
  %594 = vmatpush1.msra.mxu0 0.0
  %595 = vmatprep.mubr.f32.mxu0 0.0
  %596 = vmatmul.mubr.f32.gmra.mrb[0].mxu0 %v389
  %v597 = vpop.f32.mrb[0].mxu0
  %v598 = vadd.f32 %v290, %v597
  %v599 = vpop.f32.mrb[0].mxu0
  %600 = vdwg.mxu0
  %601 = vmatprep.subr.mxu0 0.0
  %602 = vmatpush1.msra.mxu0 %v235
  %603 = vmatprep.subr.mxu0 0.0
  %604 = vmatpush1.msra.mxu0 %v236
  %605 = vmatprep.subr.mxu0 0.0
  %606 = vmatpush1.msra.mxu0 %v237
  %607 = vmatprep.subr.mxu0 0.0
  %608 = vmatpush1.msra.mxu0 %v238
  %609 = vmatprep.subr.mxu0 0.0
  %610 = vmatpush1.msra.mxu0 0.0
  %611 = vmatprep.subr.mxu0 0.0
  %612 = vmatpush1.msra.mxu0 0.0
  %613 = vmatprep.subr.mxu0 0.0
  %614 = vmatpush1.msra.mxu0 0.0
  %615 = vmatprep.subr.mxu0 0.0
  %616 = vmatpush1.msra.mxu0 0.0
  %617 = vmatprep.subr.mxu0 0.0
  %618 = vmatpush1.msra.mxu0 0.0
  %619 = vmatprep.subr.mxu0 0.0
  %620 = vmatpush1.msra.mxu0 0.0
  %621 = vmatprep.subr.mxu0 0.0
  %622 = vmatpush1.msra.mxu0 0.0
  %623 = vmatprep.subr.mxu0 0.0
  %624 = vmatpush1.msra.mxu0 0.0
  %625 = vmatprep.subr.mxu0 0.0
  %626 = vmatpush1.msra.mxu0 0.0
  %627 = vmatprep.subr.mxu0 0.0
  %628 = vmatpush1.msra.mxu0 0.0
  %629 = vmatprep.subr.mxu0 0.0
  %630 = vmatpush1.msra.mxu0 0.0
  %631 = vmatprep.subr.mxu0 0.0
  %632 = vmatpush1.msra.mxu0 0.0
  %633 = vmatprep.subr.mxu0 0.0
  %634 = vmatpush1.msra.mxu0 0.0
  %635 = vmatprep.subr.mxu0 0.0
  %636 = vmatpush1.msra.mxu0 0.0
  %637 = vmatprep.subr.mxu0 0.0
  %638 = vmatpush1.msra.mxu0 0.0
  %639 = vmatprep.subr.mxu0 0.0
  %640 = vmatpush1.msra.mxu0 0.0
  %641 = vmatprep.subr.mxu0 0.0
  %642 = vmatpush1.msra.mxu0 0.0
  %643 = vmatprep.subr.mxu0 0.0
  %644 = vmatpush1.msra.mxu0 0.0
  %645 = vmatprep.subr.mxu0 0.0
  %646 = vmatpush1.msra.mxu0 0.0
  %647 = vmatprep.subr.mxu0 0.0
  %648 = vmatpush1.msra.mxu0 0.0
  %649 = vmatprep.subr.mxu0 0.0
  %650 = vmatpush1.msra.mxu0 0.0
  %651 = vmatprep.subr.mxu0 0.0
  %652 = vmatpush1.msra.mxu0 0.0
  %653 = vmatprep.subr.mxu0 0.0
  %654 = vmatpush1.msra.mxu0 0.0
  %655 = vmatprep.subr.mxu0 0.0
  %656 = vmatpush1.msra.mxu0 0.0
  %657 = vmatprep.subr.mxu0 0.0
  %658 = vmatpush1.msra.mxu0 0.0
  %659 = vmatprep.subr.mxu0 0.0
  %660 = vmatpush1.msra.mxu0 0.0
  %661 = vmatprep.subr.mxu0 0.0
  %662 = vmatpush1.msra.mxu0 0.0
  %663 = vmatprep.subr.mxu0 0.0
  %664 = vmatpush1.msra.mxu0 0.0
  %665 = vmatprep.mubr.f32.mxu0 0.0
  %666 = vmatmul.mubr.f32.gmra.mrb[0].mxu0 %v316
  %v667 = vpop.f32.mrb[0].mxu0
  %v668 = vadd.f32 %v294, %v667
  %v669 = vpop.f32.mrb[0].mxu0
  %670 = vdwg.mxu0
  %671 = vmatprep.subr.mxu0 0.0
  %672 = vmatpush1.msra.mxu0 %v239
  %673 = vmatprep.subr.mxu0 0.0
  %674 = vmatpush1.msra.mxu0 %v240
  %675 = vmatprep.subr.mxu0 0.0
  %676 = vmatpush1.msra.mxu0 %v241
  %677 = vmatprep.subr.mxu0 0.0
  %678 = vmatpush1.msra.mxu0 %v242
  %679 = vmatprep.subr.mxu0 0.0
  %680 = vmatpush1.msra.mxu0 0.0
  %681 = vmatprep.subr.mxu0 0.0
  %682 = vmatpush1.msra.mxu0 0.0
  %683 = vmatprep.subr.mxu0 0.0
  %684 = vmatpush1.msra.mxu0 0.0
  %685 = vmatprep.subr.mxu0 0.0
  %686 = vmatpush1.msra.mxu0 0.0
  %687 = vmatprep.subr.mxu0 0.0
  %688 = vmatpush1.msra.mxu0 0.0
  %689 = vmatprep.subr.mxu0 0.0
  %690 = vmatpush1.msra.mxu0 0.0
  %691 = vmatprep.subr.mxu0 0.0
  %692 = vmatpush1.msra.mxu0 0.0
  %693 = vmatprep.subr.mxu0 0.0
  %694 = vmatpush1.msra.mxu0 0.0
  %695 = vmatprep.subr.mxu0 0.0
  %696 = vmatpush1.msra.mxu0 0.0
  %697 = vmatprep.subr.mxu0 0.0
  %698 = vmatpush1.msra.mxu0 0.0
  %699 = vmatprep.subr.mxu0 0.0
  %700 = vmatpush1.msra.mxu0 0.0
  %701 = vmatprep.subr.mxu0 0.0
  %702 = vmatpush1.msra.mxu0 0.0
  %703 = vmatprep.subr.mxu0 0.0
  %704 = vmatpush1.msra.mxu0 0.0
  %705 = vmatprep.subr.mxu0 0.0
  %706 = vmatpush1.msra.mxu0 0.0
  %707 = vmatprep.subr.mxu0 0.0
  %708 = vmatpush1.msra.mxu0 0.0
  %709 = vmatprep.subr.mxu0 0.0
  %710 = vmatpush1.msra.mxu0 0.0
  %711 = vmatprep.subr.mxu0 0.0
  %712 = vmatpush1.msra.mxu0 0.0
  %713 = vmatprep.subr.mxu0 0.0
  %714 = vmatpush1.msra.mxu0 0.0
  %715 = vmatprep.subr.mxu0 0.0
  %716 = vmatpush1.msra.mxu0 0.0
  %717 = vmatprep.subr.mxu0 0.0
  %718 = vmatpush1.msra.mxu0 0.0
  %719 = vmatprep.subr.mxu0 0.0
  %720 = vmatpush1.msra.mxu0 0.0
  %721 = vmatprep.subr.mxu0 0.0
  %722 = vmatpush1.msra.mxu0 0.0
  %723 = vmatprep.subr.mxu0 0.0
  %724 = vmatpush1.msra.mxu0 0.0
  %725 = vmatprep.subr.mxu0 0.0
  %726 = vmatpush1.msra.mxu0 0.0
  %727 = vmatprep.subr.mxu0 0.0
  %728 = vmatpush1.msra.mxu0 0.0
  %729 = vmatprep.subr.mxu0 0.0
  %730 = vmatpush1.msra.mxu0 0.0
  %731 = vmatprep.subr.mxu0 0.0
  %732 = vmatpush1.msra.mxu0 0.0
  %733 = vmatprep.subr.mxu0 0.0
  %734 = vmatpush1.msra.mxu0 0.0
  %735 = vmatprep.mubr.f32.mxu0 0.0
  %736 = vmatmul.mubr.f32.gmra.mrb[0].mxu0 %v389
  %v737 = vpop.f32.mrb[0].mxu0
  %v738 = vadd.f32 %v298, %v737
  %v739 = vpop.f32.mrb[0].mxu0
  %740 = vdwg.mxu0
  %741 = vmatprep.subr.mxu0 0.0
  %742 = vmatpush1.msra.mxu0 %v243
  %743 = vmatprep.subr.mxu0 0.0
  %744 = vmatpush1.msra.mxu0 %v244
  %745 = vmatprep.subr.mxu0 0.0
  %746 = vmatpush1.msra.mxu0 %v245
  %747 = vmatprep.subr.mxu0 0.0
  %748 = vmatpush1.msra.mxu0 %v246
  %749 = vmatprep.subr.mxu0 0.0
  %750 = vmatpush1.msra.mxu0 0.0
  %751 = vmatprep.subr.mxu0 0.0
  %752 = vmatpush1.msra.mxu0 0.0
  %753 = vmatprep.subr.mxu0 0.0
  %754 = vmatpush1.msra.mxu0 0.0
  %755 = vmatprep.subr.mxu0 0.0
  %756 = vmatpush1.msra.mxu0 0.0
  %757 = vmatprep.subr.mxu0 0.0
  %758 = vmatpush1.msra.mxu0 0.0
  %759 = vmatprep.subr.mxu0 0.0
  %760 = vmatpush1.msra.mxu0 0.0
  %761 = vmatprep.subr.mxu0 0.0
  %762 = vmatpush1.msra.mxu0 0.0
  %763 = vmatprep.subr.mxu0 0.0
  %764 = vmatpush1.msra.mxu0 0.0
  %765 = vmatprep.subr.mxu0 0.0
  %766 = vmatpush1.msra.mxu0 0.0
  %767 = vmatprep.subr.mxu0 0.0
  %768 = vmatpush1.msra.mxu0 0.0
  %769 = vmatprep.subr.mxu0 0.0
  %770 = vmatpush1.msra.mxu0 0.0
  %771 = vmatprep.subr.mxu0 0.0
  %772 = vmatpush1.msra.mxu0 0.0
  %773 = vmatprep.subr.mxu0 0.0
  %774 = vmatpush1.msra.mxu0 0.0
  %775 = vmatprep.subr.mxu0 0.0
  %776 = vmatpush1.msra.mxu0 0.0
  %777 = vmatprep.subr.mxu0 0.0
  %778 = vmatpush1.msra.mxu0 0.0
  %779 = vmatprep.subr.mxu0 0.0
  %780 = vmatpush1.msra.mxu0 0.0
  %781 = vmatprep.subr.mxu0 0.0
  %782 = vmatpush1.msra.mxu0 0.0
  %783 = vmatprep.subr.mxu0 0.0
  %784 = vmatpush1.msra.mxu0 0.0
  %785 = vmatprep.subr.mxu0 0.0
  %786 = vmatpush1.msra.mxu0 0.0
  %787 = vmatprep.subr.mxu0 0.0
  %788 = vmatpush1.msra.mxu0 0.0
  %789 = vmatprep.subr.mxu0 0.0
  %790 = vmatpush1.msra.mxu0 0.0
  %791 = vmatprep.subr.mxu0 0.0
  %792 = vmatpush1.msra.mxu0 0.0
  %793 = vmatprep.subr.mxu0 0.0
  %794 = vmatpush1.msra.mxu0 0.0
  %795 = vmatprep.subr.mxu0 0.0
  %796 = vmatpush1.msra.mxu0 0.0
  %797 = vmatprep.subr.mxu0 0.0
  %798 = vmatpush1.msra.mxu0 0.0
  %799 = vmatprep.subr.mxu0 0.0
  %800 = vmatpush1.msra.mxu0 0.0
  %801 = vmatprep.subr.mxu0 0.0
  %802 = vmatpush1.msra.mxu0 0.0
  %803 = vmatprep.subr.mxu0 0.0
  %804 = vmatpush1.msra.mxu0 0.0
  %805 = vmatprep.mubr.f32.mxu0 0.0
  %806 = vmatmul.mubr.f32.gmra.mrb[0].mxu0 %v316
  %v807 = vpop.f32.mrb[0].mxu0
  %v808 = vadd.f32 %v302, %v807
  %v809 = vpop.f32.mrb[0].mxu0
  %810 = vdwg.mxu0
  %811 = vmatprep.subr.mxu0 0.0
  %812 = vmatpush1.msra.mxu0 %v247
  %813 = vmatprep.subr.mxu0 0.0
  %814 = vmatpush1.msra.mxu0 %v248
  %815 = vmatprep.subr.mxu0 0.0
  %816 = vmatpush1.msra.mxu0 %v249
  %817 = vmatprep.subr.mxu0 0.0
  %818 = vmatpush1.msra.mxu0 %v250
  %819 = vmatprep.subr.mxu0 0.0
  %820 = vmatpush1.msra.mxu0 0.0
  %821 = vmatprep.subr.mxu0 0.0
  %822 = vmatpush1.msra.mxu0 0.0
  %823 = vmatprep.subr.mxu0 0.0
  %824 = vmatpush1.msra.mxu0 0.0
  %825 = vmatprep.subr.mxu0 0.0
  %826 = vmatpush1.msra.mxu0 0.0
  %827 = vmatprep.subr.mxu0 0.0
  %828 = vmatpush1.msra.mxu0 0.0
  %829 = vmatprep.subr.mxu0 0.0
  %830 = vmatpush1.msra.mxu0 0.0
  %831 = vmatprep.subr.mxu0 0.0
  %832 = vmatpush1.msra.mxu0 0.0
  %833 = vmatprep.subr.mxu0 0.0
  %834 = vmatpush1.msra.mxu0 0.0
  %835 = vmatprep.subr.mxu0 0.0
  %836 = vmatpush1.msra.mxu0 0.0
  %837 = vmatprep.subr.mxu0 0.0
  %838 = vmatpush1.msra.mxu0 0.0
  %839 = vmatprep.subr.mxu0 0.0
  %840 = vmatpush1.msra.mxu0 0.0
  %841 = vmatprep.subr.mxu0 0.0
  %842 = vmatpush1.msra.mxu0 0.0
  %843 = vmatprep.subr.mxu0 0.0
  %844 = vmatpush1.msra.mxu0 0.0
  %845 = vmatprep.subr.mxu0 0.0
  %846 = vmatpush1.msra.mxu0 0.0
  %847 = vmatprep.subr.mxu0 0.0
  %848 = vmatpush1.msra.mxu0 0.0
  %849 = vmatprep.subr.mxu0 0.0
  %850 = vmatpush1.msra.mxu0 0.0
  %851 = vmatprep.subr.mxu0 0.0
  %852 = vmatpush1.msra.mxu0 0.0
  %853 = vmatprep.subr.mxu0 0.0
  %854 = vmatpush1.msra.mxu0 0.0
  %855 = vmatprep.subr.mxu0 0.0
  %856 = vmatpush1.msra.mxu0 0.0
  %857 = vmatprep.subr.mxu0 0.0
  %858 = vmatpush1.msra.mxu0 0.0
  %859 = vmatprep.subr.mxu0 0.0
  %860 = vmatpush1.msra.mxu0 0.0
  %861 = vmatprep.subr.mxu0 0.0
  %862 = vmatpush1.msra.mxu0 0.0
  %863 = vmatprep.subr.mxu0 0.0
  %864 = vmatpush1.msra.mxu0 0.0
  %865 = vmatprep.subr.mxu0 0.0
  %866 = vmatpush1.msra.mxu0 0.0
  %867 = vmatprep.subr.mxu0 0.0
  %868 = vmatpush1.msra.mxu0 0.0
  %869 = vmatprep.subr.mxu0 0.0
  %870 = vmatpush1.msra.mxu0 0.0
  %871 = vmatprep.subr.mxu0 0.0
  %872 = vmatpush1.msra.mxu0 0.0
  %873 = vmatprep.subr.mxu0 0.0
  %874 = vmatpush1.msra.mxu0 0.0
  %875 = vmatprep.mubr.f32.mxu0 0.0
  %876 = vmatmul.mubr.f32.gmra.mrb[0].mxu0 %v389
  %v877 = vpop.f32.mrb[0].mxu0
  %v878 = vadd.f32 %v306, %v877
  %v879 = vpop.f32.mrb[0].mxu0
  %880 = vdwg.mxu0
  %v883 = vlaneseq
  %v884 = vshrl.u32 %v883, 7
  %v885 = vsub.s32 0, %v884
  %v886 = vrot.slane %v216, %v885
  %v887 = vlaneseq
  %v888 = vshrl.u32 %v887, 7
  %v889 = vsub.s32 0, %v888
  %v890 = vrot.slane %v217, %v889
  %894 = vrot.lane.b32.xlu0 %v385, 120
  %v895 = vpop.permute.xlu0 %894
  %vm896 = vcmask 64512
  %v897 = vsel %vm896, %v385, 0
  %v899 = vsel %vm896, %v895, 0
  %901 = vmatprep.subr.mxu0 0.0
  %902 = vmatpush1.xpose.msra.mxu0 %v899
  %903 = vmatprep.subr.mxu0 0.0
  %904 = vmatpush1.xpose.msra.mxu0 0.0
  %905 = vmatprep.subr.mxu0 0.0
  %906 = vmatpush1.xpose.msra.mxu0 0.0
  %907 = vmatprep.subr.mxu0 0.0
  %908 = vmatpush1.xpose.msra.mxu0 0.0
  %909 = vmatprep.subr.mxu0 0.0
  %910 = vmatpush1.xpose.msra.mxu0 0.0
  %911 = vmatprep.subr.mxu0 0.0
  %912 = vmatpush1.xpose.msra.mxu0 0.0
  %913 = vmatprep.subr.mxu0 0.0
  %914 = vmatpush1.xpose.msra.mxu0 0.0
  %915 = vmatprep.subr.mxu0 0.0
  %916 = vmatpush1.xpose.msra.mxu0 0.0
  %917 = vmatprep.subr.mxu0 0.0
  %918 = vmatpush1.xpose.msra.mxu0 0.0
  %919 = vmatprep.subr.mxu0 0.0
  %920 = vmatpush1.xpose.msra.mxu0 0.0
  %921 = vmatprep.subr.mxu0 0.0
  %922 = vmatpush1.xpose.msra.mxu0 0.0
  %923 = vmatprep.subr.mxu0 0.0
  %924 = vmatpush1.xpose.msra.mxu0 0.0
  %925 = vmatprep.subr.mxu0 0.0
  %926 = vmatpush1.xpose.msra.mxu0 0.0
  %927 = vmatprep.subr.mxu0 0.0
  %928 = vmatpush1.xpose.msra.mxu0 0.0
  %929 = vmatprep.subr.mxu0 0.0
  %930 = vmatpush1.xpose.msra.mxu0 0.0
  %931 = vmatprep.subr.mxu0 0.0
  %932 = vmatpush1.xpose.msra.mxu0 0.0
  %933 = vmatprep.subr.mxu0 0.0
  %934 = vmatpush1.xpose.msra.mxu0 0.0
  %935 = vmatprep.subr.mxu0 0.0
  %936 = vmatpush1.xpose.msra.mxu0 0.0
  %937 = vmatprep.subr.mxu0 0.0
  %938 = vmatpush1.xpose.msra.mxu0 0.0
  %939 = vmatprep.subr.mxu0 0.0
  %940 = vmatpush1.xpose.msra.mxu0 0.0
  %941 = vmatprep.subr.mxu0 0.0
  %942 = vmatpush1.xpose.msra.mxu0 0.0
  %943 = vmatprep.subr.mxu0 0.0
  %944 = vmatpush1.xpose.msra.mxu0 0.0
  %945 = vmatprep.subr.mxu0 0.0
  %946 = vmatpush1.xpose.msra.mxu0 0.0
  %947 = vmatprep.subr.mxu0 0.0
  %948 = vmatpush1.xpose.msra.mxu0 0.0
  %949 = vmatprep.subr.mxu0 0.0
  %950 = vmatpush1.xpose.msra.mxu0 0.0
  %951 = vmatprep.subr.mxu0 0.0
  %952 = vmatpush1.xpose.msra.mxu0 0.0
  %953 = vmatprep.subr.mxu0 0.0
  %954 = vmatpush1.xpose.msra.mxu0 0.0
  %955 = vmatprep.subr.mxu0 0.0
  %956 = vmatpush1.xpose.msra.mxu0 0.0
  %957 = vmatprep.subr.mxu0 0.0
  %958 = vmatpush1.xpose.msra.mxu0 0.0
  %959 = vmatprep.subr.mxu0 0.0
  %960 = vmatpush1.xpose.msra.mxu0 0.0
  %961 = vmatprep.subr.mxu0 0.0
  %962 = vmatpush1.xpose.msra.mxu0 0.0
  %963 = vmatprep.subr.mxu0 0.0
  %964 = vmatpush1.xpose.msra.mxu0 0.0
  %965 = vmatprep.mubr.f32.mxu0 0.0
  %966 = vmatmul.mubr.f32.gmra.mrb[0].mxu0 %v897
  %v967 = vpop.f32.mrb[0].mxu0
  %v968 = vadd.f32 %v886, %v967
  %v969 = vpop.f32.mrb[0].mxu0
  %970 = vdwg.mxu0
  %972 = vrot.lane.b32.xlu0 %v458, 120
  %v973 = vpop.permute.xlu0 %972
  %v974 = vsel %vm896, %v458, 0
  %v976 = vsel %vm896, %v973, 0
  %978 = vmatprep.subr.mxu0 0.0
  %979 = vmatpush1.xpose.msra.mxu0 %v976
  %980 = vmatprep.subr.mxu0 0.0
  %981 = vmatpush1.xpose.msra.mxu0 0.0
  %982 = vmatprep.subr.mxu0 0.0
  %983 = vmatpush1.xpose.msra.mxu0 0.0
  %984 = vmatprep.subr.mxu0 0.0
  %985 = vmatpush1.xpose.msra.mxu0 0.0
  %986 = vmatprep.subr.mxu0 0.0
  %987 = vmatpush1.xpose.msra.mxu0 0.0
  %988 = vmatprep.subr.mxu0 0.0
  %989 = vmatpush1.xpose.msra.mxu0 0.0
  %990 = vmatprep.subr.mxu0 0.0
  %991 = vmatpush1.xpose.msra.mxu0 0.0
  %992 = vmatprep.subr.mxu0 0.0
  %993 = vmatpush1.xpose.msra.mxu0 0.0
  %994 = vmatprep.subr.mxu0 0.0
  %995 = vmatpush1.xpose.msra.mxu0 0.0
  %996 = vmatprep.subr.mxu0 0.0
  %997 = vmatpush1.xpose.msra.mxu0 0.0
  %998 = vmatprep.subr.mxu0 0.0
  %999 = vmatpush1.xpose.msra.mxu0 0.0
  %1000 = vmatprep.subr.mxu0 0.0
  %1001 = vmatpush1.xpose.msra.mxu0 0.0
  %1002 = vmatprep.subr.mxu0 0.0
  %1003 = vmatpush1.xpose.msra.mxu0 0.0
  %1004 = vmatprep.subr.mxu0 0.0
  %1005 = vmatpush1.xpose.msra.mxu0 0.0
  %1006 = vmatprep.subr.mxu0 0.0
  %1007 = vmatpush1.xpose.msra.mxu0 0.0
  %1008 = vmatprep.subr.mxu0 0.0
  %1009 = vmatpush1.xpose.msra.mxu0 0.0
  %1010 = vmatprep.subr.mxu0 0.0
  %1011 = vmatpush1.xpose.msra.mxu0 0.0
  %1012 = vmatprep.subr.mxu0 0.0
  %1013 = vmatpush1.xpose.msra.mxu0 0.0
  %1014 = vmatprep.subr.mxu0 0.0
  %1015 = vmatpush1.xpose.msra.mxu0 0.0
  %1016 = vmatprep.subr.mxu0 0.0
  %1017 = vmatpush1.xpose.msra.mxu0 0.0
  %1018 = vmatprep.subr.mxu0 0.0
  %1019 = vmatpush1.xpose.msra.mxu0 0.0
  %1020 = vmatprep.subr.mxu0 0.0
  %1021 = vmatpush1.xpose.msra.mxu0 0.0
  %1022 = vmatprep.subr.mxu0 0.0
  %1023 = vmatpush1.xpose.msra.mxu0 0.0
  %1024 = vmatprep.subr.mxu0 0.0
  %1025 = vmatpush1.xpose.msra.mxu0 0.0
  %1026 = vmatprep.subr.mxu0 0.0
  %1027 = vmatpush1.xpose.msra.mxu0 0.0
  %1028 = vmatprep.subr.mxu0 0.0
  %1029 = vmatpush1.xpose.msra.mxu0 0.0
  %1030 = vmatprep.subr.mxu0 0.0
  %1031 = vmatpush1.xpose.msra.mxu0 0.0
  %1032 = vmatprep.subr.mxu0 0.0
  %1033 = vmatpush1.xpose.msra.mxu0 0.0
  %1034 = vmatprep.subr.mxu0 0.0
  %1035 = vmatpush1.xpose.msra.mxu0 0.0
  %1036 = vmatprep.subr.mxu0 0.0
  %1037 = vmatpush1.xpose.msra.mxu0 0.0
  %1038 = vmatprep.subr.mxu0 0.0
  %1039 = vmatpush1.xpose.msra.mxu0 0.0
  %1040 = vmatprep.subr.mxu0 0.0
  %1041 = vmatpush1.xpose.msra.mxu0 0.0
  %1042 = vmatprep.mubr.f32.mxu0 0.0
  %1043 = vmatmul.mubr.f32.gmra.mrb[0].mxu0 %v974
  %v1044 = vpop.f32.mrb[0].mxu0
  %v1045 = vadd.f32 %v890, %v1044
  %v1046 = vpop.f32.mrb[0].mxu0
  %1047 = vdwg.mxu0
  %1049 = vrot.lane.b32.xlu0 %v528, 120
  %v1050 = vpop.permute.xlu0 %1049
  %v1051 = vsel %vm896, %v528, 0
  %v1053 = vsel %vm896, %v1050, 0
  %1055 = vmatprep.subr.mxu0 0.0
  %1056 = vmatpush1.xpose.msra.mxu0 %v1053
  %1057 = vmatprep.subr.mxu0 0.0
  %1058 = vmatpush1.xpose.msra.mxu0 0.0
  %1059 = vmatprep.subr.mxu0 0.0
  %1060 = vmatpush1.xpose.msra.mxu0 0.0
  %1061 = vmatprep.subr.mxu0 0.0
  %1062 = vmatpush1.xpose.msra.mxu0 0.0
  %1063 = vmatprep.subr.mxu0 0.0
  %1064 = vmatpush1.xpose.msra.mxu0 0.0
  %1065 = vmatprep.subr.mxu0 0.0
  %1066 = vmatpush1.xpose.msra.mxu0 0.0
  %1067 = vmatprep.subr.mxu0 0.0
  %1068 = vmatpush1.xpose.msra.mxu0 0.0
  %1069 = vmatprep.subr.mxu0 0.0
  %1070 = vmatpush1.xpose.msra.mxu0 0.0
  %1071 = vmatprep.subr.mxu0 0.0
  %1072 = vmatpush1.xpose.msra.mxu0 0.0
  %1073 = vmatprep.subr.mxu0 0.0
  %1074 = vmatpush1.xpose.msra.mxu0 0.0
  %1075 = vmatprep.subr.mxu0 0.0
  %1076 = vmatpush1.xpose.msra.mxu0 0.0
  %1077 = vmatprep.subr.mxu0 0.0
  %1078 = vmatpush1.xpose.msra.mxu0 0.0
  %1079 = vmatprep.subr.mxu0 0.0
  %1080 = vmatpush1.xpose.msra.mxu0 0.0
  %1081 = vmatprep.subr.mxu0 0.0
  %1082 = vmatpush1.xpose.msra.mxu0 0.0
  %1083 = vmatprep.subr.mxu0 0.0
  %1084 = vmatpush1.xpose.msra.mxu0 0.0
  %1085 = vmatprep.subr.mxu0 0.0
  %1086 = vmatpush1.xpose.msra.mxu0 0.0
  %1087 = vmatprep.subr.mxu0 0.0
  %1088 = vmatpush1.xpose.msra.mxu0 0.0
  %1089 = vmatprep.subr.mxu0 0.0
  %1090 = vmatpush1.xpose.msra.mxu0 0.0
  %1091 = vmatprep.subr.mxu0 0.0
  %1092 = vmatpush1.xpose.msra.mxu0 0.0
  %1093 = vmatprep.subr.mxu0 0.0
  %1094 = vmatpush1.xpose.msra.mxu0 0.0
  %1095 = vmatprep.subr.mxu0 0.0
  %1096 = vmatpush1.xpose.msra.mxu0 0.0
  %1097 = vmatprep.subr.mxu0 0.0
  %1098 = vmatpush1.xpose.msra.mxu0 0.0
  %1099 = vmatprep.subr.mxu0 0.0
  %1100 = vmatpush1.xpose.msra.mxu0 0.0
  %1101 = vmatprep.subr.mxu0 0.0
  %1102 = vmatpush1.xpose.msra.mxu0 0.0
  %1103 = vmatprep.subr.mxu0 0.0
  %1104 = vmatpush1.xpose.msra.mxu0 0.0
  %1105 = vmatprep.subr.mxu0 0.0
  %1106 = vmatpush1.xpose.msra.mxu0 0.0
  %1107 = vmatprep.subr.mxu0 0.0
  %1108 = vmatpush1.xpose.msra.mxu0 0.0
  %1109 = vmatprep.subr.mxu0 0.0
  %1110 = vmatpush1.xpose.msra.mxu0 0.0
  %1111 = vmatprep.subr.mxu0 0.0
  %1112 = vmatpush1.xpose.msra.mxu0 0.0
  %1113 = vmatprep.subr.mxu0 0.0
  %1114 = vmatpush1.xpose.msra.mxu0 0.0
  %1115 = vmatprep.subr.mxu0 0.0
  %1116 = vmatpush1.xpose.msra.mxu0 0.0
  %1117 = vmatprep.subr.mxu0 0.0
  %1118 = vmatpush1.xpose.msra.mxu0 0.0
  %1119 = vmatprep.mubr.f32.mxu0 0.0
  %1120 = vmatmul.mubr.f32.gmra.mrb[0].mxu0 %v1051
  %v1121 = vpop.f32.mrb[0].mxu0
  %v1122 = vadd.f32 %v886, %v1121
  %v1123 = vpop.f32.mrb[0].mxu0
  %1124 = vdwg.mxu0
  %1126 = vrot.lane.b32.xlu0 %v598, 120
  %v1127 = vpop.permute.xlu0 %1126
  %v1128 = vsel %vm896, %v598, 0
  %v1130 = vsel %vm896, %v1127, 0
  %1132 = vmatprep.subr.mxu0 0.0
  %1133 = vmatpush1.xpose.msra.mxu0 %v1130
  %1134 = vmatprep.subr.mxu0 0.0
  %1135 = vmatpush1.xpose.msra.mxu0 0.0
  %1136 = vmatprep.subr.mxu0 0.0
  %1137 = vmatpush1.xpose.msra.mxu0 0.0
  %1138 = vmatprep.subr.mxu0 0.0
  %1139 = vmatpush1.xpose.msra.mxu0 0.0
  %1140 = vmatprep.subr.mxu0 0.0
  %1141 = vmatpush1.xpose.msra.mxu0 0.0
  %1142 = vmatprep.subr.mxu0 0.0
  %1143 = vmatpush1.xpose.msra.mxu0 0.0
  %1144 = vmatprep.subr.mxu0 0.0
  %1145 = vmatpush1.xpose.msra.mxu0 0.0
  %1146 = vmatprep.subr.mxu0 0.0
  %1147 = vmatpush1.xpose.msra.mxu0 0.0
  %1148 = vmatprep.subr.mxu0 0.0
  %1149 = vmatpush1.xpose.msra.mxu0 0.0
  %1150 = vmatprep.subr.mxu0 0.0
  %1151 = vmatpush1.xpose.msra.mxu0 0.0
  %1152 = vmatprep.subr.mxu0 0.0
  %1153 = vmatpush1.xpose.msra.mxu0 0.0
  %1154 = vmatprep.subr.mxu0 0.0
  %1155 = vmatpush1.xpose.msra.mxu0 0.0
  %1156 = vmatprep.subr.mxu0 0.0
  %1157 = vmatpush1.xpose.msra.mxu0 0.0
  %1158 = vmatprep.subr.mxu0 0.0
  %1159 = vmatpush1.xpose.msra.mxu0 0.0
  %1160 = vmatprep.subr.mxu0 0.0
  %1161 = vmatpush1.xpose.msra.mxu0 0.0
  %1162 = vmatprep.subr.mxu0 0.0
  %1163 = vmatpush1.xpose.msra.mxu0 0.0
  %1164 = vmatprep.subr.mxu0 0.0
  %1165 = vmatpush1.xpose.msra.mxu0 0.0
  %1166 = vmatprep.subr.mxu0 0.0
  %1167 = vmatpush1.xpose.msra.mxu0 0.0
  %1168 = vmatprep.subr.mxu0 0.0
  %1169 = vmatpush1.xpose.msra.mxu0 0.0
  %1170 = vmatprep.subr.mxu0 0.0
  %1171 = vmatpush1.xpose.msra.mxu0 0.0
  %1172 = vmatprep.subr.mxu0 0.0
  %1173 = vmatpush1.xpose.msra.mxu0 0.0
  %1174 = vmatprep.subr.mxu0 0.0
  %1175 = vmatpush1.xpose.msra.mxu0 0.0
  %1176 = vmatprep.subr.mxu0 0.0
  %1177 = vmatpush1.xpose.msra.mxu0 0.0
  %1178 = vmatprep.subr.mxu0 0.0
  %1179 = vmatpush1.xpose.msra.mxu0 0.0
  %1180 = vmatprep.subr.mxu0 0.0
  %1181 = vmatpush1.xpose.msra.mxu0 0.0
  %1182 = vmatprep.subr.mxu0 0.0
  %1183 = vmatpush1.xpose.msra.mxu0 0.0
  %1184 = vmatprep.subr.mxu0 0.0
  %1185 = vmatpush1.xpose.msra.mxu0 0.0
  %1186 = vmatprep.subr.mxu0 0.0
  %1187 = vmatpush1.xpose.msra.mxu0 0.0
  %1188 = vmatprep.subr.mxu0 0.0
  %1189 = vmatpush1.xpose.msra.mxu0 0.0
  %1190 = vmatprep.subr.mxu0 0.0
  %1191 = vmatpush1.xpose.msra.mxu0 0.0
  %1192 = vmatprep.subr.mxu0 0.0
  %1193 = vmatpush1.xpose.msra.mxu0 0.0
  %1194 = vmatprep.subr.mxu0 0.0
  %1195 = vmatpush1.xpose.msra.mxu0 0.0
  %1196 = vmatprep.mubr.f32.mxu0 0.0
  %1197 = vmatmul.mubr.f32.gmra.mrb[0].mxu0 %v1128
  %v1198 = vpop.f32.mrb[0].mxu0
  %v1199 = vadd.f32 %v890, %v1198
  %v1200 = vpop.f32.mrb[0].mxu0
  %1201 = vdwg.mxu0
  %1203 = vrot.lane.b32.xlu0 %v668, 120
  %v1204 = vpop.permute.xlu0 %1203
  %v1205 = vsel %vm896, %v668, 0
  %v1207 = vsel %vm896, %v1204, 0
  %1209 = vmatprep.subr.mxu0 0.0
  %1210 = vmatpush1.xpose.msra.mxu0 %v1207
  %1211 = vmatprep.subr.mxu0 0.0
  %1212 = vmatpush1.xpose.msra.mxu0 0.0
  %1213 = vmatprep.subr.mxu0 0.0
  %1214 = vmatpush1.xpose.msra.mxu0 0.0
  %1215 = vmatprep.subr.mxu0 0.0
  %1216 = vmatpush1.xpose.msra.mxu0 0.0
  %1217 = vmatprep.subr.mxu0 0.0
  %1218 = vmatpush1.xpose.msra.mxu0 0.0
  %1219 = vmatprep.subr.mxu0 0.0
  %1220 = vmatpush1.xpose.msra.mxu0 0.0
  %1221 = vmatprep.subr.mxu0 0.0
  %1222 = vmatpush1.xpose.msra.mxu0 0.0
  %1223 = vmatprep.subr.mxu0 0.0
  %1224 = vmatpush1.xpose.msra.mxu0 0.0
  %1225 = vmatprep.subr.mxu0 0.0
  %1226 = vmatpush1.xpose.msra.mxu0 0.0
  %1227 = vmatprep.subr.mxu0 0.0
  %1228 = vmatpush1.xpose.msra.mxu0 0.0
  %1229 = vmatprep.subr.mxu0 0.0
  %1230 = vmatpush1.xpose.msra.mxu0 0.0
  %1231 = vmatprep.subr.mxu0 0.0
  %1232 = vmatpush1.xpose.msra.mxu0 0.0
  %1233 = vmatprep.subr.mxu0 0.0
  %1234 = vmatpush1.xpose.msra.mxu0 0.0
  %1235 = vmatprep.subr.mxu0 0.0
  %1236 = vmatpush1.xpose.msra.mxu0 0.0
  %1237 = vmatprep.subr.mxu0 0.0
  %1238 = vmatpush1.xpose.msra.mxu0 0.0
  %1239 = vmatprep.subr.mxu0 0.0
  %1240 = vmatpush1.xpose.msra.mxu0 0.0
  %1241 = vmatprep.subr.mxu0 0.0
  %1242 = vmatpush1.xpose.msra.mxu0 0.0
  %1243 = vmatprep.subr.mxu0 0.0
  %1244 = vmatpush1.xpose.msra.mxu0 0.0
  %1245 = vmatprep.subr.mxu0 0.0
  %1246 = vmatpush1.xpose.msra.mxu0 0.0
  %1247 = vmatprep.subr.mxu0 0.0
  %1248 = vmatpush1.xpose.msra.mxu0 0.0
  %1249 = vmatprep.subr.mxu0 0.0
  %1250 = vmatpush1.xpose.msra.mxu0 0.0
  %1251 = vmatprep.subr.mxu0 0.0
  %1252 = vmatpush1.xpose.msra.mxu0 0.0
  %1253 = vmatprep.subr.mxu0 0.0
  %1254 = vmatpush1.xpose.msra.mxu0 0.0
  %1255 = vmatprep.subr.mxu0 0.0
  %1256 = vmatpush1.xpose.msra.mxu0 0.0
  %1257 = vmatprep.subr.mxu0 0.0
  %1258 = vmatpush1.xpose.msra.mxu0 0.0
  %1259 = vmatprep.subr.mxu0 0.0
  %1260 = vmatpush1.xpose.msra.mxu0 0.0
  %1261 = vmatprep.subr.mxu0 0.0
  %1262 = vmatpush1.xpose.msra.mxu0 0.0
  %1263 = vmatprep.subr.mxu0 0.0
  %1264 = vmatpush1.xpose.msra.mxu0 0.0
  %1265 = vmatprep.subr.mxu0 0.0
  %1266 = vmatpush1.xpose.msra.mxu0 0.0
  %1267 = vmatprep.subr.mxu0 0.0
  %1268 = vmatpush1.xpose.msra.mxu0 0.0
  %1269 = vmatprep.subr.mxu0 0.0
  %1270 = vmatpush1.xpose.msra.mxu0 0.0
  %1271 = vmatprep.subr.mxu0 0.0
  %1272 = vmatpush1.xpose.msra.mxu0 0.0
  %1273 = vmatprep.mubr.f32.mxu0 0.0
  %1274 = vmatmul.mubr.f32.gmra.mrb[0].mxu0 %v1205
  %v1275 = vpop.f32.mrb[0].mxu0
  %v1276 = vadd.f32 %v886, %v1275
  %v1277 = vpop.f32.mrb[0].mxu0
  %1278 = vdwg.mxu0
  %1280 = vrot.lane.b32.xlu0 %v738, 120
  %v1281 = vpop.permute.xlu0 %1280
  %v1282 = vsel %vm896, %v738, 0
  %v1284 = vsel %vm896, %v1281, 0
  %1286 = vmatprep.subr.mxu0 0.0
  %1287 = vmatpush1.xpose.msra.mxu0 %v1284
  %1288 = vmatprep.subr.mxu0 0.0
  %1289 = vmatpush1.xpose.msra.mxu0 0.0
  %1290 = vmatprep.subr.mxu0 0.0
  %1291 = vmatpush1.xpose.msra.mxu0 0.0
  %1292 = vmatprep.subr.mxu0 0.0
  %1293 = vmatpush1.xpose.msra.mxu0 0.0
  %1294 = vmatprep.subr.mxu0 0.0
  %1295 = vmatpush1.xpose.msra.mxu0 0.0
  %1296 = vmatprep.subr.mxu0 0.0
  %1297 = vmatpush1.xpose.msra.mxu0 0.0
  %1298 = vmatprep.subr.mxu0 0.0
  %1299 = vmatpush1.xpose.msra.mxu0 0.0
  %1300 = vmatprep.subr.mxu0 0.0
  %1301 = vmatpush1.xpose.msra.mxu0 0.0
  %1302 = vmatprep.subr.mxu0 0.0
  %1303 = vmatpush1.xpose.msra.mxu0 0.0
  %1304 = vmatprep.subr.mxu0 0.0
  %1305 = vmatpush1.xpose.msra.mxu0 0.0
  %1306 = vmatprep.subr.mxu0 0.0
  %1307 = vmatpush1.xpose.msra.mxu0 0.0
  %1308 = vmatprep.subr.mxu0 0.0
  %1309 = vmatpush1.xpose.msra.mxu0 0.0
  %1310 = vmatprep.subr.mxu0 0.0
  %1311 = vmatpush1.xpose.msra.mxu0 0.0
  %1312 = vmatprep.subr.mxu0 0.0
  %1313 = vmatpush1.xpose.msra.mxu0 0.0
  %1314 = vmatprep.subr.mxu0 0.0
  %1315 = vmatpush1.xpose.msra.mxu0 0.0
  %1316 = vmatprep.subr.mxu0 0.0
  %1317 = vmatpush1.xpose.msra.mxu0 0.0
  %1318 = vmatprep.subr.mxu0 0.0
  %1319 = vmatpush1.xpose.msra.mxu0 0.0
  %1320 = vmatprep.subr.mxu0 0.0
  %1321 = vmatpush1.xpose.msra.mxu0 0.0
  %1322 = vmatprep.subr.mxu0 0.0
  %1323 = vmatpush1.xpose.msra.mxu0 0.0
  %1324 = vmatprep.subr.mxu0 0.0
  %1325 = vmatpush1.xpose.msra.mxu0 0.0
  %1326 = vmatprep.subr.mxu0 0.0
  %1327 = vmatpush1.xpose.msra.mxu0 0.0
  %1328 = vmatprep.subr.mxu0 0.0
  %1329 = vmatpush1.xpose.msra.mxu0 0.0
  %1330 = vmatprep.subr.mxu0 0.0
  %1331 = vmatpush1.xpose.msra.mxu0 0.0
  %1332 = vmatprep.subr.mxu0 0.0
  %1333 = vmatpush1.xpose.msra.mxu0 0.0
  %1334 = vmatprep.subr.mxu0 0.0
  %1335 = vmatpush1.xpose.msra.mxu0 0.0
  %1336 = vmatprep.subr.mxu0 0.0
  %1337 = vmatpush1.xpose.msra.mxu0 0.0
  %1338 = vmatprep.subr.mxu0 0.0
  %1339 = vmatpush1.xpose.msra.mxu0 0.0
  %1340 = vmatprep.subr.mxu0 0.0
  %1341 = vmatpush1.xpose.msra.mxu0 0.0
  %1342 = vmatprep.subr.mxu0 0.0
  %1343 = vmatpush1.xpose.msra.mxu0 0.0
  %1344 = vmatprep.subr.mxu0 0.0
  %1345 = vmatpush1.xpose.msra.mxu0 0.0
  %1346 = vmatprep.subr.mxu0 0.0
  %1347 = vmatpush1.xpose.msra.mxu0 0.0
  %1348 = vmatprep.subr.mxu0 0.0
  %1349 = vmatpush1.xpose.msra.mxu0 0.0
  %1350 = vmatprep.mubr.f32.mxu0 0.0
  %1351 = vmatmul.mubr.f32.gmra.mrb[0].mxu0 %v1282
  %v1352 = vpop.f32.mrb[0].mxu0
  %v1353 = vadd.f32 %v890, %v1352
  %v1354 = vpop.f32.mrb[0].mxu0
  %1355 = vdwg.mxu0
  %1357 = vrot.lane.b32.xlu0 %v808, 120
  %v1358 = vpop.permute.xlu0 %1357
  %v1359 = vsel %vm896, %v808, 0
  %v1361 = vsel %vm896, %v1358, 0
  %1363 = vmatprep.subr.mxu0 0.0
  %1364 = vmatpush1.xpose.msra.mxu0 %v1361
  %1365 = vmatprep.subr.mxu0 0.0
  %1366 = vmatpush1.xpose.msra.mxu0 0.0
  %1367 = vmatprep.subr.mxu0 0.0
  %1368 = vmatpush1.xpose.msra.mxu0 0.0
  %1369 = vmatprep.subr.mxu0 0.0
  %1370 = vmatpush1.xpose.msra.mxu0 0.0
  %1371 = vmatprep.subr.mxu0 0.0
  %1372 = vmatpush1.xpose.msra.mxu0 0.0
  %1373 = vmatprep.subr.mxu0 0.0
  %1374 = vmatpush1.xpose.msra.mxu0 0.0
  %1375 = vmatprep.subr.mxu0 0.0
  %1376 = vmatpush1.xpose.msra.mxu0 0.0
  %1377 = vmatprep.subr.mxu0 0.0
  %1378 = vmatpush1.xpose.msra.mxu0 0.0
  %1379 = vmatprep.subr.mxu0 0.0
  %1380 = vmatpush1.xpose.msra.mxu0 0.0
  %1381 = vmatprep.subr.mxu0 0.0
  %1382 = vmatpush1.xpose.msra.mxu0 0.0
  %1383 = vmatprep.subr.mxu0 0.0
  %1384 = vmatpush1.xpose.msra.mxu0 0.0
  %1385 = vmatprep.subr.mxu0 0.0
  %1386 = vmatpush1.xpose.msra.mxu0 0.0
  %1387 = vmatprep.subr.mxu0 0.0
  %1388 = vmatpush1.xpose.msra.mxu0 0.0
  %1389 = vmatprep.subr.mxu0 0.0
  %1390 = vmatpush1.xpose.msra.mxu0 0.0
  %1391 = vmatprep.subr.mxu0 0.0
  %1392 = vmatpush1.xpose.msra.mxu0 0.0
  %1393 = vmatprep.subr.mxu0 0.0
  %1394 = vmatpush1.xpose.msra.mxu0 0.0
  %1395 = vmatprep.subr.mxu0 0.0
  %1396 = vmatpush1.xpose.msra.mxu0 0.0
  %1397 = vmatprep.subr.mxu0 0.0
  %1398 = vmatpush1.xpose.msra.mxu0 0.0
  %1399 = vmatprep.subr.mxu0 0.0
  %1400 = vmatpush1.xpose.msra.mxu0 0.0
  %1401 = vmatprep.subr.mxu0 0.0
  %1402 = vmatpush1.xpose.msra.mxu0 0.0
  %1403 = vmatprep.subr.mxu0 0.0
  %1404 = vmatpush1.xpose.msra.mxu0 0.0
  %1405 = vmatprep.subr.mxu0 0.0
  %1406 = vmatpush1.xpose.msra.mxu0 0.0
  %1407 = vmatprep.subr.mxu0 0.0
  %1408 = vmatpush1.xpose.msra.mxu0 0.0
  %1409 = vmatprep.subr.mxu0 0.0
  %1410 = vmatpush1.xpose.msra.mxu0 0.0
  %1411 = vmatprep.subr.mxu0 0.0
  %1412 = vmatpush1.xpose.msra.mxu0 0.0
  %1413 = vmatprep.subr.mxu0 0.0
  %1414 = vmatpush1.xpose.msra.mxu0 0.0
  %1415 = vmatprep.subr.mxu0 0.0
  %1416 = vmatpush1.xpose.msra.mxu0 0.0
  %1417 = vmatprep.subr.mxu0 0.0
  %1418 = vmatpush1.xpose.msra.mxu0 0.0
  %1419 = vmatprep.subr.mxu0 0.0
  %1420 = vmatpush1.xpose.msra.mxu0 0.0
  %1421 = vmatprep.subr.mxu0 0.0
  %1422 = vmatpush1.xpose.msra.mxu0 0.0
  %1423 = vmatprep.subr.mxu0 0.0
  %1424 = vmatpush1.xpose.msra.mxu0 0.0
  %1425 = vmatprep.subr.mxu0 0.0
  %1426 = vmatpush1.xpose.msra.mxu0 0.0
  %1427 = vmatprep.mubr.f32.mxu0 0.0
  %1428 = vmatmul.mubr.f32.gmra.mrb[0].mxu0 %v1359
  %v1429 = vpop.f32.mrb[0].mxu0
  %v1430 = vadd.f32 %v886, %v1429
  %v1431 = vpop.f32.mrb[0].mxu0
  %1432 = vdwg.mxu0
  %1434 = vrot.lane.b32.xlu0 %v878, 120
  %v1435 = vpop.permute.xlu0 %1434
  %v1436 = vsel %vm896, %v878, 0
  %v1438 = vsel %vm896, %v1435, 0
  %1440 = vmatprep.subr.mxu0 0.0
  %1441 = vmatpush1.xpose.msra.mxu0 %v1438
  %1442 = vmatprep.subr.mxu0 0.0
  %1443 = vmatpush1.xpose.msra.mxu0 0.0
  %1444 = vmatprep.subr.mxu0 0.0
  %1445 = vmatpush1.xpose.msra.mxu0 0.0
  %1446 = vmatprep.subr.mxu0 0.0
  %1447 = vmatpush1.xpose.msra.mxu0 0.0
  %1448 = vmatprep.subr.mxu0 0.0
  %1449 = vmatpush1.xpose.msra.mxu0 0.0
  %1450 = vmatprep.subr.mxu0 0.0
  %1451 = vmatpush1.xpose.msra.mxu0 0.0
  %1452 = vmatprep.subr.mxu0 0.0
  %1453 = vmatpush1.xpose.msra.mxu0 0.0
  %1454 = vmatprep.subr.mxu0 0.0
  %1455 = vmatpush1.xpose.msra.mxu0 0.0
  %1456 = vmatprep.subr.mxu0 0.0
  %1457 = vmatpush1.xpose.msra.mxu0 0.0
  %1458 = vmatprep.subr.mxu0 0.0
  %1459 = vmatpush1.xpose.msra.mxu0 0.0
  %1460 = vmatprep.subr.mxu0 0.0
  %1461 = vmatpush1.xpose.msra.mxu0 0.0
  %1462 = vmatprep.subr.mxu0 0.0
  %1463 = vmatpush1.xpose.msra.mxu0 0.0
  %1464 = vmatprep.subr.mxu0 0.0
  %1465 = vmatpush1.xpose.msra.mxu0 0.0
  %1466 = vmatprep.subr.mxu0 0.0
  %1467 = vmatpush1.xpose.msra.mxu0 0.0
  %1468 = vmatprep.subr.mxu0 0.0
  %1469 = vmatpush1.xpose.msra.mxu0 0.0
  %1470 = vmatprep.subr.mxu0 0.0
  %1471 = vmatpush1.xpose.msra.mxu0 0.0
  %1472 = vmatprep.subr.mxu0 0.0
  %1473 = vmatpush1.xpose.msra.mxu0 0.0
  %1474 = vmatprep.subr.mxu0 0.0
  %1475 = vmatpush1.xpose.msra.mxu0 0.0
  %1476 = vmatprep.subr.mxu0 0.0
  %1477 = vmatpush1.xpose.msra.mxu0 0.0
  %1478 = vmatprep.subr.mxu0 0.0
  %1479 = vmatpush1.xpose.msra.mxu0 0.0
  %1480 = vmatprep.subr.mxu0 0.0
  %1481 = vmatpush1.xpose.msra.mxu0 0.0
  %1482 = vmatprep.subr.mxu0 0.0
  %1483 = vmatpush1.xpose.msra.mxu0 0.0
  %1484 = vmatprep.subr.mxu0 0.0
  %1485 = vmatpush1.xpose.msra.mxu0 0.0
  %1486 = vmatprep.subr.mxu0 0.0
  %1487 = vmatpush1.xpose.msra.mxu0 0.0
  %1488 = vmatprep.subr.mxu0 0.0
  %1489 = vmatpush1.xpose.msra.mxu0 0.0
  %1490 = vmatprep.subr.mxu0 0.0
  %1491 = vmatpush1.xpose.msra.mxu0 0.0
  %1492 = vmatprep.subr.mxu0 0.0
  %1493 = vmatpush1.xpose.msra.mxu0 0.0
  %1494 = vmatprep.subr.mxu0 0.0
  %1495 = vmatpush1.xpose.msra.mxu0 0.0
  %1496 = vmatprep.subr.mxu0 0.0
  %1497 = vmatpush1.xpose.msra.mxu0 0.0
  %1498 = vmatprep.subr.mxu0 0.0
  %1499 = vmatpush1.xpose.msra.mxu0 0.0
  %1500 = vmatprep.subr.mxu0 0.0
  %1501 = vmatpush1.xpose.msra.mxu0 0.0
  %1502 = vmatprep.subr.mxu0 0.0
  %1503 = vmatpush1.xpose.msra.mxu0 0.0
  %1504 = vmatprep.mubr.f32.mxu0 0.0
  %1505 = vmatmul.mubr.f32.gmra.mrb[0].mxu0 %v1436
  %v1506 = vpop.f32.mrb[0].mxu0
  %v1507 = vadd.f32 %v890, %v1506
  %v1508 = vpop.f32.mrb[0].mxu0
  %1509 = vdwg.mxu0
  %v1510 = vsel %vm896, %v968, -inf
  %1511 = vmax.xlane.f32.xlu0 %v1510
  %v1512 = vpop.xlane.xlu0 %1511
  %v1513 = vsel %vm896, %v1045, -inf
  %1514 = vmax.xlane.f32.xlu0 %v1513
  %v1515 = vpop.xlane.xlu0 %1514
  %v1516 = vsel %vm896, %v1122, -inf
  %1517 = vmax.xlane.f32.xlu0 %v1516
  %v1518 = vpop.xlane.xlu0 %1517
  %v1519 = vsel %vm896, %v1199, -inf
  %1520 = vmax.xlane.f32.xlu0 %v1519
  %v1521 = vpop.xlane.xlu0 %1520
  %v1522 = vsel %vm896, %v1276, -inf
  %1523 = vmax.xlane.f32.xlu0 %v1522
  %v1524 = vpop.xlane.xlu0 %1523
  %v1525 = vsel %vm896, %v1353, -inf
  %1526 = vmax.xlane.f32.xlu0 %v1525
  %v1527 = vpop.xlane.xlu0 %1526
  %v1528 = vsel %vm896, %v1430, -inf
  %1529 = vmax.xlane.f32.xlu0 %v1528
  %v1530 = vpop.xlane.xlu0 %1529
  %v1531 = vsel %vm896, %v1507, -inf
  %1532 = vmax.xlane.f32.xlu0 %v1531
  %v1533 = vpop.xlane.xlu0 %1532
  %v1534 = vsub.f32 %v968, %v1512
  %v1535 = vsub.f32 %v1045, %v1515
  %v1536 = vsub.f32 %v1122, %v1518
  %v1537 = vsub.f32 %v1199, %v1521
  %v1538 = vsub.f32 %v1276, %v1524
  %v1539 = vsub.f32 %v1353, %v1527
  %v1540 = vsub.f32 %v1430, %v1530
  %v1541 = vsub.f32 %v1507, %v1533
  %v1542 = vmul.f32 %v1534, 1.442695
  %v1543 = vpow.pop %v1542
  %v1544 = vmul.f32 %v1535, 1.442695
  %v1545 = vpow.pop %v1544
  %v1546 = vmul.f32 %v1536, 1.442695
  %v1547 = vpow.pop %v1546
  %v1548 = vmul.f32 %v1537, 1.442695
  %v1549 = vpow.pop %v1548
  %v1550 = vmul.f32 %v1538, 1.442695
  %v1551 = vpow.pop %v1550
  %v1552 = vmul.f32 %v1539, 1.442695
  %v1553 = vpow.pop %v1552
  %v1554 = vmul.f32 %v1540, 1.442695
  %v1555 = vpow.pop %v1554
  %v1556 = vmul.f32 %v1541, 1.442695
  %v1557 = vpow.pop %v1556
  %v1558 = vsel %vm896, %v1543, 0.0
  %1559 = vadd.xlane.f32.xlu0 %v1558
  %v1560 = vpop.xlane.xlu0 %1559
  %v1561 = vsel %vm896, %v1545, 0.0
  %1562 = vadd.xlane.f32.xlu0 %v1561
  %v1563 = vpop.xlane.xlu0 %1562
  %v1564 = vsel %vm896, %v1547, 0.0
  %1565 = vadd.xlane.f32.xlu0 %v1564
  %v1566 = vpop.xlane.xlu0 %1565
  %v1567 = vsel %vm896, %v1549, 0.0
  %1568 = vadd.xlane.f32.xlu0 %v1567
  %v1569 = vpop.xlane.xlu0 %1568
  %v1570 = vsel %vm896, %v1551, 0.0
  %1571 = vadd.xlane.f32.xlu0 %v1570
  %v1572 = vpop.xlane.xlu0 %1571
  %v1573 = vsel %vm896, %v1553, 0.0
  %1574 = vadd.xlane.f32.xlu0 %v1573
  %v1575 = vpop.xlane.xlu0 %1574
  %v1576 = vsel %vm896, %v1555, 0.0
  %1577 = vadd.xlane.f32.xlu0 %v1576
  %v1578 = vpop.xlane.xlu0 %1577
  %v1579 = vsel %vm896, %v1557, 0.0
  %1580 = vadd.xlane.f32.xlu0 %v1579
  %v1581 = vpop.xlane.xlu0 %1580
  %v1582 = vrcp.pop %v1560
  %v1583 = vrcp.pop %v1563
  %v1584 = vrcp.pop %v1566
  %v1585 = vrcp.pop %v1569
  %v1586 = vrcp.pop %v1572
  %v1587 = vrcp.pop %v1575
  %v1588 = vrcp.pop %v1578
  %v1589 = vrcp.pop %v1581
  %v1590 = vmul.f32 %v1543, %v1582
  %v1591 = vmul.f32 %v1545, %v1583
  %v1592 = vmul.f32 %v1547, %v1584
  %v1593 = vmul.f32 %v1549, %v1585
  %v1594 = vmul.f32 %v1551, %v1586
  %v1595 = vmul.f32 %v1553, %v1587
  %v1596 = vmul.f32 %v1555, %v1588
  %v1597 = vmul.f32 %v1557, %v1589
  %1598 = vrot.lane.b32.xlu0 %v385, 112
  %v1599 = vpop.permute.xlu0 %1598
  %v1602 = vsel %vm896, %v1590, 0
  %1604 = vmatprep.subr.mxu0 0.0
  %1605 = vmatpush1.msra.mxu0 %v1599
  %1606 = vmatprep.subr.mxu0 0.0
  %1607 = vmatpush1.msra.mxu0 0.0
  %1608 = vmatprep.subr.mxu0 0.0
  %1609 = vmatpush1.msra.mxu0 0.0
  %1610 = vmatprep.subr.mxu0 0.0
  %1611 = vmatpush1.msra.mxu0 0.0
  %1612 = vmatprep.subr.mxu0 0.0
  %1613 = vmatpush1.msra.mxu0 0.0
  %1614 = vmatprep.subr.mxu0 0.0
  %1615 = vmatpush1.msra.mxu0 0.0
  %1616 = vmatprep.subr.mxu0 0.0
  %1617 = vmatpush1.msra.mxu0 0.0
  %1618 = vmatprep.subr.mxu0 0.0
  %1619 = vmatpush1.msra.mxu0 0.0
  %1620 = vmatprep.subr.mxu0 0.0
  %1621 = vmatpush1.msra.mxu0 0.0
  %1622 = vmatprep.subr.mxu0 0.0
  %1623 = vmatpush1.msra.mxu0 0.0
  %1624 = vmatprep.subr.mxu0 0.0
  %1625 = vmatpush1.msra.mxu0 0.0
  %1626 = vmatprep.subr.mxu0 0.0
  %1627 = vmatpush1.msra.mxu0 0.0
  %1628 = vmatprep.subr.mxu0 0.0
  %1629 = vmatpush1.msra.mxu0 0.0
  %1630 = vmatprep.subr.mxu0 0.0
  %1631 = vmatpush1.msra.mxu0 0.0
  %1632 = vmatprep.subr.mxu0 0.0
  %1633 = vmatpush1.msra.mxu0 0.0
  %1634 = vmatprep.subr.mxu0 0.0
  %1635 = vmatpush1.msra.mxu0 0.0
  %1636 = vmatprep.subr.mxu0 0.0
  %1637 = vmatpush1.msra.mxu0 0.0
  %1638 = vmatprep.subr.mxu0 0.0
  %1639 = vmatpush1.msra.mxu0 0.0
  %1640 = vmatprep.subr.mxu0 0.0
  %1641 = vmatpush1.msra.mxu0 0.0
  %1642 = vmatprep.subr.mxu0 0.0
  %1643 = vmatpush1.msra.mxu0 0.0
  %1644 = vmatprep.subr.mxu0 0.0
  %1645 = vmatpush1.msra.mxu0 0.0
  %1646 = vmatprep.subr.mxu0 0.0
  %1647 = vmatpush1.msra.mxu0 0.0
  %1648 = vmatprep.subr.mxu0 0.0
  %1649 = vmatpush1.msra.mxu0 0.0
  %1650 = vmatprep.subr.mxu0 0.0
  %1651 = vmatpush1.msra.mxu0 0.0
  %1652 = vmatprep.subr.mxu0 0.0
  %1653 = vmatpush1.msra.mxu0 0.0
  %1654 = vmatprep.subr.mxu0 0.0
  %1655 = vmatpush1.msra.mxu0 0.0
  %1656 = vmatprep.subr.mxu0 0.0
  %1657 = vmatpush1.msra.mxu0 0.0
  %1658 = vmatprep.subr.mxu0 0.0
  %1659 = vmatpush1.msra.mxu0 0.0
  %1660 = vmatprep.subr.mxu0 0.0
  %1661 = vmatpush1.msra.mxu0 0.0
  %1662 = vmatprep.subr.mxu0 0.0
  %1663 = vmatpush1.msra.mxu0 0.0
  %1664 = vmatprep.subr.mxu0 0.0
  %1665 = vmatpush1.msra.mxu0 0.0
  %1666 = vmatprep.subr.mxu0 0.0
  %1667 = vmatpush1.msra.mxu0 0.0
  %1668 = vmatprep.mubr.f32.mxu0 0.0
  %1669 = vmatmul.mubr.f32.gmra.mrb[0].mxu0 %v1602
  %v1670 = vpop.f32.mrb[0].mxu0
  %v1671 = vadd.f32 0.0, %v1670
  %v1672 = vpop.f32.mrb[0].mxu0
  %1673 = vdwg.mxu0
  %1674 = vrot.lane.b32.xlu0 %v458, 112
  %v1675 = vpop.permute.xlu0 %1674
  %v1678 = vsel %vm896, %v1591, 0
  %1680 = vmatprep.subr.mxu0 0.0
  %1681 = vmatpush1.msra.mxu0 %v1675
  %1682 = vmatprep.subr.mxu0 0.0
  %1683 = vmatpush1.msra.mxu0 0.0
  %1684 = vmatprep.subr.mxu0 0.0
  %1685 = vmatpush1.msra.mxu0 0.0
  %1686 = vmatprep.subr.mxu0 0.0
  %1687 = vmatpush1.msra.mxu0 0.0
  %1688 = vmatprep.subr.mxu0 0.0
  %1689 = vmatpush1.msra.mxu0 0.0
  %1690 = vmatprep.subr.mxu0 0.0
  %1691 = vmatpush1.msra.mxu0 0.0
  %1692 = vmatprep.subr.mxu0 0.0
  %1693 = vmatpush1.msra.mxu0 0.0
  %1694 = vmatprep.subr.mxu0 0.0
  %1695 = vmatpush1.msra.mxu0 0.0
  %1696 = vmatprep.subr.mxu0 0.0
  %1697 = vmatpush1.msra.mxu0 0.0
  %1698 = vmatprep.subr.mxu0 0.0
  %1699 = vmatpush1.msra.mxu0 0.0
  %1700 = vmatprep.subr.mxu0 0.0
  %1701 = vmatpush1.msra.mxu0 0.0
  %1702 = vmatprep.subr.mxu0 0.0
  %1703 = vmatpush1.msra.mxu0 0.0
  %1704 = vmatprep.subr.mxu0 0.0
  %1705 = vmatpush1.msra.mxu0 0.0
  %1706 = vmatprep.subr.mxu0 0.0
  %1707 = vmatpush1.msra.mxu0 0.0
  %1708 = vmatprep.subr.mxu0 0.0
  %1709 = vmatpush1.msra.mxu0 0.0
  %1710 = vmatprep.subr.mxu0 0.0
  %1711 = vmatpush1.msra.mxu0 0.0
  %1712 = vmatprep.subr.mxu0 0.0
  %1713 = vmatpush1.msra.mxu0 0.0
  %1714 = vmatprep.subr.mxu0 0.0
  %1715 = vmatpush1.msra.mxu0 0.0
  %1716 = vmatprep.subr.mxu0 0.0
  %1717 = vmatpush1.msra.mxu0 0.0
  %1718 = vmatprep.subr.mxu0 0.0
  %1719 = vmatpush1.msra.mxu0 0.0
  %1720 = vmatprep.subr.mxu0 0.0
  %1721 = vmatpush1.msra.mxu0 0.0
  %1722 = vmatprep.subr.mxu0 0.0
  %1723 = vmatpush1.msra.mxu0 0.0
  %1724 = vmatprep.subr.mxu0 0.0
  %1725 = vmatpush1.msra.mxu0 0.0
  %1726 = vmatprep.subr.mxu0 0.0
  %1727 = vmatpush1.msra.mxu0 0.0
  %1728 = vmatprep.subr.mxu0 0.0
  %1729 = vmatpush1.msra.mxu0 0.0
  %1730 = vmatprep.subr.mxu0 0.0
  %1731 = vmatpush1.msra.mxu0 0.0
  %1732 = vmatprep.subr.mxu0 0.0
  %1733 = vmatpush1.msra.mxu0 0.0
  %1734 = vmatprep.subr.mxu0 0.0
  %1735 = vmatpush1.msra.mxu0 0.0
  %1736 = vmatprep.subr.mxu0 0.0
  %1737 = vmatpush1.msra.mxu0 0.0
  %1738 = vmatprep.subr.mxu0 0.0
  %1739 = vmatpush1.msra.mxu0 0.0
  %1740 = vmatprep.subr.mxu0 0.0
  %1741 = vmatpush1.msra.mxu0 0.0
  %1742 = vmatprep.subr.mxu0 0.0
  %1743 = vmatpush1.msra.mxu0 0.0
  %1744 = vmatprep.mubr.f32.mxu0 0.0
  %1745 = vmatmul.mubr.f32.gmra.mrb[0].mxu0 %v1678
  %v1746 = vpop.f32.mrb[0].mxu0
  %v1747 = vadd.f32 0.0, %v1746
  %v1748 = vpop.f32.mrb[0].mxu0
  %1749 = vdwg.mxu0
  %1750 = vrot.lane.b32.xlu0 %v528, 112
  %v1751 = vpop.permute.xlu0 %1750
  %v1754 = vsel %vm896, %v1592, 0
  %1756 = vmatprep.subr.mxu0 0.0
  %1757 = vmatpush1.msra.mxu0 %v1751
  %1758 = vmatprep.subr.mxu0 0.0
  %1759 = vmatpush1.msra.mxu0 0.0
  %1760 = vmatprep.subr.mxu0 0.0
  %1761 = vmatpush1.msra.mxu0 0.0
  %1762 = vmatprep.subr.mxu0 0.0
  %1763 = vmatpush1.msra.mxu0 0.0
  %1764 = vmatprep.subr.mxu0 0.0
  %1765 = vmatpush1.msra.mxu0 0.0
  %1766 = vmatprep.subr.mxu0 0.0
  %1767 = vmatpush1.msra.mxu0 0.0
  %1768 = vmatprep.subr.mxu0 0.0
  %1769 = vmatpush1.msra.mxu0 0.0
  %1770 = vmatprep.subr.mxu0 0.0
  %1771 = vmatpush1.msra.mxu0 0.0
  %1772 = vmatprep.subr.mxu0 0.0
  %1773 = vmatpush1.msra.mxu0 0.0
  %1774 = vmatprep.subr.mxu0 0.0
  %1775 = vmatpush1.msra.mxu0 0.0
  %1776 = vmatprep.subr.mxu0 0.0
  %1777 = vmatpush1.msra.mxu0 0.0
  %1778 = vmatprep.subr.mxu0 0.0
  %1779 = vmatpush1.msra.mxu0 0.0
  %1780 = vmatprep.subr.mxu0 0.0
  %1781 = vmatpush1.msra.mxu0 0.0
  %1782 = vmatprep.subr.mxu0 0.0
  %1783 = vmatpush1.msra.mxu0 0.0
  %1784 = vmatprep.subr.mxu0 0.0
  %1785 = vmatpush1.msra.mxu0 0.0
  %1786 = vmatprep.subr.mxu0 0.0
  %1787 = vmatpush1.msra.mxu0 0.0
  %1788 = vmatprep.subr.mxu0 0.0
  %1789 = vmatpush1.msra.mxu0 0.0
  %1790 = vmatprep.subr.mxu0 0.0
  %1791 = vmatpush1.msra.mxu0 0.0
  %1792 = vmatprep.subr.mxu0 0.0
  %1793 = vmatpush1.msra.mxu0 0.0
  %1794 = vmatprep.subr.mxu0 0.0
  %1795 = vmatpush1.msra.mxu0 0.0
  %1796 = vmatprep.subr.mxu0 0.0
  %1797 = vmatpush1.msra.mxu0 0.0
  %1798 = vmatprep.subr.mxu0 0.0
  %1799 = vmatpush1.msra.mxu0 0.0
  %1800 = vmatprep.subr.mxu0 0.0
  %1801 = vmatpush1.msra.mxu0 0.0
  %1802 = vmatprep.subr.mxu0 0.0
  %1803 = vmatpush1.msra.mxu0 0.0
  %1804 = vmatprep.subr.mxu0 0.0
  %1805 = vmatpush1.msra.mxu0 0.0
  %1806 = vmatprep.subr.mxu0 0.0
  %1807 = vmatpush1.msra.mxu0 0.0
  %1808 = vmatprep.subr.mxu0 0.0
  %1809 = vmatpush1.msra.mxu0 0.0
  %1810 = vmatprep.subr.mxu0 0.0
  %1811 = vmatpush1.msra.mxu0 0.0
  %1812 = vmatprep.subr.mxu0 0.0
  %1813 = vmatpush1.msra.mxu0 0.0
  %1814 = vmatprep.subr.mxu0 0.0
  %1815 = vmatpush1.msra.mxu0 0.0
  %1816 = vmatprep.subr.mxu0 0.0
  %1817 = vmatpush1.msra.mxu0 0.0
  %1818 = vmatprep.subr.mxu0 0.0
  %1819 = vmatpush1.msra.mxu0 0.0
  %1820 = vmatprep.mubr.f32.mxu0 0.0
  %1821 = vmatmul.mubr.f32.gmra.mrb[0].mxu0 %v1754
  %v1822 = vpop.f32.mrb[0].mxu0
  %v1823 = vadd.f32 0.0, %v1822
  %v1824 = vpop.f32.mrb[0].mxu0
  %1825 = vdwg.mxu0
  %1826 = vrot.lane.b32.xlu0 %v598, 112
  %v1827 = vpop.permute.xlu0 %1826
  %v1830 = vsel %vm896, %v1593, 0
  %1832 = vmatprep.subr.mxu0 0.0
  %1833 = vmatpush1.msra.mxu0 %v1827
  %1834 = vmatprep.subr.mxu0 0.0
  %1835 = vmatpush1.msra.mxu0 0.0
  %1836 = vmatprep.subr.mxu0 0.0
  %1837 = vmatpush1.msra.mxu0 0.0
  %1838 = vmatprep.subr.mxu0 0.0
  %1839 = vmatpush1.msra.mxu0 0.0
  %1840 = vmatprep.subr.mxu0 0.0
  %1841 = vmatpush1.msra.mxu0 0.0
  %1842 = vmatprep.subr.mxu0 0.0
  %1843 = vmatpush1.msra.mxu0 0.0
  %1844 = vmatprep.subr.mxu0 0.0
  %1845 = vmatpush1.msra.mxu0 0.0
  %1846 = vmatprep.subr.mxu0 0.0
  %1847 = vmatpush1.msra.mxu0 0.0
  %1848 = vmatprep.subr.mxu0 0.0
  %1849 = vmatpush1.msra.mxu0 0.0
  %1850 = vmatprep.subr.mxu0 0.0
  %1851 = vmatpush1.msra.mxu0 0.0
  %1852 = vmatprep.subr.mxu0 0.0
  %1853 = vmatpush1.msra.mxu0 0.0
  %1854 = vmatprep.subr.mxu0 0.0
  %1855 = vmatpush1.msra.mxu0 0.0
  %1856 = vmatprep.subr.mxu0 0.0
  %1857 = vmatpush1.msra.mxu0 0.0
  %1858 = vmatprep.subr.mxu0 0.0
  %1859 = vmatpush1.msra.mxu0 0.0
  %1860 = vmatprep.subr.mxu0 0.0
  %1861 = vmatpush1.msra.mxu0 0.0
  %1862 = vmatprep.subr.mxu0 0.0
  %1863 = vmatpush1.msra.mxu0 0.0
  %1864 = vmatprep.subr.mxu0 0.0
  %1865 = vmatpush1.msra.mxu0 0.0
  %1866 = vmatprep.subr.mxu0 0.0
  %1867 = vmatpush1.msra.mxu0 0.0
  %1868 = vmatprep.subr.mxu0 0.0
  %1869 = vmatpush1.msra.mxu0 0.0
  %1870 = vmatprep.subr.mxu0 0.0
  %1871 = vmatpush1.msra.mxu0 0.0
  %1872 = vmatprep.subr.mxu0 0.0
  %1873 = vmatpush1.msra.mxu0 0.0
  %1874 = vmatprep.subr.mxu0 0.0
  %1875 = vmatpush1.msra.mxu0 0.0
  %1876 = vmatprep.subr.mxu0 0.0
  %1877 = vmatpush1.msra.mxu0 0.0
  %1878 = vmatprep.subr.mxu0 0.0
  %1879 = vmatpush1.msra.mxu0 0.0
  %1880 = vmatprep.subr.mxu0 0.0
  %1881 = vmatpush1.msra.mxu0 0.0
  %1882 = vmatprep.subr.mxu0 0.0
  %1883 = vmatpush1.msra.mxu0 0.0
  %1884 = vmatprep.subr.mxu0 0.0
  %1885 = vmatpush1.msra.mxu0 0.0
  %1886 = vmatprep.subr.mxu0 0.0
  %1887 = vmatpush1.msra.mxu0 0.0
  %1888 = vmatprep.subr.mxu0 0.0
  %1889 = vmatpush1.msra.mxu0 0.0
  %1890 = vmatprep.subr.mxu0 0.0
  %1891 = vmatpush1.msra.mxu0 0.0
  %1892 = vmatprep.subr.mxu0 0.0
  %1893 = vmatpush1.msra.mxu0 0.0
  %1894 = vmatprep.subr.mxu0 0.0
  %1895 = vmatpush1.msra.mxu0 0.0
  %1896 = vmatprep.mubr.f32.mxu0 0.0
  %1897 = vmatmul.mubr.f32.gmra.mrb[0].mxu0 %v1830
  %v1898 = vpop.f32.mrb[0].mxu0
  %v1899 = vadd.f32 0.0, %v1898
  %v1900 = vpop.f32.mrb[0].mxu0
  %1901 = vdwg.mxu0
  %1902 = vrot.lane.b32.xlu0 %v668, 112
  %v1903 = vpop.permute.xlu0 %1902
  %v1906 = vsel %vm896, %v1594, 0
  %1908 = vmatprep.subr.mxu0 0.0
  %1909 = vmatpush1.msra.mxu0 %v1903
  %1910 = vmatprep.subr.mxu0 0.0
  %1911 = vmatpush1.msra.mxu0 0.0
  %1912 = vmatprep.subr.mxu0 0.0
  %1913 = vmatpush1.msra.mxu0 0.0
  %1914 = vmatprep.subr.mxu0 0.0
  %1915 = vmatpush1.msra.mxu0 0.0
  %1916 = vmatprep.subr.mxu0 0.0
  %1917 = vmatpush1.msra.mxu0 0.0
  %1918 = vmatprep.subr.mxu0 0.0
  %1919 = vmatpush1.msra.mxu0 0.0
  %1920 = vmatprep.subr.mxu0 0.0
  %1921 = vmatpush1.msra.mxu0 0.0
  %1922 = vmatprep.subr.mxu0 0.0
  %1923 = vmatpush1.msra.mxu0 0.0
  %1924 = vmatprep.subr.mxu0 0.0
  %1925 = vmatpush1.msra.mxu0 0.0
  %1926 = vmatprep.subr.mxu0 0.0
  %1927 = vmatpush1.msra.mxu0 0.0
  %1928 = vmatprep.subr.mxu0 0.0
  %1929 = vmatpush1.msra.mxu0 0.0
  %1930 = vmatprep.subr.mxu0 0.0
  %1931 = vmatpush1.msra.mxu0 0.0
  %1932 = vmatprep.subr.mxu0 0.0
  %1933 = vmatpush1.msra.mxu0 0.0
  %1934 = vmatprep.subr.mxu0 0.0
  %1935 = vmatpush1.msra.mxu0 0.0
  %1936 = vmatprep.subr.mxu0 0.0
  %1937 = vmatpush1.msra.mxu0 0.0
  %1938 = vmatprep.subr.mxu0 0.0
  %1939 = vmatpush1.msra.mxu0 0.0
  %1940 = vmatprep.subr.mxu0 0.0
  %1941 = vmatpush1.msra.mxu0 0.0
  %1942 = vmatprep.subr.mxu0 0.0
  %1943 = vmatpush1.msra.mxu0 0.0
  %1944 = vmatprep.subr.mxu0 0.0
  %1945 = vmatpush1.msra.mxu0 0.0
  %1946 = vmatprep.subr.mxu0 0.0
  %1947 = vmatpush1.msra.mxu0 0.0
  %1948 = vmatprep.subr.mxu0 0.0
  %1949 = vmatpush1.msra.mxu0 0.0
  %1950 = vmatprep.subr.mxu0 0.0
  %1951 = vmatpush1.msra.mxu0 0.0
  %1952 = vmatprep.subr.mxu0 0.0
  %1953 = vmatpush1.msra.mxu0 0.0
  %1954 = vmatprep.subr.mxu0 0.0
  %1955 = vmatpush1.msra.mxu0 0.0
  %1956 = vmatprep.subr.mxu0 0.0
  %1957 = vmatpush1.msra.mxu0 0.0
  %1958 = vmatprep.subr.mxu0 0.0
  %1959 = vmatpush1.msra.mxu0 0.0
  %1960 = vmatprep.subr.mxu0 0.0
  %1961 = vmatpush1.msra.mxu0 0.0
  %1962 = vmatprep.subr.mxu0 0.0
  %1963 = vmatpush1.msra.mxu0 0.0
  %1964 = vmatprep.subr.mxu0 0.0
  %1965 = vmatpush1.msra.mxu0 0.0
  %1966 = vmatprep.subr.mxu0 0.0
  %1967 = vmatpush1.msra.mxu0 0.0
  %1968 = vmatprep.subr.mxu0 0.0
  %1969 = vmatpush1.msra.mxu0 0.0
  %1970 = vmatprep.subr.mxu0 0.0
  %1971 = vmatpush1.msra.mxu0 0.0
  %1972 = vmatprep.mubr.f32.mxu0 0.0
  %1973 = vmatmul.mubr.f32.gmra.mrb[0].mxu0 %v1906
  %v1974 = vpop.f32.mrb[0].mxu0
  %v1975 = vadd.f32 0.0, %v1974
  %v1976 = vpop.f32.mrb[0].mxu0
  %1977 = vdwg.mxu0
  %1978 = vrot.lane.b32.xlu0 %v738, 112
  %v1979 = vpop.permute.xlu0 %1978
  %v1982 = vsel %vm896, %v1595, 0
  %1984 = vmatprep.subr.mxu0 0.0
  %1985 = vmatpush1.msra.mxu0 %v1979
  %1986 = vmatprep.subr.mxu0 0.0
  %1987 = vmatpush1.msra.mxu0 0.0
  %1988 = vmatprep.subr.mxu0 0.0
  %1989 = vmatpush1.msra.mxu0 0.0
  %1990 = vmatprep.subr.mxu0 0.0
  %1991 = vmatpush1.msra.mxu0 0.0
  %1992 = vmatprep.subr.mxu0 0.0
  %1993 = vmatpush1.msra.mxu0 0.0
  %1994 = vmatprep.subr.mxu0 0.0
  %1995 = vmatpush1.msra.mxu0 0.0
  %1996 = vmatprep.subr.mxu0 0.0
  %1997 = vmatpush1.msra.mxu0 0.0
  %1998 = vmatprep.subr.mxu0 0.0
  %1999 = vmatpush1.msra.mxu0 0.0
  %2000 = vmatprep.subr.mxu0 0.0
  %2001 = vmatpush1.msra.mxu0 0.0
  %2002 = vmatprep.subr.mxu0 0.0
  %2003 = vmatpush1.msra.mxu0 0.0
  %2004 = vmatprep.subr.mxu0 0.0
  %2005 = vmatpush1.msra.mxu0 0.0
  %2006 = vmatprep.subr.mxu0 0.0
  %2007 = vmatpush1.msra.mxu0 0.0
  %2008 = vmatprep.subr.mxu0 0.0
  %2009 = vmatpush1.msra.mxu0 0.0
  %2010 = vmatprep.subr.mxu0 0.0
  %2011 = vmatpush1.msra.mxu0 0.0
  %2012 = vmatprep.subr.mxu0 0.0
  %2013 = vmatpush1.msra.mxu0 0.0
  %2014 = vmatprep.subr.mxu0 0.0
  %2015 = vmatpush1.msra.mxu0 0.0
  %2016 = vmatprep.subr.mxu0 0.0
  %2017 = vmatpush1.msra.mxu0 0.0
  %2018 = vmatprep.subr.mxu0 0.0
  %2019 = vmatpush1.msra.mxu0 0.0
  %2020 = vmatprep.subr.mxu0 0.0
  %2021 = vmatpush1.msra.mxu0 0.0
  %2022 = vmatprep.subr.mxu0 0.0
  %2023 = vmatpush1.msra.mxu0 0.0
  %2024 = vmatprep.subr.mxu0 0.0
  %2025 = vmatpush1.msra.mxu0 0.0
  %2026 = vmatprep.subr.mxu0 0.0
  %2027 = vmatpush1.msra.mxu0 0.0
  %2028 = vmatprep.subr.mxu0 0.0
  %2029 = vmatpush1.msra.mxu0 0.0
  %2030 = vmatprep.subr.mxu0 0.0
  %2031 = vmatpush1.msra.mxu0 0.0
  %2032 = vmatprep.subr.mxu0 0.0
  %2033 = vmatpush1.msra.mxu0 0.0
  %2034 = vmatprep.subr.mxu0 0.0
  %2035 = vmatpush1.msra.mxu0 0.0
  %2036 = vmatprep.subr.mxu0 0.0
  %2037 = vmatpush1.msra.mxu0 0.0
  %2038 = vmatprep.subr.mxu0 0.0
  %2039 = vmatpush1.msra.mxu0 0.0
  %2040 = vmatprep.subr.mxu0 0.0
  %2041 = vmatpush1.msra.mxu0 0.0
  %2042 = vmatprep.subr.mxu0 0.0
  %2043 = vmatpush1.msra.mxu0 0.0
  %2044 = vmatprep.subr.mxu0 0.0
  %2045 = vmatpush1.msra.mxu0 0.0
  %2046 = vmatprep.subr.mxu0 0.0
  %2047 = vmatpush1.msra.mxu0 0.0
  %2048 = vmatprep.mubr.f32.mxu0 0.0
  %2049 = vmatmul.mubr.f32.gmra.mrb[0].mxu0 %v1982
  %v2050 = vpop.f32.mrb[0].mxu0
  %v2051 = vadd.f32 0.0, %v2050
  %v2052 = vpop.f32.mrb[0].mxu0
  %2053 = vdwg.mxu0
  %2054 = vrot.lane.b32.xlu0 %v808, 112
  %v2055 = vpop.permute.xlu0 %2054
  %v2058 = vsel %vm896, %v1596, 0
  %2060 = vmatprep.subr.mxu0 0.0
  %2061 = vmatpush1.msra.mxu0 %v2055
  %2062 = vmatprep.subr.mxu0 0.0
  %2063 = vmatpush1.msra.mxu0 0.0
  %2064 = vmatprep.subr.mxu0 0.0
  %2065 = vmatpush1.msra.mxu0 0.0
  %2066 = vmatprep.subr.mxu0 0.0
  %2067 = vmatpush1.msra.mxu0 0.0
  %2068 = vmatprep.subr.mxu0 0.0
  %2069 = vmatpush1.msra.mxu0 0.0
  %2070 = vmatprep.subr.mxu0 0.0
  %2071 = vmatpush1.msra.mxu0 0.0
  %2072 = vmatprep.subr.mxu0 0.0
  %2073 = vmatpush1.msra.mxu0 0.0
  %2074 = vmatprep.subr.mxu0 0.0
  %2075 = vmatpush1.msra.mxu0 0.0
  %2076 = vmatprep.subr.mxu0 0.0
  %2077 = vmatpush1.msra.mxu0 0.0
  %2078 = vmatprep.subr.mxu0 0.0
  %2079 = vmatpush1.msra.mxu0 0.0
  %2080 = vmatprep.subr.mxu0 0.0
  %2081 = vmatpush1.msra.mxu0 0.0
  %2082 = vmatprep.subr.mxu0 0.0
  %2083 = vmatpush1.msra.mxu0 0.0
  %2084 = vmatprep.subr.mxu0 0.0
  %2085 = vmatpush1.msra.mxu0 0.0
  %2086 = vmatprep.subr.mxu0 0.0
  %2087 = vmatpush1.msra.mxu0 0.0
  %2088 = vmatprep.subr.mxu0 0.0
  %2089 = vmatpush1.msra.mxu0 0.0
  %2090 = vmatprep.subr.mxu0 0.0
  %2091 = vmatpush1.msra.mxu0 0.0
  %2092 = vmatprep.subr.mxu0 0.0
  %2093 = vmatpush1.msra.mxu0 0.0
  %2094 = vmatprep.subr.mxu0 0.0
  %2095 = vmatpush1.msra.mxu0 0.0
  %2096 = vmatprep.subr.mxu0 0.0
  %2097 = vmatpush1.msra.mxu0 0.0
  %2098 = vmatprep.subr.mxu0 0.0
  %2099 = vmatpush1.msra.mxu0 0.0
  %2100 = vmatprep.subr.mxu0 0.0
  %2101 = vmatpush1.msra.mxu0 0.0
  %2102 = vmatprep.subr.mxu0 0.0
  %2103 = vmatpush1.msra.mxu0 0.0
  %2104 = vmatprep.subr.mxu0 0.0
  %2105 = vmatpush1.msra.mxu0 0.0
  %2106 = vmatprep.subr.mxu0 0.0
  %2107 = vmatpush1.msra.mxu0 0.0
  %2108 = vmatprep.subr.mxu0 0.0
  %2109 = vmatpush1.msra.mxu0 0.0
  %2110 = vmatprep.subr.mxu0 0.0
  %2111 = vmatpush1.msra.mxu0 0.0
  %2112 = vmatprep.subr.mxu0 0.0
  %2113 = vmatpush1.msra.mxu0 0.0
  %2114 = vmatprep.subr.mxu0 0.0
  %2115 = vmatpush1.msra.mxu0 0.0
  %2116 = vmatprep.subr.mxu0 0.0
  %2117 = vmatpush1.msra.mxu0 0.0
  %2118 = vmatprep.subr.mxu0 0.0
  %2119 = vmatpush1.msra.mxu0 0.0
  %2120 = vmatprep.subr.mxu0 0.0
  %2121 = vmatpush1.msra.mxu0 0.0
  %2122 = vmatprep.subr.mxu0 0.0
  %2123 = vmatpush1.msra.mxu0 0.0
  %2124 = vmatprep.mubr.f32.mxu0 0.0
  %2125 = vmatmul.mubr.f32.gmra.mrb[0].mxu0 %v2058
  %v2126 = vpop.f32.mrb[0].mxu0
  %v2127 = vadd.f32 0.0, %v2126
  %v2128 = vpop.f32.mrb[0].mxu0
  %2129 = vdwg.mxu0
  %2130 = vrot.lane.b32.xlu0 %v878, 112
  %v2131 = vpop.permute.xlu0 %2130
  %v2134 = vsel %vm896, %v1597, 0
  %2136 = vmatprep.subr.mxu0 0.0
  %2137 = vmatpush1.msra.mxu0 %v2131
  %2138 = vmatprep.subr.mxu0 0.0
  %2139 = vmatpush1.msra.mxu0 0.0
  %2140 = vmatprep.subr.mxu0 0.0
  %2141 = vmatpush1.msra.mxu0 0.0
  %2142 = vmatprep.subr.mxu0 0.0
  %2143 = vmatpush1.msra.mxu0 0.0
  %2144 = vmatprep.subr.mxu0 0.0
  %2145 = vmatpush1.msra.mxu0 0.0
  %2146 = vmatprep.subr.mxu0 0.0
  %2147 = vmatpush1.msra.mxu0 0.0
  %2148 = vmatprep.subr.mxu0 0.0
  %2149 = vmatpush1.msra.mxu0 0.0
  %2150 = vmatprep.subr.mxu0 0.0
  %2151 = vmatpush1.msra.mxu0 0.0
  %2152 = vmatprep.subr.mxu0 0.0
  %2153 = vmatpush1.msra.mxu0 0.0
  %2154 = vmatprep.subr.mxu0 0.0
  %2155 = vmatpush1.msra.mxu0 0.0
  %2156 = vmatprep.subr.mxu0 0.0
  %2157 = vmatpush1.msra.mxu0 0.0
  %2158 = vmatprep.subr.mxu0 0.0
  %2159 = vmatpush1.msra.mxu0 0.0
  %2160 = vmatprep.subr.mxu0 0.0
  %2161 = vmatpush1.msra.mxu0 0.0
  %2162 = vmatprep.subr.mxu0 0.0
  %2163 = vmatpush1.msra.mxu0 0.0
  %2164 = vmatprep.subr.mxu0 0.0
  %2165 = vmatpush1.msra.mxu0 0.0
  %2166 = vmatprep.subr.mxu0 0.0
  %2167 = vmatpush1.msra.mxu0 0.0
  %2168 = vmatprep.subr.mxu0 0.0
  %2169 = vmatpush1.msra.mxu0 0.0
  %2170 = vmatprep.subr.mxu0 0.0
  %2171 = vmatpush1.msra.mxu0 0.0
  %2172 = vmatprep.subr.mxu0 0.0
  %2173 = vmatpush1.msra.mxu0 0.0
  %2174 = vmatprep.subr.mxu0 0.0
  %2175 = vmatpush1.msra.mxu0 0.0
  %2176 = vmatprep.subr.mxu0 0.0
  %2177 = vmatpush1.msra.mxu0 0.0
  %2178 = vmatprep.subr.mxu0 0.0
  %2179 = vmatpush1.msra.mxu0 0.0
  %2180 = vmatprep.subr.mxu0 0.0
  %2181 = vmatpush1.msra.mxu0 0.0
  %2182 = vmatprep.subr.mxu0 0.0
  %2183 = vmatpush1.msra.mxu0 0.0
  %2184 = vmatprep.subr.mxu0 0.0
  %2185 = vmatpush1.msra.mxu0 0.0
  %2186 = vmatprep.subr.mxu0 0.0
  %2187 = vmatpush1.msra.mxu0 0.0
  %2188 = vmatprep.subr.mxu0 0.0
  %2189 = vmatpush1.msra.mxu0 0.0
  %2190 = vmatprep.subr.mxu0 0.0
  %2191 = vmatpush1.msra.mxu0 0.0
  %2192 = vmatprep.subr.mxu0 0.0
  %2193 = vmatpush1.msra.mxu0 0.0
  %2194 = vmatprep.subr.mxu0 0.0
  %2195 = vmatpush1.msra.mxu0 0.0
  %2196 = vmatprep.subr.mxu0 0.0
  %2197 = vmatpush1.msra.mxu0 0.0
  %2198 = vmatprep.subr.mxu0 0.0
  %2199 = vmatpush1.msra.mxu0 0.0
  %2200 = vmatprep.mubr.f32.mxu0 0.0
  %2201 = vmatmul.mubr.f32.gmra.mrb[0].mxu0 %v2134
  %v2202 = vpop.f32.mrb[0].mxu0
  %v2203 = vadd.f32 0.0, %v2202
  %v2204 = vpop.f32.mrb[0].mxu0
  %2205 = vdwg.mxu0
  %v2207 = vsel %vm896, %v1671, 0
  %2209 = vmatprep.subr.mxu0 0.0
  %2210 = vmatpush1.msra.mxu0 %v259
  %2211 = vmatprep.subr.mxu0 0.0
  %2212 = vmatpush1.msra.mxu0 0.0
  %2213 = vmatprep.subr.mxu0 0.0
  %2214 = vmatpush1.msra.mxu0 0.0
  %2215 = vmatprep.subr.mxu0 0.0
  %2216 = vmatpush1.msra.mxu0 0.0
  %2217 = vmatprep.subr.mxu0 0.0
  %2218 = vmatpush1.msra.mxu0 0.0
  %2219 = vmatprep.subr.mxu0 0.0
  %2220 = vmatpush1.msra.mxu0 0.0
  %2221 = vmatprep.subr.mxu0 0.0
  %2222 = vmatpush1.msra.mxu0 0.0
  %2223 = vmatprep.subr.mxu0 0.0
  %2224 = vmatpush1.msra.mxu0 0.0
  %2225 = vmatprep.subr.mxu0 0.0
  %2226 = vmatpush1.msra.mxu0 0.0
  %2227 = vmatprep.subr.mxu0 0.0
  %2228 = vmatpush1.msra.mxu0 0.0
  %2229 = vmatprep.subr.mxu0 0.0
  %2230 = vmatpush1.msra.mxu0 0.0
  %2231 = vmatprep.subr.mxu0 0.0
  %2232 = vmatpush1.msra.mxu0 0.0
  %2233 = vmatprep.subr.mxu0 0.0
  %2234 = vmatpush1.msra.mxu0 0.0
  %2235 = vmatprep.subr.mxu0 0.0
  %2236 = vmatpush1.msra.mxu0 0.0
  %2237 = vmatprep.subr.mxu0 0.0
  %2238 = vmatpush1.msra.mxu0 0.0
  %2239 = vmatprep.subr.mxu0 0.0
  %2240 = vmatpush1.msra.mxu0 0.0
  %2241 = vmatprep.subr.mxu0 0.0
  %2242 = vmatpush1.msra.mxu0 0.0
  %2243 = vmatprep.subr.mxu0 0.0
  %2244 = vmatpush1.msra.mxu0 0.0
  %2245 = vmatprep.subr.mxu0 0.0
  %2246 = vmatpush1.msra.mxu0 0.0
  %2247 = vmatprep.subr.mxu0 0.0
  %2248 = vmatpush1.msra.mxu0 0.0
  %2249 = vmatprep.subr.mxu0 0.0
  %2250 = vmatpush1.msra.mxu0 0.0
  %2251 = vmatprep.subr.mxu0 0.0
  %2252 = vmatpush1.msra.mxu0 0.0
  %2253 = vmatprep.subr.mxu0 0.0
  %2254 = vmatpush1.msra.mxu0 0.0
  %2255 = vmatprep.subr.mxu0 0.0
  %2256 = vmatpush1.msra.mxu0 0.0
  %2257 = vmatprep.subr.mxu0 0.0
  %2258 = vmatpush1.msra.mxu0 0.0
  %2259 = vmatprep.subr.mxu0 0.0
  %2260 = vmatpush1.msra.mxu0 0.0
  %2261 = vmatprep.subr.mxu0 0.0
  %2262 = vmatpush1.msra.mxu0 0.0
  %2263 = vmatprep.subr.mxu0 0.0
  %2264 = vmatpush1.msra.mxu0 0.0
  %2265 = vmatprep.subr.mxu0 0.0
  %2266 = vmatpush1.msra.mxu0 0.0
  %2267 = vmatprep.subr.mxu0 0.0
  %2268 = vmatpush1.msra.mxu0 0.0
  %2269 = vmatprep.subr.mxu0 0.0
  %2270 = vmatpush1.msra.mxu0 0.0
  %2271 = vmatprep.subr.mxu0 0.0
  %2272 = vmatpush1.msra.mxu0 0.0
  %2273 = vmatprep.mubr.f32.mxu0 0.0
  %2274 = vmatmul.mubr.f32.gmra.mrb[0].mxu0 %v2207
  %v2275 = vpop.f32.mrb[0].mxu0
  %v2276 = vadd.f32 0.0, %v2275
  %v2277 = vpop.f32.mrb[0].mxu0
  %2278 = vdwg.mxu0
  %v2280 = vsel %vm896, %v1747, 0
  %2282 = vmatprep.subr.mxu0 0.0
  %2283 = vmatpush1.msra.mxu0 %v260
  %2284 = vmatprep.subr.mxu0 0.0
  %2285 = vmatpush1.msra.mxu0 0.0
  %2286 = vmatprep.subr.mxu0 0.0
  %2287 = vmatpush1.msra.mxu0 0.0
  %2288 = vmatprep.subr.mxu0 0.0
  %2289 = vmatpush1.msra.mxu0 0.0
  %2290 = vmatprep.subr.mxu0 0.0
  %2291 = vmatpush1.msra.mxu0 0.0
  %2292 = vmatprep.subr.mxu0 0.0
  %2293 = vmatpush1.msra.mxu0 0.0
  %2294 = vmatprep.subr.mxu0 0.0
  %2295 = vmatpush1.msra.mxu0 0.0
  %2296 = vmatprep.subr.mxu0 0.0
  %2297 = vmatpush1.msra.mxu0 0.0
  %2298 = vmatprep.subr.mxu0 0.0
  %2299 = vmatpush1.msra.mxu0 0.0
  %2300 = vmatprep.subr.mxu0 0.0
  %2301 = vmatpush1.msra.mxu0 0.0
  %2302 = vmatprep.subr.mxu0 0.0
  %2303 = vmatpush1.msra.mxu0 0.0
  %2304 = vmatprep.subr.mxu0 0.0
  %2305 = vmatpush1.msra.mxu0 0.0
  %2306 = vmatprep.subr.mxu0 0.0
  %2307 = vmatpush1.msra.mxu0 0.0
  %2308 = vmatprep.subr.mxu0 0.0
  %2309 = vmatpush1.msra.mxu0 0.0
  %2310 = vmatprep.subr.mxu0 0.0
  %2311 = vmatpush1.msra.mxu0 0.0
  %2312 = vmatprep.subr.mxu0 0.0
  %2313 = vmatpush1.msra.mxu0 0.0
  %2314 = vmatprep.subr.mxu0 0.0
  %2315 = vmatpush1.msra.mxu0 0.0
  %2316 = vmatprep.subr.mxu0 0.0
  %2317 = vmatpush1.msra.mxu0 0.0
  %2318 = vmatprep.subr.mxu0 0.0
  %2319 = vmatpush1.msra.mxu0 0.0
  %2320 = vmatprep.subr.mxu0 0.0
  %2321 = vmatpush1.msra.mxu0 0.0
  %2322 = vmatprep.subr.mxu0 0.0
  %2323 = vmatpush1.msra.mxu0 0.0
  %2324 = vmatprep.subr.mxu0 0.0
  %2325 = vmatpush1.msra.mxu0 0.0
  %2326 = vmatprep.subr.mxu0 0.0
  %2327 = vmatpush1.msra.mxu0 0.0
  %2328 = vmatprep.subr.mxu0 0.0
  %2329 = vmatpush1.msra.mxu0 0.0
  %2330 = vmatprep.subr.mxu0 0.0
  %2331 = vmatpush1.msra.mxu0 0.0
  %2332 = vmatprep.subr.mxu0 0.0
  %2333 = vmatpush1.msra.mxu0 0.0
  %2334 = vmatprep.subr.mxu0 0.0
  %2335 = vmatpush1.msra.mxu0 0.0
  %2336 = vmatprep.subr.mxu0 0.0
  %2337 = vmatpush1.msra.mxu0 0.0
  %2338 = vmatprep.subr.mxu0 0.0
  %2339 = vmatpush1.msra.mxu0 0.0
  %2340 = vmatprep.subr.mxu0 0.0
  %2341 = vmatpush1.msra.mxu0 0.0
  %2342 = vmatprep.subr.mxu0 0.0
  %2343 = vmatpush1.msra.mxu0 0.0
  %2344 = vmatprep.subr.mxu0 0.0
  %2345 = vmatpush1.msra.mxu0 0.0
  %2346 = vmatprep.mubr.f32.mxu0 0.0
  %2347 = vmatmul.mubr.f32.gmra.mrb[0].mxu0 %v2280
  %v2348 = vpop.f32.mrb[0].mxu0
  %v2349 = vadd.f32 0.0, %v2348
  %v2350 = vpop.f32.mrb[0].mxu0
  %2351 = vdwg.mxu0
  %v2353 = vsel %vm896, %v1823, 0
  %2355 = vmatprep.subr.mxu0 0.0
  %2356 = vmatpush1.msra.mxu0 %v261
  %2357 = vmatprep.subr.mxu0 0.0
  %2358 = vmatpush1.msra.mxu0 0.0
  %2359 = vmatprep.subr.mxu0 0.0
  %2360 = vmatpush1.msra.mxu0 0.0
  %2361 = vmatprep.subr.mxu0 0.0
  %2362 = vmatpush1.msra.mxu0 0.0
  %2363 = vmatprep.subr.mxu0 0.0
  %2364 = vmatpush1.msra.mxu0 0.0
  %2365 = vmatprep.subr.mxu0 0.0
  %2366 = vmatpush1.msra.mxu0 0.0
  %2367 = vmatprep.subr.mxu0 0.0
  %2368 = vmatpush1.msra.mxu0 0.0
  %2369 = vmatprep.subr.mxu0 0.0
  %2370 = vmatpush1.msra.mxu0 0.0
  %2371 = vmatprep.subr.mxu0 0.0
  %2372 = vmatpush1.msra.mxu0 0.0
  %2373 = vmatprep.subr.mxu0 0.0
  %2374 = vmatpush1.msra.mxu0 0.0
  %2375 = vmatprep.subr.mxu0 0.0
  %2376 = vmatpush1.msra.mxu0 0.0
  %2377 = vmatprep.subr.mxu0 0.0
  %2378 = vmatpush1.msra.mxu0 0.0
  %2379 = vmatprep.subr.mxu0 0.0
  %2380 = vmatpush1.msra.mxu0 0.0
  %2381 = vmatprep.subr.mxu0 0.0
  %2382 = vmatpush1.msra.mxu0 0.0
  %2383 = vmatprep.subr.mxu0 0.0
  %2384 = vmatpush1.msra.mxu0 0.0
  %2385 = vmatprep.subr.mxu0 0.0
  %2386 = vmatpush1.msra.mxu0 0.0
  %2387 = vmatprep.subr.mxu0 0.0
  %2388 = vmatpush1.msra.mxu0 0.0
  %2389 = vmatprep.subr.mxu0 0.0
  %2390 = vmatpush1.msra.mxu0 0.0
  %2391 = vmatprep.subr.mxu0 0.0
  %2392 = vmatpush1.msra.mxu0 0.0
  %2393 = vmatprep.subr.mxu0 0.0
  %2394 = vmatpush1.msra.mxu0 0.0
  %2395 = vmatprep.subr.mxu0 0.0
  %2396 = vmatpush1.msra.mxu0 0.0
  %2397 = vmatprep.subr.mxu0 0.0
  %2398 = vmatpush1.msra.mxu0 0.0
  %2399 = vmatprep.subr.mxu0 0.0
  %2400 = vmatpush1.msra.mxu0 0.0
  %2401 = vmatprep.subr.mxu0 0.0
  %2402 = vmatpush1.msra.mxu0 0.0
  %2403 = vmatprep.subr.mxu0 0.0
  %2404 = vmatpush1.msra.mxu0 0.0
  %2405 = vmatprep.subr.mxu0 0.0
  %2406 = vmatpush1.msra.mxu0 0.0
  %2407 = vmatprep.subr.mxu0 0.0
  %2408 = vmatpush1.msra.mxu0 0.0
  %2409 = vmatprep.subr.mxu0 0.0
  %2410 = vmatpush1.msra.mxu0 0.0
  %2411 = vmatprep.subr.mxu0 0.0
  %2412 = vmatpush1.msra.mxu0 0.0
  %2413 = vmatprep.subr.mxu0 0.0
  %2414 = vmatpush1.msra.mxu0 0.0
  %2415 = vmatprep.subr.mxu0 0.0
  %2416 = vmatpush1.msra.mxu0 0.0
  %2417 = vmatprep.subr.mxu0 0.0
  %2418 = vmatpush1.msra.mxu0 0.0
  %2419 = vmatprep.mubr.f32.mxu0 0.0
  %2420 = vmatmul.mubr.f32.gmra.mrb[0].mxu0 %v2353
  %v2421 = vpop.f32.mrb[0].mxu0
  %v2422 = vadd.f32 0.0, %v2421
  %v2423 = vpop.f32.mrb[0].mxu0
  %2424 = vdwg.mxu0
  %v2426 = vsel %vm896, %v1899, 0
  %2428 = vmatprep.subr.mxu0 0.0
  %2429 = vmatpush1.msra.mxu0 %v262
  %2430 = vmatprep.subr.mxu0 0.0
  %2431 = vmatpush1.msra.mxu0 0.0
  %2432 = vmatprep.subr.mxu0 0.0
  %2433 = vmatpush1.msra.mxu0 0.0
  %2434 = vmatprep.subr.mxu0 0.0
  %2435 = vmatpush1.msra.mxu0 0.0
  %2436 = vmatprep.subr.mxu0 0.0
  %2437 = vmatpush1.msra.mxu0 0.0
  %2438 = vmatprep.subr.mxu0 0.0
  %2439 = vmatpush1.msra.mxu0 0.0
  %2440 = vmatprep.subr.mxu0 0.0
  %2441 = vmatpush1.msra.mxu0 0.0
  %2442 = vmatprep.subr.mxu0 0.0
  %2443 = vmatpush1.msra.mxu0 0.0
  %2444 = vmatprep.subr.mxu0 0.0
  %2445 = vmatpush1.msra.mxu0 0.0
  %2446 = vmatprep.subr.mxu0 0.0
  %2447 = vmatpush1.msra.mxu0 0.0
  %2448 = vmatprep.subr.mxu0 0.0
  %2449 = vmatpush1.msra.mxu0 0.0
  %2450 = vmatprep.subr.mxu0 0.0
  %2451 = vmatpush1.msra.mxu0 0.0
  %2452 = vmatprep.subr.mxu0 0.0
  %2453 = vmatpush1.msra.mxu0 0.0
  %2454 = vmatprep.subr.mxu0 0.0
  %2455 = vmatpush1.msra.mxu0 0.0
  %2456 = vmatprep.subr.mxu0 0.0
  %2457 = vmatpush1.msra.mxu0 0.0
  %2458 = vmatprep.subr.mxu0 0.0
  %2459 = vmatpush1.msra.mxu0 0.0
  %2460 = vmatprep.subr.mxu0 0.0
  %2461 = vmatpush1.msra.mxu0 0.0
  %2462 = vmatprep.subr.mxu0 0.0
  %2463 = vmatpush1.msra.mxu0 0.0
  %2464 = vmatprep.subr.mxu0 0.0
  %2465 = vmatpush1.msra.mxu0 0.0
  %2466 = vmatprep.subr.mxu0 0.0
  %2467 = vmatpush1.msra.mxu0 0.0
  %2468 = vmatprep.subr.mxu0 0.0
  %2469 = vmatpush1.msra.mxu0 0.0
  %2470 = vmatprep.subr.mxu0 0.0
  %2471 = vmatpush1.msra.mxu0 0.0
  %2472 = vmatprep.subr.mxu0 0.0
  %2473 = vmatpush1.msra.mxu0 0.0
  %2474 = vmatprep.subr.mxu0 0.0
  %2475 = vmatpush1.msra.mxu0 0.0
  %2476 = vmatprep.subr.mxu0 0.0
  %2477 = vmatpush1.msra.mxu0 0.0
  %2478 = vmatprep.subr.mxu0 0.0
  %2479 = vmatpush1.msra.mxu0 0.0
  %2480 = vmatprep.subr.mxu0 0.0
  %2481 = vmatpush1.msra.mxu0 0.0
  %2482 = vmatprep.subr.mxu0 0.0
  %2483 = vmatpush1.msra.mxu0 0.0
  %2484 = vmatprep.subr.mxu0 0.0
  %2485 = vmatpush1.msra.mxu0 0.0
  %2486 = vmatprep.subr.mxu0 0.0
  %2487 = vmatpush1.msra.mxu0 0.0
  %2488 = vmatprep.subr.mxu0 0.0
  %2489 = vmatpush1.msra.mxu0 0.0
  %2490 = vmatprep.subr.mxu0 0.0
  %2491 = vmatpush1.msra.mxu0 0.0
  %2492 = vmatprep.mubr.f32.mxu0 0.0
  %2493 = vmatmul.mubr.f32.gmra.mrb[0].mxu0 %v2426
  %v2494 = vpop.f32.mrb[0].mxu0
  %v2495 = vadd.f32 0.0, %v2494
  %v2496 = vpop.f32.mrb[0].mxu0
  %2497 = vdwg.mxu0
  %v2499 = vsel %vm896, %v1975, 0
  %2501 = vmatprep.subr.mxu0 0.0
  %2502 = vmatpush1.msra.mxu0 %v263
  %2503 = vmatprep.subr.mxu0 0.0
  %2504 = vmatpush1.msra.mxu0 0.0
  %2505 = vmatprep.subr.mxu0 0.0
  %2506 = vmatpush1.msra.mxu0 0.0
  %2507 = vmatprep.subr.mxu0 0.0
  %2508 = vmatpush1.msra.mxu0 0.0
  %2509 = vmatprep.subr.mxu0 0.0
  %2510 = vmatpush1.msra.mxu0 0.0
  %2511 = vmatprep.subr.mxu0 0.0
  %2512 = vmatpush1.msra.mxu0 0.0
  %2513 = vmatprep.subr.mxu0 0.0
  %2514 = vmatpush1.msra.mxu0 0.0
  %2515 = vmatprep.subr.mxu0 0.0
  %2516 = vmatpush1.msra.mxu0 0.0
  %2517 = vmatprep.subr.mxu0 0.0
  %2518 = vmatpush1.msra.mxu0 0.0
  %2519 = vmatprep.subr.mxu0 0.0
  %2520 = vmatpush1.msra.mxu0 0.0
  %2521 = vmatprep.subr.mxu0 0.0
  %2522 = vmatpush1.msra.mxu0 0.0
  %2523 = vmatprep.subr.mxu0 0.0
  %2524 = vmatpush1.msra.mxu0 0.0
  %2525 = vmatprep.subr.mxu0 0.0
  %2526 = vmatpush1.msra.mxu0 0.0
  %2527 = vmatprep.subr.mxu0 0.0
  %2528 = vmatpush1.msra.mxu0 0.0
  %2529 = vmatprep.subr.mxu0 0.0
  %2530 = vmatpush1.msra.mxu0 0.0
  %2531 = vmatprep.subr.mxu0 0.0
  %2532 = vmatpush1.msra.mxu0 0.0
  %2533 = vmatprep.subr.mxu0 0.0
  %2534 = vmatpush1.msra.mxu0 0.0
  %2535 = vmatprep.subr.mxu0 0.0
  %2536 = vmatpush1.msra.mxu0 0.0
  %2537 = vmatprep.subr.mxu0 0.0
  %2538 = vmatpush1.msra.mxu0 0.0
  %2539 = vmatprep.subr.mxu0 0.0
  %2540 = vmatpush1.msra.mxu0 0.0
  %2541 = vmatprep.subr.mxu0 0.0
  %2542 = vmatpush1.msra.mxu0 0.0
  %2543 = vmatprep.subr.mxu0 0.0
  %2544 = vmatpush1.msra.mxu0 0.0
  %2545 = vmatprep.subr.mxu0 0.0
  %2546 = vmatpush1.msra.mxu0 0.0
  %2547 = vmatprep.subr.mxu0 0.0
  %2548 = vmatpush1.msra.mxu0 0.0
  %2549 = vmatprep.subr.mxu0 0.0
  %2550 = vmatpush1.msra.mxu0 0.0
  %2551 = vmatprep.subr.mxu0 0.0
  %2552 = vmatpush1.msra.mxu0 0.0
  %2553 = vmatprep.subr.mxu0 0.0
  %2554 = vmatpush1.msra.mxu0 0.0
  %2555 = vmatprep.subr.mxu0 0.0
  %2556 = vmatpush1.msra.mxu0 0.0
  %2557 = vmatprep.subr.mxu0 0.0
  %2558 = vmatpush1.msra.mxu0 0.0
  %2559 = vmatprep.subr.mxu0 0.0
  %2560 = vmatpush1.msra.mxu0 0.0
  %2561 = vmatprep.subr.mxu0 0.0
  %2562 = vmatpush1.msra.mxu0 0.0
  %2563 = vmatprep.subr.mxu0 0.0
  %2564 = vmatpush1.msra.mxu0 0.0
  %2565 = vmatprep.mubr.f32.mxu0 0.0
  %2566 = vmatmul.mubr.f32.gmra.mrb[0].mxu0 %v2499
  %v2567 = vpop.f32.mrb[0].mxu0
  %v2568 = vadd.f32 0.0, %v2567
  %v2569 = vpop.f32.mrb[0].mxu0
  %2570 = vdwg.mxu0
  %v2572 = vsel %vm896, %v2051, 0
  %2574 = vmatprep.subr.mxu0 0.0
  %2575 = vmatpush1.msra.mxu0 %v264
  %2576 = vmatprep.subr.mxu0 0.0
  %2577 = vmatpush1.msra.mxu0 0.0
  %2578 = vmatprep.subr.mxu0 0.0
  %2579 = vmatpush1.msra.mxu0 0.0
  %2580 = vmatprep.subr.mxu0 0.0
  %2581 = vmatpush1.msra.mxu0 0.0
  %2582 = vmatprep.subr.mxu0 0.0
  %2583 = vmatpush1.msra.mxu0 0.0
  %2584 = vmatprep.subr.mxu0 0.0
  %2585 = vmatpush1.msra.mxu0 0.0
  %2586 = vmatprep.subr.mxu0 0.0
  %2587 = vmatpush1.msra.mxu0 0.0
  %2588 = vmatprep.subr.mxu0 0.0
  %2589 = vmatpush1.msra.mxu0 0.0
  %2590 = vmatprep.subr.mxu0 0.0
  %2591 = vmatpush1.msra.mxu0 0.0
  %2592 = vmatprep.subr.mxu0 0.0
  %2593 = vmatpush1.msra.mxu0 0.0
  %2594 = vmatprep.subr.mxu0 0.0
  %2595 = vmatpush1.msra.mxu0 0.0
  %2596 = vmatprep.subr.mxu0 0.0
  %2597 = vmatpush1.msra.mxu0 0.0
  %2598 = vmatprep.subr.mxu0 0.0
  %2599 = vmatpush1.msra.mxu0 0.0
  %2600 = vmatprep.subr.mxu0 0.0
  %2601 = vmatpush1.msra.mxu0 0.0
  %2602 = vmatprep.subr.mxu0 0.0
  %2603 = vmatpush1.msra.mxu0 0.0
  %2604 = vmatprep.subr.mxu0 0.0
  %2605 = vmatpush1.msra.mxu0 0.0
  %2606 = vmatprep.subr.mxu0 0.0
  %2607 = vmatpush1.msra.mxu0 0.0
  %2608 = vmatprep.subr.mxu0 0.0
  %2609 = vmatpush1.msra.mxu0 0.0
  %2610 = vmatprep.subr.mxu0 0.0
  %2611 = vmatpush1.msra.mxu0 0.0
  %2612 = vmatprep.subr.mxu0 0.0
  %2613 = vmatpush1.msra.mxu0 0.0
  %2614 = vmatprep.subr.mxu0 0.0
  %2615 = vmatpush1.msra.mxu0 0.0
  %2616 = vmatprep.subr.mxu0 0.0
  %2617 = vmatpush1.msra.mxu0 0.0
  %2618 = vmatprep.subr.mxu0 0.0
  %2619 = vmatpush1.msra.mxu0 0.0
  %2620 = vmatprep.subr.mxu0 0.0
  %2621 = vmatpush1.msra.mxu0 0.0
  %2622 = vmatprep.subr.mxu0 0.0
  %2623 = vmatpush1.msra.mxu0 0.0
  %2624 = vmatprep.subr.mxu0 0.0
  %2625 = vmatpush1.msra.mxu0 0.0
  %2626 = vmatprep.subr.mxu0 0.0
  %2627 = vmatpush1.msra.mxu0 0.0
  %2628 = vmatprep.subr.mxu0 0.0
  %2629 = vmatpush1.msra.mxu0 0.0
  %2630 = vmatprep.subr.mxu0 0.0
  %2631 = vmatpush1.msra.mxu0 0.0
  %2632 = vmatprep.subr.mxu0 0.0
  %2633 = vmatpush1.msra.mxu0 0.0
  %2634 = vmatprep.subr.mxu0 0.0
  %2635 = vmatpush1.msra.mxu0 0.0
  %2636 = vmatprep.subr.mxu0 0.0
  %2637 = vmatpush1.msra.mxu0 0.0
  %2638 = vmatprep.mubr.f32.mxu0 0.0
  %2639 = vmatmul.mubr.f32.gmra.mrb[0].mxu0 %v2572
  %v2640 = vpop.f32.mrb[0].mxu0
  %v2641 = vadd.f32 0.0, %v2640
  %v2642 = vpop.f32.mrb[0].mxu0
  %2643 = vdwg.mxu0
  %v2645 = vsel %vm896, %v2127, 0
  %2647 = vmatprep.subr.mxu0 0.0
  %2648 = vmatpush1.msra.mxu0 %v265
  %2649 = vmatprep.subr.mxu0 0.0
  %2650 = vmatpush1.msra.mxu0 0.0
  %2651 = vmatprep.subr.mxu0 0.0
  %2652 = vmatpush1.msra.mxu0 0.0
  %2653 = vmatprep.subr.mxu0 0.0
  %2654 = vmatpush1.msra.mxu0 0.0
  %2655 = vmatprep.subr.mxu0 0.0
  %2656 = vmatpush1.msra.mxu0 0.0
  %2657 = vmatprep.subr.mxu0 0.0
  %2658 = vmatpush1.msra.mxu0 0.0
  %2659 = vmatprep.subr.mxu0 0.0
  %2660 = vmatpush1.msra.mxu0 0.0
  %2661 = vmatprep.subr.mxu0 0.0
  %2662 = vmatpush1.msra.mxu0 0.0
  %2663 = vmatprep.subr.mxu0 0.0
  %2664 = vmatpush1.msra.mxu0 0.0
  %2665 = vmatprep.subr.mxu0 0.0
  %2666 = vmatpush1.msra.mxu0 0.0
  %2667 = vmatprep.subr.mxu0 0.0
  %2668 = vmatpush1.msra.mxu0 0.0
  %2669 = vmatprep.subr.mxu0 0.0
  %2670 = vmatpush1.msra.mxu0 0.0
  %2671 = vmatprep.subr.mxu0 0.0
  %2672 = vmatpush1.msra.mxu0 0.0
  %2673 = vmatprep.subr.mxu0 0.0
  %2674 = vmatpush1.msra.mxu0 0.0
  %2675 = vmatprep.subr.mxu0 0.0
  %2676 = vmatpush1.msra.mxu0 0.0
  %2677 = vmatprep.subr.mxu0 0.0
  %2678 = vmatpush1.msra.mxu0 0.0
  %2679 = vmatprep.subr.mxu0 0.0
  %2680 = vmatpush1.msra.mxu0 0.0
  %2681 = vmatprep.subr.mxu0 0.0
  %2682 = vmatpush1.msra.mxu0 0.0
  %2683 = vmatprep.subr.mxu0 0.0
  %2684 = vmatpush1.msra.mxu0 0.0
  %2685 = vmatprep.subr.mxu0 0.0
  %2686 = vmatpush1.msra.mxu0 0.0
  %2687 = vmatprep.subr.mxu0 0.0
  %2688 = vmatpush1.msra.mxu0 0.0
  %2689 = vmatprep.subr.mxu0 0.0
  %2690 = vmatpush1.msra.mxu0 0.0
  %2691 = vmatprep.subr.mxu0 0.0
  %2692 = vmatpush1.msra.mxu0 0.0
  %2693 = vmatprep.subr.mxu0 0.0
  %2694 = vmatpush1.msra.mxu0 0.0
  %2695 = vmatprep.subr.mxu0 0.0
  %2696 = vmatpush1.msra.mxu0 0.0
  %2697 = vmatprep.subr.mxu0 0.0
  %2698 = vmatpush1.msra.mxu0 0.0
  %2699 = vmatprep.subr.mxu0 0.0
  %2700 = vmatpush1.msra.mxu0 0.0
  %2701 = vmatprep.subr.mxu0 0.0
  %2702 = vmatpush1.msra.mxu0 0.0
  %2703 = vmatprep.subr.mxu0 0.0
  %2704 = vmatpush1.msra.mxu0 0.0
  %2705 = vmatprep.subr.mxu0 0.0
  %2706 = vmatpush1.msra.mxu0 0.0
  %2707 = vmatprep.subr.mxu0 0.0
  %2708 = vmatpush1.msra.mxu0 0.0
  %2709 = vmatprep.subr.mxu0 0.0
  %2710 = vmatpush1.msra.mxu0 0.0
  %2711 = vmatprep.mubr.f32.mxu0 0.0
  %2712 = vmatmul.mubr.f32.gmra.mrb[0].mxu0 %v2645
  %v2713 = vpop.f32.mrb[0].mxu0
  %v2714 = vadd.f32 0.0, %v2713
  %v2715 = vpop.f32.mrb[0].mxu0
  %2716 = vdwg.mxu0
  %v2718 = vsel %vm896, %v2203, 0
  %2720 = vmatprep.subr.mxu0 0.0
  %2721 = vmatpush1.msra.mxu0 %v266
  %2722 = vmatprep.subr.mxu0 0.0
  %2723 = vmatpush1.msra.mxu0 0.0
  %2724 = vmatprep.subr.mxu0 0.0
  %2725 = vmatpush1.msra.mxu0 0.0
  %2726 = vmatprep.subr.mxu0 0.0
  %2727 = vmatpush1.msra.mxu0 0.0
  %2728 = vmatprep.subr.mxu0 0.0
  %2729 = vmatpush1.msra.mxu0 0.0
  %2730 = vmatprep.subr.mxu0 0.0
  %2731 = vmatpush1.msra.mxu0 0.0
  %2732 = vmatprep.subr.mxu0 0.0
  %2733 = vmatpush1.msra.mxu0 0.0
  %2734 = vmatprep.subr.mxu0 0.0
  %2735 = vmatpush1.msra.mxu0 0.0
  %2736 = vmatprep.subr.mxu0 0.0
  %2737 = vmatpush1.msra.mxu0 0.0
  %2738 = vmatprep.subr.mxu0 0.0
  %2739 = vmatpush1.msra.mxu0 0.0
  %2740 = vmatprep.subr.mxu0 0.0
  %2741 = vmatpush1.msra.mxu0 0.0
  %2742 = vmatprep.subr.mxu0 0.0
  %2743 = vmatpush1.msra.mxu0 0.0
  %2744 = vmatprep.subr.mxu0 0.0
  %2745 = vmatpush1.msra.mxu0 0.0
  %2746 = vmatprep.subr.mxu0 0.0
  %2747 = vmatpush1.msra.mxu0 0.0
  %2748 = vmatprep.subr.mxu0 0.0
  %2749 = vmatpush1.msra.mxu0 0.0
  %2750 = vmatprep.subr.mxu0 0.0
  %2751 = vmatpush1.msra.mxu0 0.0
  %2752 = vmatprep.subr.mxu0 0.0
  %2753 = vmatpush1.msra.mxu0 0.0
  %2754 = vmatprep.subr.mxu0 0.0
  %2755 = vmatpush1.msra.mxu0 0.0
  %2756 = vmatprep.subr.mxu0 0.0
  %2757 = vmatpush1.msra.mxu0 0.0
  %2758 = vmatprep.subr.mxu0 0.0
  %2759 = vmatpush1.msra.mxu0 0.0
  %2760 = vmatprep.subr.mxu0 0.0
  %2761 = vmatpush1.msra.mxu0 0.0
  %2762 = vmatprep.subr.mxu0 0.0
  %2763 = vmatpush1.msra.mxu0 0.0
  %2764 = vmatprep.subr.mxu0 0.0
  %2765 = vmatpush1.msra.mxu0 0.0
  %2766 = vmatprep.subr.mxu0 0.0
  %2767 = vmatpush1.msra.mxu0 0.0
  %2768 = vmatprep.subr.mxu0 0.0
  %2769 = vmatpush1.msra.mxu0 0.0
  %2770 = vmatprep.subr.mxu0 0.0
  %2771 = vmatpush1.msra.mxu0 0.0
  %2772 = vmatprep.subr.mxu0 0.0
  %2773 = vmatpush1.msra.mxu0 0.0
  %2774 = vmatprep.subr.mxu0 0.0
  %2775 = vmatpush1.msra.mxu0 0.0
  %2776 = vmatprep.subr.mxu0 0.0
  %2777 = vmatpush1.msra.mxu0 0.0
  %2778 = vmatprep.subr.mxu0 0.0
  %2779 = vmatpush1.msra.mxu0 0.0
  %2780 = vmatprep.subr.mxu0 0.0
  %2781 = vmatpush1.msra.mxu0 0.0
  %2782 = vmatprep.subr.mxu0 0.0
  %2783 = vmatpush1.msra.mxu0 0.0
  %2784 = vmatprep.mubr.f32.mxu0 0.0
  %2785 = vmatmul.mubr.f32.gmra.mrb[0].mxu0 %v2718
  %v2786 = vpop.f32.mrb[0].mxu0
  %v2787 = vadd.f32 0.0, %v2786
  %v2788 = vpop.f32.mrb[0].mxu0
  %2789 = vdwg.mxu0
  %v2790 = vadd.f32 %v2276, %v2422
  %v2791 = vadd.f32 %v2349, %v2495
  %v2792 = vadd.f32 %v2790, %v2568
  %v2793 = vadd.f32 %v2791, %v2641
  %v2794 = vadd.f32 %v2792, %v2714
  %v2795 = vadd.f32 %v2793, %v2787
  %v2796 = vlaneseq
  %v2797 = vshrl.u32 %v2796, 7
  %v2798 = vsub.s32 0, %v2797
  %v2799 = vrot.slane %v218, %v2798
  %v2800 = vadd.f32 %v2794, %v2799
  %v2801 = vadd.f32 %v2795, %v2799
  %v2802 = vadd.f32 %v214, %v2800
  %v2803 = vadd.f32 %v215, %v2801
  %v2804 = vsel %vm176, %v2802, 0.0
  %2805 = vadd.xlane.f32.xlu0 %v2804
  %v2806 = vpop.xlane.xlu0 %2805
  %v2807 = vsel %vm176, %v2803, 0.0
  %2808 = vadd.xlane.f32.xlu0 %v2807
  %v2809 = vpop.xlane.xlu0 %2808
  %v2810 = vmul.f32 %v2806, %v183
  %v2811 = vmul.f32 %v2809, %v183
  %v2812 = vsub.f32 %v2802, %v2810
  %v2813 = vsub.f32 %v2803, %v2811
  %v2814 = vmul.f32 %v2812, %v2812
  %v2815 = vmul.f32 %v2813, %v2813
  %v2816 = vsel %vm176, %v2814, 0.0
  %2817 = vadd.xlane.f32.xlu0 %v2816
  %v2818 = vpop.xlane.xlu0 %2817
  %v2819 = vsel %vm176, %v2815, 0.0
  %2820 = vadd.xlane.f32.xlu0 %v2819
  %v2821 = vpop.xlane.xlu0 %2820
  %v2822 = vmul.f32 %v2818, %v183
  %v2823 = vmul.f32 %v2821, %v183
  %v2824 = vadd.f32 %v2822, 1e-12
  %v2825 = vadd.f32 %v2823, 1e-12
  %v2826 = vrsqrt.pop %v2824
  %v2827 = vrsqrt.pop %v2825
  %v2828 = vmul.f32 %v2812, %v2826
  %v2829 = vmul.f32 %v2813, %v2827
  %v2830 = vlaneseq
  %v2831 = vshrl.u32 %v2830, 7
  %v2832 = vsub.s32 1, %v2831
  %v2833 = vrot.slane %v218, %v2832
  %v2834 = vmul.f32 %v2828, %v2833
  %v2835 = vmul.f32 %v2829, %v2833
  %v2836 = vlaneseq
  %v2837 = vshrl.u32 %v2836, 7
  %v2838 = vsub.s32 2, %v2837
  %v2839 = vrot.slane %v218, %v2838
  %v2840 = vadd.f32 %v2834, %v2839
  %v2841 = vadd.f32 %v2835, %v2839
  %v2842 = vld [vmem:[%s8] sm:$0xff]
  %v2843 = vld [vmem:[%s8 + $0x8] sm:$0xff]
  %v2844 = vld [vmem:[%s8 + $0x10] sm:$0xff]
  %v2845 = vld [vmem:[%s8 + $0x18] sm:$0xff]
  %v2846 = vlaneseq
  %v2847 = vshrl.u32 %v2846, 7
  %v2848 = vsub.s32 3, %v2847
  %v2849 = vrot.slane %v218, %v2848
  %v2851 = vsel %vm176, %v2840, 0
  %v2854 = vsel %vm176, %v2841, 0
  %2856 = vmatprep.subr.mxu0 0.0
  %2857 = vmatpush1.msra.mxu0 %v2842
  %2858 = vmatprep.subr.mxu0 0.0
  %2859 = vmatpush1.msra.mxu0 %v2843
  %2860 = vmatprep.subr.mxu0 0.0
  %2861 = vmatpush1.msra.mxu0 %v2844
  %2862 = vmatprep.subr.mxu0 0.0
  %2863 = vmatpush1.msra.mxu0 %v2845
  %2864 = vmatprep.subr.mxu0 0.0
  %2865 = vmatpush1.msra.mxu0 0.0
  %2866 = vmatprep.subr.mxu0 0.0
  %2867 = vmatpush1.msra.mxu0 0.0
  %2868 = vmatprep.subr.mxu0 0.0
  %2869 = vmatpush1.msra.mxu0 0.0
  %2870 = vmatprep.subr.mxu0 0.0
  %2871 = vmatpush1.msra.mxu0 0.0
  %2872 = vmatprep.subr.mxu0 0.0
  %2873 = vmatpush1.msra.mxu0 0.0
  %2874 = vmatprep.subr.mxu0 0.0
  %2875 = vmatpush1.msra.mxu0 0.0
  %2876 = vmatprep.subr.mxu0 0.0
  %2877 = vmatpush1.msra.mxu0 0.0
  %2878 = vmatprep.subr.mxu0 0.0
  %2879 = vmatpush1.msra.mxu0 0.0
  %2880 = vmatprep.subr.mxu0 0.0
  %2881 = vmatpush1.msra.mxu0 0.0
  %2882 = vmatprep.subr.mxu0 0.0
  %2883 = vmatpush1.msra.mxu0 0.0
  %2884 = vmatprep.subr.mxu0 0.0
  %2885 = vmatpush1.msra.mxu0 0.0
  %2886 = vmatprep.subr.mxu0 0.0
  %2887 = vmatpush1.msra.mxu0 0.0
  %2888 = vmatprep.subr.mxu0 0.0
  %2889 = vmatpush1.msra.mxu0 0.0
  %2890 = vmatprep.subr.mxu0 0.0
  %2891 = vmatpush1.msra.mxu0 0.0
  %2892 = vmatprep.subr.mxu0 0.0
  %2893 = vmatpush1.msra.mxu0 0.0
  %2894 = vmatprep.subr.mxu0 0.0
  %2895 = vmatpush1.msra.mxu0 0.0
  %2896 = vmatprep.subr.mxu0 0.0
  %2897 = vmatpush1.msra.mxu0 0.0
  %2898 = vmatprep.subr.mxu0 0.0
  %2899 = vmatpush1.msra.mxu0 0.0
  %2900 = vmatprep.subr.mxu0 0.0
  %2901 = vmatpush1.msra.mxu0 0.0
  %2902 = vmatprep.subr.mxu0 0.0
  %2903 = vmatpush1.msra.mxu0 0.0
  %2904 = vmatprep.subr.mxu0 0.0
  %2905 = vmatpush1.msra.mxu0 0.0
  %2906 = vmatprep.subr.mxu0 0.0
  %2907 = vmatpush1.msra.mxu0 0.0
  %2908 = vmatprep.subr.mxu0 0.0
  %2909 = vmatpush1.msra.mxu0 0.0
  %2910 = vmatprep.subr.mxu0 0.0
  %2911 = vmatpush1.msra.mxu0 0.0
  %2912 = vmatprep.subr.mxu0 0.0
  %2913 = vmatpush1.msra.mxu0 0.0
  %2914 = vmatprep.subr.mxu0 0.0
  %2915 = vmatpush1.msra.mxu0 0.0
  %2916 = vmatprep.subr.mxu0 0.0
  %2917 = vmatpush1.msra.mxu0 0.0
  %2918 = vmatprep.subr.mxu0 0.0
  %2919 = vmatpush1.msra.mxu0 0.0
  %2920 = vmatprep.mubr.f32.mxu0 0.0
  %2921 = vmatmul.mubr.f32.gmra.mrb[0].mxu0 %v2851
  %v2922 = vpop.f32.mrb[0].mxu0
  %v2923 = vadd.f32 %v2849, %v2922
  %v2924 = vpop.f32.mrb[0].mxu0
  %2925 = vmatprep.mubr.f32.mxu0 0.0
  %2926 = vmatmul.mubr.f32.gmra.mrb[0].mxu0 %v2854
  %v2927 = vpop.f32.mrb[0].mxu0
  %v2928 = vadd.f32 %v2849, %v2927
  %v2929 = vpop.f32.mrb[0].mxu0
  %2930 = vdwg.mxu0
  %v2931 = vmul.f32 %v2923, %v2923
  %v2932 = vmul.f32 %v2928, %v2928
  %v2933 = vmul.f32 %v2923, %v2931
  %v2934 = vmul.f32 %v2928, %v2932
  %v2935 = vmul.f32 %v2933, 0.044715
  %v2936 = vmul.f32 %v2934, 0.044715
  %v2937 = vadd.f32 %v2923, %v2935
  %v2938 = vadd.f32 %v2928, %v2936
  %v2939 = vmul.f32 %v2937, 0.7978846
  %v2940 = vmul.f32 %v2938, 0.7978846
  %v2941 = vtanh.pop %v2939
  %v2942 = vtanh.pop %v2940
  %v2943 = vadd.f32 %v2941, 1.0
  %v2944 = vadd.f32 %v2942, 1.0
  %v2945 = vmul.f32 %v2943, 0.5
  %v2946 = vmul.f32 %v2944, 0.5
  %v2947 = vmul.f32 %v2923, %v2945
  %v2948 = vmul.f32 %v2928, %v2946
  %v2949 = vld [vmem:[%s9] sm:$0xff]
  %v2950 = vld [vmem:[%s9 + $0x8] sm:$0xff]
  %v2951 = vld [vmem:[%s9 + $0x10] sm:$0xff]
  %v2952 = vld [vmem:[%s9 + $0x18] sm:$0xff]
  %v2953 = vld [vmem:[%s9 + $0x20] sm:$0xff]
  %v2954 = vld [vmem:[%s9 + $0x28] sm:$0xff]
  %v2955 = vld [vmem:[%s9 + $0x30] sm:$0xff]
  %v2956 = vld [vmem:[%s9 + $0x38] sm:$0xff]
  %v2957 = vlaneseq
  %v2958 = vshrl.u32 %v2957, 7
  %v2959 = vsub.s32 4, %v2958
  %v2960 = vrot.slane %v218, %v2959
  %v2962 = vsel %vm90, %v2947, 0
  %v2965 = vsel %vm90, %v2948, 0
  %2967 = vmatprep.subr.mxu0 0.0
  %2968 = vmatpush1.msra.mxu0 %v2949
  %2969 = vmatprep.subr.mxu0 0.0
  %2970 = vmatpush1.msra.mxu0 %v2950
  %2971 = vmatprep.subr.mxu0 0.0
  %2972 = vmatpush1.msra.mxu0 %v2951
  %2973 = vmatprep.subr.mxu0 0.0
  %2974 = vmatpush1.msra.mxu0 %v2952
  %2975 = vmatprep.subr.mxu0 0.0
  %2976 = vmatpush1.msra.mxu0 %v2953
  %2977 = vmatprep.subr.mxu0 0.0
  %2978 = vmatpush1.msra.mxu0 %v2954
  %2979 = vmatprep.subr.mxu0 0.0
  %2980 = vmatpush1.msra.mxu0 %v2955
  %2981 = vmatprep.subr.mxu0 0.0
  %2982 = vmatpush1.msra.mxu0 %v2956
  %2983 = vmatprep.subr.mxu0 0.0
  %2984 = vmatpush1.msra.mxu0 0.0
  %2985 = vmatprep.subr.mxu0 0.0
  %2986 = vmatpush1.msra.mxu0 0.0
  %2987 = vmatprep.subr.mxu0 0.0
  %2988 = vmatpush1.msra.mxu0 0.0
  %2989 = vmatprep.subr.mxu0 0.0
  %2990 = vmatpush1.msra.mxu0 0.0
  %2991 = vmatprep.subr.mxu0 0.0
  %2992 = vmatpush1.msra.mxu0 0.0
  %2993 = vmatprep.subr.mxu0 0.0
  %2994 = vmatpush1.msra.mxu0 0.0
  %2995 = vmatprep.subr.mxu0 0.0
  %2996 = vmatpush1.msra.mxu0 0.0
  %2997 = vmatprep.subr.mxu0 0.0
  %2998 = vmatpush1.msra.mxu0 0.0
  %2999 = vmatprep.subr.mxu0 0.0
  %3000 = vmatpush1.msra.mxu0 0.0
  %3001 = vmatprep.subr.mxu0 0.0
  %3002 = vmatpush1.msra.mxu0 0.0
  %3003 = vmatprep.subr.mxu0 0.0
  %3004 = vmatpush1.msra.mxu0 0.0
  %3005 = vmatprep.subr.mxu0 0.0
  %3006 = vmatpush1.msra.mxu0 0.0
  %3007 = vmatprep.subr.mxu0 0.0
  %3008 = vmatpush1.msra.mxu0 0.0
  %3009 = vmatprep.subr.mxu0 0.0
  %3010 = vmatpush1.msra.mxu0 0.0
  %3011 = vmatprep.subr.mxu0 0.0
  %3012 = vmatpush1.msra.mxu0 0.0
  %3013 = vmatprep.subr.mxu0 0.0
  %3014 = vmatpush1.msra.mxu0 0.0
  %3015 = vmatprep.subr.mxu0 0.0
  %3016 = vmatpush1.msra.mxu0 0.0
  %3017 = vmatprep.subr.mxu0 0.0
  %3018 = vmatpush1.msra.mxu0 0.0
  %3019 = vmatprep.subr.mxu0 0.0
  %3020 = vmatpush1.msra.mxu0 0.0
  %3021 = vmatprep.subr.mxu0 0.0
  %3022 = vmatpush1.msra.mxu0 0.0
  %3023 = vmatprep.subr.mxu0 0.0
  %3024 = vmatpush1.msra.mxu0 0.0
  %3025 = vmatprep.subr.mxu0 0.0
  %3026 = vmatpush1.msra.mxu0 0.0
  %3027 = vmatprep.subr.mxu0 0.0
  %3028 = vmatpush1.msra.mxu0 0.0
  %3029 = vmatprep.subr.mxu0 0.0
  %3030 = vmatpush1.msra.mxu0 0.0
  %3031 = vmatprep.mubr.f32.mxu0 0.0
  %3032 = vmatmul.mubr.f32.gmra.mrb[0].mxu0 %v2962
  %v3033 = vpop.f32.mrb[0].mxu0
  %v3034 = vadd.f32 %v2960, %v3033
  %v3035 = vpop.f32.mrb[0].mxu0
  %3036 = vmatprep.mubr.f32.mxu0 0.0
  %3037 = vmatmul.mubr.f32.gmra.mrb[0].mxu0 %v2965
  %v3038 = vpop.f32.mrb[0].mxu0
  %v3039 = vadd.f32 %v2960, %v3038
  %v3040 = vpop.f32.mrb[0].mxu0
  %3041 = vdwg.mxu0
  %v3042 = vadd.f32 %v2840, %v3034
  %v3043 = vadd.f32 %v2841, %v3039
  %v3044 = vsel %vm176, %v3042, 0.0
  %3045 = vadd.xlane.f32.xlu0 %v3044
  %v3046 = vpop.xlane.xlu0 %3045
  %v3047 = vsel %vm176, %v3043, 0.0
  %3048 = vadd.xlane.f32.xlu0 %v3047
  %v3049 = vpop.xlane.xlu0 %3048
  %v3050 = vmul.f32 %v3046, %v183
  %v3051 = vmul.f32 %v3049, %v183
  %v3052 = vsub.f32 %v3042, %v3050
  %v3053 = vsub.f32 %v3043, %v3051
  %v3054 = vmul.f32 %v3052, %v3052
  %v3055 = vmul.f32 %v3053, %v3053
  %v3056 = vsel %vm176, %v3054, 0.0
  %3057 = vadd.xlane.f32.xlu0 %v3056
  %v3058 = vpop.xlane.xlu0 %3057
  %v3059 = vsel %vm176, %v3055, 0.0
  %3060 = vadd.xlane.f32.xlu0 %v3059
  %v3061 = vpop.xlane.xlu0 %3060
  %v3062 = vmul.f32 %v3058, %v183
  %v3063 = vmul.f32 %v3061, %v183
  %v3064 = vadd.f32 %v3062, 1e-12
  %v3065 = vadd.f32 %v3063, 1e-12
  %v3066 = vrsqrt.pop %v3064
  %v3067 = vrsqrt.pop %v3065
  %v3068 = vmul.f32 %v3052, %v3066
  %v3069 = vmul.f32 %v3053, %v3067
  %v3070 = vlaneseq
  %v3071 = vshrl.u32 %v3070, 7
  %v3072 = vsub.s32 5, %v3071
  %v3073 = vrot.slane %v218, %v3072
  %v3074 = vmul.f32 %v3068, %v3073
  %v3075 = vmul.f32 %v3069, %v3073
  %v3076 = vlaneseq
  %v3077 = vshrl.u32 %v3076, 7
  %v3078 = vsub.s32 6, %v3077
  %v3079 = vrot.slane %v218, %v3078
  %v3080 = vadd.f32 %v3074, %v3079
  %v3081 = vadd.f32 %v3075, %v3079
  %s3082 = scalar_lea.vmem %s7, 8
  %v3083 = vld [vmem:[%s3082] sm:$0xff]
  %s3084 = scalar_lea.vmem %s4, 256
  %v3085 = vld [vmem:[%s3084] sm:$0xff]
  %v3086 = vld [vmem:[%s3084 + $0x8] sm:$0xff]
  %v3087 = vld [vmem:[%s3084 + $0x10] sm:$0xff]
  %v3088 = vld [vmem:[%s3084 + $0x18] sm:$0xff]
  %v3089 = vld [vmem:[%s3084 + $0x20] sm:$0xff]
  %v3090 = vld [vmem:[%s3084 + $0x28] sm:$0xff]
  %v3091 = vld [vmem:[%s3084 + $0x30] sm:$0xff]
  %v3092 = vld [vmem:[%s3084 + $0x38] sm:$0xff]
  %v3093 = vld [vmem:[%s3084 + $0x40] sm:$0xff]
  %v3094 = vld [vmem:[%s3084 + $0x48] sm:$0xff]
  %v3095 = vld [vmem:[%s3084 + $0x50] sm:$0xff]
  %v3096 = vld [vmem:[%s3084 + $0x58] sm:$0xff]
  %v3097 = vld [vmem:[%s3084 + $0x60] sm:$0xff]
  %v3098 = vld [vmem:[%s3084 + $0x68] sm:$0xff]
  %v3099 = vld [vmem:[%s3084 + $0x70] sm:$0xff]
  %v3100 = vld [vmem:[%s3084 + $0x78] sm:$0xff]
  %v3101 = vld [vmem:[%s3084 + $0x80] sm:$0xff]
  %v3102 = vld [vmem:[%s3084 + $0x88] sm:$0xff]
  %v3103 = vld [vmem:[%s3084 + $0x90] sm:$0xff]
  %v3104 = vld [vmem:[%s3084 + $0x98] sm:$0xff]
  %v3105 = vld [vmem:[%s3084 + $0xa0] sm:$0xff]
  %v3106 = vld [vmem:[%s3084 + $0xa8] sm:$0xff]
  %v3107 = vld [vmem:[%s3084 + $0xb0] sm:$0xff]
  %v3108 = vld [vmem:[%s3084 + $0xb8] sm:$0xff]
  %v3109 = vld [vmem:[%s3084 + $0xc0] sm:$0xff]
  %v3110 = vld [vmem:[%s3084 + $0xc8] sm:$0xff]
  %v3111 = vld [vmem:[%s3084 + $0xd0] sm:$0xff]
  %v3112 = vld [vmem:[%s3084 + $0xd8] sm:$0xff]
  %v3113 = vld [vmem:[%s3084 + $0xe0] sm:$0xff]
  %v3114 = vld [vmem:[%s3084 + $0xe8] sm:$0xff]
  %v3115 = vld [vmem:[%s3084 + $0xf0] sm:$0xff]
  %v3116 = vld [vmem:[%s3084 + $0xf8] sm:$0xff]
  %s3117 = scalar_lea.vmem %s5, 8
  %v3118 = vld [vmem:[%s3117] sm:$0x1]
  %v3119 = vld [vmem:[%s3117 + $0x1] sm:$0x1]
  %v3120 = vld [vmem:[%s3117 + $0x2] sm:$0x1]
  %v3121 = vld [vmem:[%s3117 + $0x3] sm:$0x1]
  %v3122 = vld [vmem:[%s3117 + $0x4] sm:$0x1]
  %v3123 = vld [vmem:[%s3117 + $0x5] sm:$0x1]
  %v3124 = vld [vmem:[%s3117 + $0x6] sm:$0x1]
  %v3125 = vld [vmem:[%s3117 + $0x7] sm:$0x1]
  %s3126 = scalar_lea.vmem %s6, 64
  %v3127 = vld [vmem:[%s3126] sm:$0xff]
  %v3128 = vld [vmem:[%s3126 + $0x8] sm:$0xff]
  %v3129 = vld [vmem:[%s3126 + $0x10] sm:$0xff]
  %v3130 = vld [vmem:[%s3126 + $0x18] sm:$0xff]
  %v3131 = vld [vmem:[%s3126 + $0x20] sm:$0xff]
  %v3132 = vld [vmem:[%s3126 + $0x28] sm:$0xff]
  %v3133 = vld [vmem:[%s3126 + $0x30] sm:$0xff]
  %v3134 = vld [vmem:[%s3126 + $0x38] sm:$0xff]
  %v3143 = vlaneseq
  %v3144 = vshrl.u32 %v3143, 7
  %v3145 = vsub.s32 0, %v3144
  %v3146 = vrot.slane %v3118, %v3145
  %v3147 = vlaneseq
  %v3148 = vshrl.u32 %v3147, 7
  %v3149 = vsub.s32 0, %v3148
  %v3150 = vrot.slane %v3119, %v3149
  %v3151 = vlaneseq
  %v3152 = vshrl.u32 %v3151, 7
  %v3153 = vsub.s32 0, %v3152
  %v3154 = vrot.slane %v3120, %v3153
  %v3155 = vlaneseq
  %v3156 = vshrl.u32 %v3155, 7
  %v3157 = vsub.s32 0, %v3156
  %v3158 = vrot.slane %v3121, %v3157
  %v3159 = vlaneseq
  %v3160 = vshrl.u32 %v3159, 7
  %v3161 = vsub.s32 0, %v3160
  %v3162 = vrot.slane %v3122, %v3161
  %v3163 = vlaneseq
  %v3164 = vshrl.u32 %v3163, 7
  %v3165 = vsub.s32 0, %v3164
  %v3166 = vrot.slane %v3123, %v3165
  %v3167 = vlaneseq
  %v3168 = vshrl.u32 %v3167, 7
  %v3169 = vsub.s32 0, %v3168
  %v3170 = vrot.slane %v3124, %v3169
  %v3171 = vlaneseq
  %v3172 = vshrl.u32 %v3171, 7
  %v3173 = vsub.s32 0, %v3172
  %v3174 = vrot.slane %v3125, %v3173
  %v3184 = vsel %vm176, %v3080, 0
  %3186 = vmatprep.subr.mxu0 0.0
  %3187 = vmatpush1.msra.mxu0 %v3085
  %3188 = vmatprep.subr.mxu0 0.0
  %3189 = vmatpush1.msra.mxu0 %v3086
  %3190 = vmatprep.subr.mxu0 0.0
  %3191 = vmatpush1.msra.mxu0 %v3087
  %3192 = vmatprep.subr.mxu0 0.0
  %3193 = vmatpush1.msra.mxu0 %v3088
  %3194 = vmatprep.subr.mxu0 0.0
  %3195 = vmatpush1.msra.mxu0 0.0
  %3196 = vmatprep.subr.mxu0 0.0
  %3197 = vmatpush1.msra.mxu0 0.0
  %3198 = vmatprep.subr.mxu0 0.0
  %3199 = vmatpush1.msra.mxu0 0.0
  %3200 = vmatprep.subr.mxu0 0.0
  %3201 = vmatpush1.msra.mxu0 0.0
  %3202 = vmatprep.subr.mxu0 0.0
  %3203 = vmatpush1.msra.mxu0 0.0
  %3204 = vmatprep.subr.mxu0 0.0
  %3205 = vmatpush1.msra.mxu0 0.0
  %3206 = vmatprep.subr.mxu0 0.0
  %3207 = vmatpush1.msra.mxu0 0.0
  %3208 = vmatprep.subr.mxu0 0.0
  %3209 = vmatpush1.msra.mxu0 0.0
  %3210 = vmatprep.subr.mxu0 0.0
  %3211 = vmatpush1.msra.mxu0 0.0
  %3212 = vmatprep.subr.mxu0 0.0
  %3213 = vmatpush1.msra.mxu0 0.0
  %3214 = vmatprep.subr.mxu0 0.0
  %3215 = vmatpush1.msra.mxu0 0.0
  %3216 = vmatprep.subr.mxu0 0.0
  %3217 = vmatpush1.msra.mxu0 0.0
  %3218 = vmatprep.subr.mxu0 0.0
  %3219 = vmatpush1.msra.mxu0 0.0
  %3220 = vmatprep.subr.mxu0 0.0
  %3221 = vmatpush1.msra.mxu0 0.0
  %3222 = vmatprep.subr.mxu0 0.0
  %3223 = vmatpush1.msra.mxu0 0.0
  %3224 = vmatprep.subr.mxu0 0.0
  %3225 = vmatpush1.msra.mxu0 0.0
  %3226 = vmatprep.subr.mxu0 0.0
  %3227 = vmatpush1.msra.mxu0 0.0
  %3228 = vmatprep.subr.mxu0 0.0
  %3229 = vmatpush1.msra.mxu0 0.0
  %3230 = vmatprep.subr.mxu0 0.0
  %3231 = vmatpush1.msra.mxu0 0.0
  %3232 = vmatprep.subr.mxu0 0.0
  %3233 = vmatpush1.msra.mxu0 0.0
  %3234 = vmatprep.subr.mxu0 0.0
  %3235 = vmatpush1.msra.mxu0 0.0
  %3236 = vmatprep.subr.mxu0 0.0
  %3237 = vmatpush1.msra.mxu0 0.0
  %3238 = vmatprep.subr.mxu0 0.0
  %3239 = vmatpush1.msra.mxu0 0.0
  %3240 = vmatprep.subr.mxu0 0.0
  %3241 = vmatpush1.msra.mxu0 0.0
  %3242 = vmatprep.subr.mxu0 0.0
  %3243 = vmatpush1.msra.mxu0 0.0
  %3244 = vmatprep.subr.mxu0 0.0
  %3245 = vmatpush1.msra.mxu0 0.0
  %3246 = vmatprep.subr.mxu0 0.0
  %3247 = vmatpush1.msra.mxu0 0.0
  %3248 = vmatprep.subr.mxu0 0.0
  %3249 = vmatpush1.msra.mxu0 0.0
  %3250 = vmatprep.mubr.f32.mxu0 0.0
  %3251 = vmatmul.mubr.f32.gmra.mrb[0].mxu0 %v3184
  %v3252 = vpop.f32.mrb[0].mxu0
  %v3253 = vadd.f32 %v3146, %v3252
  %v3254 = vpop.f32.mrb[0].mxu0
  %3255 = vdwg.mxu0
  %v3257 = vsel %vm176, %v3081, 0
  %3259 = vmatprep.subr.mxu0 0.0
  %3260 = vmatpush1.msra.mxu0 %v3089
  %3261 = vmatprep.subr.mxu0 0.0
  %3262 = vmatpush1.msra.mxu0 %v3090
  %3263 = vmatprep.subr.mxu0 0.0
  %3264 = vmatpush1.msra.mxu0 %v3091
  %3265 = vmatprep.subr.mxu0 0.0
  %3266 = vmatpush1.msra.mxu0 %v3092
  %3267 = vmatprep.subr.mxu0 0.0
  %3268 = vmatpush1.msra.mxu0 0.0
  %3269 = vmatprep.subr.mxu0 0.0
  %3270 = vmatpush1.msra.mxu0 0.0
  %3271 = vmatprep.subr.mxu0 0.0
  %3272 = vmatpush1.msra.mxu0 0.0
  %3273 = vmatprep.subr.mxu0 0.0
  %3274 = vmatpush1.msra.mxu0 0.0
  %3275 = vmatprep.subr.mxu0 0.0
  %3276 = vmatpush1.msra.mxu0 0.0
  %3277 = vmatprep.subr.mxu0 0.0
  %3278 = vmatpush1.msra.mxu0 0.0
  %3279 = vmatprep.subr.mxu0 0.0
  %3280 = vmatpush1.msra.mxu0 0.0
  %3281 = vmatprep.subr.mxu0 0.0
  %3282 = vmatpush1.msra.mxu0 0.0
  %3283 = vmatprep.subr.mxu0 0.0
  %3284 = vmatpush1.msra.mxu0 0.0
  %3285 = vmatprep.subr.mxu0 0.0
  %3286 = vmatpush1.msra.mxu0 0.0
  %3287 = vmatprep.subr.mxu0 0.0
  %3288 = vmatpush1.msra.mxu0 0.0
  %3289 = vmatprep.subr.mxu0 0.0
  %3290 = vmatpush1.msra.mxu0 0.0
  %3291 = vmatprep.subr.mxu0 0.0
  %3292 = vmatpush1.msra.mxu0 0.0
  %3293 = vmatprep.subr.mxu0 0.0
  %3294 = vmatpush1.msra.mxu0 0.0
  %3295 = vmatprep.subr.mxu0 0.0
  %3296 = vmatpush1.msra.mxu0 0.0
  %3297 = vmatprep.subr.mxu0 0.0
  %3298 = vmatpush1.msra.mxu0 0.0
  %3299 = vmatprep.subr.mxu0 0.0
  %3300 = vmatpush1.msra.mxu0 0.0
  %3301 = vmatprep.subr.mxu0 0.0
  %3302 = vmatpush1.msra.mxu0 0.0
  %3303 = vmatprep.subr.mxu0 0.0
  %3304 = vmatpush1.msra.mxu0 0.0
  %3305 = vmatprep.subr.mxu0 0.0
  %3306 = vmatpush1.msra.mxu0 0.0
  %3307 = vmatprep.subr.mxu0 0.0
  %3308 = vmatpush1.msra.mxu0 0.0
  %3309 = vmatprep.subr.mxu0 0.0
  %3310 = vmatpush1.msra.mxu0 0.0
  %3311 = vmatprep.subr.mxu0 0.0
  %3312 = vmatpush1.msra.mxu0 0.0
  %3313 = vmatprep.subr.mxu0 0.0
  %3314 = vmatpush1.msra.mxu0 0.0
  %3315 = vmatprep.subr.mxu0 0.0
  %3316 = vmatpush1.msra.mxu0 0.0
  %3317 = vmatprep.subr.mxu0 0.0
  %3318 = vmatpush1.msra.mxu0 0.0
  %3319 = vmatprep.subr.mxu0 0.0
  %3320 = vmatpush1.msra.mxu0 0.0
  %3321 = vmatprep.subr.mxu0 0.0
  %3322 = vmatpush1.msra.mxu0 0.0
  %3323 = vmatprep.mubr.f32.mxu0 0.0
  %3324 = vmatmul.mubr.f32.gmra.mrb[0].mxu0 %v3257
  %v3325 = vpop.f32.mrb[0].mxu0
  %v3326 = vadd.f32 %v3150, %v3325
  %v3327 = vpop.f32.mrb[0].mxu0
  %3328 = vdwg.mxu0
  %3329 = vmatprep.subr.mxu0 0.0
  %3330 = vmatpush1.msra.mxu0 %v3093
  %3331 = vmatprep.subr.mxu0 0.0
  %3332 = vmatpush1.msra.mxu0 %v3094
  %3333 = vmatprep.subr.mxu0 0.0
  %3334 = vmatpush1.msra.mxu0 %v3095
  %3335 = vmatprep.subr.mxu0 0.0
  %3336 = vmatpush1.msra.mxu0 %v3096
  %3337 = vmatprep.subr.mxu0 0.0
  %3338 = vmatpush1.msra.mxu0 0.0
  %3339 = vmatprep.subr.mxu0 0.0
  %3340 = vmatpush1.msra.mxu0 0.0
  %3341 = vmatprep.subr.mxu0 0.0
  %3342 = vmatpush1.msra.mxu0 0.0
  %3343 = vmatprep.subr.mxu0 0.0
  %3344 = vmatpush1.msra.mxu0 0.0
  %3345 = vmatprep.subr.mxu0 0.0
  %3346 = vmatpush1.msra.mxu0 0.0
  %3347 = vmatprep.subr.mxu0 0.0
  %3348 = vmatpush1.msra.mxu0 0.0
  %3349 = vmatprep.subr.mxu0 0.0
  %3350 = vmatpush1.msra.mxu0 0.0
  %3351 = vmatprep.subr.mxu0 0.0
  %3352 = vmatpush1.msra.mxu0 0.0
  %3353 = vmatprep.subr.mxu0 0.0
  %3354 = vmatpush1.msra.mxu0 0.0
  %3355 = vmatprep.subr.mxu0 0.0
  %3356 = vmatpush1.msra.mxu0 0.0
  %3357 = vmatprep.subr.mxu0 0.0
  %3358 = vmatpush1.msra.mxu0 0.0
  %3359 = vmatprep.subr.mxu0 0.0
  %3360 = vmatpush1.msra.mxu0 0.0
  %3361 = vmatprep.subr.mxu0 0.0
  %3362 = vmatpush1.msra.mxu0 0.0
  %3363 = vmatprep.subr.mxu0 0.0
  %3364 = vmatpush1.msra.mxu0 0.0
  %3365 = vmatprep.subr.mxu0 0.0
  %3366 = vmatpush1.msra.mxu0 0.0
  %3367 = vmatprep.subr.mxu0 0.0
  %3368 = vmatpush1.msra.mxu0 0.0
  %3369 = vmatprep.subr.mxu0 0.0
  %3370 = vmatpush1.msra.mxu0 0.0
  %3371 = vmatprep.subr.mxu0 0.0
  %3372 = vmatpush1.msra.mxu0 0.0
  %3373 = vmatprep.subr.mxu0 0.0
  %3374 = vmatpush1.msra.mxu0 0.0
  %3375 = vmatprep.subr.mxu0 0.0
  %3376 = vmatpush1.msra.mxu0 0.0
  %3377 = vmatprep.subr.mxu0 0.0
  %3378 = vmatpush1.msra.mxu0 0.0
  %3379 = vmatprep.subr.mxu0 0.0
  %3380 = vmatpush1.msra.mxu0 0.0
  %3381 = vmatprep.subr.mxu0 0.0
  %3382 = vmatpush1.msra.mxu0 0.0
  %3383 = vmatprep.subr.mxu0 0.0
  %3384 = vmatpush1.msra.mxu0 0.0
  %3385 = vmatprep.subr.mxu0 0.0
  %3386 = vmatpush1.msra.mxu0 0.0
  %3387 = vmatprep.subr.mxu0 0.0
  %3388 = vmatpush1.msra.mxu0 0.0
  %3389 = vmatprep.subr.mxu0 0.0
  %3390 = vmatpush1.msra.mxu0 0.0
  %3391 = vmatprep.subr.mxu0 0.0
  %3392 = vmatpush1.msra.mxu0 0.0
  %3393 = vmatprep.mubr.f32.mxu0 0.0
  %3394 = vmatmul.mubr.f32.gmra.mrb[0].mxu0 %v3184
  %v3395 = vpop.f32.mrb[0].mxu0
  %v3396 = vadd.f32 %v3154, %v3395
  %v3397 = vpop.f32.mrb[0].mxu0
  %3398 = vdwg.mxu0
  %3399 = vmatprep.subr.mxu0 0.0
  %3400 = vmatpush1.msra.mxu0 %v3097
  %3401 = vmatprep.subr.mxu0 0.0
  %3402 = vmatpush1.msra.mxu0 %v3098
  %3403 = vmatprep.subr.mxu0 0.0
  %3404 = vmatpush1.msra.mxu0 %v3099
  %3405 = vmatprep.subr.mxu0 0.0
  %3406 = vmatpush1.msra.mxu0 %v3100
  %3407 = vmatprep.subr.mxu0 0.0
  %3408 = vmatpush1.msra.mxu0 0.0
  %3409 = vmatprep.subr.mxu0 0.0
  %3410 = vmatpush1.msra.mxu0 0.0
  %3411 = vmatprep.subr.mxu0 0.0
  %3412 = vmatpush1.msra.mxu0 0.0
  %3413 = vmatprep.subr.mxu0 0.0
  %3414 = vmatpush1.msra.mxu0 0.0
  %3415 = vmatprep.subr.mxu0 0.0
  %3416 = vmatpush1.msra.mxu0 0.0
  %3417 = vmatprep.subr.mxu0 0.0
  %3418 = vmatpush1.msra.mxu0 0.0
  %3419 = vmatprep.subr.mxu0 0.0
  %3420 = vmatpush1.msra.mxu0 0.0
  %3421 = vmatprep.subr.mxu0 0.0
  %3422 = vmatpush1.msra.mxu0 0.0
  %3423 = vmatprep.subr.mxu0 0.0
  %3424 = vmatpush1.msra.mxu0 0.0
  %3425 = vmatprep.subr.mxu0 0.0
  %3426 = vmatpush1.msra.mxu0 0.0
  %3427 = vmatprep.subr.mxu0 0.0
  %3428 = vmatpush1.msra.mxu0 0.0
  %3429 = vmatprep.subr.mxu0 0.0
  %3430 = vmatpush1.msra.mxu0 0.0
  %3431 = vmatprep.subr.mxu0 0.0
  %3432 = vmatpush1.msra.mxu0 0.0
  %3433 = vmatprep.subr.mxu0 0.0
  %3434 = vmatpush1.msra.mxu0 0.0
  %3435 = vmatprep.subr.mxu0 0.0
  %3436 = vmatpush1.msra.mxu0 0.0
  %3437 = vmatprep.subr.mxu0 0.0
  %3438 = vmatpush1.msra.mxu0 0.0
  %3439 = vmatprep.subr.mxu0 0.0
  %3440 = vmatpush1.msra.mxu0 0.0
  %3441 = vmatprep.subr.mxu0 0.0
  %3442 = vmatpush1.msra.mxu0 0.0
  %3443 = vmatprep.subr.mxu0 0.0
  %3444 = vmatpush1.msra.mxu0 0.0
  %3445 = vmatprep.subr.mxu0 0.0
  %3446 = vmatpush1.msra.mxu0 0.0
  %3447 = vmatprep.subr.mxu0 0.0
  %3448 = vmatpush1.msra.mxu0 0.0
  %3449 = vmatprep.subr.mxu0 0.0
  %3450 = vmatpush1.msra.mxu0 0.0
  %3451 = vmatprep.subr.mxu0 0.0
  %3452 = vmatpush1.msra.mxu0 0.0
  %3453 = vmatprep.subr.mxu0 0.0
  %3454 = vmatpush1.msra.mxu0 0.0
  %3455 = vmatprep.subr.mxu0 0.0
  %3456 = vmatpush1.msra.mxu0 0.0
  %3457 = vmatprep.subr.mxu0 0.0
  %3458 = vmatpush1.msra.mxu0 0.0
  %3459 = vmatprep.subr.mxu0 0.0
  %3460 = vmatpush1.msra.mxu0 0.0
  %3461 = vmatprep.subr.mxu0 0.0
  %3462 = vmatpush1.msra.mxu0 0.0
  %3463 = vmatprep.mubr.f32.mxu0 0.0
  %3464 = vmatmul.mubr.f32.gmra.mrb[0].mxu0 %v3257
  %v3465 = vpop.f32.mrb[0].mxu0
  %v3466 = vadd.f32 %v3158, %v3465
  %v3467 = vpop.f32.mrb[0].mxu0
  %3468 = vdwg.mxu0
  %3469 = vmatprep.subr.mxu0 0.0
  %3470 = vmatpush1.msra.mxu0 %v3101
  %3471 = vmatprep.subr.mxu0 0.0
  %3472 = vmatpush1.msra.mxu0 %v3102
  %3473 = vmatprep.subr.mxu0 0.0
  %3474 = vmatpush1.msra.mxu0 %v3103
  %3475 = vmatprep.subr.mxu0 0.0
  %3476 = vmatpush1.msra.mxu0 %v3104
  %3477 = vmatprep.subr.mxu0 0.0
  %3478 = vmatpush1.msra.mxu0 0.0
  %3479 = vmatprep.subr.mxu0 0.0
  %3480 = vmatpush1.msra.mxu0 0.0
  %3481 = vmatprep.subr.mxu0 0.0
  %3482 = vmatpush1.msra.mxu0 0.0
  %3483 = vmatprep.subr.mxu0 0.0
  %3484 = vmatpush1.msra.mxu0 0.0
  %3485 = vmatprep.subr.mxu0 0.0
  %3486 = vmatpush1.msra.mxu0 0.0
  %3487 = vmatprep.subr.mxu0 0.0
  %3488 = vmatpush1.msra.mxu0 0.0
  %3489 = vmatprep.subr.mxu0 0.0
  %3490 = vmatpush1.msra.mxu0 0.0
  %3491 = vmatprep.subr.mxu0 0.0
  %3492 = vmatpush1.msra.mxu0 0.0
  %3493 = vmatprep.subr.mxu0 0.0
  %3494 = vmatpush1.msra.mxu0 0.0
  %3495 = vmatprep.subr.mxu0 0.0
  %3496 = vmatpush1.msra.mxu0 0.0
  %3497 = vmatprep.subr.mxu0 0.0
  %3498 = vmatpush1.msra.mxu0 0.0
  %3499 = vmatprep.subr.mxu0 0.0
  %3500 = vmatpush1.msra.mxu0 0.0
  %3501 = vmatprep.subr.mxu0 0.0
  %3502 = vmatpush1.msra.mxu0 0.0
  %3503 = vmatprep.subr.mxu0 0.0
  %3504 = vmatpush1.msra.mxu0 0.0
  %3505 = vmatprep.subr.mxu0 0.0
  %3506 = vmatpush1.msra.mxu0 0.0
  %3507 = vmatprep.subr.mxu0 0.0
  %3508 = vmatpush1.msra.mxu0 0.0
  %3509 = vmatprep.subr.mxu0 0.0
  %3510 = vmatpush1.msra.mxu0 0.0
  %3511 = vmatprep.subr.mxu0 0.0
  %3512 = vmatpush1.msra.mxu0 0.0
  %3513 = vmatprep.subr.mxu0 0.0
  %3514 = vmatpush1.msra.mxu0 0.0
  %3515 = vmatprep.subr.mxu0 0.0
  %3516 = vmatpush1.msra.mxu0 0.0
  %3517 = vmatprep.subr.mxu0 0.0
  %3518 = vmatpush1.msra.mxu0 0.0
  %3519 = vmatprep.subr.mxu0 0.0
  %3520 = vmatpush1.msra.mxu0 0.0
  %3521 = vmatprep.subr.mxu0 0.0
  %3522 = vmatpush1.msra.mxu0 0.0
  %3523 = vmatprep.subr.mxu0 0.0
  %3524 = vmatpush1.msra.mxu0 0.0
  %3525 = vmatprep.subr.mxu0 0.0
  %3526 = vmatpush1.msra.mxu0 0.0
  %3527 = vmatprep.subr.mxu0 0.0
  %3528 = vmatpush1.msra.mxu0 0.0
  %3529 = vmatprep.subr.mxu0 0.0
  %3530 = vmatpush1.msra.mxu0 0.0
  %3531 = vmatprep.subr.mxu0 0.0
  %3532 = vmatpush1.msra.mxu0 0.0
  %3533 = vmatprep.mubr.f32.mxu0 0.0
  %3534 = vmatmul.mubr.f32.gmra.mrb[0].mxu0 %v3184
  %v3535 = vpop.f32.mrb[0].mxu0
  %v3536 = vadd.f32 %v3162, %v3535
  %v3537 = vpop.f32.mrb[0].mxu0
  %3538 = vdwg.mxu0
  %3539 = vmatprep.subr.mxu0 0.0
  %3540 = vmatpush1.msra.mxu0 %v3105
  %3541 = vmatprep.subr.mxu0 0.0
  %3542 = vmatpush1.msra.mxu0 %v3106
  %3543 = vmatprep.subr.mxu0 0.0
  %3544 = vmatpush1.msra.mxu0 %v3107
  %3545 = vmatprep.subr.mxu0 0.0
  %3546 = vmatpush1.msra.mxu0 %v3108
  %3547 = vmatprep.subr.mxu0 0.0
  %3548 = vmatpush1.msra.mxu0 0.0
  %3549 = vmatprep.subr.mxu0 0.0
  %3550 = vmatpush1.msra.mxu0 0.0
  %3551 = vmatprep.subr.mxu0 0.0
  %3552 = vmatpush1.msra.mxu0 0.0
  %3553 = vmatprep.subr.mxu0 0.0
  %3554 = vmatpush1.msra.mxu0 0.0
  %3555 = vmatprep.subr.mxu0 0.0
  %3556 = vmatpush1.msra.mxu0 0.0
  %3557 = vmatprep.subr.mxu0 0.0
  %3558 = vmatpush1.msra.mxu0 0.0
  %3559 = vmatprep.subr.mxu0 0.0
  %3560 = vmatpush1.msra.mxu0 0.0
  %3561 = vmatprep.subr.mxu0 0.0
  %3562 = vmatpush1.msra.mxu0 0.0
  %3563 = vmatprep.subr.mxu0 0.0
  %3564 = vmatpush1.msra.mxu0 0.0
  %3565 = vmatprep.subr.mxu0 0.0
  %3566 = vmatpush1.msra.mxu0 0.0
  %3567 = vmatprep.subr.mxu0 0.0
  %3568 = vmatpush1.msra.mxu0 0.0
  %3569 = vmatprep.subr.mxu0 0.0
  %3570 = vmatpush1.msra.mxu0 0.0
  %3571 = vmatprep.subr.mxu0 0.0
  %3572 = vmatpush1.msra.mxu0 0.0
  %3573 = vmatprep.subr.mxu0 0.0
  %3574 = vmatpush1.msra.mxu0 0.0
  %3575 = vmatprep.subr.mxu0 0.0
  %3576 = vmatpush1.msra.mxu0 0.0
  %3577 = vmatprep.subr.mxu0 0.0
  %3578 = vmatpush1.msra.mxu0 0.0
  %3579 = vmatprep.subr.mxu0 0.0
  %3580 = vmatpush1.msra.mxu0 0.0
  %3581 = vmatprep.subr.mxu0 0.0
  %3582 = vmatpush1.msra.mxu0 0.0
  %3583 = vmatprep.subr.mxu0 0.0
  %3584 = vmatpush1.msra.mxu0 0.0
  %3585 = vmatprep.subr.mxu0 0.0
  %3586 = vmatpush1.msra.mxu0 0.0
  %3587 = vmatprep.subr.mxu0 0.0
  %3588 = vmatpush1.msra.mxu0 0.0
  %3589 = vmatprep.subr.mxu0 0.0
  %3590 = vmatpush1.msra.mxu0 0.0
  %3591 = vmatprep.subr.mxu0 0.0
  %3592 = vmatpush1.msra.mxu0 0.0
  %3593 = vmatprep.subr.mxu0 0.0
  %3594 = vmatpush1.msra.mxu0 0.0
  %3595 = vmatprep.subr.mxu0 0.0
  %3596 = vmatpush1.msra.mxu0 0.0
  %3597 = vmatprep.subr.mxu0 0.0
  %3598 = vmatpush1.msra.mxu0 0.0
  %3599 = vmatprep.subr.mxu0 0.0
  %3600 = vmatpush1.msra.mxu0 0.0
  %3601 = vmatprep.subr.mxu0 0.0
  %3602 = vmatpush1.msra.mxu0 0.0
  %3603 = vmatprep.mubr.f32.mxu0 0.0
  %3604 = vmatmul.mubr.f32.gmra.mrb[0].mxu0 %v3257
  %v3605 = vpop.f32.mrb[0].mxu0
  %v3606 = vadd.f32 %v3166, %v3605
  %v3607 = vpop.f32.mrb[0].mxu0
  %3608 = vdwg.mxu0
  %3609 = vmatprep.subr.mxu0 0.0
  %3610 = vmatpush1.msra.mxu0 %v3109
  %3611 = vmatprep.subr.mxu0 0.0
  %3612 = vmatpush1.msra.mxu0 %v3110
  %3613 = vmatprep.subr.mxu0 0.0
  %3614 = vmatpush1.msra.mxu0 %v3111
  %3615 = vmatprep.subr.mxu0 0.0
  %3616 = vmatpush1.msra.mxu0 %v3112
  %3617 = vmatprep.subr.mxu0 0.0
  %3618 = vmatpush1.msra.mxu0 0.0
  %3619 = vmatprep.subr.mxu0 0.0
  %3620 = vmatpush1.msra.mxu0 0.0
  %3621 = vmatprep.subr.mxu0 0.0
  %3622 = vmatpush1.msra.mxu0 0.0
  %3623 = vmatprep.subr.mxu0 0.0
  %3624 = vmatpush1.msra.mxu0 0.0
  %3625 = vmatprep.subr.mxu0 0.0
  %3626 = vmatpush1.msra.mxu0 0.0
  %3627 = vmatprep.subr.mxu0 0.0
  %3628 = vmatpush1.msra.mxu0 0.0
  %3629 = vmatprep.subr.mxu0 0.0
  %3630 = vmatpush1.msra.mxu0 0.0
  %3631 = vmatprep.subr.mxu0 0.0
  %3632 = vmatpush1.msra.mxu0 0.0
  %3633 = vmatprep.subr.mxu0 0.0
  %3634 = vmatpush1.msra.mxu0 0.0
  %3635 = vmatprep.subr.mxu0 0.0
  %3636 = vmatpush1.msra.mxu0 0.0
  %3637 = vmatprep.subr.mxu0 0.0
  %3638 = vmatpush1.msra.mxu0 0.0
  %3639 = vmatprep.subr.mxu0 0.0
  %3640 = vmatpush1.msra.mxu0 0.0
  %3641 = vmatprep.subr.mxu0 0.0
  %3642 = vmatpush1.msra.mxu0 0.0
  %3643 = vmatprep.subr.mxu0 0.0
  %3644 = vmatpush1.msra.mxu0 0.0
  %3645 = vmatprep.subr.mxu0 0.0
  %3646 = vmatpush1.msra.mxu0 0.0
  %3647 = vmatprep.subr.mxu0 0.0
  %3648 = vmatpush1.msra.mxu0 0.0
  %3649 = vmatprep.subr.mxu0 0.0
  %3650 = vmatpush1.msra.mxu0 0.0
  %3651 = vmatprep.subr.mxu0 0.0
  %3652 = vmatpush1.msra.mxu0 0.0
  %3653 = vmatprep.subr.mxu0 0.0
  %3654 = vmatpush1.msra.mxu0 0.0
  %3655 = vmatprep.subr.mxu0 0.0
  %3656 = vmatpush1.msra.mxu0 0.0
  %3657 = vmatprep.subr.mxu0 0.0
  %3658 = vmatpush1.msra.mxu0 0.0
  %3659 = vmatprep.subr.mxu0 0.0
  %3660 = vmatpush1.msra.mxu0 0.0
  %3661 = vmatprep.subr.mxu0 0.0
  %3662 = vmatpush1.msra.mxu0 0.0
  %3663 = vmatprep.subr.mxu0 0.0
  %3664 = vmatpush1.msra.mxu0 0.0
  %3665 = vmatprep.subr.mxu0 0.0
  %3666 = vmatpush1.msra.mxu0 0.0
  %3667 = vmatprep.subr.mxu0 0.0
  %3668 = vmatpush1.msra.mxu0 0.0
  %3669 = vmatprep.subr.mxu0 0.0
  %3670 = vmatpush1.msra.mxu0 0.0
  %3671 = vmatprep.subr.mxu0 0.0
  %3672 = vmatpush1.msra.mxu0 0.0
  %3673 = vmatprep.mubr.f32.mxu0 0.0
  %3674 = vmatmul.mubr.f32.gmra.mrb[0].mxu0 %v3184
  %v3675 = vpop.f32.mrb[0].mxu0
  %v3676 = vadd.f32 %v3170, %v3675
  %v3677 = vpop.f32.mrb[0].mxu0
  %3678 = vdwg.mxu0
  %3679 = vmatprep.subr.mxu0 0.0
  %3680 = vmatpush1.msra.mxu0 %v3113
  %3681 = vmatprep.subr.mxu0 0.0
  %3682 = vmatpush1.msra.mxu0 %v3114
  %3683 = vmatprep.subr.mxu0 0.0
  %3684 = vmatpush1.msra.mxu0 %v3115
  %3685 = vmatprep.subr.mxu0 0.0
  %3686 = vmatpush1.msra.mxu0 %v3116
  %3687 = vmatprep.subr.mxu0 0.0
  %3688 = vmatpush1.msra.mxu0 0.0
  %3689 = vmatprep.subr.mxu0 0.0
  %3690 = vmatpush1.msra.mxu0 0.0
  %3691 = vmatprep.subr.mxu0 0.0
  %3692 = vmatpush1.msra.mxu0 0.0
  %3693 = vmatprep.subr.mxu0 0.0
  %3694 = vmatpush1.msra.mxu0 0.0
  %3695 = vmatprep.subr.mxu0 0.0
  %3696 = vmatpush1.msra.mxu0 0.0
  %3697 = vmatprep.subr.mxu0 0.0
  %3698 = vmatpush1.msra.mxu0 0.0
  %3699 = vmatprep.subr.mxu0 0.0
  %3700 = vmatpush1.msra.mxu0 0.0
  %3701 = vmatprep.subr.mxu0 0.0
  %3702 = vmatpush1.msra.mxu0 0.0
  %3703 = vmatprep.subr.mxu0 0.0
  %3704 = vmatpush1.msra.mxu0 0.0
  %3705 = vmatprep.subr.mxu0 0.0
  %3706 = vmatpush1.msra.mxu0 0.0
  %3707 = vmatprep.subr.mxu0 0.0
  %3708 = vmatpush1.msra.mxu0 0.0
  %3709 = vmatprep.subr.mxu0 0.0
  %3710 = vmatpush1.msra.mxu0 0.0
  %3711 = vmatprep.subr.mxu0 0.0
  %3712 = vmatpush1.msra.mxu0 0.0
  %3713 = vmatprep.subr.mxu0 0.0
  %3714 = vmatpush1.msra.mxu0 0.0
  %3715 = vmatprep.subr.mxu0 0.0
  %3716 = vmatpush1.msra.mxu0 0.0
  %3717 = vmatprep.subr.mxu0 0.0
  %3718 = vmatpush1.msra.mxu0 0.0
  %3719 = vmatprep.subr.mxu0 0.0
  %3720 = vmatpush1.msra.mxu0 0.0
  %3721 = vmatprep.subr.mxu0 0.0
  %3722 = vmatpush1.msra.mxu0 0.0
  %3723 = vmatprep.subr.mxu0 0.0
  %3724 = vmatpush1.msra.mxu0 0.0
  %3725 = vmatprep.subr.mxu0 0.0
  %3726 = vmatpush1.msra.mxu0 0.0
  %3727 = vmatprep.subr.mxu0 0.0
  %3728 = vmatpush1.msra.mxu0 0.0
  %3729 = vmatprep.subr.mxu0 0.0
  %3730 = vmatpush1.msra.mxu0 0.0
  %3731 = vmatprep.subr.mxu0 0.0
  %3732 = vmatpush1.msra.mxu0 0.0
  %3733 = vmatprep.subr.mxu0 0.0
  %3734 = vmatpush1.msra.mxu0 0.0
  %3735 = vmatprep.subr.mxu0 0.0
  %3736 = vmatpush1.msra.mxu0 0.0
  %3737 = vmatprep.subr.mxu0 0.0
  %3738 = vmatpush1.msra.mxu0 0.0
  %3739 = vmatprep.subr.mxu0 0.0
  %3740 = vmatpush1.msra.mxu0 0.0
  %3741 = vmatprep.subr.mxu0 0.0
  %3742 = vmatpush1.msra.mxu0 0.0
  %3743 = vmatprep.mubr.f32.mxu0 0.0
  %3744 = vmatmul.mubr.f32.gmra.mrb[0].mxu0 %v3257
  %v3745 = vpop.f32.mrb[0].mxu0
  %v3746 = vadd.f32 %v3174, %v3745
  %v3747 = vpop.f32.mrb[0].mxu0
  %3748 = vdwg.mxu0
  %3750 = vrot.lane.b32.xlu0 %v3253, 120
  %v3751 = vpop.permute.xlu0 %3750
  %v3752 = vsel %vm896, %v3253, 0
  %v3754 = vsel %vm896, %v3751, 0
  %3756 = vmatprep.subr.mxu0 0.0
  %3757 = vmatpush1.xpose.msra.mxu0 %v3754
  %3758 = vmatprep.subr.mxu0 0.0
  %3759 = vmatpush1.xpose.msra.mxu0 0.0
  %3760 = vmatprep.subr.mxu0 0.0
  %3761 = vmatpush1.xpose.msra.mxu0 0.0
  %3762 = vmatprep.subr.mxu0 0.0
  %3763 = vmatpush1.xpose.msra.mxu0 0.0
  %3764 = vmatprep.subr.mxu0 0.0
  %3765 = vmatpush1.xpose.msra.mxu0 0.0
  %3766 = vmatprep.subr.mxu0 0.0
  %3767 = vmatpush1.xpose.msra.mxu0 0.0
  %3768 = vmatprep.subr.mxu0 0.0
  %3769 = vmatpush1.xpose.msra.mxu0 0.0
  %3770 = vmatprep.subr.mxu0 0.0
  %3771 = vmatpush1.xpose.msra.mxu0 0.0
  %3772 = vmatprep.subr.mxu0 0.0
  %3773 = vmatpush1.xpose.msra.mxu0 0.0
  %3774 = vmatprep.subr.mxu0 0.0
  %3775 = vmatpush1.xpose.msra.mxu0 0.0
  %3776 = vmatprep.subr.mxu0 0.0
  %3777 = vmatpush1.xpose.msra.mxu0 0.0
  %3778 = vmatprep.subr.mxu0 0.0
  %3779 = vmatpush1.xpose.msra.mxu0 0.0
  %3780 = vmatprep.subr.mxu0 0.0
  %3781 = vmatpush1.xpose.msra.mxu0 0.0
  %3782 = vmatprep.subr.mxu0 0.0
  %3783 = vmatpush1.xpose.msra.mxu0 0.0
  %3784 = vmatprep.subr.mxu0 0.0
  %3785 = vmatpush1.xpose.msra.mxu0 0.0
  %3786 = vmatprep.subr.mxu0 0.0
  %3787 = vmatpush1.xpose.msra.mxu0 0.0
  %3788 = vmatprep.subr.mxu0 0.0
  %3789 = vmatpush1.xpose.msra.mxu0 0.0
  %3790 = vmatprep.subr.mxu0 0.0
  %3791 = vmatpush1.xpose.msra.mxu0 0.0
  %3792 = vmatprep.subr.mxu0 0.0
  %3793 = vmatpush1.xpose.msra.mxu0 0.0
  %3794 = vmatprep.subr.mxu0 0.0
  %3795 = vmatpush1.xpose.msra.mxu0 0.0
  %3796 = vmatprep.subr.mxu0 0.0
  %3797 = vmatpush1.xpose.msra.mxu0 0.0
  %3798 = vmatprep.subr.mxu0 0.0
  %3799 = vmatpush1.xpose.msra.mxu0 0.0
  %3800 = vmatprep.subr.mxu0 0.0
  %3801 = vmatpush1.xpose.msra.mxu0 0.0
  %3802 = vmatprep.subr.mxu0 0.0
  %3803 = vmatpush1.xpose.msra.mxu0 0.0
  %3804 = vmatprep.subr.mxu0 0.0
  %3805 = vmatpush1.xpose.msra.mxu0 0.0
  %3806 = vmatprep.subr.mxu0 0.0
  %3807 = vmatpush1.xpose.msra.mxu0 0.0
  %3808 = vmatprep.subr.mxu0 0.0
  %3809 = vmatpush1.xpose.msra.mxu0 0.0
  %3810 = vmatprep.subr.mxu0 0.0
  %3811 = vmatpush1.xpose.msra.mxu0 0.0
  %3812 = vmatprep.subr.mxu0 0.0
  %3813 = vmatpush1.xpose.msra.mxu0 0.0
  %3814 = vmatprep.subr.mxu0 0.0
  %3815 = vmatpush1.xpose.msra.mxu0 0.0
  %3816 = vmatprep.subr.mxu0 0.0
  %3817 = vmatpush1.xpose.msra.mxu0 0.0
  %3818 = vmatprep.subr.mxu0 0.0
  %3819 = vmatpush1.xpose.msra.mxu0 0.0
  %3820 = vmatprep.mubr.f32.mxu0 0.0
  %3821 = vmatmul.mubr.f32.gmra.mrb[0].mxu0 %v3752
  %v3822 = vpop.f32.mrb[0].mxu0
  %v3823 = vadd.f32 %v886, %v3822
  %v3824 = vpop.f32.mrb[0].mxu0
  %3825 = vdwg.mxu0
  %3827 = vrot.lane.b32.xlu0 %v3326, 120
  %v3828 = vpop.permute.xlu0 %3827
  %v3829 = vsel %vm896, %v3326, 0
  %v3831 = vsel %vm896, %v3828, 0
  %3833 = vmatprep.subr.mxu0 0.0
  %3834 = vmatpush1.xpose.msra.mxu0 %v3831
  %3835 = vmatprep.subr.mxu0 0.0
  %3836 = vmatpush1.xpose.msra.mxu0 0.0
  %3837 = vmatprep.subr.mxu0 0.0
  %3838 = vmatpush1.xpose.msra.mxu0 0.0
  %3839 = vmatprep.subr.mxu0 0.0
  %3840 = vmatpush1.xpose.msra.mxu0 0.0
  %3841 = vmatprep.subr.mxu0 0.0
  %3842 = vmatpush1.xpose.msra.mxu0 0.0
  %3843 = vmatprep.subr.mxu0 0.0
  %3844 = vmatpush1.xpose.msra.mxu0 0.0
  %3845 = vmatprep.subr.mxu0 0.0
  %3846 = vmatpush1.xpose.msra.mxu0 0.0
  %3847 = vmatprep.subr.mxu0 0.0
  %3848 = vmatpush1.xpose.msra.mxu0 0.0
  %3849 = vmatprep.subr.mxu0 0.0
  %3850 = vmatpush1.xpose.msra.mxu0 0.0
  %3851 = vmatprep.subr.mxu0 0.0
  %3852 = vmatpush1.xpose.msra.mxu0 0.0
  %3853 = vmatprep.subr.mxu0 0.0
  %3854 = vmatpush1.xpose.msra.mxu0 0.0
  %3855 = vmatprep.subr.mxu0 0.0
  %3856 = vmatpush1.xpose.msra.mxu0 0.0
  %3857 = vmatprep.subr.mxu0 0.0
  %3858 = vmatpush1.xpose.msra.mxu0 0.0
  %3859 = vmatprep.subr.mxu0 0.0
  %3860 = vmatpush1.xpose.msra.mxu0 0.0
  %3861 = vmatprep.subr.mxu0 0.0
  %3862 = vmatpush1.xpose.msra.mxu0 0.0
  %3863 = vmatprep.subr.mxu0 0.0
  %3864 = vmatpush1.xpose.msra.mxu0 0.0
  %3865 = vmatprep.subr.mxu0 0.0
  %3866 = vmatpush1.xpose.msra.mxu0 0.0
  %3867 = vmatprep.subr.mxu0 0.0
  %3868 = vmatpush1.xpose.msra.mxu0 0.0
  %3869 = vmatprep.subr.mxu0 0.0
  %3870 = vmatpush1.xpose.msra.mxu0 0.0
  %3871 = vmatprep.subr.mxu0 0.0
  %3872 = vmatpush1.xpose.msra.mxu0 0.0
  %3873 = vmatprep.subr.mxu0 0.0
  %3874 = vmatpush1.xpose.msra.mxu0 0.0
  %3875 = vmatprep.subr.mxu0 0.0
  %3876 = vmatpush1.xpose.msra.mxu0 0.0
  %3877 = vmatprep.subr.mxu0 0.0
  %3878 = vmatpush1.xpose.msra.mxu0 0.0
  %3879 = vmatprep.subr.mxu0 0.0
  %3880 = vmatpush1.xpose.msra.mxu0 0.0
  %3881 = vmatprep.subr.mxu0 0.0
  %3882 = vmatpush1.xpose.msra.mxu0 0.0
  %3883 = vmatprep.subr.mxu0 0.0
  %3884 = vmatpush1.xpose.msra.mxu0 0.0
  %3885 = vmatprep.subr.mxu0 0.0
  %3886 = vmatpush1.xpose.msra.mxu0 0.0
  %3887 = vmatprep.subr.mxu0 0.0
  %3888 = vmatpush1.xpose.msra.mxu0 0.0
  %3889 = vmatprep.subr.mxu0 0.0
  %3890 = vmatpush1.xpose.msra.mxu0 0.0
  %3891 = vmatprep.subr.mxu0 0.0
  %3892 = vmatpush1.xpose.msra.mxu0 0.0
  %3893 = vmatprep.subr.mxu0 0.0
  %3894 = vmatpush1.xpose.msra.mxu0 0.0
  %3895 = vmatprep.subr.mxu0 0.0
  %3896 = vmatpush1.xpose.msra.mxu0 0.0
  %3897 = vmatprep.mubr.f32.mxu0 0.0
  %3898 = vmatmul.mubr.f32.gmra.mrb[0].mxu0 %v3829
  %v3899 = vpop.f32.mrb[0].mxu0
  %v3900 = vadd.f32 %v890, %v3899
  %v3901 = vpop.f32.mrb[0].mxu0
  %3902 = vdwg.mxu0
  %3904 = vrot.lane.b32.xlu0 %v3396, 120
  %v3905 = vpop.permute.xlu0 %3904
  %v3906 = vsel %vm896, %v3396, 0
  %v3908 = vsel %vm896, %v3905, 0
  %3910 = vmatprep.subr.mxu0 0.0
  %3911 = vmatpush1.xpose.msra.mxu0 %v3908
  %3912 = vmatprep.subr.mxu0 0.0
  %3913 = vmatpush1.xpose.msra.mxu0 0.0
  %3914 = vmatprep.subr.mxu0 0.0
  %3915 = vmatpush1.xpose.msra.mxu0 0.0
  %3916 = vmatprep.subr.mxu0 0.0
  %3917 = vmatpush1.xpose.msra.mxu0 0.0
  %3918 = vmatprep.subr.mxu0 0.0
  %3919 = vmatpush1.xpose.msra.mxu0 0.0
  %3920 = vmatprep.subr.mxu0 0.0
  %3921 = vmatpush1.xpose.msra.mxu0 0.0
  %3922 = vmatprep.subr.mxu0 0.0
  %3923 = vmatpush1.xpose.msra.mxu0 0.0
  %3924 = vmatprep.subr.mxu0 0.0
  %3925 = vmatpush1.xpose.msra.mxu0 0.0
  %3926 = vmatprep.subr.mxu0 0.0
  %3927 = vmatpush1.xpose.msra.mxu0 0.0
  %3928 = vmatprep.subr.mxu0 0.0
  %3929 = vmatpush1.xpose.msra.mxu0 0.0
  %3930 = vmatprep.subr.mxu0 0.0
  %3931 = vmatpush1.xpose.msra.mxu0 0.0
  %3932 = vmatprep.subr.mxu0 0.0
  %3933 = vmatpush1.xpose.msra.mxu0 0.0
  %3934 = vmatprep.subr.mxu0 0.0
  %3935 = vmatpush1.xpose.msra.mxu0 0.0
  %3936 = vmatprep.subr.mxu0 0.0
  %3937 = vmatpush1.xpose.msra.mxu0 0.0
  %3938 = vmatprep.subr.mxu0 0.0
  %3939 = vmatpush1.xpose.msra.mxu0 0.0
  %3940 = vmatprep.subr.mxu0 0.0
  %3941 = vmatpush1.xpose.msra.mxu0 0.0
  %3942 = vmatprep.subr.mxu0 0.0
  %3943 = vmatpush1.xpose.msra.mxu0 0.0
  %3944 = vmatprep.subr.mxu0 0.0
  %3945 = vmatpush1.xpose.msra.mxu0 0.0
  %3946 = vmatprep.subr.mxu0 0.0
  %3947 = vmatpush1.xpose.msra.mxu0 0.0
  %3948 = vmatprep.subr.mxu0 0.0
  %3949 = vmatpush1.xpose.msra.mxu0 0.0
  %3950 = vmatprep.subr.mxu0 0.0
  %3951 = vmatpush1.xpose.msra.mxu0 0.0
  %3952 = vmatprep.subr.mxu0 0.0
  %3953 = vmatpush1.xpose.msra.mxu0 0.0
  %3954 = vmatprep.subr.mxu0 0.0
  %3955 = vmatpush1.xpose.msra.mxu0 0.0
  %3956 = vmatprep.subr.mxu0 0.0
  %3957 = vmatpush1.xpose.msra.mxu0 0.0
  %3958 = vmatprep.subr.mxu0 0.0
  %3959 = vmatpush1.xpose.msra.mxu0 0.0
  %3960 = vmatprep.subr.mxu0 0.0
  %3961 = vmatpush1.xpose.msra.mxu0 0.0
  %3962 = vmatprep.subr.mxu0 0.0
  %3963 = vmatpush1.xpose.msra.mxu0 0.0
  %3964 = vmatprep.subr.mxu0 0.0
  %3965 = vmatpush1.xpose.msra.mxu0 0.0
  %3966 = vmatprep.subr.mxu0 0.0
  %3967 = vmatpush1.xpose.msra.mxu0 0.0
  %3968 = vmatprep.subr.mxu0 0.0
  %3969 = vmatpush1.xpose.msra.mxu0 0.0
  %3970 = vmatprep.subr.mxu0 0.0
  %3971 = vmatpush1.xpose.msra.mxu0 0.0
  %3972 = vmatprep.subr.mxu0 0.0
  %3973 = vmatpush1.xpose.msra.mxu0 0.0
  %3974 = vmatprep.mubr.f32.mxu0 0.0
  %3975 = vmatmul.mubr.f32.gmra.mrb[0].mxu0 %v3906
  %v3976 = vpop.f32.mrb[0].mxu0
  %v3977 = vadd.f32 %v886, %v3976
  %v3978 = vpop.f32.mrb[0].mxu0
  %3979 = vdwg.mxu0
  %3981 = vrot.lane.b32.xlu0 %v3466, 120
  %v3982 = vpop.permute.xlu0 %3981
  %v3983 = vsel %vm896, %v3466, 0
  %v3985 = vsel %vm896, %v3982, 0
  %3987 = vmatprep.subr.mxu0 0.0
  %3988 = vmatpush1.xpose.msra.mxu0 %v3985
  %3989 = vmatprep.subr.mxu0 0.0
  %3990 = vmatpush1.xpose.msra.mxu0 0.0
  %3991 = vmatprep.subr.mxu0 0.0
  %3992 = vmatpush1.xpose.msra.mxu0 0.0
  %3993 = vmatprep.subr.mxu0 0.0
  %3994 = vmatpush1.xpose.msra.mxu0 0.0
  %3995 = vmatprep.subr.mxu0 0.0
  %3996 = vmatpush1.xpose.msra.mxu0 0.0
  %3997 = vmatprep.subr.mxu0 0.0
  %3998 = vmatpush1.xpose.msra.mxu0 0.0
  %3999 = vmatprep.subr.mxu0 0.0
  %4000 = vmatpush1.xpose.msra.mxu0 0.0
  %4001 = vmatprep.subr.mxu0 0.0
  %4002 = vmatpush1.xpose.msra.mxu0 0.0
  %4003 = vmatprep.subr.mxu0 0.0
  %4004 = vmatpush1.xpose.msra.mxu0 0.0
  %4005 = vmatprep.subr.mxu0 0.0
  %4006 = vmatpush1.xpose.msra.mxu0 0.0
  %4007 = vmatprep.subr.mxu0 0.0
  %4008 = vmatpush1.xpose.msra.mxu0 0.0
  %4009 = vmatprep.subr.mxu0 0.0
  %4010 = vmatpush1.xpose.msra.mxu0 0.0
  %4011 = vmatprep.subr.mxu0 0.0
  %4012 = vmatpush1.xpose.msra.mxu0 0.0
  %4013 = vmatprep.subr.mxu0 0.0
  %4014 = vmatpush1.xpose.msra.mxu0 0.0
  %4015 = vmatprep.subr.mxu0 0.0
  %4016 = vmatpush1.xpose.msra.mxu0 0.0
  %4017 = vmatprep.subr.mxu0 0.0
  %4018 = vmatpush1.xpose.msra.mxu0 0.0
  %4019 = vmatprep.subr.mxu0 0.0
  %4020 = vmatpush1.xpose.msra.mxu0 0.0
  %4021 = vmatprep.subr.mxu0 0.0
  %4022 = vmatpush1.xpose.msra.mxu0 0.0
  %4023 = vmatprep.subr.mxu0 0.0
  %4024 = vmatpush1.xpose.msra.mxu0 0.0
  %4025 = vmatprep.subr.mxu0 0.0
  %4026 = vmatpush1.xpose.msra.mxu0 0.0
  %4027 = vmatprep.subr.mxu0 0.0
  %4028 = vmatpush1.xpose.msra.mxu0 0.0
  %4029 = vmatprep.subr.mxu0 0.0
  %4030 = vmatpush1.xpose.msra.mxu0 0.0
  %4031 = vmatprep.subr.mxu0 0.0
  %4032 = vmatpush1.xpose.msra.mxu0 0.0
  %4033 = vmatprep.subr.mxu0 0.0
  %4034 = vmatpush1.xpose.msra.mxu0 0.0
  %4035 = vmatprep.subr.mxu0 0.0
  %4036 = vmatpush1.xpose.msra.mxu0 0.0
  %4037 = vmatprep.subr.mxu0 0.0
  %4038 = vmatpush1.xpose.msra.mxu0 0.0
  %4039 = vmatprep.subr.mxu0 0.0
  %4040 = vmatpush1.xpose.msra.mxu0 0.0
  %4041 = vmatprep.subr.mxu0 0.0
  %4042 = vmatpush1.xpose.msra.mxu0 0.0
  %4043 = vmatprep.subr.mxu0 0.0
  %4044 = vmatpush1.xpose.msra.mxu0 0.0
  %4045 = vmatprep.subr.mxu0 0.0
  %4046 = vmatpush1.xpose.msra.mxu0 0.0
  %4047 = vmatprep.subr.mxu0 0.0
  %4048 = vmatpush1.xpose.msra.mxu0 0.0
  %4049 = vmatprep.subr.mxu0 0.0
  %4050 = vmatpush1.xpose.msra.mxu0 0.0
  %4051 = vmatprep.mubr.f32.mxu0 0.0
  %4052 = vmatmul.mubr.f32.gmra.mrb[0].mxu0 %v3983
  %v4053 = vpop.f32.mrb[0].mxu0
  %v4054 = vadd.f32 %v890, %v4053
  %v4055 = vpop.f32.mrb[0].mxu0
  %4056 = vdwg.mxu0
  %4058 = vrot.lane.b32.xlu0 %v3536, 120
  %v4059 = vpop.permute.xlu0 %4058
  %v4060 = vsel %vm896, %v3536, 0
  %v4062 = vsel %vm896, %v4059, 0
  %4064 = vmatprep.subr.mxu0 0.0
  %4065 = vmatpush1.xpose.msra.mxu0 %v4062
  %4066 = vmatprep.subr.mxu0 0.0
  %4067 = vmatpush1.xpose.msra.mxu0 0.0
  %4068 = vmatprep.subr.mxu0 0.0
  %4069 = vmatpush1.xpose.msra.mxu0 0.0
  %4070 = vmatprep.subr.mxu0 0.0
  %4071 = vmatpush1.xpose.msra.mxu0 0.0
  %4072 = vmatprep.subr.mxu0 0.0
  %4073 = vmatpush1.xpose.msra.mxu0 0.0
  %4074 = vmatprep.subr.mxu0 0.0
  %4075 = vmatpush1.xpose.msra.mxu0 0.0
  %4076 = vmatprep.subr.mxu0 0.0
  %4077 = vmatpush1.xpose.msra.mxu0 0.0
  %4078 = vmatprep.subr.mxu0 0.0
  %4079 = vmatpush1.xpose.msra.mxu0 0.0
  %4080 = vmatprep.subr.mxu0 0.0
  %4081 = vmatpush1.xpose.msra.mxu0 0.0
  %4082 = vmatprep.subr.mxu0 0.0
  %4083 = vmatpush1.xpose.msra.mxu0 0.0
  %4084 = vmatprep.subr.mxu0 0.0
  %4085 = vmatpush1.xpose.msra.mxu0 0.0
  %4086 = vmatprep.subr.mxu0 0.0
  %4087 = vmatpush1.xpose.msra.mxu0 0.0
  %4088 = vmatprep.subr.mxu0 0.0
  %4089 = vmatpush1.xpose.msra.mxu0 0.0
  %4090 = vmatprep.subr.mxu0 0.0
  %4091 = vmatpush1.xpose.msra.mxu0 0.0
  %4092 = vmatprep.subr.mxu0 0.0
  %4093 = vmatpush1.xpose.msra.mxu0 0.0
  %4094 = vmatprep.subr.mxu0 0.0
  %4095 = vmatpush1.xpose.msra.mxu0 0.0
  %4096 = vmatprep.subr.mxu0 0.0
  %4097 = vmatpush1.xpose.msra.mxu0 0.0
  %4098 = vmatprep.subr.mxu0 0.0
  %4099 = vmatpush1.xpose.msra.mxu0 0.0
  %4100 = vmatprep.subr.mxu0 0.0
  %4101 = vmatpush1.xpose.msra.mxu0 0.0
  %4102 = vmatprep.subr.mxu0 0.0
  %4103 = vmatpush1.xpose.msra.mxu0 0.0
  %4104 = vmatprep.subr.mxu0 0.0
  %4105 = vmatpush1.xpose.msra.mxu0 0.0
  %4106 = vmatprep.subr.mxu0 0.0
  %4107 = vmatpush1.xpose.msra.mxu0 0.0
  %4108 = vmatprep.subr.mxu0 0.0
  %4109 = vmatpush1.xpose.msra.mxu0 0.0
  %4110 = vmatprep.subr.mxu0 0.0
  %4111 = vmatpush1.xpose.msra.mxu0 0.0
  %4112 = vmatprep.subr.mxu0 0.0
  %4113 = vmatpush1.xpose.msra.mxu0 0.0
  %4114 = vmatprep.subr.mxu0 0.0
  %4115 = vmatpush1.xpose.msra.mxu0 0.0
  %4116 = vmatprep.subr.mxu0 0.0
  %4117 = vmatpush1.xpose.msra.mxu0 0.0
  %4118 = vmatprep.subr.mxu0 0.0
  %4119 = vmatpush1.xpose.msra.mxu0 0.0
  %4120 = vmatprep.subr.mxu0 0.0
  %4121 = vmatpush1.xpose.msra.mxu0 0.0
  %4122 = vmatprep.subr.mxu0 0.0
  %4123 = vmatpush1.xpose.msra.mxu0 0.0
  %4124 = vmatprep.subr.mxu0 0.0
  %4125 = vmatpush1.xpose.msra.mxu0 0.0
  %4126 = vmatprep.subr.mxu0 0.0
  %4127 = vmatpush1.xpose.msra.mxu0 0.0
  %4128 = vmatprep.mubr.f32.mxu0 0.0
  %4129 = vmatmul.mubr.f32.gmra.mrb[0].mxu0 %v4060
  %v4130 = vpop.f32.mrb[0].mxu0
  %v4131 = vadd.f32 %v886, %v4130
  %v4132 = vpop.f32.mrb[0].mxu0
  %4133 = vdwg.mxu0
  %4135 = vrot.lane.b32.xlu0 %v3606, 120
  %v4136 = vpop.permute.xlu0 %4135
  %v4137 = vsel %vm896, %v3606, 0
  %v4139 = vsel %vm896, %v4136, 0
  %4141 = vmatprep.subr.mxu0 0.0
  %4142 = vmatpush1.xpose.msra.mxu0 %v4139
  %4143 = vmatprep.subr.mxu0 0.0
  %4144 = vmatpush1.xpose.msra.mxu0 0.0
  %4145 = vmatprep.subr.mxu0 0.0
  %4146 = vmatpush1.xpose.msra.mxu0 0.0
  %4147 = vmatprep.subr.mxu0 0.0
  %4148 = vmatpush1.xpose.msra.mxu0 0.0
  %4149 = vmatprep.subr.mxu0 0.0
  %4150 = vmatpush1.xpose.msra.mxu0 0.0
  %4151 = vmatprep.subr.mxu0 0.0
  %4152 = vmatpush1.xpose.msra.mxu0 0.0
  %4153 = vmatprep.subr.mxu0 0.0
  %4154 = vmatpush1.xpose.msra.mxu0 0.0
  %4155 = vmatprep.subr.mxu0 0.0
  %4156 = vmatpush1.xpose.msra.mxu0 0.0
  %4157 = vmatprep.subr.mxu0 0.0
  %4158 = vmatpush1.xpose.msra.mxu0 0.0
  %4159 = vmatprep.subr.mxu0 0.0
  %4160 = vmatpush1.xpose.msra.mxu0 0.0
  %4161 = vmatprep.subr.mxu0 0.0
  %4162 = vmatpush1.xpose.msra.mxu0 0.0
  %4163 = vmatprep.subr.mxu0 0.0
  %4164 = vmatpush1.xpose.msra.mxu0 0.0
  %4165 = vmatprep.subr.mxu0 0.0
  %4166 = vmatpush1.xpose.msra.mxu0 0.0
  %4167 = vmatprep.subr.mxu0 0.0
  %4168 = vmatpush1.xpose.msra.mxu0 0.0
  %4169 = vmatprep.subr.mxu0 0.0
  %4170 = vmatpush1.xpose.msra.mxu0 0.0
  %4171 = vmatprep.subr.mxu0 0.0
  %4172 = vmatpush1.xpose.msra.mxu0 0.0
  %4173 = vmatprep.subr.mxu0 0.0
  %4174 = vmatpush1.xpose.msra.mxu0 0.0
  %4175 = vmatprep.subr.mxu0 0.0
  %4176 = vmatpush1.xpose.msra.mxu0 0.0
  %4177 = vmatprep.subr.mxu0 0.0
  %4178 = vmatpush1.xpose.msra.mxu0 0.0
  %4179 = vmatprep.subr.mxu0 0.0
  %4180 = vmatpush1.xpose.msra.mxu0 0.0
  %4181 = vmatprep.subr.mxu0 0.0
  %4182 = vmatpush1.xpose.msra.mxu0 0.0
  %4183 = vmatprep.subr.mxu0 0.0
  %4184 = vmatpush1.xpose.msra.mxu0 0.0
  %4185 = vmatprep.subr.mxu0 0.0
  %4186 = vmatpush1.xpose.msra.mxu0 0.0
  %4187 = vmatprep.subr.mxu0 0.0
  %4188 = vmatpush1.xpose.msra.mxu0 0.0
  %4189 = vmatprep.subr.mxu0 0.0
  %4190 = vmatpush1.xpose.msra.mxu0 0.0
  %4191 = vmatprep.subr.mxu0 0.0
  %4192 = vmatpush1.xpose.msra.mxu0 0.0
  %4193 = vmatprep.subr.mxu0 0.0
  %4194 = vmatpush1.xpose.msra.mxu0 0.0
  %4195 = vmatprep.subr.mxu0 0.0
  %4196 = vmatpush1.xpose.msra.mxu0 0.0
  %4197 = vmatprep.subr.mxu0 0.0
  %4198 = vmatpush1.xpose.msra.mxu0 0.0
  %4199 = vmatprep.subr.mxu0 0.0
  %4200 = vmatpush1.xpose.msra.mxu0 0.0
  %4201 = vmatprep.subr.mxu0 0.0
  %4202 = vmatpush1.xpose.msra.mxu0 0.0
  %4203 = vmatprep.subr.mxu0 0.0
  %4204 = vmatpush1.xpose.msra.mxu0 0.0
  %4205 = vmatprep.mubr.f32.mxu0 0.0
  %4206 = vmatmul.mubr.f32.gmra.mrb[0].mxu0 %v4137
  %v4207 = vpop.f32.mrb[0].mxu0
  %v4208 = vadd.f32 %v890, %v4207
  %v4209 = vpop.f32.mrb[0].mxu0
  %4210 = vdwg.mxu0
  %4212 = vrot.lane.b32.xlu0 %v3676, 120
  %v4213 = vpop.permute.xlu0 %4212
  %v4214 = vsel %vm896, %v3676, 0
  %v4216 = vsel %vm896, %v4213, 0
  %4218 = vmatprep.subr.mxu0 0.0
  %4219 = vmatpush1.xpose.msra.mxu0 %v4216
  %4220 = vmatprep.subr.mxu0 0.0
  %4221 = vmatpush1.xpose.msra.mxu0 0.0
  %4222 = vmatprep.subr.mxu0 0.0
  %4223 = vmatpush1.xpose.msra.mxu0 0.0
  %4224 = vmatprep.subr.mxu0 0.0
  %4225 = vmatpush1.xpose.msra.mxu0 0.0
  %4226 = vmatprep.subr.mxu0 0.0
  %4227 = vmatpush1.xpose.msra.mxu0 0.0
  %4228 = vmatprep.subr.mxu0 0.0
  %4229 = vmatpush1.xpose.msra.mxu0 0.0
  %4230 = vmatprep.subr.mxu0 0.0
  %4231 = vmatpush1.xpose.msra.mxu0 0.0
  %4232 = vmatprep.subr.mxu0 0.0
  %4233 = vmatpush1.xpose.msra.mxu0 0.0
  %4234 = vmatprep.subr.mxu0 0.0
  %4235 = vmatpush1.xpose.msra.mxu0 0.0
  %4236 = vmatprep.subr.mxu0 0.0
  %4237 = vmatpush1.xpose.msra.mxu0 0.0
  %4238 = vmatprep.subr.mxu0 0.0
  %4239 = vmatpush1.xpose.msra.mxu0 0.0
  %4240 = vmatprep.subr.mxu0 0.0
  %4241 = vmatpush1.xpose.msra.mxu0 0.0
  %4242 = vmatprep.subr.mxu0 0.0
  %4243 = vmatpush1.xpose.msra.mxu0 0.0
  %4244 = vmatprep.subr.mxu0 0.0
  %4245 = vmatpush1.xpose.msra.mxu0 0.0
  %4246 = vmatprep.subr.mxu0 0.0
  %4247 = vmatpush1.xpose.msra.mxu0 0.0
  %4248 = vmatprep.subr.mxu0 0.0
  %4249 = vmatpush1.xpose.msra.mxu0 0.0
  %4250 = vmatprep.subr.mxu0 0.0
  %4251 = vmatpush1.xpose.msra.mxu0 0.0
  %4252 = vmatprep.subr.mxu0 0.0
  %4253 = vmatpush1.xpose.msra.mxu0 0.0
  %4254 = vmatprep.subr.mxu0 0.0
  %4255 = vmatpush1.xpose.msra.mxu0 0.0
  %4256 = vmatprep.subr.mxu0 0.0
  %4257 = vmatpush1.xpose.msra.mxu0 0.0
  %4258 = vmatprep.subr.mxu0 0.0
  %4259 = vmatpush1.xpose.msra.mxu0 0.0
  %4260 = vmatprep.subr.mxu0 0.0
  %4261 = vmatpush1.xpose.msra.mxu0 0.0
  %4262 = vmatprep.subr.mxu0 0.0
  %4263 = vmatpush1.xpose.msra.mxu0 0.0
  %4264 = vmatprep.subr.mxu0 0.0
  %4265 = vmatpush1.xpose.msra.mxu0 0.0
  %4266 = vmatprep.subr.mxu0 0.0
  %4267 = vmatpush1.xpose.msra.mxu0 0.0
  %4268 = vmatprep.subr.mxu0 0.0
  %4269 = vmatpush1.xpose.msra.mxu0 0.0
  %4270 = vmatprep.subr.mxu0 0.0
  %4271 = vmatpush1.xpose.msra.mxu0 0.0
  %4272 = vmatprep.subr.mxu0 0.0
  %4273 = vmatpush1.xpose.msra.mxu0 0.0
  %4274 = vmatprep.subr.mxu0 0.0
  %4275 = vmatpush1.xpose.msra.mxu0 0.0
  %4276 = vmatprep.subr.mxu0 0.0
  %4277 = vmatpush1.xpose.msra.mxu0 0.0
  %4278 = vmatprep.subr.mxu0 0.0
  %4279 = vmatpush1.xpose.msra.mxu0 0.0
  %4280 = vmatprep.subr.mxu0 0.0
  %4281 = vmatpush1.xpose.msra.mxu0 0.0
  %4282 = vmatprep.mubr.f32.mxu0 0.0
  %4283 = vmatmul.mubr.f32.gmra.mrb[0].mxu0 %v4214
  %v4284 = vpop.f32.mrb[0].mxu0
  %v4285 = vadd.f32 %v886, %v4284
  %v4286 = vpop.f32.mrb[0].mxu0
  %4287 = vdwg.mxu0
  %4289 = vrot.lane.b32.xlu0 %v3746, 120
  %v4290 = vpop.permute.xlu0 %4289
  %v4291 = vsel %vm896, %v3746, 0
  %v4293 = vsel %vm896, %v4290, 0
  %4295 = vmatprep.subr.mxu0 0.0
  %4296 = vmatpush1.xpose.msra.mxu0 %v4293
  %4297 = vmatprep.subr.mxu0 0.0
  %4298 = vmatpush1.xpose.msra.mxu0 0.0
  %4299 = vmatprep.subr.mxu0 0.0
  %4300 = vmatpush1.xpose.msra.mxu0 0.0
  %4301 = vmatprep.subr.mxu0 0.0
  %4302 = vmatpush1.xpose.msra.mxu0 0.0
  %4303 = vmatprep.subr.mxu0 0.0
  %4304 = vmatpush1.xpose.msra.mxu0 0.0
  %4305 = vmatprep.subr.mxu0 0.0
  %4306 = vmatpush1.xpose.msra.mxu0 0.0
  %4307 = vmatprep.subr.mxu0 0.0
  %4308 = vmatpush1.xpose.msra.mxu0 0.0
  %4309 = vmatprep.subr.mxu0 0.0
  %4310 = vmatpush1.xpose.msra.mxu0 0.0
  %4311 = vmatprep.subr.mxu0 0.0
  %4312 = vmatpush1.xpose.msra.mxu0 0.0
  %4313 = vmatprep.subr.mxu0 0.0
  %4314 = vmatpush1.xpose.msra.mxu0 0.0
  %4315 = vmatprep.subr.mxu0 0.0
  %4316 = vmatpush1.xpose.msra.mxu0 0.0
  %4317 = vmatprep.subr.mxu0 0.0
  %4318 = vmatpush1.xpose.msra.mxu0 0.0
  %4319 = vmatprep.subr.mxu0 0.0
  %4320 = vmatpush1.xpose.msra.mxu0 0.0
  %4321 = vmatprep.subr.mxu0 0.0
  %4322 = vmatpush1.xpose.msra.mxu0 0.0
  %4323 = vmatprep.subr.mxu0 0.0
  %4324 = vmatpush1.xpose.msra.mxu0 0.0
  %4325 = vmatprep.subr.mxu0 0.0
  %4326 = vmatpush1.xpose.msra.mxu0 0.0
  %4327 = vmatprep.subr.mxu0 0.0
  %4328 = vmatpush1.xpose.msra.mxu0 0.0
  %4329 = vmatprep.subr.mxu0 0.0
  %4330 = vmatpush1.xpose.msra.mxu0 0.0
  %4331 = vmatprep.subr.mxu0 0.0
  %4332 = vmatpush1.xpose.msra.mxu0 0.0
  %4333 = vmatprep.subr.mxu0 0.0
  %4334 = vmatpush1.xpose.msra.mxu0 0.0
  %4335 = vmatprep.subr.mxu0 0.0
  %4336 = vmatpush1.xpose.msra.mxu0 0.0
  %4337 = vmatprep.subr.mxu0 0.0
  %4338 = vmatpush1.xpose.msra.mxu0 0.0
  %4339 = vmatprep.subr.mxu0 0.0
  %4340 = vmatpush1.xpose.msra.mxu0 0.0
  %4341 = vmatprep.subr.mxu0 0.0
  %4342 = vmatpush1.xpose.msra.mxu0 0.0
  %4343 = vmatprep.subr.mxu0 0.0
  %4344 = vmatpush1.xpose.msra.mxu0 0.0
  %4345 = vmatprep.subr.mxu0 0.0
  %4346 = vmatpush1.xpose.msra.mxu0 0.0
  %4347 = vmatprep.subr.mxu0 0.0
  %4348 = vmatpush1.xpose.msra.mxu0 0.0
  %4349 = vmatprep.subr.mxu0 0.0
  %4350 = vmatpush1.xpose.msra.mxu0 0.0
  %4351 = vmatprep.subr.mxu0 0.0
  %4352 = vmatpush1.xpose.msra.mxu0 0.0
  %4353 = vmatprep.subr.mxu0 0.0
  %4354 = vmatpush1.xpose.msra.mxu0 0.0
  %4355 = vmatprep.subr.mxu0 0.0
  %4356 = vmatpush1.xpose.msra.mxu0 0.0
  %4357 = vmatprep.subr.mxu0 0.0
  %4358 = vmatpush1.xpose.msra.mxu0 0.0
  %4359 = vmatprep.mubr.f32.mxu0 0.0
  %4360 = vmatmul.mubr.f32.gmra.mrb[0].mxu0 %v4291
  %v4361 = vpop.f32.mrb[0].mxu0
  %v4362 = vadd.f32 %v890, %v4361
  %v4363 = vpop.f32.mrb[0].mxu0
  %4364 = vdwg.mxu0
  %v4365 = vsel %vm896, %v3823, -inf
  %4366 = vmax.xlane.f32.xlu0 %v4365
  %v4367 = vpop.xlane.xlu0 %4366
  %v4368 = vsel %vm896, %v3900, -inf
  %4369 = vmax.xlane.f32.xlu0 %v4368
  %v4370 = vpop.xlane.xlu0 %4369
  %v4371 = vsel %vm896, %v3977, -inf
  %4372 = vmax.xlane.f32.xlu0 %v4371
  %v4373 = vpop.xlane.xlu0 %4372
  %v4374 = vsel %vm896, %v4054, -inf
  %4375 = vmax.xlane.f32.xlu0 %v4374
  %v4376 = vpop.xlane.xlu0 %4375
  %v4377 = vsel %vm896, %v4131, -inf
  %4378 = vmax.xlane.f32.xlu0 %v4377
  %v4379 = vpop.xlane.xlu0 %4378
  %v4380 = vsel %vm896, %v4208, -inf
  %4381 = vmax.xlane.f32.xlu0 %v4380
  %v4382 = vpop.xlane.xlu0 %4381
  %v4383 = vsel %vm896, %v4285, -inf
  %4384 = vmax.xlane.f32.xlu0 %v4383
  %v4385 = vpop.xlane.xlu0 %4384
  %v4386 = vsel %vm896, %v4362, -inf
  %4387 = vmax.xlane.f32.xlu0 %v4386
  %v4388 = vpop.xlane.xlu0 %4387
  %v4389 = vsub.f32 %v3823, %v4367
  %v4390 = vsub.f32 %v3900, %v4370
  %v4391 = vsub.f32 %v3977, %v4373
  %v4392 = vsub.f32 %v4054, %v4376
  %v4393 = vsub.f32 %v4131, %v4379
  %v4394 = vsub.f32 %v4208, %v4382
  %v4395 = vsub.f32 %v4285, %v4385
  %v4396 = vsub.f32 %v4362, %v4388
  %v4397 = vmul.f32 %v4389, 1.442695
  %v4398 = vpow.pop %v4397
  %v4399 = vmul.f32 %v4390, 1.442695
  %v4400 = vpow.pop %v4399
  %v4401 = vmul.f32 %v4391, 1.442695
  %v4402 = vpow.pop %v4401
  %v4403 = vmul.f32 %v4392, 1.442695
  %v4404 = vpow.pop %v4403
  %v4405 = vmul.f32 %v4393, 1.442695
  %v4406 = vpow.pop %v4405
  %v4407 = vmul.f32 %v4394, 1.442695
  %v4408 = vpow.pop %v4407
  %v4409 = vmul.f32 %v4395, 1.442695
  %v4410 = vpow.pop %v4409
  %v4411 = vmul.f32 %v4396, 1.442695
  %v4412 = vpow.pop %v4411
  %v4413 = vsel %vm896, %v4398, 0.0
  %4414 = vadd.xlane.f32.xlu0 %v4413
  %v4415 = vpop.xlane.xlu0 %4414
  %v4416 = vsel %vm896, %v4400, 0.0
  %4417 = vadd.xlane.f32.xlu0 %v4416
  %v4418 = vpop.xlane.xlu0 %4417
  %v4419 = vsel %vm896, %v4402, 0.0
  %4420 = vadd.xlane.f32.xlu0 %v4419
  %v4421 = vpop.xlane.xlu0 %4420
  %v4422 = vsel %vm896, %v4404, 0.0
  %4423 = vadd.xlane.f32.xlu0 %v4422
  %v4424 = vpop.xlane.xlu0 %4423
  %v4425 = vsel %vm896, %v4406, 0.0
  %4426 = vadd.xlane.f32.xlu0 %v4425
  %v4427 = vpop.xlane.xlu0 %4426
  %v4428 = vsel %vm896, %v4408, 0.0
  %4429 = vadd.xlane.f32.xlu0 %v4428
  %v4430 = vpop.xlane.xlu0 %4429
  %v4431 = vsel %vm896, %v4410, 0.0
  %4432 = vadd.xlane.f32.xlu0 %v4431
  %v4433 = vpop.xlane.xlu0 %4432
  %v4434 = vsel %vm896, %v4412, 0.0
  %4435 = vadd.xlane.f32.xlu0 %v4434
  %v4436 = vpop.xlane.xlu0 %4435
  %v4437 = vrcp.pop %v4415
  %v4438 = vrcp.pop %v4418
  %v4439 = vrcp.pop %v4421
  %v4440 = vrcp.pop %v4424
  %v4441 = vrcp.pop %v4427
  %v4442 = vrcp.pop %v4430
  %v4443 = vrcp.pop %v4433
  %v4444 = vrcp.pop %v4436
  %v4445 = vmul.f32 %v4398, %v4437
  %v4446 = vmul.f32 %v4400, %v4438
  %v4447 = vmul.f32 %v4402, %v4439
  %v4448 = vmul.f32 %v4404, %v4440
  %v4449 = vmul.f32 %v4406, %v4441
  %v4450 = vmul.f32 %v4408, %v4442
  %v4451 = vmul.f32 %v4410, %v4443
  %v4452 = vmul.f32 %v4412, %v4444
  %4453 = vrot.lane.b32.xlu0 %v3253, 112
  %v4454 = vpop.permute.xlu0 %4453
  %v4457 = vsel %vm896, %v4445, 0
  %4459 = vmatprep.subr.mxu0 0.0
  %4460 = vmatpush1.msra.mxu0 %v4454
  %4461 = vmatprep.subr.mxu0 0.0
  %4462 = vmatpush1.msra.mxu0 0.0
  %4463 = vmatprep.subr.mxu0 0.0
  %4464 = vmatpush1.msra.mxu0 0.0
  %4465 = vmatprep.subr.mxu0 0.0
  %4466 = vmatpush1.msra.mxu0 0.0
  %4467 = vmatprep.subr.mxu0 0.0
  %4468 = vmatpush1.msra.mxu0 0.0
  %4469 = vmatprep.subr.mxu0 0.0
  %4470 = vmatpush1.msra.mxu0 0.0
  %4471 = vmatprep.subr.mxu0 0.0
  %4472 = vmatpush1.msra.mxu0 0.0
  %4473 = vmatprep.subr.mxu0 0.0
  %4474 = vmatpush1.msra.mxu0 0.0
  %4475 = vmatprep.subr.mxu0 0.0
  %4476 = vmatpush1.msra.mxu0 0.0
  %4477 = vmatprep.subr.mxu0 0.0
  %4478 = vmatpush1.msra.mxu0 0.0
  %4479 = vmatprep.subr.mxu0 0.0
  %4480 = vmatpush1.msra.mxu0 0.0
  %4481 = vmatprep.subr.mxu0 0.0
  %4482 = vmatpush1.msra.mxu0 0.0
  %4483 = vmatprep.subr.mxu0 0.0
  %4484 = vmatpush1.msra.mxu0 0.0
  %4485 = vmatprep.subr.mxu0 0.0
  %4486 = vmatpush1.msra.mxu0 0.0
  %4487 = vmatprep.subr.mxu0 0.0
  %4488 = vmatpush1.msra.mxu0 0.0
  %4489 = vmatprep.subr.mxu0 0.0
  %4490 = vmatpush1.msra.mxu0 0.0
  %4491 = vmatprep.subr.mxu0 0.0
  %4492 = vmatpush1.msra.mxu0 0.0
  %4493 = vmatprep.subr.mxu0 0.0
  %4494 = vmatpush1.msra.mxu0 0.0
  %4495 = vmatprep.subr.mxu0 0.0
  %4496 = vmatpush1.msra.mxu0 0.0
  %4497 = vmatprep.subr.mxu0 0.0
  %4498 = vmatpush1.msra.mxu0 0.0
  %4499 = vmatprep.subr.mxu0 0.0
  %4500 = vmatpush1.msra.mxu0 0.0
  %4501 = vmatprep.subr.mxu0 0.0
  %4502 = vmatpush1.msra.mxu0 0.0
  %4503 = vmatprep.subr.mxu0 0.0
  %4504 = vmatpush1.msra.mxu0 0.0
  %4505 = vmatprep.subr.mxu0 0.0
  %4506 = vmatpush1.msra.mxu0 0.0
  %4507 = vmatprep.subr.mxu0 0.0
  %4508 = vmatpush1.msra.mxu0 0.0
  %4509 = vmatprep.subr.mxu0 0.0
  %4510 = vmatpush1.msra.mxu0 0.0
  %4511 = vmatprep.subr.mxu0 0.0
  %4512 = vmatpush1.msra.mxu0 0.0
  %4513 = vmatprep.subr.mxu0 0.0
  %4514 = vmatpush1.msra.mxu0 0.0
  %4515 = vmatprep.subr.mxu0 0.0
  %4516 = vmatpush1.msra.mxu0 0.0
  %4517 = vmatprep.subr.mxu0 0.0
  %4518 = vmatpush1.msra.mxu0 0.0
  %4519 = vmatprep.subr.mxu0 0.0
  %4520 = vmatpush1.msra.mxu0 0.0
  %4521 = vmatprep.subr.mxu0 0.0
  %4522 = vmatpush1.msra.mxu0 0.0
  %4523 = vmatprep.mubr.f32.mxu0 0.0
  %4524 = vmatmul.mubr.f32.gmra.mrb[0].mxu0 %v4457
  %v4525 = vpop.f32.mrb[0].mxu0
  %v4526 = vadd.f32 0.0, %v4525
  %v4527 = vpop.f32.mrb[0].mxu0
  %4528 = vdwg.mxu0
  %4529 = vrot.lane.b32.xlu0 %v3326, 112
  %v4530 = vpop.permute.xlu0 %4529
  %v4533 = vsel %vm896, %v4446, 0
  %4535 = vmatprep.subr.mxu0 0.0
  %4536 = vmatpush1.msra.mxu0 %v4530
  %4537 = vmatprep.subr.mxu0 0.0
  %4538 = vmatpush1.msra.mxu0 0.0
  %4539 = vmatprep.subr.mxu0 0.0
  %4540 = vmatpush1.msra.mxu0 0.0
  %4541 = vmatprep.subr.mxu0 0.0
  %4542 = vmatpush1.msra.mxu0 0.0
  %4543 = vmatprep.subr.mxu0 0.0
  %4544 = vmatpush1.msra.mxu0 0.0
  %4545 = vmatprep.subr.mxu0 0.0
  %4546 = vmatpush1.msra.mxu0 0.0
  %4547 = vmatprep.subr.mxu0 0.0
  %4548 = vmatpush1.msra.mxu0 0.0
  %4549 = vmatprep.subr.mxu0 0.0
  %4550 = vmatpush1.msra.mxu0 0.0
  %4551 = vmatprep.subr.mxu0 0.0
  %4552 = vmatpush1.msra.mxu0 0.0
  %4553 = vmatprep.subr.mxu0 0.0
  %4554 = vmatpush1.msra.mxu0 0.0
  %4555 = vmatprep.subr.mxu0 0.0
  %4556 = vmatpush1.msra.mxu0 0.0
  %4557 = vmatprep.subr.mxu0 0.0
  %4558 = vmatpush1.msra.mxu0 0.0
  %4559 = vmatprep.subr.mxu0 0.0
  %4560 = vmatpush1.msra.mxu0 0.0
  %4561 = vmatprep.subr.mxu0 0.0
  %4562 = vmatpush1.msra.mxu0 0.0
  %4563 = vmatprep.subr.mxu0 0.0
  %4564 = vmatpush1.msra.mxu0 0.0
  %4565 = vmatprep.subr.mxu0 0.0
  %4566 = vmatpush1.msra.mxu0 0.0
  %4567 = vmatprep.subr.mxu0 0.0
  %4568 = vmatpush1.msra.mxu0 0.0
  %4569 = vmatprep.subr.mxu0 0.0
  %4570 = vmatpush1.msra.mxu0 0.0
  %4571 = vmatprep.subr.mxu0 0.0
  %4572 = vmatpush1.msra.mxu0 0.0
  %4573 = vmatprep.subr.mxu0 0.0
  %4574 = vmatpush1.msra.mxu0 0.0
  %4575 = vmatprep.subr.mxu0 0.0
  %4576 = vmatpush1.msra.mxu0 0.0
  %4577 = vmatprep.subr.mxu0 0.0
  %4578 = vmatpush1.msra.mxu0 0.0
  %4579 = vmatprep.subr.mxu0 0.0
  %4580 = vmatpush1.msra.mxu0 0.0
  %4581 = vmatprep.subr.mxu0 0.0
  %4582 = vmatpush1.msra.mxu0 0.0
  %4583 = vmatprep.subr.mxu0 0.0
  %4584 = vmatpush1.msra.mxu0 0.0
  %4585 = vmatprep.subr.mxu0 0.0
  %4586 = vmatpush1.msra.mxu0 0.0
  %4587 = vmatprep.subr.mxu0 0.0
  %4588 = vmatpush1.msra.mxu0 0.0
  %4589 = vmatprep.subr.mxu0 0.0
  %4590 = vmatpush1.msra.mxu0 0.0
  %4591 = vmatprep.subr.mxu0 0.0
  %4592 = vmatpush1.msra.mxu0 0.0
  %4593 = vmatprep.subr.mxu0 0.0
  %4594 = vmatpush1.msra.mxu0 0.0
  %4595 = vmatprep.subr.mxu0 0.0
  %4596 = vmatpush1.msra.mxu0 0.0
  %4597 = vmatprep.subr.mxu0 0.0
  %4598 = vmatpush1.msra.mxu0 0.0
  %4599 = vmatprep.mubr.f32.mxu0 0.0
  %4600 = vmatmul.mubr.f32.gmra.mrb[0].mxu0 %v4533
  %v4601 = vpop.f32.mrb[0].mxu0
  %v4602 = vadd.f32 0.0, %v4601
  %v4603 = vpop.f32.mrb[0].mxu0
  %4604 = vdwg.mxu0
  %4605 = vrot.lane.b32.xlu0 %v3396, 112
  %v4606 = vpop.permute.xlu0 %4605
  %v4609 = vsel %vm896, %v4447, 0
  %4611 = vmatprep.subr.mxu0 0.0
  %4612 = vmatpush1.msra.mxu0 %v4606
  %4613 = vmatprep.subr.mxu0 0.0
  %4614 = vmatpush1.msra.mxu0 0.0
  %4615 = vmatprep.subr.mxu0 0.0
  %4616 = vmatpush1.msra.mxu0 0.0
  %4617 = vmatprep.subr.mxu0 0.0
  %4618 = vmatpush1.msra.mxu0 0.0
  %4619 = vmatprep.subr.mxu0 0.0
  %4620 = vmatpush1.msra.mxu0 0.0
  %4621 = vmatprep.subr.mxu0 0.0
  %4622 = vmatpush1.msra.mxu0 0.0
  %4623 = vmatprep.subr.mxu0 0.0
  %4624 = vmatpush1.msra.mxu0 0.0
  %4625 = vmatprep.subr.mxu0 0.0
  %4626 = vmatpush1.msra.mxu0 0.0
  %4627 = vmatprep.subr.mxu0 0.0
  %4628 = vmatpush1.msra.mxu0 0.0
  %4629 = vmatprep.subr.mxu0 0.0
  %4630 = vmatpush1.msra.mxu0 0.0
  %4631 = vmatprep.subr.mxu0 0.0
  %4632 = vmatpush1.msra.mxu0 0.0
  %4633 = vmatprep.subr.mxu0 0.0
  %4634 = vmatpush1.msra.mxu0 0.0
  %4635 = vmatprep.subr.mxu0 0.0
  %4636 = vmatpush1.msra.mxu0 0.0
  %4637 = vmatprep.subr.mxu0 0.0
  %4638 = vmatpush1.msra.mxu0 0.0
  %4639 = vmatprep.subr.mxu0 0.0
  %4640 = vmatpush1.msra.mxu0 0.0
  %4641 = vmatprep.subr.mxu0 0.0
  %4642 = vmatpush1.msra.mxu0 0.0
  %4643 = vmatprep.subr.mxu0 0.0
  %4644 = vmatpush1.msra.mxu0 0.0
  %4645 = vmatprep.subr.mxu0 0.0
  %4646 = vmatpush1.msra.mxu0 0.0
  %4647 = vmatprep.subr.mxu0 0.0
  %4648 = vmatpush1.msra.mxu0 0.0
  %4649 = vmatprep.subr.mxu0 0.0
  %4650 = vmatpush1.msra.mxu0 0.0
  %4651 = vmatprep.subr.mxu0 0.0
  %4652 = vmatpush1.msra.mxu0 0.0
  %4653 = vmatprep.subr.mxu0 0.0
  %4654 = vmatpush1.msra.mxu0 0.0
  %4655 = vmatprep.subr.mxu0 0.0
  %4656 = vmatpush1.msra.mxu0 0.0
  %4657 = vmatprep.subr.mxu0 0.0
  %4658 = vmatpush1.msra.mxu0 0.0
  %4659 = vmatprep.subr.mxu0 0.0
  %4660 = vmatpush1.msra.mxu0 0.0
  %4661 = vmatprep.subr.mxu0 0.0
  %4662 = vmatpush1.msra.mxu0 0.0
  %4663 = vmatprep.subr.mxu0 0.0
  %4664 = vmatpush1.msra.mxu0 0.0
  %4665 = vmatprep.subr.mxu0 0.0
  %4666 = vmatpush1.msra.mxu0 0.0
  %4667 = vmatprep.subr.mxu0 0.0
  %4668 = vmatpush1.msra.mxu0 0.0
  %4669 = vmatprep.subr.mxu0 0.0
  %4670 = vmatpush1.msra.mxu0 0.0
  %4671 = vmatprep.subr.mxu0 0.0
  %4672 = vmatpush1.msra.mxu0 0.0
  %4673 = vmatprep.subr.mxu0 0.0
  %4674 = vmatpush1.msra.mxu0 0.0
  %4675 = vmatprep.mubr.f32.mxu0 0.0
  %4676 = vmatmul.mubr.f32.gmra.mrb[0].mxu0 %v4609
  %v4677 = vpop.f32.mrb[0].mxu0
  %v4678 = vadd.f32 0.0, %v4677
  %v4679 = vpop.f32.mrb[0].mxu0
  %4680 = vdwg.mxu0
  %4681 = vrot.lane.b32.xlu0 %v3466, 112
  %v4682 = vpop.permute.xlu0 %4681
  %v4685 = vsel %vm896, %v4448, 0
  %4687 = vmatprep.subr.mxu0 0.0
  %4688 = vmatpush1.msra.mxu0 %v4682
  %4689 = vmatprep.subr.mxu0 0.0
  %4690 = vmatpush1.msra.mxu0 0.0
  %4691 = vmatprep.subr.mxu0 0.0
  %4692 = vmatpush1.msra.mxu0 0.0
  %4693 = vmatprep.subr.mxu0 0.0
  %4694 = vmatpush1.msra.mxu0 0.0
  %4695 = vmatprep.subr.mxu0 0.0
  %4696 = vmatpush1.msra.mxu0 0.0
  %4697 = vmatprep.subr.mxu0 0.0
  %4698 = vmatpush1.msra.mxu0 0.0
  %4699 = vmatprep.subr.mxu0 0.0
  %4700 = vmatpush1.msra.mxu0 0.0
  %4701 = vmatprep.subr.mxu0 0.0
  %4702 = vmatpush1.msra.mxu0 0.0
  %4703 = vmatprep.subr.mxu0 0.0
  %4704 = vmatpush1.msra.mxu0 0.0
  %4705 = vmatprep.subr.mxu0 0.0
  %4706 = vmatpush1.msra.mxu0 0.0
  %4707 = vmatprep.subr.mxu0 0.0
  %4708 = vmatpush1.msra.mxu0 0.0
  %4709 = vmatprep.subr.mxu0 0.0
  %4710 = vmatpush1.msra.mxu0 0.0
  %4711 = vmatprep.subr.mxu0 0.0
  %4712 = vmatpush1.msra.mxu0 0.0
  %4713 = vmatprep.subr.mxu0 0.0
  %4714 = vmatpush1.msra.mxu0 0.0
  %4715 = vmatprep.subr.mxu0 0.0
  %4716 = vmatpush1.msra.mxu0 0.0
  %4717 = vmatprep.subr.mxu0 0.0
  %4718 = vmatpush1.msra.mxu0 0.0
  %4719 = vmatprep.subr.mxu0 0.0
  %4720 = vmatpush1.msra.mxu0 0.0
  %4721 = vmatprep.subr.mxu0 0.0
  %4722 = vmatpush1.msra.mxu0 0.0
  %4723 = vmatprep.subr.mxu0 0.0
  %4724 = vmatpush1.msra.mxu0 0.0
  %4725 = vmatprep.subr.mxu0 0.0
  %4726 = vmatpush1.msra.mxu0 0.0
  %4727 = vmatprep.subr.mxu0 0.0
  %4728 = vmatpush1.msra.mxu0 0.0
  %4729 = vmatprep.subr.mxu0 0.0
  %4730 = vmatpush1.msra.mxu0 0.0
  %4731 = vmatprep.subr.mxu0 0.0
  %4732 = vmatpush1.msra.mxu0 0.0
  %4733 = vmatprep.subr.mxu0 0.0
  %4734 = vmatpush1.msra.mxu0 0.0
  %4735 = vmatprep.subr.mxu0 0.0
  %4736 = vmatpush1.msra.mxu0 0.0
  %4737 = vmatprep.subr.mxu0 0.0
  %4738 = vmatpush1.msra.mxu0 0.0
  %4739 = vmatprep.subr.mxu0 0.0
  %4740 = vmatpush1.msra.mxu0 0.0
  %4741 = vmatprep.subr.mxu0 0.0
  %4742 = vmatpush1.msra.mxu0 0.0
  %4743 = vmatprep.subr.mxu0 0.0
  %4744 = vmatpush1.msra.mxu0 0.0
  %4745 = vmatprep.subr.mxu0 0.0
  %4746 = vmatpush1.msra.mxu0 0.0
  %4747 = vmatprep.subr.mxu0 0.0
  %4748 = vmatpush1.msra.mxu0 0.0
  %4749 = vmatprep.subr.mxu0 0.0
  %4750 = vmatpush1.msra.mxu0 0.0
  %4751 = vmatprep.mubr.f32.mxu0 0.0
  %4752 = vmatmul.mubr.f32.gmra.mrb[0].mxu0 %v4685
  %v4753 = vpop.f32.mrb[0].mxu0
  %v4754 = vadd.f32 0.0, %v4753
  %v4755 = vpop.f32.mrb[0].mxu0
  %4756 = vdwg.mxu0
  %4757 = vrot.lane.b32.xlu0 %v3536, 112
  %v4758 = vpop.permute.xlu0 %4757
  %v4761 = vsel %vm896, %v4449, 0
  %4763 = vmatprep.subr.mxu0 0.0
  %4764 = vmatpush1.msra.mxu0 %v4758
  %4765 = vmatprep.subr.mxu0 0.0
  %4766 = vmatpush1.msra.mxu0 0.0
  %4767 = vmatprep.subr.mxu0 0.0
  %4768 = vmatpush1.msra.mxu0 0.0
  %4769 = vmatprep.subr.mxu0 0.0
  %4770 = vmatpush1.msra.mxu0 0.0
  %4771 = vmatprep.subr.mxu0 0.0
  %4772 = vmatpush1.msra.mxu0 0.0
  %4773 = vmatprep.subr.mxu0 0.0
  %4774 = vmatpush1.msra.mxu0 0.0
  %4775 = vmatprep.subr.mxu0 0.0
  %4776 = vmatpush1.msra.mxu0 0.0
  %4777 = vmatprep.subr.mxu0 0.0
  %4778 = vmatpush1.msra.mxu0 0.0
  %4779 = vmatprep.subr.mxu0 0.0
  %4780 = vmatpush1.msra.mxu0 0.0
  %4781 = vmatprep.subr.mxu0 0.0
  %4782 = vmatpush1.msra.mxu0 0.0
  %4783 = vmatprep.subr.mxu0 0.0
  %4784 = vmatpush1.msra.mxu0 0.0
  %4785 = vmatprep.subr.mxu0 0.0
  %4786 = vmatpush1.msra.mxu0 0.0
  %4787 = vmatprep.subr.mxu0 0.0
  %4788 = vmatpush1.msra.mxu0 0.0
  %4789 = vmatprep.subr.mxu0 0.0
  %4790 = vmatpush1.msra.mxu0 0.0
  %4791 = vmatprep.subr.mxu0 0.0
  %4792 = vmatpush1.msra.mxu0 0.0
  %4793 = vmatprep.subr.mxu0 0.0
  %4794 = vmatpush1.msra.mxu0 0.0
  %4795 = vmatprep.subr.mxu0 0.0
  %4796 = vmatpush1.msra.mxu0 0.0
  %4797 = vmatprep.subr.mxu0 0.0
  %4798 = vmatpush1.msra.mxu0 0.0
  %4799 = vmatprep.subr.mxu0 0.0
  %4800 = vmatpush1.msra.mxu0 0.0
  %4801 = vmatprep.subr.mxu0 0.0
  %4802 = vmatpush1.msra.mxu0 0.0
  %4803 = vmatprep.subr.mxu0 0.0
  %4804 = vmatpush1.msra.mxu0 0.0
  %4805 = vmatprep.subr.mxu0 0.0
  %4806 = vmatpush1.msra.mxu0 0.0
  %4807 = vmatprep.subr.mxu0 0.0
  %4808 = vmatpush1.msra.mxu0 0.0
  %4809 = vmatprep.subr.mxu0 0.0
  %4810 = vmatpush1.msra.mxu0 0.0
  %4811 = vmatprep.subr.mxu0 0.0
  %4812 = vmatpush1.msra.mxu0 0.0
  %4813 = vmatprep.subr.mxu0 0.0
  %4814 = vmatpush1.msra.mxu0 0.0
  %4815 = vmatprep.subr.mxu0 0.0
  %4816 = vmatpush1.msra.mxu0 0.0
  %4817 = vmatprep.subr.mxu0 0.0
  %4818 = vmatpush1.msra.mxu0 0.0
  %4819 = vmatprep.subr.mxu0 0.0
  %4820 = vmatpush1.msra.mxu0 0.0
  %4821 = vmatprep.subr.mxu0 0.0
  %4822 = vmatpush1.msra.mxu0 0.0
  %4823 = vmatprep.subr.mxu0 0.0
  %4824 = vmatpush1.msra.mxu0 0.0
  %4825 = vmatprep.subr.mxu0 0.0
  %4826 = vmatpush1.msra.mxu0 0.0
  %4827 = vmatprep.mubr.f32.mxu0 0.0
  %4828 = vmatmul.mubr.f32.gmra.mrb[0].mxu0 %v4761
  %v4829 = vpop.f32.mrb[0].mxu0
  %v4830 = vadd.f32 0.0, %v4829
  %v4831 = vpop.f32.mrb[0].mxu0
  %4832 = vdwg.mxu0
  %4833 = vrot.lane.b32.xlu0 %v3606, 112
  %v4834 = vpop.permute.xlu0 %4833
  %v4837 = vsel %vm896, %v4450, 0
  %4839 = vmatprep.subr.mxu0 0.0
  %4840 = vmatpush1.msra.mxu0 %v4834
  %4841 = vmatprep.subr.mxu0 0.0
  %4842 = vmatpush1.msra.mxu0 0.0
  %4843 = vmatprep.subr.mxu0 0.0
  %4844 = vmatpush1.msra.mxu0 0.0
  %4845 = vmatprep.subr.mxu0 0.0
  %4846 = vmatpush1.msra.mxu0 0.0
  %4847 = vmatprep.subr.mxu0 0.0
  %4848 = vmatpush1.msra.mxu0 0.0
  %4849 = vmatprep.subr.mxu0 0.0
  %4850 = vmatpush1.msra.mxu0 0.0
  %4851 = vmatprep.subr.mxu0 0.0
  %4852 = vmatpush1.msra.mxu0 0.0
  %4853 = vmatprep.subr.mxu0 0.0
  %4854 = vmatpush1.msra.mxu0 0.0
  %4855 = vmatprep.subr.mxu0 0.0
  %4856 = vmatpush1.msra.mxu0 0.0
  %4857 = vmatprep.subr.mxu0 0.0
  %4858 = vmatpush1.msra.mxu0 0.0
  %4859 = vmatprep.subr.mxu0 0.0
  %4860 = vmatpush1.msra.mxu0 0.0
  %4861 = vmatprep.subr.mxu0 0.0
  %4862 = vmatpush1.msra.mxu0 0.0
  %4863 = vmatprep.subr.mxu0 0.0
  %4864 = vmatpush1.msra.mxu0 0.0
  %4865 = vmatprep.subr.mxu0 0.0
  %4866 = vmatpush1.msra.mxu0 0.0
  %4867 = vmatprep.subr.mxu0 0.0
  %4868 = vmatpush1.msra.mxu0 0.0
  %4869 = vmatprep.subr.mxu0 0.0
  %4870 = vmatpush1.msra.mxu0 0.0
  %4871 = vmatprep.subr.mxu0 0.0
  %4872 = vmatpush1.msra.mxu0 0.0
  %4873 = vmatprep.subr.mxu0 0.0
  %4874 = vmatpush1.msra.mxu0 0.0
  %4875 = vmatprep.subr.mxu0 0.0
  %4876 = vmatpush1.msra.mxu0 0.0
  %4877 = vmatprep.subr.mxu0 0.0
  %4878 = vmatpush1.msra.mxu0 0.0
  %4879 = vmatprep.subr.mxu0 0.0
  %4880 = vmatpush1.msra.mxu0 0.0
  %4881 = vmatprep.subr.mxu0 0.0
  %4882 = vmatpush1.msra.mxu0 0.0
  %4883 = vmatprep.subr.mxu0 0.0
  %4884 = vmatpush1.msra.mxu0 0.0
  %4885 = vmatprep.subr.mxu0 0.0
  %4886 = vmatpush1.msra.mxu0 0.0
  %4887 = vmatprep.subr.mxu0 0.0
  %4888 = vmatpush1.msra.mxu0 0.0
  %4889 = vmatprep.subr.mxu0 0.0
  %4890 = vmatpush1.msra.mxu0 0.0
  %4891 = vmatprep.subr.mxu0 0.0
  %4892 = vmatpush1.msra.mxu0 0.0
  %4893 = vmatprep.subr.mxu0 0.0
  %4894 = vmatpush1.msra.mxu0 0.0
  %4895 = vmatprep.subr.mxu0 0.0
  %4896 = vmatpush1.msra.mxu0 0.0
  %4897 = vmatprep.subr.mxu0 0.0
  %4898 = vmatpush1.msra.mxu0 0.0
  %4899 = vmatprep.subr.mxu0 0.0
  %4900 = vmatpush1.msra.mxu0 0.0
  %4901 = vmatprep.subr.mxu0 0.0
  %4902 = vmatpush1.msra.mxu0 0.0
  %4903 = vmatprep.mubr.f32.mxu0 0.0
  %4904 = vmatmul.mubr.f32.gmra.mrb[0].mxu0 %v4837
  %v4905 = vpop.f32.mrb[0].mxu0
  %v4906 = vadd.f32 0.0, %v4905
  %v4907 = vpop.f32.mrb[0].mxu0
  %4908 = vdwg.mxu0
  %4909 = vrot.lane.b32.xlu0 %v3676, 112
  %v4910 = vpop.permute.xlu0 %4909
  %v4913 = vsel %vm896, %v4451, 0
  %4915 = vmatprep.subr.mxu0 0.0
  %4916 = vmatpush1.msra.mxu0 %v4910
  %4917 = vmatprep.subr.mxu0 0.0
  %4918 = vmatpush1.msra.mxu0 0.0
  %4919 = vmatprep.subr.mxu0 0.0
  %4920 = vmatpush1.msra.mxu0 0.0
  %4921 = vmatprep.subr.mxu0 0.0
  %4922 = vmatpush1.msra.mxu0 0.0
  %4923 = vmatprep.subr.mxu0 0.0
  %4924 = vmatpush1.msra.mxu0 0.0
  %4925 = vmatprep.subr.mxu0 0.0
  %4926 = vmatpush1.msra.mxu0 0.0
  %4927 = vmatprep.subr.mxu0 0.0
  %4928 = vmatpush1.msra.mxu0 0.0
  %4929 = vmatprep.subr.mxu0 0.0
  %4930 = vmatpush1.msra.mxu0 0.0
  %4931 = vmatprep.subr.mxu0 0.0
  %4932 = vmatpush1.msra.mxu0 0.0
  %4933 = vmatprep.subr.mxu0 0.0
  %4934 = vmatpush1.msra.mxu0 0.0
  %4935 = vmatprep.subr.mxu0 0.0
  %4936 = vmatpush1.msra.mxu0 0.0
  %4937 = vmatprep.subr.mxu0 0.0
  %4938 = vmatpush1.msra.mxu0 0.0
  %4939 = vmatprep.subr.mxu0 0.0
  %4940 = vmatpush1.msra.mxu0 0.0
  %4941 = vmatprep.subr.mxu0 0.0
  %4942 = vmatpush1.msra.mxu0 0.0
  %4943 = vmatprep.subr.mxu0 0.0
  %4944 = vmatpush1.msra.mxu0 0.0
  %4945 = vmatprep.subr.mxu0 0.0
  %4946 = vmatpush1.msra.mxu0 0.0
  %4947 = vmatprep.subr.mxu0 0.0
  %4948 = vmatpush1.msra.mxu0 0.0
  %4949 = vmatprep.subr.mxu0 0.0
  %4950 = vmatpush1.msra.mxu0 0.0
  %4951 = vmatprep.subr.mxu0 0.0
  %4952 = vmatpush1.msra.mxu0 0.0
  %4953 = vmatprep.subr.mxu0 0.0
  %4954 = vmatpush1.msra.mxu0 0.0
  %4955 = vmatprep.subr.mxu0 0.0
  %4956 = vmatpush1.msra.mxu0 0.0
  %4957 = vmatprep.subr.mxu0 0.0
  %4958 = vmatpush1.msra.mxu0 0.0
  %4959 = vmatprep.subr.mxu0 0.0
  %4960 = vmatpush1.msra.mxu0 0.0
  %4961 = vmatprep.subr.mxu0 0.0
  %4962 = vmatpush1.msra.mxu0 0.0
  %4963 = vmatprep.subr.mxu0 0.0
  %4964 = vmatpush1.msra.mxu0 0.0
  %4965 = vmatprep.subr.mxu0 0.0
  %4966 = vmatpush1.msra.mxu0 0.0
  %4967 = vmatprep.subr.mxu0 0.0
  %4968 = vmatpush1.msra.mxu0 0.0
  %4969 = vmatprep.subr.mxu0 0.0
  %4970 = vmatpush1.msra.mxu0 0.0
  %4971 = vmatprep.subr.mxu0 0.0
  %4972 = vmatpush1.msra.mxu0 0.0
  %4973 = vmatprep.subr.mxu0 0.0
  %4974 = vmatpush1.msra.mxu0 0.0
  %4975 = vmatprep.subr.mxu0 0.0
  %4976 = vmatpush1.msra.mxu0 0.0
  %4977 = vmatprep.subr.mxu0 0.0
  %4978 = vmatpush1.msra.mxu0 0.0
  %4979 = vmatprep.mubr.f32.mxu0 0.0
  %4980 = vmatmul.mubr.f32.gmra.mrb[0].mxu0 %v4913
  %v4981 = vpop.f32.mrb[0].mxu0
  %v4982 = vadd.f32 0.0, %v4981
  %v4983 = vpop.f32.mrb[0].mxu0
  %4984 = vdwg.mxu0
  %4985 = vrot.lane.b32.xlu0 %v3746, 112
  %v4986 = vpop.permute.xlu0 %4985
  %v4989 = vsel %vm896, %v4452, 0
  %4991 = vmatprep.subr.mxu0 0.0
  %4992 = vmatpush1.msra.mxu0 %v4986
  %4993 = vmatprep.subr.mxu0 0.0
  %4994 = vmatpush1.msra.mxu0 0.0
  %4995 = vmatprep.subr.mxu0 0.0
  %4996 = vmatpush1.msra.mxu0 0.0
  %4997 = vmatprep.subr.mxu0 0.0
  %4998 = vmatpush1.msra.mxu0 0.0
  %4999 = vmatprep.subr.mxu0 0.0
  %5000 = vmatpush1.msra.mxu0 0.0
  %5001 = vmatprep.subr.mxu0 0.0
  %5002 = vmatpush1.msra.mxu0 0.0
  %5003 = vmatprep.subr.mxu0 0.0
  %5004 = vmatpush1.msra.mxu0 0.0
  %5005 = vmatprep.subr.mxu0 0.0
  %5006 = vmatpush1.msra.mxu0 0.0
  %5007 = vmatprep.subr.mxu0 0.0
  %5008 = vmatpush1.msra.mxu0 0.0
  %5009 = vmatprep.subr.mxu0 0.0
  %5010 = vmatpush1.msra.mxu0 0.0
  %5011 = vmatprep.subr.mxu0 0.0
  %5012 = vmatpush1.msra.mxu0 0.0
  %5013 = vmatprep.subr.mxu0 0.0
  %5014 = vmatpush1.msra.mxu0 0.0
  %5015 = vmatprep.subr.mxu0 0.0
  %5016 = vmatpush1.msra.mxu0 0.0
  %5017 = vmatprep.subr.mxu0 0.0
  %5018 = vmatpush1.msra.mxu0 0.0
  %5019 = vmatprep.subr.mxu0 0.0
  %5020 = vmatpush1.msra.mxu0 0.0
  %5021 = vmatprep.subr.mxu0 0.0
  %5022 = vmatpush1.msra.mxu0 0.0
  %5023 = vmatprep.subr.mxu0 0.0
  %5024 = vmatpush1.msra.mxu0 0.0
  %5025 = vmatprep.subr.mxu0 0.0
  %5026 = vmatpush1.msra.mxu0 0.0
  %5027 = vmatprep.subr.mxu0 0.0
  %5028 = vmatpush1.msra.mxu0 0.0
  %5029 = vmatprep.subr.mxu0 0.0
  %5030 = vmatpush1.msra.mxu0 0.0
  %5031 = vmatprep.subr.mxu0 0.0
  %5032 = vmatpush1.msra.mxu0 0.0
  %5033 = vmatprep.subr.mxu0 0.0
  %5034 = vmatpush1.msra.mxu0 0.0
  %5035 = vmatprep.subr.mxu0 0.0
  %5036 = vmatpush1.msra.mxu0 0.0
  %5037 = vmatprep.subr.mxu0 0.0
  %5038 = vmatpush1.msra.mxu0 0.0
  %5039 = vmatprep.subr.mxu0 0.0
  %5040 = vmatpush1.msra.mxu0 0.0
  %5041 = vmatprep.subr.mxu0 0.0
  %5042 = vmatpush1.msra.mxu0 0.0
  %5043 = vmatprep.subr.mxu0 0.0
  %5044 = vmatpush1.msra.mxu0 0.0
  %5045 = vmatprep.subr.mxu0 0.0
  %5046 = vmatpush1.msra.mxu0 0.0
  %5047 = vmatprep.subr.mxu0 0.0
  %5048 = vmatpush1.msra.mxu0 0.0
  %5049 = vmatprep.subr.mxu0 0.0
  %5050 = vmatpush1.msra.mxu0 0.0
  %5051 = vmatprep.subr.mxu0 0.0
  %5052 = vmatpush1.msra.mxu0 0.0
  %5053 = vmatprep.subr.mxu0 0.0
  %5054 = vmatpush1.msra.mxu0 0.0
  %5055 = vmatprep.mubr.f32.mxu0 0.0
  %5056 = vmatmul.mubr.f32.gmra.mrb[0].mxu0 %v4989
  %v5057 = vpop.f32.mrb[0].mxu0
  %v5058 = vadd.f32 0.0, %v5057
  %v5059 = vpop.f32.mrb[0].mxu0
  %5060 = vdwg.mxu0
  %v5062 = vsel %vm896, %v4526, 0
  %5064 = vmatprep.subr.mxu0 0.0
  %5065 = vmatpush1.msra.mxu0 %v3127
  %5066 = vmatprep.subr.mxu0 0.0
  %5067 = vmatpush1.msra.mxu0 0.0
  %5068 = vmatprep.subr.mxu0 0.0
  %5069 = vmatpush1.msra.mxu0 0.0
  %5070 = vmatprep.subr.mxu0 0.0
  %5071 = vmatpush1.msra.mxu0 0.0
  %5072 = vmatprep.subr.mxu0 0.0
  %5073 = vmatpush1.msra.mxu0 0.0
  %5074 = vmatprep.subr.mxu0 0.0
  %5075 = vmatpush1.msra.mxu0 0.0
  %5076 = vmatprep.subr.mxu0 0.0
  %5077 = vmatpush1.msra.mxu0 0.0
  %5078 = vmatprep.subr.mxu0 0.0
  %5079 = vmatpush1.msra.mxu0 0.0
  %5080 = vmatprep.subr.mxu0 0.0
  %5081 = vmatpush1.msra.mxu0 0.0
  %5082 = vmatprep.subr.mxu0 0.0
  %5083 = vmatpush1.msra.mxu0 0.0
  %5084 = vmatprep.subr.mxu0 0.0
  %5085 = vmatpush1.msra.mxu0 0.0
  %5086 = vmatprep.subr.mxu0 0.0
  %5087 = vmatpush1.msra.mxu0 0.0
  %5088 = vmatprep.subr.mxu0 0.0
  %5089 = vmatpush1.msra.mxu0 0.0
  %5090 = vmatprep.subr.mxu0 0.0
  %5091 = vmatpush1.msra.mxu0 0.0
  %5092 = vmatprep.subr.mxu0 0.0
  %5093 = vmatpush1.msra.mxu0 0.0
  %5094 = vmatprep.subr.mxu0 0.0
  %5095 = vmatpush1.msra.mxu0 0.0
  %5096 = vmatprep.subr.mxu0 0.0
  %5097 = vmatpush1.msra.mxu0 0.0
  %5098 = vmatprep.subr.mxu0 0.0
  %5099 = vmatpush1.msra.mxu0 0.0
  %5100 = vmatprep.subr.mxu0 0.0
  %5101 = vmatpush1.msra.mxu0 0.0
  %5102 = vmatprep.subr.mxu0 0.0
  %5103 = vmatpush1.msra.mxu0 0.0
  %5104 = vmatprep.subr.mxu0 0.0
  %5105 = vmatpush1.msra.mxu0 0.0
  %5106 = vmatprep.subr.mxu0 0.0
  %5107 = vmatpush1.msra.mxu0 0.0
  %5108 = vmatprep.subr.mxu0 0.0
  %5109 = vmatpush1.msra.mxu0 0.0
  %5110 = vmatprep.subr.mxu0 0.0
  %5111 = vmatpush1.msra.mxu0 0.0
  %5112 = vmatprep.subr.mxu0 0.0
  %5113 = vmatpush1.msra.mxu0 0.0
  %5114 = vmatprep.subr.mxu0 0.0
  %5115 = vmatpush1.msra.mxu0 0.0
  %5116 = vmatprep.subr.mxu0 0.0
  %5117 = vmatpush1.msra.mxu0 0.0
  %5118 = vmatprep.subr.mxu0 0.0
  %5119 = vmatpush1.msra.mxu0 0.0
  %5120 = vmatprep.subr.mxu0 0.0
  %5121 = vmatpush1.msra.mxu0 0.0
  %5122 = vmatprep.subr.mxu0 0.0
  %5123 = vmatpush1.msra.mxu0 0.0
  %5124 = vmatprep.subr.mxu0 0.0
  %5125 = vmatpush1.msra.mxu0 0.0
  %5126 = vmatprep.subr.mxu0 0.0
  %5127 = vmatpush1.msra.mxu0 0.0
  %5128 = vmatprep.mubr.f32.mxu0 0.0
  %5129 = vmatmul.mubr.f32.gmra.mrb[0].mxu0 %v5062
  %v5130 = vpop.f32.mrb[0].mxu0
  %v5131 = vadd.f32 0.0, %v5130
  %v5132 = vpop.f32.mrb[0].mxu0
  %5133 = vdwg.mxu0
  %v5135 = vsel %vm896, %v4602, 0
  %5137 = vmatprep.subr.mxu0 0.0
  %5138 = vmatpush1.msra.mxu0 %v3128
  %5139 = vmatprep.subr.mxu0 0.0
  %5140 = vmatpush1.msra.mxu0 0.0
  %5141 = vmatprep.subr.mxu0 0.0
  %5142 = vmatpush1.msra.mxu0 0.0
  %5143 = vmatprep.subr.mxu0 0.0
  %5144 = vmatpush1.msra.mxu0 0.0
  %5145 = vmatprep.subr.mxu0 0.0
  %5146 = vmatpush1.msra.mxu0 0.0
  %5147 = vmatprep.subr.mxu0 0.0
  %5148 = vmatpush1.msra.mxu0 0.0
  %5149 = vmatprep.subr.mxu0 0.0
  %5150 = vmatpush1.msra.mxu0 0.0
  %5151 = vmatprep.subr.mxu0 0.0
  %5152 = vmatpush1.msra.mxu0 0.0
  %5153 = vmatprep.subr.mxu0 0.0
  %5154 = vmatpush1.msra.mxu0 0.0
  %5155 = vmatprep.subr.mxu0 0.0
  %5156 = vmatpush1.msra.mxu0 0.0
  %5157 = vmatprep.subr.mxu0 0.0
  %5158 = vmatpush1.msra.mxu0 0.0
  %5159 = vmatprep.subr.mxu0 0.0
  %5160 = vmatpush1.msra.mxu0 0.0
  %5161 = vmatprep.subr.mxu0 0.0
  %5162 = vmatpush1.msra.mxu0 0.0
  %5163 = vmatprep.subr.mxu0 0.0
  %5164 = vmatpush1.msra.mxu0 0.0
  %5165 = vmatprep.subr.mxu0 0.0
  %5166 = vmatpush1.msra.mxu0 0.0
  %5167 = vmatprep.subr.mxu0 0.0
  %5168 = vmatpush1.msra.mxu0 0.0
  %5169 = vmatprep.subr.mxu0 0.0
  %5170 = vmatpush1.msra.mxu0 0.0
  %5171 = vmatprep.subr.mxu0 0.0
  %5172 = vmatpush1.msra.mxu0 0.0
  %5173 = vmatprep.subr.mxu0 0.0
  %5174 = vmatpush1.msra.mxu0 0.0
  %5175 = vmatprep.subr.mxu0 0.0
  %5176 = vmatpush1.msra.mxu0 0.0
  %5177 = vmatprep.subr.mxu0 0.0
  %5178 = vmatpush1.msra.mxu0 0.0
  %5179 = vmatprep.subr.mxu0 0.0
  %5180 = vmatpush1.msra.mxu0 0.0
  %5181 = vmatprep.subr.mxu0 0.0
  %5182 = vmatpush1.msra.mxu0 0.0
  %5183 = vmatprep.subr.mxu0 0.0
  %5184 = vmatpush1.msra.mxu0 0.0
  %5185 = vmatprep.subr.mxu0 0.0
  %5186 = vmatpush1.msra.mxu0 0.0
  %5187 = vmatprep.subr.mxu0 0.0
  %5188 = vmatpush1.msra.mxu0 0.0
  %5189 = vmatprep.subr.mxu0 0.0
  %5190 = vmatpush1.msra.mxu0 0.0
  %5191 = vmatprep.subr.mxu0 0.0
  %5192 = vmatpush1.msra.mxu0 0.0
  %5193 = vmatprep.subr.mxu0 0.0
  %5194 = vmatpush1.msra.mxu0 0.0
  %5195 = vmatprep.subr.mxu0 0.0
  %5196 = vmatpush1.msra.mxu0 0.0
  %5197 = vmatprep.subr.mxu0 0.0
  %5198 = vmatpush1.msra.mxu0 0.0
  %5199 = vmatprep.subr.mxu0 0.0
  %5200 = vmatpush1.msra.mxu0 0.0
  %5201 = vmatprep.mubr.f32.mxu0 0.0
  %5202 = vmatmul.mubr.f32.gmra.mrb[0].mxu0 %v5135
  %v5203 = vpop.f32.mrb[0].mxu0
  %v5204 = vadd.f32 0.0, %v5203
  %v5205 = vpop.f32.mrb[0].mxu0
  %5206 = vdwg.mxu0
  %v5208 = vsel %vm896, %v4678, 0
  %5210 = vmatprep.subr.mxu0 0.0
  %5211 = vmatpush1.msra.mxu0 %v3129
  %5212 = vmatprep.subr.mxu0 0.0
  %5213 = vmatpush1.msra.mxu0 0.0
  %5214 = vmatprep.subr.mxu0 0.0
  %5215 = vmatpush1.msra.mxu0 0.0
  %5216 = vmatprep.subr.mxu0 0.0
  %5217 = vmatpush1.msra.mxu0 0.0
  %5218 = vmatprep.subr.mxu0 0.0
  %5219 = vmatpush1.msra.mxu0 0.0
  %5220 = vmatprep.subr.mxu0 0.0
  %5221 = vmatpush1.msra.mxu0 0.0
  %5222 = vmatprep.subr.mxu0 0.0
  %5223 = vmatpush1.msra.mxu0 0.0
  %5224 = vmatprep.subr.mxu0 0.0
  %5225 = vmatpush1.msra.mxu0 0.0
  %5226 = vmatprep.subr.mxu0 0.0
  %5227 = vmatpush1.msra.mxu0 0.0
  %5228 = vmatprep.subr.mxu0 0.0
  %5229 = vmatpush1.msra.mxu0 0.0
  %5230 = vmatprep.subr.mxu0 0.0
  %5231 = vmatpush1.msra.mxu0 0.0
  %5232 = vmatprep.subr.mxu0 0.0
  %5233 = vmatpush1.msra.mxu0 0.0
  %5234 = vmatprep.subr.mxu0 0.0
  %5235 = vmatpush1.msra.mxu0 0.0
  %5236 = vmatprep.subr.mxu0 0.0
  %5237 = vmatpush1.msra.mxu0 0.0
  %5238 = vmatprep.subr.mxu0 0.0
  %5239 = vmatpush1.msra.mxu0 0.0
  %5240 = vmatprep.subr.mxu0 0.0
  %5241 = vmatpush1.msra.mxu0 0.0
  %5242 = vmatprep.subr.mxu0 0.0
  %5243 = vmatpush1.msra.mxu0 0.0
  %5244 = vmatprep.subr.mxu0 0.0
  %5245 = vmatpush1.msra.mxu0 0.0
  %5246 = vmatprep.subr.mxu0 0.0
  %5247 = vmatpush1.msra.mxu0 0.0
  %5248 = vmatprep.subr.mxu0 0.0
  %5249 = vmatpush1.msra.mxu0 0.0
  %5250 = vmatprep.subr.mxu0 0.0
  %5251 = vmatpush1.msra.mxu0 0.0
  %5252 = vmatprep.subr.mxu0 0.0
  %5253 = vmatpush1.msra.mxu0 0.0
  %5254 = vmatprep.subr.mxu0 0.0
  %5255 = vmatpush1.msra.mxu0 0.0
  %5256 = vmatprep.subr.mxu0 0.0
  %5257 = vmatpush1.msra.mxu0 0.0
  %5258 = vmatprep.subr.mxu0 0.0
  %5259 = vmatpush1.msra.mxu0 0.0
  %5260 = vmatprep.subr.mxu0 0.0
  %5261 = vmatpush1.msra.mxu0 0.0
  %5262 = vmatprep.subr.mxu0 0.0
  %5263 = vmatpush1.msra.mxu0 0.0
  %5264 = vmatprep.subr.mxu0 0.0
  %5265 = vmatpush1.msra.mxu0 0.0
  %5266 = vmatprep.subr.mxu0 0.0
  %5267 = vmatpush1.msra.mxu0 0.0
  %5268 = vmatprep.subr.mxu0 0.0
  %5269 = vmatpush1.msra.mxu0 0.0
  %5270 = vmatprep.subr.mxu0 0.0
  %5271 = vmatpush1.msra.mxu0 0.0
  %5272 = vmatprep.subr.mxu0 0.0
  %5273 = vmatpush1.msra.mxu0 0.0
  %5274 = vmatprep.mubr.f32.mxu0 0.0
  %5275 = vmatmul.mubr.f32.gmra.mrb[0].mxu0 %v5208
  %v5276 = vpop.f32.mrb[0].mxu0
  %v5277 = vadd.f32 0.0, %v5276
  %v5278 = vpop.f32.mrb[0].mxu0
  %5279 = vdwg.mxu0
  %v5281 = vsel %vm896, %v4754, 0
  %5283 = vmatprep.subr.mxu0 0.0
  %5284 = vmatpush1.msra.mxu0 %v3130
  %5285 = vmatprep.subr.mxu0 0.0
  %5286 = vmatpush1.msra.mxu0 0.0
  %5287 = vmatprep.subr.mxu0 0.0
  %5288 = vmatpush1.msra.mxu0 0.0
  %5289 = vmatprep.subr.mxu0 0.0
  %5290 = vmatpush1.msra.mxu0 0.0
  %5291 = vmatprep.subr.mxu0 0.0
  %5292 = vmatpush1.msra.mxu0 0.0
  %5293 = vmatprep.subr.mxu0 0.0
  %5294 = vmatpush1.msra.mxu0 0.0
  %5295 = vmatprep.subr.mxu0 0.0
  %5296 = vmatpush1.msra.mxu0 0.0
  %5297 = vmatprep.subr.mxu0 0.0
  %5298 = vmatpush1.msra.mxu0 0.0
  %5299 = vmatprep.subr.mxu0 0.0
  %5300 = vmatpush1.msra.mxu0 0.0
  %5301 = vmatprep.subr.mxu0 0.0
  %5302 = vmatpush1.msra.mxu0 0.0
  %5303 = vmatprep.subr.mxu0 0.0
  %5304 = vmatpush1.msra.mxu0 0.0
  %5305 = vmatprep.subr.mxu0 0.0
  %5306 = vmatpush1.msra.mxu0 0.0
  %5307 = vmatprep.subr.mxu0 0.0
  %5308 = vmatpush1.msra.mxu0 0.0
  %5309 = vmatprep.subr.mxu0 0.0
  %5310 = vmatpush1.msra.mxu0 0.0
  %5311 = vmatprep.subr.mxu0 0.0
  %5312 = vmatpush1.msra.mxu0 0.0
  %5313 = vmatprep.subr.mxu0 0.0
  %5314 = vmatpush1.msra.mxu0 0.0
  %5315 = vmatprep.subr.mxu0 0.0
  %5316 = vmatpush1.msra.mxu0 0.0
  %5317 = vmatprep.subr.mxu0 0.0
  %5318 = vmatpush1.msra.mxu0 0.0
  %5319 = vmatprep.subr.mxu0 0.0
  %5320 = vmatpush1.msra.mxu0 0.0
  %5321 = vmatprep.subr.mxu0 0.0
  %5322 = vmatpush1.msra.mxu0 0.0
  %5323 = vmatprep.subr.mxu0 0.0
  %5324 = vmatpush1.msra.mxu0 0.0
  %5325 = vmatprep.subr.mxu0 0.0
  %5326 = vmatpush1.msra.mxu0 0.0
  %5327 = vmatprep.subr.mxu0 0.0
  %5328 = vmatpush1.msra.mxu0 0.0
  %5329 = vmatprep.subr.mxu0 0.0
  %5330 = vmatpush1.msra.mxu0 0.0
  %5331 = vmatprep.subr.mxu0 0.0
  %5332 = vmatpush1.msra.mxu0 0.0
  %5333 = vmatprep.subr.mxu0 0.0
  %5334 = vmatpush1.msra.mxu0 0.0
  %5335 = vmatprep.subr.mxu0 0.0
  %5336 = vmatpush1.msra.mxu0 0.0
  %5337 = vmatprep.subr.mxu0 0.0
  %5338 = vmatpush1.msra.mxu0 0.0
  %5339 = vmatprep.subr.mxu0 0.0
  %5340 = vmatpush1.msra.mxu0 0.0
  %5341 = vmatprep.subr.mxu0 0.0
  %5342 = vmatpush1.msra.mxu0 0.0
  %5343 = vmatprep.subr.mxu0 0.0
  %5344 = vmatpush1.msra.mxu0 0.0
  %5345 = vmatprep.subr.mxu0 0.0
  %5346 = vmatpush1.msra.mxu0 0.0
  %5347 = vmatprep.mubr.f32.mxu0 0.0
  %5348 = vmatmul.mubr.f32.gmra.mrb[0].mxu0 %v5281
  %v5349 = vpop.f32.mrb[0].mxu0
  %v5350 = vadd.f32 0.0, %v5349
  %v5351 = vpop.f32.mrb[0].mxu0
  %5352 = vdwg.mxu0
  %v5354 = vsel %vm896, %v4830, 0
  %5356 = vmatprep.subr.mxu0 0.0
  %5357 = vmatpush1.msra.mxu0 %v3131
  %5358 = vmatprep.subr.mxu0 0.0
  %5359 = vmatpush1.msra.mxu0 0.0
  %5360 = vmatprep.subr.mxu0 0.0
  %5361 = vmatpush1.msra.mxu0 0.0
  %5362 = vmatprep.subr.mxu0 0.0
  %5363 = vmatpush1.msra.mxu0 0.0
  %5364 = vmatprep.subr.mxu0 0.0
  %5365 = vmatpush1.msra.mxu0 0.0
  %5366 = vmatprep.subr.mxu0 0.0
  %5367 = vmatpush1.msra.mxu0 0.0
  %5368 = vmatprep.subr.mxu0 0.0
  %5369 = vmatpush1.msra.mxu0 0.0
  %5370 = vmatprep.subr.mxu0 0.0
  %5371 = vmatpush1.msra.mxu0 0.0
  %5372 = vmatprep.subr.mxu0 0.0
  %5373 = vmatpush1.msra.mxu0 0.0
  %5374 = vmatprep.subr.mxu0 0.0
  %5375 = vmatpush1.msra.mxu0 0.0
  %5376 = vmatprep.subr.mxu0 0.0
  %5377 = vmatpush1.msra.mxu0 0.0
  %5378 = vmatprep.subr.mxu0 0.0
  %5379 = vmatpush1.msra.mxu0 0.0
  %5380 = vmatprep.subr.mxu0 0.0
  %5381 = vmatpush1.msra.mxu0 0.0
  %5382 = vmatprep.subr.mxu0 0.0
  %5383 = vmatpush1.msra.mxu0 0.0
  %5384 = vmatprep.subr.mxu0 0.0
  %5385 = vmatpush1.msra.mxu0 0.0
  %5386 = vmatprep.subr.mxu0 0.0
  %5387 = vmatpush1.msra.mxu0 0.0
  %5388 = vmatprep.subr.mxu0 0.0
  %5389 = vmatpush1.msra.mxu0 0.0
  %5390 = vmatprep.subr.mxu0 0.0
  %5391 = vmatpush1.msra.mxu0 0.0
  %5392 = vmatprep.subr.mxu0 0.0
  %5393 = vmatpush1.msra.mxu0 0.0
  %5394 = vmatprep.subr.mxu0 0.0
  %5395 = vmatpush1.msra.mxu0 0.0
  %5396 = vmatprep.subr.mxu0 0.0
  %5397 = vmatpush1.msra.mxu0 0.0
  %5398 = vmatprep.subr.mxu0 0.0
  %5399 = vmatpush1.msra.mxu0 0.0
  %5400 = vmatprep.subr.mxu0 0.0
  %5401 = vmatpush1.msra.mxu0 0.0
  %5402 = vmatprep.subr.mxu0 0.0
  %5403 = vmatpush1.msra.mxu0 0.0
  %5404 = vmatprep.subr.mxu0 0.0
  %5405 = vmatpush1.msra.mxu0 0.0
  %5406 = vmatprep.subr.mxu0 0.0
  %5407 = vmatpush1.msra.mxu0 0.0
  %5408 = vmatprep.subr.mxu0 0.0
  %5409 = vmatpush1.msra.mxu0 0.0
  %5410 = vmatprep.subr.mxu0 0.0
  %5411 = vmatpush1.msra.mxu0 0.0
  %5412 = vmatprep.subr.mxu0 0.0
  %5413 = vmatpush1.msra.mxu0 0.0
  %5414 = vmatprep.subr.mxu0 0.0
  %5415 = vmatpush1.msra.mxu0 0.0
  %5416 = vmatprep.subr.mxu0 0.0
  %5417 = vmatpush1.msra.mxu0 0.0
  %5418 = vmatprep.subr.mxu0 0.0
  %5419 = vmatpush1.msra.mxu0 0.0
  %5420 = vmatprep.mubr.f32.mxu0 0.0
  %5421 = vmatmul.mubr.f32.gmra.mrb[0].mxu0 %v5354
  %v5422 = vpop.f32.mrb[0].mxu0
  %v5423 = vadd.f32 0.0, %v5422
  %v5424 = vpop.f32.mrb[0].mxu0
  %5425 = vdwg.mxu0
  %v5427 = vsel %vm896, %v4906, 0
  %5429 = vmatprep.subr.mxu0 0.0
  %5430 = vmatpush1.msra.mxu0 %v3132
  %5431 = vmatprep.subr.mxu0 0.0
  %5432 = vmatpush1.msra.mxu0 0.0
  %5433 = vmatprep.subr.mxu0 0.0
  %5434 = vmatpush1.msra.mxu0 0.0
  %5435 = vmatprep.subr.mxu0 0.0
  %5436 = vmatpush1.msra.mxu0 0.0
  %5437 = vmatprep.subr.mxu0 0.0
  %5438 = vmatpush1.msra.mxu0 0.0
  %5439 = vmatprep.subr.mxu0 0.0
  %5440 = vmatpush1.msra.mxu0 0.0
  %5441 = vmatprep.subr.mxu0 0.0
  %5442 = vmatpush1.msra.mxu0 0.0
  %5443 = vmatprep.subr.mxu0 0.0
  %5444 = vmatpush1.msra.mxu0 0.0
  %5445 = vmatprep.subr.mxu0 0.0
  %5446 = vmatpush1.msra.mxu0 0.0
  %5447 = vmatprep.subr.mxu0 0.0
  %5448 = vmatpush1.msra.mxu0 0.0
  %5449 = vmatprep.subr.mxu0 0.0
  %5450 = vmatpush1.msra.mxu0 0.0
  %5451 = vmatprep.subr.mxu0 0.0
  %5452 = vmatpush1.msra.mxu0 0.0
  %5453 = vmatprep.subr.mxu0 0.0
  %5454 = vmatpush1.msra.mxu0 0.0
  %5455 = vmatprep.subr.mxu0 0.0
  %5456 = vmatpush1.msra.mxu0 0.0
  %5457 = vmatprep.subr.mxu0 0.0
  %5458 = vmatpush1.msra.mxu0 0.0
  %5459 = vmatprep.subr.mxu0 0.0
  %5460 = vmatpush1.msra.mxu0 0.0
  %5461 = vmatprep.subr.mxu0 0.0
  %5462 = vmatpush1.msra.mxu0 0.0
  %5463 = vmatprep.subr.mxu0 0.0
  %5464 = vmatpush1.msra.mxu0 0.0
  %5465 = vmatprep.subr.mxu0 0.0
  %5466 = vmatpush1.msra.mxu0 0.0
  %5467 = vmatprep.subr.mxu0 0.0
  %5468 = vmatpush1.msra.mxu0 0.0
  %5469 = vmatprep.subr.mxu0 0.0
  %5470 = vmatpush1.msra.mxu0 0.0
  %5471 = vmatprep.subr.mxu0 0.0
  %5472 = vmatpush1.msra.mxu0 0.0
  %5473 = vmatprep.subr.mxu0 0.0
  %5474 = vmatpush1.msra.mxu0 0.0
  %5475 = vmatprep.subr.mxu0 0.0
  %5476 = vmatpush1.msra.mxu0 0.0
  %5477 = vmatprep.subr.mxu0 0.0
  %5478 = vmatpush1.msra.mxu0 0.0
  %5479 = vmatprep.subr.mxu0 0.0
  %5480 = vmatpush1.msra.mxu0 0.0
  %5481 = vmatprep.subr.mxu0 0.0
  %5482 = vmatpush1.msra.mxu0 0.0
  %5483 = vmatprep.subr.mxu0 0.0
  %5484 = vmatpush1.msra.mxu0 0.0
  %5485 = vmatprep.subr.mxu0 0.0
  %5486 = vmatpush1.msra.mxu0 0.0
  %5487 = vmatprep.subr.mxu0 0.0
  %5488 = vmatpush1.msra.mxu0 0.0
  %5489 = vmatprep.subr.mxu0 0.0
  %5490 = vmatpush1.msra.mxu0 0.0
  %5491 = vmatprep.subr.mxu0 0.0
  %5492 = vmatpush1.msra.mxu0 0.0
  %5493 = vmatprep.mubr.f32.mxu0 0.0
  %5494 = vmatmul.mubr.f32.gmra.mrb[0].mxu0 %v5427
  %v5495 = vpop.f32.mrb[0].mxu0
  %v5496 = vadd.f32 0.0, %v5495
  %v5497 = vpop.f32.mrb[0].mxu0
  %5498 = vdwg.mxu0
  %v5500 = vsel %vm896, %v4982, 0
  %5502 = vmatprep.subr.mxu0 0.0
  %5503 = vmatpush1.msra.mxu0 %v3133
  %5504 = vmatprep.subr.mxu0 0.0
  %5505 = vmatpush1.msra.mxu0 0.0
  %5506 = vmatprep.subr.mxu0 0.0
  %5507 = vmatpush1.msra.mxu0 0.0
  %5508 = vmatprep.subr.mxu0 0.0
  %5509 = vmatpush1.msra.mxu0 0.0
  %5510 = vmatprep.subr.mxu0 0.0
  %5511 = vmatpush1.msra.mxu0 0.0
  %5512 = vmatprep.subr.mxu0 0.0
  %5513 = vmatpush1.msra.mxu0 0.0
  %5514 = vmatprep.subr.mxu0 0.0
  %5515 = vmatpush1.msra.mxu0 0.0
  %5516 = vmatprep.subr.mxu0 0.0
  %5517 = vmatpush1.msra.mxu0 0.0
  %5518 = vmatprep.subr.mxu0 0.0
  %5519 = vmatpush1.msra.mxu0 0.0
  %5520 = vmatprep.subr.mxu0 0.0
  %5521 = vmatpush1.msra.mxu0 0.0
  %5522 = vmatprep.subr.mxu0 0.0
  %5523 = vmatpush1.msra.mxu0 0.0
  %5524 = vmatprep.subr.mxu0 0.0
  %5525 = vmatpush1.msra.mxu0 0.0
  %5526 = vmatprep.subr.mxu0 0.0
  %5527 = vmatpush1.msra.mxu0 0.0
  %5528 = vmatprep.subr.mxu0 0.0
  %5529 = vmatpush1.msra.mxu0 0.0
  %5530 = vmatprep.subr.mxu0 0.0
  %5531 = vmatpush1.msra.mxu0 0.0
  %5532 = vmatprep.subr.mxu0 0.0
  %5533 = vmatpush1.msra.mxu0 0.0
  %5534 = vmatprep.subr.mxu0 0.0
  %5535 = vmatpush1.msra.mxu0 0.0
  %5536 = vmatprep.subr.mxu0 0.0
  %5537 = vmatpush1.msra.mxu0 0.0
  %5538 = vmatprep.subr.mxu0 0.0
  %5539 = vmatpush1.msra.mxu0 0.0
  %5540 = vmatprep.subr.mxu0 0.0
  %5541 = vmatpush1.msra.mxu0 0.0
  %5542 = vmatprep.subr.mxu0 0.0
  %5543 = vmatpush1.msra.mxu0 0.0
  %5544 = vmatprep.subr.mxu0 0.0
  %5545 = vmatpush1.msra.mxu0 0.0
  %5546 = vmatprep.subr.mxu0 0.0
  %5547 = vmatpush1.msra.mxu0 0.0
  %5548 = vmatprep.subr.mxu0 0.0
  %5549 = vmatpush1.msra.mxu0 0.0
  %5550 = vmatprep.subr.mxu0 0.0
  %5551 = vmatpush1.msra.mxu0 0.0
  %5552 = vmatprep.subr.mxu0 0.0
  %5553 = vmatpush1.msra.mxu0 0.0
  %5554 = vmatprep.subr.mxu0 0.0
  %5555 = vmatpush1.msra.mxu0 0.0
  %5556 = vmatprep.subr.mxu0 0.0
  %5557 = vmatpush1.msra.mxu0 0.0
  %5558 = vmatprep.subr.mxu0 0.0
  %5559 = vmatpush1.msra.mxu0 0.0
  %5560 = vmatprep.subr.mxu0 0.0
  %5561 = vmatpush1.msra.mxu0 0.0
  %5562 = vmatprep.subr.mxu0 0.0
  %5563 = vmatpush1.msra.mxu0 0.0
  %5564 = vmatprep.subr.mxu0 0.0
  %5565 = vmatpush1.msra.mxu0 0.0
  %5566 = vmatprep.mubr.f32.mxu0 0.0
  %5567 = vmatmul.mubr.f32.gmra.mrb[0].mxu0 %v5500
  %v5568 = vpop.f32.mrb[0].mxu0
  %v5569 = vadd.f32 0.0, %v5568
  %v5570 = vpop.f32.mrb[0].mxu0
  %5571 = vdwg.mxu0
  %v5573 = vsel %vm896, %v5058, 0
  %5575 = vmatprep.subr.mxu0 0.0
  %5576 = vmatpush1.msra.mxu0 %v3134
  %5577 = vmatprep.subr.mxu0 0.0
  %5578 = vmatpush1.msra.mxu0 0.0
  %5579 = vmatprep.subr.mxu0 0.0
  %5580 = vmatpush1.msra.mxu0 0.0
  %5581 = vmatprep.subr.mxu0 0.0
  %5582 = vmatpush1.msra.mxu0 0.0
  %5583 = vmatprep.subr.mxu0 0.0
  %5584 = vmatpush1.msra.mxu0 0.0
  %5585 = vmatprep.subr.mxu0 0.0
  %5586 = vmatpush1.msra.mxu0 0.0
  %5587 = vmatprep.subr.mxu0 0.0
  %5588 = vmatpush1.msra.mxu0 0.0
  %5589 = vmatprep.subr.mxu0 0.0
  %5590 = vmatpush1.msra.mxu0 0.0
  %5591 = vmatprep.subr.mxu0 0.0
  %5592 = vmatpush1.msra.mxu0 0.0
  %5593 = vmatprep.subr.mxu0 0.0
  %5594 = vmatpush1.msra.mxu0 0.0
  %5595 = vmatprep.subr.mxu0 0.0
  %5596 = vmatpush1.msra.mxu0 0.0
  %5597 = vmatprep.subr.mxu0 0.0
  %5598 = vmatpush1.msra.mxu0 0.0
  %5599 = vmatprep.subr.mxu0 0.0
  %5600 = vmatpush1.msra.mxu0 0.0
  %5601 = vmatprep.subr.mxu0 0.0
  %5602 = vmatpush1.msra.mxu0 0.0
  %5603 = vmatprep.subr.mxu0 0.0
  %5604 = vmatpush1.msra.mxu0 0.0
  %5605 = vmatprep.subr.mxu0 0.0
  %5606 = vmatpush1.msra.mxu0 0.0
  %5607 = vmatprep.subr.mxu0 0.0
  %5608 = vmatpush1.msra.mxu0 0.0
  %5609 = vmatprep.subr.mxu0 0.0
  %5610 = vmatpush1.msra.mxu0 0.0
  %5611 = vmatprep.subr.mxu0 0.0
  %5612 = vmatpush1.msra.mxu0 0.0
  %5613 = vmatprep.subr.mxu0 0.0
  %5614 = vmatpush1.msra.mxu0 0.0
  %5615 = vmatprep.subr.mxu0 0.0
  %5616 = vmatpush1.msra.mxu0 0.0
  %5617 = vmatprep.subr.mxu0 0.0
  %5618 = vmatpush1.msra.mxu0 0.0
  %5619 = vmatprep.subr.mxu0 0.0
  %5620 = vmatpush1.msra.mxu0 0.0
  %5621 = vmatprep.subr.mxu0 0.0
  %5622 = vmatpush1.msra.mxu0 0.0
  %5623 = vmatprep.subr.mxu0 0.0
  %5624 = vmatpush1.msra.mxu0 0.0
  %5625 = vmatprep.subr.mxu0 0.0
  %5626 = vmatpush1.msra.mxu0 0.0
  %5627 = vmatprep.subr.mxu0 0.0
  %5628 = vmatpush1.msra.mxu0 0.0
  %5629 = vmatprep.subr.mxu0 0.0
  %5630 = vmatpush1.msra.mxu0 0.0
  %5631 = vmatprep.subr.mxu0 0.0
  %5632 = vmatpush1.msra.mxu0 0.0
  %5633 = vmatprep.subr.mxu0 0.0
  %5634 = vmatpush1.msra.mxu0 0.0
  %5635 = vmatprep.subr.mxu0 0.0
  %5636 = vmatpush1.msra.mxu0 0.0
  %5637 = vmatprep.subr.mxu0 0.0
  %5638 = vmatpush1.msra.mxu0 0.0
  %5639 = vmatprep.mubr.f32.mxu0 0.0
  %5640 = vmatmul.mubr.f32.gmra.mrb[0].mxu0 %v5573
  %v5641 = vpop.f32.mrb[0].mxu0
  %v5642 = vadd.f32 0.0, %v5641
  %v5643 = vpop.f32.mrb[0].mxu0
  %5644 = vdwg.mxu0
  %v5645 = vadd.f32 %v5131, %v5277
  %v5646 = vadd.f32 %v5204, %v5350
  %v5647 = vadd.f32 %v5645, %v5423
  %v5648 = vadd.f32 %v5646, %v5496
  %v5649 = vadd.f32 %v5647, %v5569
  %v5650 = vadd.f32 %v5648, %v5642
  %v5651 = vlaneseq
  %v5652 = vshrl.u32 %v5651, 7
  %v5653 = vsub.s32 0, %v5652
  %v5654 = vrot.slane %v3083, %v5653
  %v5655 = vadd.f32 %v5649, %v5654
  %v5656 = vadd.f32 %v5650, %v5654
  %v5657 = vadd.f32 %v3080, %v5655
  %v5658 = vadd.f32 %v3081, %v5656
  %v5659 = vsel %vm176, %v5657, 0.0
  %5660 = vadd.xlane.f32.xlu0 %v5659
  %v5661 = vpop.xlane.xlu0 %5660
  %v5662 = vsel %vm176, %v5658, 0.0
  %5663 = vadd.xlane.f32.xlu0 %v5662
  %v5664 = vpop.xlane.xlu0 %5663
  %v5665 = vmul.f32 %v5661, %v183
  %v5666 = vmul.f32 %v5664, %v183
  %v5667 = vsub.f32 %v5657, %v5665
  %v5668 = vsub.f32 %v5658, %v5666
  %v5669 = vmul.f32 %v5667, %v5667
  %v5670 = vmul.f32 %v5668, %v5668
  %v5671 = vsel %vm176, %v5669, 0.0
  %5672 = vadd.xlane.f32.xlu0 %v5671
  %v5673 = vpop.xlane.xlu0 %5672
  %v5674 = vsel %vm176, %v5670, 0.0
  %5675 = vadd.xlane.f32.xlu0 %v5674
  %v5676 = vpop.xlane.xlu0 %5675
  %v5677 = vmul.f32 %v5673, %v183
  %v5678 = vmul.f32 %v5676, %v183
  %v5679 = vadd.f32 %v5677, 1e-12
  %v5680 = vadd.f32 %v5678, 1e-12
  %v5681 = vrsqrt.pop %v5679
  %v5682 = vrsqrt.pop %v5680
  %v5683 = vmul.f32 %v5667, %v5681
  %v5684 = vmul.f32 %v5668, %v5682
  %v5685 = vlaneseq
  %v5686 = vshrl.u32 %v5685, 7
  %v5687 = vsub.s32 1, %v5686
  %v5688 = vrot.slane %v3083, %v5687
  %v5689 = vmul.f32 %v5683, %v5688
  %v5690 = vmul.f32 %v5684, %v5688
  %v5691 = vlaneseq
  %v5692 = vshrl.u32 %v5691, 7
  %v5693 = vsub.s32 2, %v5692
  %v5694 = vrot.slane %v3083, %v5693
  %v5695 = vadd.f32 %v5689, %v5694
  %v5696 = vadd.f32 %v5690, %v5694
  %s5697 = scalar_lea.vmem %s8, 32
  %v5698 = vld [vmem:[%s5697] sm:$0xff]
  %v5699 = vld [vmem:[%s5697 + $0x8] sm:$0xff]
  %v5700 = vld [vmem:[%s5697 + $0x10] sm:$0xff]
  %v5701 = vld [vmem:[%s5697 + $0x18] sm:$0xff]
  %v5702 = vlaneseq
  %v5703 = vshrl.u32 %v5702, 7
  %v5704 = vsub.s32 3, %v5703
  %v5705 = vrot.slane %v3083, %v5704
  %v5707 = vsel %vm176, %v5695, 0
  %v5710 = vsel %vm176, %v5696, 0
  %5712 = vmatprep.subr.mxu0 0.0
  %5713 = vmatpush1.msra.mxu0 %v5698
  %5714 = vmatprep.subr.mxu0 0.0
  %5715 = vmatpush1.msra.mxu0 %v5699
  %5716 = vmatprep.subr.mxu0 0.0
  %5717 = vmatpush1.msra.mxu0 %v5700
  %5718 = vmatprep.subr.mxu0 0.0
  %5719 = vmatpush1.msra.mxu0 %v5701
  %5720 = vmatprep.subr.mxu0 0.0
  %5721 = vmatpush1.msra.mxu0 0.0
  %5722 = vmatprep.subr.mxu0 0.0
  %5723 = vmatpush1.msra.mxu0 0.0
  %5724 = vmatprep.subr.mxu0 0.0
  %5725 = vmatpush1.msra.mxu0 0.0
  %5726 = vmatprep.subr.mxu0 0.0
  %5727 = vmatpush1.msra.mxu0 0.0
  %5728 = vmatprep.subr.mxu0 0.0
  %5729 = vmatpush1.msra.mxu0 0.0
  %5730 = vmatprep.subr.mxu0 0.0
  %5731 = vmatpush1.msra.mxu0 0.0
  %5732 = vmatprep.subr.mxu0 0.0
  %5733 = vmatpush1.msra.mxu0 0.0
  %5734 = vmatprep.subr.mxu0 0.0
  %5735 = vmatpush1.msra.mxu0 0.0
  %5736 = vmatprep.subr.mxu0 0.0
  %5737 = vmatpush1.msra.mxu0 0.0
  %5738 = vmatprep.subr.mxu0 0.0
  %5739 = vmatpush1.msra.mxu0 0.0
  %5740 = vmatprep.subr.mxu0 0.0
  %5741 = vmatpush1.msra.mxu0 0.0
  %5742 = vmatprep.subr.mxu0 0.0
  %5743 = vmatpush1.msra.mxu0 0.0
  %5744 = vmatprep.subr.mxu0 0.0
  %5745 = vmatpush1.msra.mxu0 0.0
  %5746 = vmatprep.subr.mxu0 0.0
  %5747 = vmatpush1.msra.mxu0 0.0
  %5748 = vmatprep.subr.mxu0 0.0
  %5749 = vmatpush1.msra.mxu0 0.0
  %5750 = vmatprep.subr.mxu0 0.0
  %5751 = vmatpush1.msra.mxu0 0.0
  %5752 = vmatprep.subr.mxu0 0.0
  %5753 = vmatpush1.msra.mxu0 0.0
  %5754 = vmatprep.subr.mxu0 0.0
  %5755 = vmatpush1.msra.mxu0 0.0
  %5756 = vmatprep.subr.mxu0 0.0
  %5757 = vmatpush1.msra.mxu0 0.0
  %5758 = vmatprep.subr.mxu0 0.0
  %5759 = vmatpush1.msra.mxu0 0.0
  %5760 = vmatprep.subr.mxu0 0.0
  %5761 = vmatpush1.msra.mxu0 0.0
  %5762 = vmatprep.subr.mxu0 0.0
  %5763 = vmatpush1.msra.mxu0 0.0
  %5764 = vmatprep.subr.mxu0 0.0
  %5765 = vmatpush1.msra.mxu0 0.0
  %5766 = vmatprep.subr.mxu0 0.0
  %5767 = vmatpush1.msra.mxu0 0.0
  %5768 = vmatprep.subr.mxu0 0.0
  %5769 = vmatpush1.msra.mxu0 0.0
  %5770 = vmatprep.subr.mxu0 0.0
  %5771 = vmatpush1.msra.mxu0 0.0
  %5772 = vmatprep.subr.mxu0 0.0
  %5773 = vmatpush1.msra.mxu0 0.0
  %5774 = vmatprep.subr.mxu0 0.0
  %5775 = vmatpush1.msra.mxu0 0.0
  %5776 = vmatprep.mubr.f32.mxu0 0.0
  %5777 = vmatmul.mubr.f32.gmra.mrb[0].mxu0 %v5707
  %v5778 = vpop.f32.mrb[0].mxu0
  %v5779 = vadd.f32 %v5705, %v5778
  %v5780 = vpop.f32.mrb[0].mxu0
  %5781 = vmatprep.mubr.f32.mxu0 0.0
  %5782 = vmatmul.mubr.f32.gmra.mrb[0].mxu0 %v5710
  %v5783 = vpop.f32.mrb[0].mxu0
  %v5784 = vadd.f32 %v5705, %v5783
  %v5785 = vpop.f32.mrb[0].mxu0
  %5786 = vdwg.mxu0
  %v5787 = vmul.f32 %v5779, %v5779
  %v5788 = vmul.f32 %v5784, %v5784
  %v5789 = vmul.f32 %v5779, %v5787
  %v5790 = vmul.f32 %v5784, %v5788
  %v5791 = vmul.f32 %v5789, 0.044715
  %v5792 = vmul.f32 %v5790, 0.044715
  %v5793 = vadd.f32 %v5779, %v5791
  %v5794 = vadd.f32 %v5784, %v5792
  %v5795 = vmul.f32 %v5793, 0.7978846
  %v5796 = vmul.f32 %v5794, 0.7978846
  %v5797 = vtanh.pop %v5795
  %v5798 = vtanh.pop %v5796
  %v5799 = vadd.f32 %v5797, 1.0
  %v5800 = vadd.f32 %v5798, 1.0
  %v5801 = vmul.f32 %v5799, 0.5
  %v5802 = vmul.f32 %v5800, 0.5
  %v5803 = vmul.f32 %v5779, %v5801
  %v5804 = vmul.f32 %v5784, %v5802
  %s5805 = scalar_lea.vmem %s9, 64
  %v5806 = vld [vmem:[%s5805] sm:$0xff]
  %v5807 = vld [vmem:[%s5805 + $0x8] sm:$0xff]
  %v5808 = vld [vmem:[%s5805 + $0x10] sm:$0xff]
  %v5809 = vld [vmem:[%s5805 + $0x18] sm:$0xff]
  %v5810 = vld [vmem:[%s5805 + $0x20] sm:$0xff]
  %v5811 = vld [vmem:[%s5805 + $0x28] sm:$0xff]
  %v5812 = vld [vmem:[%s5805 + $0x30] sm:$0xff]
  %v5813 = vld [vmem:[%s5805 + $0x38] sm:$0xff]
  %v5814 = vlaneseq
  %v5815 = vshrl.u32 %v5814, 7
  %v5816 = vsub.s32 4, %v5815
  %v5817 = vrot.slane %v3083, %v5816
  %v5819 = vsel %vm90, %v5803, 0
  %v5822 = vsel %vm90, %v5804, 0
  %5824 = vmatprep.subr.mxu0 0.0
  %5825 = vmatpush1.msra.mxu0 %v5806
  %5826 = vmatprep.subr.mxu0 0.0
  %5827 = vmatpush1.msra.mxu0 %v5807
  %5828 = vmatprep.subr.mxu0 0.0
  %5829 = vmatpush1.msra.mxu0 %v5808
  %5830 = vmatprep.subr.mxu0 0.0
  %5831 = vmatpush1.msra.mxu0 %v5809
  %5832 = vmatprep.subr.mxu0 0.0
  %5833 = vmatpush1.msra.mxu0 %v5810
  %5834 = vmatprep.subr.mxu0 0.0
  %5835 = vmatpush1.msra.mxu0 %v5811
  %5836 = vmatprep.subr.mxu0 0.0
  %5837 = vmatpush1.msra.mxu0 %v5812
  %5838 = vmatprep.subr.mxu0 0.0
  %5839 = vmatpush1.msra.mxu0 %v5813
  %5840 = vmatprep.subr.mxu0 0.0
  %5841 = vmatpush1.msra.mxu0 0.0
  %5842 = vmatprep.subr.mxu0 0.0
  %5843 = vmatpush1.msra.mxu0 0.0
  %5844 = vmatprep.subr.mxu0 0.0
  %5845 = vmatpush1.msra.mxu0 0.0
  %5846 = vmatprep.subr.mxu0 0.0
  %5847 = vmatpush1.msra.mxu0 0.0
  %5848 = vmatprep.subr.mxu0 0.0
  %5849 = vmatpush1.msra.mxu0 0.0
  %5850 = vmatprep.subr.mxu0 0.0
  %5851 = vmatpush1.msra.mxu0 0.0
  %5852 = vmatprep.subr.mxu0 0.0
  %5853 = vmatpush1.msra.mxu0 0.0
  %5854 = vmatprep.subr.mxu0 0.0
  %5855 = vmatpush1.msra.mxu0 0.0
  %5856 = vmatprep.subr.mxu0 0.0
  %5857 = vmatpush1.msra.mxu0 0.0
  %5858 = vmatprep.subr.mxu0 0.0
  %5859 = vmatpush1.msra.mxu0 0.0
  %5860 = vmatprep.subr.mxu0 0.0
  %5861 = vmatpush1.msra.mxu0 0.0
  %5862 = vmatprep.subr.mxu0 0.0
  %5863 = vmatpush1.msra.mxu0 0.0
  %5864 = vmatprep.subr.mxu0 0.0
  %5865 = vmatpush1.msra.mxu0 0.0
  %5866 = vmatprep.subr.mxu0 0.0
  %5867 = vmatpush1.msra.mxu0 0.0
  %5868 = vmatprep.subr.mxu0 0.0
  %5869 = vmatpush1.msra.mxu0 0.0
  %5870 = vmatprep.subr.mxu0 0.0
  %5871 = vmatpush1.msra.mxu0 0.0
  %5872 = vmatprep.subr.mxu0 0.0
  %5873 = vmatpush1.msra.mxu0 0.0
  %5874 = vmatprep.subr.mxu0 0.0
  %5875 = vmatpush1.msra.mxu0 0.0
  %5876 = vmatprep.subr.mxu0 0.0
  %5877 = vmatpush1.msra.mxu0 0.0
  %5878 = vmatprep.subr.mxu0 0.0
  %5879 = vmatpush1.msra.mxu0 0.0
  %5880 = vmatprep.subr.mxu0 0.0
  %5881 = vmatpush1.msra.mxu0 0.0
  %5882 = vmatprep.subr.mxu0 0.0
  %5883 = vmatpush1.msra.mxu0 0.0
  %5884 = vmatprep.subr.mxu0 0.0
  %5885 = vmatpush1.msra.mxu0 0.0
  %5886 = vmatprep.subr.mxu0 0.0
  %5887 = vmatpush1.msra.mxu0 0.0
  %5888 = vmatprep.mubr.f32.mxu0 0.0
  %5889 = vmatmul.mubr.f32.gmra.mrb[0].mxu0 %v5819
  %v5890 = vpop.f32.mrb[0].mxu0
  %v5891 = vadd.f32 %v5817, %v5890
  %v5892 = vpop.f32.mrb[0].mxu0
  %5893 = vmatprep.mubr.f32.mxu0 0.0
  %5894 = vmatmul.mubr.f32.gmra.mrb[0].mxu0 %v5822
  %v5895 = vpop.f32.mrb[0].mxu0
  %v5896 = vadd.f32 %v5817, %v5895
  %v5897 = vpop.f32.mrb[0].mxu0
  %5898 = vdwg.mxu0
  %v5899 = vadd.f32 %v5695, %v5891
  %v5900 = vadd.f32 %v5696, %v5896
  %v5901 = vsel %vm176, %v5899, 0.0
  %5902 = vadd.xlane.f32.xlu0 %v5901
  %v5903 = vpop.xlane.xlu0 %5902
  %v5904 = vsel %vm176, %v5900, 0.0
  %5905 = vadd.xlane.f32.xlu0 %v5904
  %v5906 = vpop.xlane.xlu0 %5905
  %v5907 = vmul.f32 %v5903, %v183
  %v5908 = vmul.f32 %v5906, %v183
  %v5909 = vsub.f32 %v5899, %v5907
  %v5910 = vsub.f32 %v5900, %v5908
  %v5911 = vmul.f32 %v5909, %v5909
  %v5912 = vmul.f32 %v5910, %v5910
  %v5913 = vsel %vm176, %v5911, 0.0
  %5914 = vadd.xlane.f32.xlu0 %v5913
  %v5915 = vpop.xlane.xlu0 %5914
  %v5916 = vsel %vm176, %v5912, 0.0
  %5917 = vadd.xlane.f32.xlu0 %v5916
  %v5918 = vpop.xlane.xlu0 %5917
  %v5919 = vmul.f32 %v5915, %v183
  %v5920 = vmul.f32 %v5918, %v183
  %v5921 = vadd.f32 %v5919, 1e-12
  %v5922 = vadd.f32 %v5920, 1e-12
  %v5923 = vrsqrt.pop %v5921
  %v5924 = vrsqrt.pop %v5922
  %v5925 = vmul.f32 %v5909, %v5923
  %v5926 = vmul.f32 %v5910, %v5924
  %v5927 = vlaneseq
  %v5928 = vshrl.u32 %v5927, 7
  %v5929 = vsub.s32 5, %v5928
  %v5930 = vrot.slane %v3083, %v5929
  %v5931 = vmul.f32 %v5925, %v5930
  %v5932 = vmul.f32 %v5926, %v5930
  %v5933 = vlaneseq
  %v5934 = vshrl.u32 %v5933, 7
  %v5935 = vsub.s32 6, %v5934
  %v5936 = vrot.slane %v3083, %v5935
  %v5937 = vadd.f32 %v5931, %v5936
  %v5938 = vadd.f32 %v5932, %v5936
  %v5939 = vld [vmem:[%s10] sm:$0x3]
  %v5940 = vld [vmem:[%s10 + $0x2] sm:$0x3]
  %v5941 = vld [vmem:[%s11] sm:$0x3]
  %5943 = vset.pattern.permute.xlu0 0
  %5944 = vperm.xlu0 %5943, %v5941
  %v5945 = vpop.permute.xlu0 %5944
  %v5948 = vsel %vm176, %v5939, 0
  %v5951 = vsel %vm176, %v5937, 0
  %5953 = vmatprep.subr.mxu0 0.0
  %5954 = vmatpush1.xpose.msra.mxu0 %v5951
  %5955 = vmatprep.subr.mxu0 0.0
  %5956 = vmatpush1.xpose.msra.mxu0 0.0
  %5957 = vmatprep.subr.mxu0 0.0
  %5958 = vmatpush1.xpose.msra.mxu0 0.0
  %5959 = vmatprep.subr.mxu0 0.0
  %5960 = vmatpush1.xpose.msra.mxu0 0.0
  %5961 = vmatprep.subr.mxu0 0.0
  %5962 = vmatpush1.xpose.msra.mxu0 0.0
  %5963 = vmatprep.subr.mxu0 0.0
  %5964 = vmatpush1.xpose.msra.mxu0 0.0
  %5965 = vmatprep.subr.mxu0 0.0
  %5966 = vmatpush1.xpose.msra.mxu0 0.0
  %5967 = vmatprep.subr.mxu0 0.0
  %5968 = vmatpush1.xpose.msra.mxu0 0.0
  %5969 = vmatprep.subr.mxu0 0.0
  %5970 = vmatpush1.xpose.msra.mxu0 0.0
  %5971 = vmatprep.subr.mxu0 0.0
  %5972 = vmatpush1.xpose.msra.mxu0 0.0
  %5973 = vmatprep.subr.mxu0 0.0
  %5974 = vmatpush1.xpose.msra.mxu0 0.0
  %5975 = vmatprep.subr.mxu0 0.0
  %5976 = vmatpush1.xpose.msra.mxu0 0.0
  %5977 = vmatprep.subr.mxu0 0.0
  %5978 = vmatpush1.xpose.msra.mxu0 0.0
  %5979 = vmatprep.subr.mxu0 0.0
  %5980 = vmatpush1.xpose.msra.mxu0 0.0
  %5981 = vmatprep.subr.mxu0 0.0
  %5982 = vmatpush1.xpose.msra.mxu0 0.0
  %5983 = vmatprep.subr.mxu0 0.0
  %5984 = vmatpush1.xpose.msra.mxu0 0.0
  %5985 = vmatprep.subr.mxu0 0.0
  %5986 = vmatpush1.xpose.msra.mxu0 0.0
  %5987 = vmatprep.subr.mxu0 0.0
  %5988 = vmatpush1.xpose.msra.mxu0 0.0
  %5989 = vmatprep.subr.mxu0 0.0
  %5990 = vmatpush1.xpose.msra.mxu0 0.0
  %5991 = vmatprep.subr.mxu0 0.0
  %5992 = vmatpush1.xpose.msra.mxu0 0.0
  %5993 = vmatprep.subr.mxu0 0.0
  %5994 = vmatpush1.xpose.msra.mxu0 0.0
  %5995 = vmatprep.subr.mxu0 0.0
  %5996 = vmatpush1.xpose.msra.mxu0 0.0
  %5997 = vmatprep.subr.mxu0 0.0
  %5998 = vmatpush1.xpose.msra.mxu0 0.0
  %5999 = vmatprep.subr.mxu0 0.0
  %6000 = vmatpush1.xpose.msra.mxu0 0.0
  %6001 = vmatprep.subr.mxu0 0.0
  %6002 = vmatpush1.xpose.msra.mxu0 0.0
  %6003 = vmatprep.subr.mxu0 0.0
  %6004 = vmatpush1.xpose.msra.mxu0 0.0
  %6005 = vmatprep.subr.mxu0 0.0
  %6006 = vmatpush1.xpose.msra.mxu0 0.0
  %6007 = vmatprep.subr.mxu0 0.0
  %6008 = vmatpush1.xpose.msra.mxu0 0.0
  %6009 = vmatprep.subr.mxu0 0.0
  %6010 = vmatpush1.xpose.msra.mxu0 0.0
  %6011 = vmatprep.subr.mxu0 0.0
  %6012 = vmatpush1.xpose.msra.mxu0 0.0
  %6013 = vmatprep.subr.mxu0 0.0
  %6014 = vmatpush1.xpose.msra.mxu0 0.0
  %6015 = vmatprep.subr.mxu0 0.0
  %6016 = vmatpush1.xpose.msra.mxu0 0.0
  %6017 = vmatprep.mubr.f32.mxu0 0.0
  %6018 = vmatmul.mubr.f32.gmra.mrb[0].mxu0 %v5948
  %v6019 = vpop.f32.mrb[0].mxu0
  %v6020 = vadd.f32 %v5945, %v6019
  %v6021 = vpop.f32.mrb[0].mxu0
  %6022 = vdwg.mxu0
  %v6024 = vsel %vm176, %v5940, 0
  %v6027 = vsel %vm176, %v5938, 0
  %6029 = vmatprep.subr.mxu0 0.0
  %6030 = vmatpush1.xpose.msra.mxu0 %v6027
  %6031 = vmatprep.subr.mxu0 0.0
  %6032 = vmatpush1.xpose.msra.mxu0 0.0
  %6033 = vmatprep.subr.mxu0 0.0
  %6034 = vmatpush1.xpose.msra.mxu0 0.0
  %6035 = vmatprep.subr.mxu0 0.0
  %6036 = vmatpush1.xpose.msra.mxu0 0.0
  %6037 = vmatprep.subr.mxu0 0.0
  %6038 = vmatpush1.xpose.msra.mxu0 0.0
  %6039 = vmatprep.subr.mxu0 0.0
  %6040 = vmatpush1.xpose.msra.mxu0 0.0
  %6041 = vmatprep.subr.mxu0 0.0
  %6042 = vmatpush1.xpose.msra.mxu0 0.0
  %6043 = vmatprep.subr.mxu0 0.0
  %6044 = vmatpush1.xpose.msra.mxu0 0.0
  %6045 = vmatprep.subr.mxu0 0.0
  %6046 = vmatpush1.xpose.msra.mxu0 0.0
  %6047 = vmatprep.subr.mxu0 0.0
  %6048 = vmatpush1.xpose.msra.mxu0 0.0
  %6049 = vmatprep.subr.mxu0 0.0
  %6050 = vmatpush1.xpose.msra.mxu0 0.0
  %6051 = vmatprep.subr.mxu0 0.0
  %6052 = vmatpush1.xpose.msra.mxu0 0.0
  %6053 = vmatprep.subr.mxu0 0.0
  %6054 = vmatpush1.xpose.msra.mxu0 0.0
  %6055 = vmatprep.subr.mxu0 0.0
  %6056 = vmatpush1.xpose.msra.mxu0 0.0
  %6057 = vmatprep.subr.mxu0 0.0
  %6058 = vmatpush1.xpose.msra.mxu0 0.0
  %6059 = vmatprep.subr.mxu0 0.0
  %6060 = vmatpush1.xpose.msra.mxu0 0.0
  %6061 = vmatprep.subr.mxu0 0.0
  %6062 = vmatpush1.xpose.msra.mxu0 0.0
  %6063 = vmatprep.subr.mxu0 0.0
  %6064 = vmatpush1.xpose.msra.mxu0 0.0
  %6065 = vmatprep.subr.mxu0 0.0
  %6066 = vmatpush1.xpose.msra.mxu0 0.0
  %6067 = vmatprep.subr.mxu0 0.0
  %6068 = vmatpush1.xpose.msra.mxu0 0.0
  %6069 = vmatprep.subr.mxu0 0.0
  %6070 = vmatpush1.xpose.msra.mxu0 0.0
  %6071 = vmatprep.subr.mxu0 0.0
  %6072 = vmatpush1.xpose.msra.mxu0 0.0
  %6073 = vmatprep.subr.mxu0 0.0
  %6074 = vmatpush1.xpose.msra.mxu0 0.0
  %6075 = vmatprep.subr.mxu0 0.0
  %6076 = vmatpush1.xpose.msra.mxu0 0.0
  %6077 = vmatprep.subr.mxu0 0.0
  %6078 = vmatpush1.xpose.msra.mxu0 0.0
  %6079 = vmatprep.subr.mxu0 0.0
  %6080 = vmatpush1.xpose.msra.mxu0 0.0
  %6081 = vmatprep.subr.mxu0 0.0
  %6082 = vmatpush1.xpose.msra.mxu0 0.0
  %6083 = vmatprep.subr.mxu0 0.0
  %6084 = vmatpush1.xpose.msra.mxu0 0.0
  %6085 = vmatprep.subr.mxu0 0.0
  %6086 = vmatpush1.xpose.msra.mxu0 0.0
  %6087 = vmatprep.subr.mxu0 0.0
  %6088 = vmatpush1.xpose.msra.mxu0 0.0
  %6089 = vmatprep.subr.mxu0 0.0
  %6090 = vmatpush1.xpose.msra.mxu0 0.0
  %6091 = vmatprep.subr.mxu0 0.0
  %6092 = vmatpush1.xpose.msra.mxu0 0.0
  %6093 = vmatprep.mubr.f32.mxu0 0.0
  %6094 = vmatmul.mubr.f32.gmra.mrb[0].mxu0 %v6024
  %v6095 = vpop.f32.mrb[0].mxu0
  %v6096 = vadd.f32 %v5945, %v6095
  %v6097 = vpop.f32.mrb[0].mxu0
  %6098 = vdwg.mxu0
  %vm6099 = vcmask 58368
  %v6100 = vsel %vm6099, %v6020, -inf
  %6101 = vmax.xlane.f32.xlu0 %v6100
  %v6102 = vpop.xlane.xlu0 %6101
  %v6103 = vsel %vm6099, %v6096, -inf
  %6104 = vmax.xlane.f32.xlu0 %v6103
  %v6105 = vpop.xlane.xlu0 %6104
  %v6106 = vsub.f32 %v6020, %v6102
  %v6107 = vsub.f32 %v6096, %v6105
  %v6108 = vmul.f32 %v6106, 1.442695
  %v6109 = vpow.pop %v6108
  %v6110 = vmul.f32 %v6107, 1.442695
  %v6111 = vpow.pop %v6110
  %v6112 = vsel %vm6099, %v6109, 0.0
  %6113 = vadd.xlane.f32.xlu0 %v6112
  %v6114 = vpop.xlane.xlu0 %6113
  %v6115 = vsel %vm6099, %v6111, 0.0
  %6116 = vadd.xlane.f32.xlu0 %v6115
  %v6117 = vpop.xlane.xlu0 %6116
  %v6118 = vlog2.pop %v6114
  %v6119 = vmul.f32 %v6118, 0.6931472
  %v6120 = vlog2.pop %v6117
  %v6121 = vmul.f32 %v6120, 0.6931472
  %v6122 = vadd.f32 %v6119, %v6102
  %v6123 = vadd.f32 %v6121, %v6105
  %v6124 = vld [vmem:[%s1] sm:$0x3]
  %v6125 = vld [vmem:[%s1 + $0x2] sm:$0x3]
  %6126 = vset.pattern.permute.xlu0 0
  %6127 = vperm.xlu0 %6126, %v6124
  %v6128 = vpop.permute.xlu0 %6127
  %6129 = vset.pattern.permute.xlu0 0
  %6130 = vperm.xlu0 %6129, %v6125
  %v6131 = vpop.permute.xlu0 %6130
  %vm6132 = vcmp.eq.s32.totalorder %v44, %v6128
  %vm6133 = vcmp.eq.s32.totalorder %v44, %v6131
  %v6134 = vsel %vm6132, 1, 0
  %v6135 = vsel %vm6133, 1, 0
  %v6136 = vcvt.s32.f32 %v6134
  %v6137 = vcvt.s32.f32 %v6135
  %v6138 = vsub.f32 %v6020, %v6122
  %v6139 = vsub.f32 %v6096, %v6123
  %v6140 = vmul.f32 %v6136, %v6138
  %v6141 = vmul.f32 %v6137, %v6139
  %v6142 = vsel %vm6099, %v6140, 0.0
  %6143 = vadd.xlane.f32.xlu0 %v6142
  %v6144 = vpop.xlane.xlu0 %6143
  %v6145 = vsel %vm6099, %v6141, 0.0
  %6146 = vadd.xlane.f32.xlu0 %v6145
  %v6147 = vpop.xlane.xlu0 %6146
  %v6148 = vsub.f32 0.0, %v6144
  %v6149 = vsub.f32 0.0, %v6147
  %vm6150 = vcmask 1041408
  %v6151 = vsel %vm6150, %v6148, 0.0
  %v6152 = vrot.slane %v6151, 4
  %v6153 = vadd.f32 %v6151, %v6152
  %v6154 = vrot.slane %v6153, 2
  %v6155 = vadd.f32 %v6153, %v6154
  %v6156 = vrot.slane %v6155, 1
  %v6157 = vadd.f32 %v6155, %v6156
  %v6158 = vsel %vm6150, %v6149, 0.0
  %v6159 = vrot.slane %v6158, 4
  %v6160 = vadd.f32 %v6158, %v6159
  %v6161 = vrot.slane %v6160, 2
  %v6162 = vadd.f32 %v6160, %v6161
  %v6163 = vrot.slane %v6162, 1
  %v6164 = vadd.f32 %v6162, %v6163
  %v6165 = vadd.f32 %v6157, %v6164
  %v6166 = vmul.f32 %v6165, 0.25
  %v6167 = vsel %vm896, %v6020, 0.0
  %v6168 = vsel %vm896, %v6096, 0.0
  %v6169 = vadd.f32 %v6166, 0.0
  %v6170 = vsel %vm6150, %v6167, %v6169
  %v6171 = vsel %vm6150, %v6168, %v6169
  %vm6172 = vcmask 1042432
  %v6173 = vsel %vm6172, %v6170, 0.0
  %v6174 = vsel %vm6172, %v6171, 0.0
  %6175 = vst [vmem:[%s12] sm:$0xff] %v6173
  %6176 = vst [vmem:[%s12 + $0x8] sm:$0xff] %v6174
  // Predicated region
  $region50: #{bert_qa_forward.1} parent=0 // pred_check
    _
  $region51: #{bert_qa_forward.1} parent=0 // pred_check_branch
    %6178 = sbr.rel (0) target = $region53
  $region52: #{bert_qa_forward.1} parent=0 // pred_region
    _
  $region53: #{bert_qa_forward.1} parent=0 // pred_fallthru
    _
  // Predicated region
  $region54: #{bert_qa_forward.1} parent=0 // pred_check
    _
  $region55: #{bert_qa_forward.1} parent=0 // pred_check_branch
    %6180 = sbr.rel (0) target = $region57
  $region56: #{bert_qa_forward.1} parent=0 // pred_region
    _
  $region57: #{bert_qa_forward.1} parent=0 // pred_fallthru
    _

</llo_original>
